<compile_context>
chip_gen: v7x
topology: tpu7x:2x2x1
jax: 0.10.0
libtpu: 0.0.40
codegen_flags: <defaults>
</compile_context>

<pallas_src>
import jax
import jax.numpy as jnp
from jax.experimental import pallas as pl
from jax.experimental.pallas import tpu as pltpu

EMB_DIM = 512
STEM_CH = 64
IMG_HW = 112
ROW_TILE = 56          # 112 % 56 == 0 -> 2 row strips per image
K_TAPS = 27            # 3x3 taps * 3 input channels
K_PAD = 32             # contraction depth padded to 32 lanes


# ------------------------------ Pallas kernel --------------------------------

def _fused_backbone_kernel(x_ref, wconv_ref, bconv_ref, alpha_ref,
                           wfc_ref, bfc_ref, o_ref, acc_ref):
    """Per row strip: one K=32 matmul (3x3 conv, normalization folded) + bias
    + PReLU, with the global-average-pool partial sum kept in a VMEM scratch.
    The FC(512) projection runs only on the last strip of each image.

    x_ref:     (ROW_TILE, W, 32) bf16  pre-packed shifted taps (raw pixels)
    wconv_ref: (32, COUT)        bf16  folded conv weights (rows 27..31 zero)
    bconv_ref: (1, COUT)         f32   folded conv bias
    alpha_ref: (1, COUT)         f32   PReLU slopes
    wfc_ref:   (COUT, EMB)       bf16  embedding projection
    bfc_ref:   (1, EMB)          f32
    o_ref:     (1, EMB)          f32   embedding for this image
    acc_ref:   (1, COUT)         f32   GAP accumulator scratch
    """
    j = pl.program_id(1)

    @pl.when(j == 0)
    def _():
        acc_ref[...] = jnp.zeros_like(acc_ref)

    rows, w, k = x_ref.shape
    # Free leading-dim merge (lane dim unchanged), then ONE MXU contraction.
    slab = x_ref[...].reshape(rows * w, k)                       # bf16
    conv = jnp.dot(slab, wconv_ref[...],
                   preferred_element_type=jnp.float32)           # (rows*W, 64)
    conv += bconv_ref[...]
    act = jnp.where(conv > 0.0, conv, conv * alpha_ref[...])     # PReLU
    # Global-average-pool partial sum; the feature map never touches HBM.
    acc_ref[...] += jnp.sum(act, axis=0, keepdims=True)          # (1, COUT)

    @pl.when(j == pl.num_programs(1) - 1)
    def _():
        pooled = (acc_ref[...] * (1.0 / float(IMG_HW * IMG_HW))
                  ).astype(jnp.bfloat16)                         # GAP
        emb = jnp.dot(pooled, wfc_ref[...],
                      preferred_element_type=jnp.float32) + bfc_ref[...]
        o_ref[...] = emb                                         # (1, 512)


# ------------------------------- wrapper --------------------------------------

def _forward_impl(imgs_nchw, wconv, bconv, alpha, wfc, bfc):
    n, c, h, w = imgs_nchw.shape
    cout = wconv.shape[1]
    emb_dim = wfc.shape[1]

    # Tap pre-pack (cheap one-pass XLA prep on the small raw image):
    # NCHW -> NHWC, SAME pad with raw 127.5 (== 0 after folded normalization),
    # stack the 9 shifted views along the channel axis, pad 27 -> 32 lanes,
    # cast to bf16.  Result: (N, H, W, 32) bf16, ~0.8 MB per image.
    x = jnp.transpose(imgs_nchw, (0, 2, 3, 1))
    xp = jnp.pad(x, ((0, 0), (1, 1), (1, 1), (0, 0)), constant_values=127.5)
    taps = [xp[:, di:di + h, dj:dj + w, :]
            for di in range(3) for dj in range(3)]
    x_taps = jnp.concatenate(taps, axis=-1)                      # (N,H,W,27)
    x_taps = jnp.pad(x_taps, ((0, 0), (0, 0), (0, 0), (0, K_PAD - K_TAPS)))
    x_taps = x_taps.astype(jnp.bfloat16)                         # (N,H,W,32)

    n_row_blk = h // ROW_TILE
    emb = pl.pallas_call(
        _fused_backbone_kernel,
        out_shape=jax.ShapeDtypeStruct((n, 1, emb_dim), jnp.float32),
        grid=(n, n_row_blk),
        in_specs=[
            pl.BlockSpec((None, ROW_TILE, w, K_PAD), lambda i, j: (i, j, 0, 0)),
            pl.BlockSpec((K_PAD, cout), lambda i, j: (0, 0)),
            pl.BlockSpec((1, cout), lambda i, j: (0, 0)),
            pl.BlockSpec((1, cout), lambda i, j: (0, 0)),
            pl.BlockSpec((cout, emb_dim), lambda i, j: (0, 0)),
            pl.BlockSpec((1, emb_dim), lambda i, j: (0, 0)),
        ],
        out_specs=pl.BlockSpec((None, 1, emb_dim), lambda i, j: (i, 0, 0)),
        scratch_shapes=[pltpu.VMEM((1, cout), jnp.float32)],
        compiler_params=pltpu.CompilerParams(
            dimension_semantics=("parallel", "arbitrary")),
    )(x_taps, wconv, bconv, alpha, wfc, bfc)
    return emb.reshape(n, emb_dim)


_forward = jax.jit(_forward_impl)


# -------------------------------- model ---------------------------------------

class RetinafaceRecognitionModelPallas:
    """Deterministic stand-in for the ONNX ArcFace recognition backbone."""

    def __init__(self, in_channels=3, stem_channels=STEM_CH, emb_dim=EMB_DIM,
                 seed=42):
        key = jax.random.PRNGKey(seed)
        k1, k2, k3, k4 = jax.random.split(key, 4)
        fan_in = 9 * in_channels
        # Unfolded f32 parameters (kept for the pure-JAX reference check).
        self.conv_w = (jax.random.normal(k1, (9, in_channels, stem_channels),
                                         jnp.float32) / jnp.sqrt(fan_in))
        self.conv_b = jax.random.normal(k2, (stem_channels,), jnp.float32) * 0.01
        self.prelu_a = jnp.full((stem_channels,), 0.25, jnp.float32)
        self.fc_w = (jax.random.normal(k3, (stem_channels, emb_dim), jnp.float32)
                     / jnp.sqrt(stem_channels))
        self.fc_b = jax.random.normal(k4, (emb_dim,), jnp.float32) * 0.01

        # Fold (x - 127.5)/127.5 into the conv: W' = W/127.5, b' = b - sum(W),
        # then pack taps row-major ((di*3+dj)*C + c) and zero-pad K 27 -> 32.
        w_folded = (self.conv_w / 127.5).reshape(9 * in_channels, stem_channels)
        w_packed = jnp.pad(w_folded, ((0, K_PAD - 9 * in_channels), (0, 0)))
        self.wconv_packed = w_packed.astype(jnp.bfloat16)        # (32, 64)
        self.bconv_folded = (self.conv_b
                             - self.conv_w.sum(axis=(0, 1))).reshape(1, stem_channels)
        self.alpha2d = self.prelu_a.reshape(1, stem_channels)
        self.wfc_bf16 = self.fc_w.astype(jnp.bfloat16)
        self.bfc2d = self.fc_b.reshape(1, emb_dim)

    def __call__(self, imgs_crop):
        # TODO(synk): AlignCropModel (face detection + alignment) has no clean
        # Pallas equivalent; inputs are assumed to be aligned 112x112 crops.
        # TODO(synk): the real IResNet ONNX backbone is an opaque graph; it is
        # represented by a conv-stem -> GAP -> FC(512) stand-in with the
        # module's exact pre-processing semantics.
        return _forward(imgs_crop, self.wconv_packed, self.bconv_folded,
                        self.alpha2d, self.wfc_bf16, self.bfc2d)

    def reference(self, imgs_crop):
        """Pure-JAX f32 reference of the same forward (unfolded path)."""
        x = jnp.transpose(imgs_crop, (0, 2, 3, 1))
        x = (x - 127.5) / 127.5
        xp = jnp.pad(x, ((0, 0), (1, 1), (1, 1), (0, 0)))
        n, hp, wp, _ = xp.shape
        h, w = hp - 2, wp - 2
        conv = jnp.zeros((n, h, w, self.conv_w.shape[-1]), jnp.float32)
        for di in range(3):
            for dj in range(3):
                conv = conv + jnp.einsum(
                    'nhwc,co->nhwo', xp[:, di:di + h, dj:dj + w, :],
                    self.conv_w[di * 3 + dj])
        conv = conv + self.conv_b
        act = jnp.where(conv > 0.0, conv, conv * self.prelu_a)
        pooled = act.mean(axis=(1, 2))
        return pooled @ self.fc_w + self.fc_b


# --------------------------------- main ----------------------------------------

if __name__ == "__main__":
    # Aligned face crops as AlignCropModel would produce: N x 3 x 112 x 112,
    # uint8-range pixel values stored as float32 (PyTorch NCHW convention).
    key = jax.random.PRNGKey(0)
    imgs = jax.random.uniform(key, (2, 3, IMG_HW, IMG_HW), jnp.float32,
                              minval=0.0, maxval=255.0)

    model = RetinafaceRecognitionModelPallas()
    emb = jax.block_until_ready(model(imgs))

    assert emb.shape == (2, EMB_DIM), emb.shape
    assert emb.dtype == jnp.float32
    assert bool(jnp.all(jnp.isfinite(emb)))

    ref = jax.block_until_ready(model.reference(imgs))
    max_err = float(jnp.max(jnp.abs(emb - ref)))
    assert max_err < 5e-2, f"max abs err vs reference: {max_err}"

    print("KERNEL_OK")
</pallas_src>

<mosaic_0001>
module attributes {stable_mosaic.version = 11 : i64} {
  func.func @_fused_backbone_kernel(%arg0: i32, %arg1: i32, %arg2: memref<1x56x112x32xbf16, #tpu.memory_space<vmem>>, %arg3: memref<32x64xbf16, #tpu.memory_space<vmem>>, %arg4: memref<1x64xf32, #tpu.memory_space<vmem>>, %arg5: memref<1x64xf32, #tpu.memory_space<vmem>>, %arg6: memref<64x512xbf16, #tpu.memory_space<vmem>>, %arg7: memref<1x512xf32, #tpu.memory_space<vmem>>, %arg8: memref<1x1x512xf32, #tpu.memory_space<vmem>>, %arg9: memref<1x64xf32, #tpu.memory_space<vmem>>) attributes {dimension_semantics = [#tpu.dimension_semantics<parallel>, #tpu.dimension_semantics<arbitrary>], iteration_bounds = array<i64: 2, 2>, scalar_prefetch = 0 : i64, scratch_operands = 1 : i64, tpu.core_type = #tpu.core_type<tc>, window_params = [{transform_indices = @transform_0, window_bounds = array<i64: 1, 56, 112, 32>}, {pipeline_mode = #tpu.pipeline_mode<synchronous>, transform_indices = @transform_1, window_bounds = array<i64: 32, 64>}, {pipeline_mode = #tpu.pipeline_mode<synchronous>, transform_indices = @transform_2, window_bounds = array<i64: 1, 64>}, {pipeline_mode = #tpu.pipeline_mode<synchronous>, transform_indices = @transform_3, window_bounds = array<i64: 1, 64>}, {pipeline_mode = #tpu.pipeline_mode<synchronous>, transform_indices = @transform_4, window_bounds = array<i64: 64, 512>}, {pipeline_mode = #tpu.pipeline_mode<synchronous>, transform_indices = @transform_5, window_bounds = array<i64: 1, 512>}, {transform_indices = @transform_6, window_bounds = array<i64: 1, 1, 512>}]} {
    %c0_i32 = arith.constant 0 : i32
    %0 = arith.cmpi eq, %arg1, %c0_i32 : i32
    %1 = arith.extui %0 : i1 to i32
    %c0_i32_0 = arith.constant 0 : i32
    %2 = arith.cmpi ne, %1, %c0_i32_0 : i32
    scf.if %2 {
      %cst_17 = arith.constant 0.000000e+00 : f32
      %25 = vector.broadcast %cst_17 : f32 to vector<1x64xf32>
      %c0_18 = arith.constant 0 : index
      %c0_19 = arith.constant 0 : index
      %26 = vector.load %arg9[%c0_18, %c0_19] : memref<1x64xf32, #tpu.memory_space<vmem>>, vector<1x64xf32>
      tpu.vector_store %arg9[%c0_18, %c0_19], %25 {strides = array<i32>} : memref<1x64xf32, #tpu.memory_space<vmem>>, vector<1x64xf32>,
    } else {
    }
    %c0 = arith.constant 0 : index
    %c0_1 = arith.constant 0 : index
    %c0_2 = arith.constant 0 : index
    %c0_3 = arith.constant 0 : index
    %3 = vector.load %arg2[%c0, %c0_1, %c0_2, %c0_3] : memref<1x56x112x32xbf16, #tpu.memory_space<vmem>>, vector<1x56x112x32xbf16>
    %4 = vector.shape_cast %3 : vector<1x56x112x32xbf16> to vector<56x112x32xbf16>
    %5 = vector.shape_cast %4 : vector<56x112x32xbf16> to vector<6272x32xbf16>
    %c0_4 = arith.constant 0 : index
    %c0_5 = arith.constant 0 : index
    %6 = vector.load %arg3[%c0_4, %c0_5] : memref<32x64xbf16, #tpu.memory_space<vmem>>, vector<32x64xbf16>
    %cst = arith.constant dense<0.000000e+00> : vector<6272x64xf32>
    %7 = tpu.matmul %5, %6, %cst {dimension_numbers = #tpu.dot_dimension_numbers<[1], [0], [0], [1], [0, 0, 1, 1], [], []>} : vector<6272x32xbf16>, vector<32x64xbf16>, vector<6272x64xf32> -> vector<6272x64xf32>
    %c0_6 = arith.constant 0 : index
    %c0_7 = arith.constant 0 : index
    %8 = vector.load %arg4[%c0_6, %c0_7] : memref<1x64xf32, #tpu.memory_space<vmem>>, vector<1x64xf32>
    %9 = vector.broadcast %8 : vector<1x64xf32> to vector<6272x64xf32>
    %10 = arith.addf %7, %9 : vector<6272x64xf32>
    %cst_8 = arith.constant 0.000000e+00 : f32
    %11 = vector.broadcast %cst_8 : f32 to vector<6272x64xf32>
    %12 = arith.cmpf ogt, %10, %11 : vector<6272x64xf32>
    %c0_9 = arith.constant 0 : index
    %c0_10 = arith.constant 0 : index
    %13 = vector.load %arg5[%c0_9, %c0_10] : memref<1x64xf32, #tpu.memory_space<vmem>>, vector<1x64xf32>
    %14 = vector.broadcast %13 : vector<1x64xf32> to vector<6272x64xf32>
    %15 = arith.mulf %10, %14 : vector<6272x64xf32>
    %16 = arith.select %12, %10, %15 : vector<6272x64xi1>, vector<6272x64xf32>
    %c0_11 = arith.constant 0 : index
    %c0_12 = arith.constant 0 : index
    %17 = vector.load %arg9[%c0_11, %c0_12] : memref<1x64xf32, #tpu.memory_space<vmem>>, vector<1x64xf32>
    %cst_13 = arith.constant dense<0.000000e+00> : vector<64xf32>
    %18 = vector.multi_reduction <add>, %16, %cst_13 [0] : vector<6272x64xf32> to vector<64xf32>
    %19 = vector.shape_cast %18 : vector<64xf32> to vector<1x64xf32>
    %20 = arith.addf %17, %19 : vector<1x64xf32>
    %c0_14 = arith.constant 0 : index
    %c0_15 = arith.constant 0 : index
    %21 = vector.load %arg9[%c0_14, %c0_15] : memref<1x64xf32, #tpu.memory_space<vmem>>, vector<1x64xf32>
    tpu.vector_store %arg9[%c0_14, %c0_15], %20 {strides = array<i32>} : memref<1x64xf32, #tpu.memory_space<vmem>>, vector<1x64xf32>,
    %c1_i32 = arith.constant 1 : i32
    %22 = arith.cmpi eq, %arg1, %c1_i32 : i32
    %23 = arith.extui %22 : i1 to i32
    %c0_i32_16 = arith.constant 0 : i32
    %24 = arith.cmpi ne, %23, %c0_i32_16 : i32
    scf.if %24 {
      %c0_17 = arith.constant 0 : index
      %c0_18 = arith.constant 0 : index
      %25 = vector.load %arg9[%c0_17, %c0_18] : memref<1x64xf32, #tpu.memory_space<vmem>>, vector<1x64xf32>
      %cst_19 = arith.constant 7.97193861E-5 : f32
      %26 = vector.broadcast %cst_19 : f32 to vector<1x64xf32>
      %27 = arith.mulf %25, %26 : vector<1x64xf32>
      %28 = arith.truncf %27 : vector<1x64xf32> to vector<1x64xbf16>
      %c0_20 = arith.constant 0 : index
      %c0_21 = arith.constant 0 : index
      %29 = vector.load %arg6[%c0_20, %c0_21] : memref<64x512xbf16, #tpu.memory_space<vmem>>, vector<64x512xbf16>
      %cst_22 = arith.constant dense<0.000000e+00> : vector<1x512xf32>
      %30 = tpu.matmul %28, %29, %cst_22 {dimension_numbers = #tpu.dot_dimension_numbers<[1], [0], [0], [1], [0, 0, 1, 1], [], []>} : vector<1x64xbf16>, vector<64x512xbf16>, vector<1x512xf32> -> vector<1x512xf32>
      %c0_23 = arith.constant 0 : index
      %c0_24 = arith.constant 0 : index
      %31 = vector.load %arg7[%c0_23, %c0_24] : memref<1x512xf32, #tpu.memory_space<vmem>>, vector<1x512xf32>
      %32 = arith.addf %30, %31 : vector<1x512xf32>
      %c0_25 = arith.constant 0 : index
      %c0_26 = arith.constant 0 : index
      %c0_27 = arith.constant 0 : index
      %33 = vector.load %arg8[%c0_25, %c0_26, %c0_27] : memref<1x1x512xf32, #tpu.memory_space<vmem>>, vector<1x1x512xf32>
      %34 = vector.shape_cast %33 : vector<1x1x512xf32> to vector<1x512xf32>
      %35 = vector.shape_cast %32 : vector<1x512xf32> to vector<1x1x512xf32>
      tpu.vector_store %arg8[%c0_25, %c0_26, %c0_27], %35 {strides = array<i32>} : memref<1x1x512xf32, #tpu.memory_space<vmem>>, vector<1x1x512xf32>,
    } else {
    }
    return
  }
  func.func @transform_0(%arg0: i32, %arg1: i32) -> (i32, i32, i32, i32) {
    %c0_i32 = arith.constant 0 : i32
    %c0_i32_0 = arith.constant 0 : i32
    %c0_i32_1 = arith.constant 0 : i32
    return %arg0, %arg1, %c0_i32, %c0_i32_0 : i32, i32, i32, i32
  }
  func.func @transform_1(%arg0: i32, %arg1: i32) -> (i32, i32) {
    %c0_i32 = arith.constant 0 : i32
    %c0_i32_0 = arith.constant 0 : i32
    %c0_i32_1 = arith.constant 0 : i32
    return %c0_i32, %c0_i32_0 : i32, i32
  }
  func.func @transform_2(%arg0: i32, %arg1: i32) -> (i32, i32) {
    %c0_i32 = arith.constant 0 : i32
    %c0_i32_0 = arith.constant 0 : i32
    %c0_i32_1 = arith.constant 0 : i32
    return %c0_i32, %c0_i32_0 : i32, i32
  }
  func.func @transform_3(%arg0: i32, %arg1: i32) -> (i32, i32) {
    %c0_i32 = arith.constant 0 : i32
    %c0_i32_0 = arith.constant 0 : i32
    %c0_i32_1 = arith.constant 0 : i32
    return %c0_i32, %c0_i32_0 : i32, i32
  }
  func.func @transform_4(%arg0: i32, %arg1: i32) -> (i32, i32) {
    %c0_i32 = arith.constant 0 : i32
    %c0_i32_0 = arith.constant 0 : i32
    %c0_i32_1 = arith.constant 0 : i32
    return %c0_i32, %c0_i32_0 : i32, i32
  }
  func.func @transform_5(%arg0: i32, %arg1: i32) -> (i32, i32) {
    %c0_i32 = arith.constant 0 : i32
    %c0_i32_0 = arith.constant 0 : i32
    %c0_i32_1 = arith.constant 0 : i32
    return %c0_i32, %c0_i32_0 : i32, i32
  }
  func.func @transform_6(%arg0: i32, %arg1: i32) -> (i32, i32, i32) {
    %c0_i32 = arith.constant 0 : i32
    %c0_i32_0 = arith.constant 0 : i32
    %c0_i32_1 = arith.constant 0 : i32
    return %arg0, %c0_i32, %c0_i32_0 : i32, i32, i32
  }
}

</mosaic_0001>

<llo_original>
// kernel: _forward_impl.1
$region0: #{_forward_impl.1}
  #allocation0 [shape = 'u32[]', space=smem, size = 0x4, offset = 0x4, fixed_abs, tag = 'smem constant byte address 0x4 - core index']
  #allocation1 [shape = 'u32[144,128]{1,0:T(1,128)}', space=vmem, size = 0x12000, scoped, tag = 'internal scratch']
  #allocation2 [shape = 'f32[1,64]{1,0:T(1,128)}', space=vmem, size = 0x200, scoped, tag = 'scratch operand']
  %s0 = inlined_call_operand.vmem [shape: bf16[2,112,112,32], index: 0, kind: input, shape index: {}]
  %s1 = inlined_call_operand.vmem [shape: bf16[32,64], index: 1, kind: input, shape index: {}]
  %s2 = inlined_call_operand.vmem [shape: f32[1,64], index: 2, kind: input, shape index: {}]
  %s3 = inlined_call_operand.vmem [shape: f32[1,64], index: 3, kind: input, shape index: {}]
  %s4 = inlined_call_operand.vmem [shape: bf16[64,512], index: 4, kind: input, shape index: {}]
  %s5 = inlined_call_operand.vmem [shape: f32[1,512], index: 5, kind: input, shape index: {}]
  %s6 = inlined_call_operand.vmem [shape: f32[2,1,512], index: 6, kind: output, shape index: {}]
  %s7 = sld [smem:[#allocation0]]
  $region65: #{_forward_impl.1} parent=0
    _
  %s9 = ssub.s32 1, %s7
  %s10 = scalar_select 0, %s9, %s7
  loop: start=0, step=1, limit=6
  $region2: #{_forward_impl.1} parent=0 // loop_pre_header
    _
  $region3: #{_forward_impl.1} parent=0 // loop_header
    %s12 = sphi 0, %s16
    %p13 = scmp.ge.s32.totalorder %s12, 6
    %s19 = sphi 0, %s31
    %s20 = sphi 0, %s27
    %s21 = sphi 0, %s19
    %s22 = sphi 0, %s20
    %s23 = sphi 0, %s21
    %s24 = sphi 0, %s22
    %s36 = sphi 0, %s38
    %s39 = sphi 0, %s36
    %s40 = sphi 0, %s39
    %s56 = sphi 0, %s40
    %s60 = sphi 0, %s60
    %s62 = sphi 0, %s60
    %s63 = sphi 0, %s62
    %s77 = sphi 0, %s63
    %s81 = sphi 0, %s81
    %s83 = sphi 0, %s81
    %s84 = sphi 0, %s83
    %s98 = sphi 0, %s84
    %s102 = sphi 0, %s102
    %s104 = sphi 0, %s102
    %s105 = sphi 0, %s104
    %s119 = sphi 0, %s105
    %s123 = sphi 0, %s123
    %s125 = sphi 0, %s123
    %s126 = sphi 0, %s125
    %s140 = sphi 0, %s126
    %s144 = sphi 0, %s144
    %s146 = sphi 0, %s144
    %s147 = sphi 0, %s146
    %s161 = sphi 0, %s147
    %s167 = sphi 0, %s169
    %s170 = sphi 0, %s167
    %s171 = sphi 0, %s170
    %s187 = sphi 0, %s171
  $region4: #{_forward_impl.1} parent=0 // loop_header_branch
    %15 = sbr.rel (%p13) target = $region8
  $region5: #{_forward_impl.1} parent=0 // loop_body
    %s17 = ssub.s32 %s12, 1
    %s18 = ssub.s32 %s12, 2
    %s25 = sadd.s32 1, %s20
    %p26 = scmp.ge.s32.totalorder %s25, 2
    %s27 = scalar_select %p26, 0, %s25
    %s28 = sadd.s32 1, %s19
    %s29 = scalar_select %p26, %s28, %s19
    %p30 = scmp.ge.s32.totalorder %s29, 2
    %s31 = scalar_select %p30, 0, %s29
    %s32 = ssub.s32 %s19, %s31
    %s33 = ssub.s32 %s20, %s27
    %s34 = sor.u32 %s32, %s33
    %p35 = scmp.eq.s32.totalorder %s34, 0
    %s37 = sadd.s32 %s36, 1
    %s38 = scalar_select %p35, %s36, %s37
    %p41 = pneg %p35
    %p42 = scmp.eq.s32.totalorder %s12, 3
    %p43 = por %p41, %p42
    %p44 = scmp.ne.s32.totalorder %s36, %s39
    %p45 = scmp.eq.s32.totalorder %s12, 0
    %p46 = por %p44, %p45
    %p47 = scmp.ne.s32.totalorder %s36, %s39
    %p48 = scmp.eq.s32.totalorder %s17, 3
    %p49 = por %p47, %p48
    %p50 = scmp.ne.s32.totalorder %s39, %s40
    %p51 = scmp.eq.s32.totalorder %s17, 0
    %p52 = por %p50, %p51
    %p53 = scmp.ne.s32.totalorder %s39, %s40
    %p54 = scmp.eq.s32.totalorder %s18, 3
    %p55 = por %p53, %p54
    %p57 = scmp.ne.s32.totalorder %s40, %s56
    %p58 = scmp.eq.s32.totalorder %s18, 0
    %p59 = por %p57, %p58
    %s61 = sadd.s32 %s60, 1
    %p64 = scmp.eq.s32.totalorder %s12, 3
    %p65 = scmp.ne.s32.totalorder %s60, %s62
    %p66 = scmp.eq.s32.totalorder %s12, 0
    %p67 = por %p65, %p66
    %p68 = scmp.ne.s32.totalorder %s60, %s62
    %p69 = scmp.eq.s32.totalorder %s17, 3
    %p70 = por %p68, %p69
    %p71 = scmp.ne.s32.totalorder %s62, %s63
    %p72 = scmp.eq.s32.totalorder %s17, 0
    %p73 = por %p71, %p72
    %p74 = scmp.ne.s32.totalorder %s62, %s63
    %p75 = scmp.eq.s32.totalorder %s18, 3
    %p76 = por %p74, %p75
    %p78 = scmp.ne.s32.totalorder %s63, %s77
    %p79 = scmp.eq.s32.totalorder %s18, 0
    %p80 = por %p78, %p79
    %s82 = sadd.s32 %s81, 1
    %p85 = scmp.eq.s32.totalorder %s12, 3
    %p86 = scmp.ne.s32.totalorder %s81, %s83
    %p87 = scmp.eq.s32.totalorder %s12, 0
    %p88 = por %p86, %p87
    %p89 = scmp.ne.s32.totalorder %s81, %s83
    %p90 = scmp.eq.s32.totalorder %s17, 3
    %p91 = por %p89, %p90
    %p92 = scmp.ne.s32.totalorder %s83, %s84
    %p93 = scmp.eq.s32.totalorder %s17, 0
    %p94 = por %p92, %p93
    %p95 = scmp.ne.s32.totalorder %s83, %s84
    %p96 = scmp.eq.s32.totalorder %s18, 3
    %p97 = por %p95, %p96
    %p99 = scmp.ne.s32.totalorder %s84, %s98
    %p100 = scmp.eq.s32.totalorder %s18, 0
    %p101 = por %p99, %p100
    %s103 = sadd.s32 %s102, 1
    %p106 = scmp.eq.s32.totalorder %s12, 3
    %p107 = scmp.ne.s32.totalorder %s102, %s104
    %p108 = scmp.eq.s32.totalorder %s12, 0
    %p109 = por %p107, %p108
    %p110 = scmp.ne.s32.totalorder %s102, %s104
    %p111 = scmp.eq.s32.totalorder %s17, 3
    %p112 = por %p110, %p111
    %p113 = scmp.ne.s32.totalorder %s104, %s105
    %p114 = scmp.eq.s32.totalorder %s17, 0
    %p115 = por %p113, %p114
    %p116 = scmp.ne.s32.totalorder %s104, %s105
    %p117 = scmp.eq.s32.totalorder %s18, 3
    %p118 = por %p116, %p117
    %p120 = scmp.ne.s32.totalorder %s105, %s119
    %p121 = scmp.eq.s32.totalorder %s18, 0
    %p122 = por %p120, %p121
    %s124 = sadd.s32 %s123, 1
    %p127 = scmp.eq.s32.totalorder %s12, 3
    %p128 = scmp.ne.s32.totalorder %s123, %s125
    %p129 = scmp.eq.s32.totalorder %s12, 0
    %p130 = por %p128, %p129
    %p131 = scmp.ne.s32.totalorder %s123, %s125
    %p132 = scmp.eq.s32.totalorder %s17, 3
    %p133 = por %p131, %p132
    %p134 = scmp.ne.s32.totalorder %s125, %s126
    %p135 = scmp.eq.s32.totalorder %s17, 0
    %p136 = por %p134, %p135
    %p137 = scmp.ne.s32.totalorder %s125, %s126
    %p138 = scmp.eq.s32.totalorder %s18, 3
    %p139 = por %p137, %p138
    %p141 = scmp.ne.s32.totalorder %s126, %s140
    %p142 = scmp.eq.s32.totalorder %s18, 0
    %p143 = por %p141, %p142
    %s145 = sadd.s32 %s144, 1
    %p148 = scmp.eq.s32.totalorder %s12, 3
    %p149 = scmp.ne.s32.totalorder %s144, %s146
    %p150 = scmp.eq.s32.totalorder %s12, 0
    %p151 = por %p149, %p150
    %p152 = scmp.ne.s32.totalorder %s144, %s146
    %p153 = scmp.eq.s32.totalorder %s17, 3
    %p154 = por %p152, %p153
    %p155 = scmp.ne.s32.totalorder %s146, %s147
    %p156 = scmp.eq.s32.totalorder %s17, 0
    %p157 = por %p155, %p156
    %p158 = scmp.ne.s32.totalorder %s146, %s147
    %p159 = scmp.eq.s32.totalorder %s18, 3
    %p160 = por %p158, %p159
    %p162 = scmp.ne.s32.totalorder %s147, %s161
    %p163 = scmp.eq.s32.totalorder %s18, 0
    %p164 = por %p162, %p163
    %s165 = ssub.s32 %s19, %s31
    %p166 = scmp.eq.s32.totalorder %s165, 0
    %s168 = sadd.s32 %s167, 1
    %s169 = scalar_select %p166, %s167, %s168
    %p172 = pneg %p166
    %p173 = scmp.eq.s32.totalorder %s12, 3
    %p174 = por %p172, %p173
    %p175 = scmp.ne.s32.totalorder %s167, %s170
    %p176 = scmp.eq.s32.totalorder %s12, 0
    %p177 = por %p175, %p176
    %p178 = scmp.ne.s32.totalorder %s167, %s170
    %p179 = scmp.eq.s32.totalorder %s17, 3
    %p180 = por %p178, %p179
    %p181 = scmp.ne.s32.totalorder %s170, %s171
    %p182 = scmp.eq.s32.totalorder %s17, 0
    %p183 = por %p181, %p182
    %p184 = scmp.ne.s32.totalorder %s170, %s171
    %p185 = scmp.eq.s32.totalorder %s18, 3
    %p186 = por %p184, %p185
    %p188 = scmp.ne.s32.totalorder %s171, %s187
    %p189 = scmp.eq.s32.totalorder %s18, 0
    %p190 = por %p188, %p189
    %p191 = scmp.le.s32.totalorder 1, %s12
    %p192 = scmp.lt.s32.totalorder %s12, 5
    %p193 = pnand %p191, %p192
    %p194 = pneg %p193
    // Predicated region
    $region9: #{_forward_impl.1} parent=5 // pred_check
      _
    $region10: #{_forward_impl.1} parent=5 // pred_check_branch
      %196 = sbr.rel (%p193) target = $region12
    $region11: #{_forward_impl.1} parent=5 // pred_region
      %s197 = ssub.s32 %s12, 1
      // Predicated region
      $region13: #{_forward_impl.1} parent=11 // pred_check
        %p198 = pneg %p73
      $region14: #{_forward_impl.1} parent=11 // pred_check_branch
        %200 = sbr.rel (%p198) target = $region16
      $region15: #{_forward_impl.1} parent=11 // pred_region
        _
      $region16: #{_forward_impl.1} parent=11 // pred_fallthru
        _
      // Predicated region
      $region17: #{_forward_impl.1} parent=11 // pred_check
        %p201 = pneg %p94
      $region18: #{_forward_impl.1} parent=11 // pred_check_branch
        %203 = sbr.rel (%p201) target = $region20
      $region19: #{_forward_impl.1} parent=11 // pred_region
        _
      $region20: #{_forward_impl.1} parent=11 // pred_fallthru
        _
      // Predicated region
      $region21: #{_forward_impl.1} parent=11 // pred_check
        %p204 = pneg %p115
      $region22: #{_forward_impl.1} parent=11 // pred_check_branch
        %206 = sbr.rel (%p204) target = $region24
      $region23: #{_forward_impl.1} parent=11 // pred_region
        _
      $region24: #{_forward_impl.1} parent=11 // pred_fallthru
        _
      // Predicated region
      $region25: #{_forward_impl.1} parent=11 // pred_check
        %p207 = pneg %p136
      $region26: #{_forward_impl.1} parent=11 // pred_check_branch
        %209 = sbr.rel (%p207) target = $region28
      $region27: #{_forward_impl.1} parent=11 // pred_region
        _
      $region28: #{_forward_impl.1} parent=11 // pred_fallthru
        _
      // Predicated region
      $region29: #{_forward_impl.1} parent=11 // pred_check
        %p210 = pneg %p157
      $region30: #{_forward_impl.1} parent=11 // pred_check_branch
        %212 = sbr.rel (%p210) target = $region32
      $region31: #{_forward_impl.1} parent=11 // pred_region
        _
      $region32: #{_forward_impl.1} parent=11 // pred_fallthru
        _
    $region12: #{_forward_impl.1} parent=5 // pred_fallthru
      _
    %p213 = scmp.lt.s32.totalorder %s12, 4
    // Predicated region
    $region33: #{_forward_impl.1} parent=5 // pred_check
      %p214 = pneg %p213
    $region34: #{_forward_impl.1} parent=5 // pred_check_branch
      %216 = sbr.rel (%p214) target = $region36
    $region35: #{_forward_impl.1} parent=5 // pred_region
      // Predicated region
      $region37: #{_forward_impl.1} parent=35 // pred_check
        %p217 = pneg %p46
      $region38: #{_forward_impl.1} parent=35 // pred_check_branch
        %219 = sbr.rel (%p217) target = $region40
      $region39: #{_forward_impl.1} parent=35 // pred_region
        %s220 = smul.u32 56, %s20
        %p221 = scmp.lt.s32.totalorder %s19, 1
        %s222 = scalar_select %p221, %s19, 1
        %p223 = scmp.lt.s32.totalorder %s220, 111
        %s224 = scalar_select %p223, %s220, 111
        %s225 = smul.addr %s224, 14
        %s226 = smul.addr %s222, 1568
        %s227 = sadd.s32 %s225, %s226
        %s228 = smul.addr %s227, 4
        %s229 = scalar_lea.vmem %s0, %s228
        %s230 = smul.u32 56, %s20
      $region40: #{_forward_impl.1} parent=35 // pred_fallthru
        _
    $region36: #{_forward_impl.1} parent=5 // pred_fallthru
      _
    %p231 = scmp.le.s32.totalorder 1, %s12
    %p232 = scmp.lt.s32.totalorder %s12, 5
    %p233 = pnand %p231, %p232
    %p234 = pneg %p233
    // Predicated region
    $region41: #{_forward_impl.1} parent=5 // pred_check
      _
    $region42: #{_forward_impl.1} parent=5 // pred_check_branch
      %236 = sbr.rel (%p233) target = $region44
    $region43: #{_forward_impl.1} parent=5 // pred_region
      %s237 = ssub.s32 %s12, 1
      %s238 = smul.u32 56, %s22
      %p239 = scmp.lt.s32.totalorder %s21, 1
      %s240 = scalar_select %p239, %s21, 1
      %p241 = scmp.lt.s32.totalorder %s238, 111
      %s242 = scalar_select %p241, %s238, 111
      %s243 = smul.addr %s242, 14
      %s244 = smul.addr %s240, 1568
      %s245 = sadd.s32 %s243, %s244
      %s246 = smul.addr %s245, 4
      %s247 = scalar_lea.vmem %s0, %s246
      %p248 = pneg %p52
      %p249 = pneg %p49
      %p250 = pneg %p73
      %p251 = pneg %p70
      %p252 = pneg %p94
      %p253 = pneg %p91
      %p254 = pneg %p115
      %p255 = pneg %p112
      %p256 = pneg %p136
      %p257 = pneg %p133
      %p258 = pneg %p157
      %p259 = pneg %p154
      %p260 = pneg %p183
      %p261 = pneg %p180
      %p262 = scmp.lt.s32.totalorder %s21, 1
      %s263 = scalar_select %p262, %s21, 1
      %s264 = smul.addr %s263, 4
      %s265 = scalar_lea.vmem %s6, %s264
      %s266 = smul.u32 56, %s22
      %p267 = scmp.lt.s32.totalorder %s21, 1
      %s268 = scalar_select %p267, %s21, 1
      %p269 = scmp.lt.s32.totalorder %s266, 111
      %s270 = scalar_select %p269, %s266, 111
      %s271 = smul.addr %s270, 14
      %s272 = smul.addr %s268, 1568
      %s273 = sadd.s32 %s271, %s272
      %s274 = smul.addr %s273, 4
      %s275 = scalar_lea.vmem %s0, %s274
      %s276 = smul.u32 56, %s22
      %p277 = scmp.lt.s32.totalorder %s21, 1
      %s278 = scalar_select %p277, %s21, 1
      %s279 = smul.addr %s278, 4
      %s280 = scalar_lea.vmem %s6, %s279
      %p282 = scmp.eq.s32.totalorder %s22, 0
      // Predicated region
      $region45: #{_forward_impl.1} parent=43 // pred_check
        %p283 = pneg %p282
      $region46: #{_forward_impl.1} parent=43 // pred_check_branch
        %285 = sbr.rel (%p283) target = $region48
      $region47: #{_forward_impl.1} parent=43 // pred_region
        %vm286 = vcmask 516096
        %287 = vst.msk [vmem:[#allocation2] sm:$0x1] %vm286, 0.0
      $region48: #{_forward_impl.1} parent=43 // pred_fallthru
        _
      %v288 = vld [vmem:[%s275] sm:$0xf]
      %v289 = vld [vmem:[%s275 + $0x4] sm:$0xf]
      %v290 = vld [vmem:[%s275 + $0x8] sm:$0xf]
      %v291 = vld [vmem:[%s275 + $0xc] sm:$0xf]
      %v292 = vld [vmem:[%s275 + $0x10] sm:$0xf]
      %v293 = vld [vmem:[%s275 + $0x14] sm:$0xf]
      %v294 = vld [vmem:[%s275 + $0x18] sm:$0xf]
      %v295 = vld [vmem:[%s275 + $0x1c] sm:$0xf]
      %v296 = vld [vmem:[%s275 + $0x20] sm:$0xf]
      %v297 = vld [vmem:[%s275 + $0x24] sm:$0xf]
      %v298 = vld [vmem:[%s275 + $0x28] sm:$0xf]
      %v299 = vld [vmem:[%s275 + $0x2c] sm:$0xf]
      %v300 = vld [vmem:[%s275 + $0x30] sm:$0xf]
      %v301 = vld [vmem:[%s275 + $0x34] sm:$0xf]
      %v302 = vld [vmem:[%s275 + $0x38] sm:$0xf]
      %v303 = vld [vmem:[%s275 + $0x3c] sm:$0xf]
      %v304 = vld [vmem:[%s275 + $0x40] sm:$0xf]
      %v305 = vld [vmem:[%s275 + $0x44] sm:$0xf]
      %v306 = vld [vmem:[%s275 + $0x48] sm:$0xf]
      %v307 = vld [vmem:[%s275 + $0x4c] sm:$0xf]
      %v308 = vld [vmem:[%s275 + $0x50] sm:$0xf]
      %v309 = vld [vmem:[%s275 + $0x54] sm:$0xf]
      %v310 = vld [vmem:[%s275 + $0x58] sm:$0xf]
      %v311 = vld [vmem:[%s275 + $0x5c] sm:$0xf]
      %v312 = vld [vmem:[%s275 + $0x60] sm:$0xf]
      %v313 = vld [vmem:[%s275 + $0x64] sm:$0xf]
      %v314 = vld [vmem:[%s275 + $0x68] sm:$0xf]
      %v315 = vld [vmem:[%s275 + $0x6c] sm:$0xf]
      %v316 = vld [vmem:[%s275 + $0x70] sm:$0xf]
      %v317 = vld [vmem:[%s275 + $0x74] sm:$0xf]
      %v318 = vld [vmem:[%s275 + $0x78] sm:$0xf]
      %v319 = vld [vmem:[%s275 + $0x7c] sm:$0xf]
      %v320 = vld [vmem:[%s275 + $0x80] sm:$0xf]
      %v321 = vld [vmem:[%s275 + $0x84] sm:$0xf]
      %v322 = vld [vmem:[%s275 + $0x88] sm:$0xf]
      %v323 = vld [vmem:[%s275 + $0x8c] sm:$0xf]
      %v324 = vld [vmem:[%s275 + $0x90] sm:$0xf]
      %v325 = vld [vmem:[%s275 + $0x94] sm:$0xf]
      %v326 = vld [vmem:[%s275 + $0x98] sm:$0xf]
      %v327 = vld [vmem:[%s275 + $0x9c] sm:$0xf]
      %v328 = vld [vmem:[%s275 + $0xa0] sm:$0xf]
      %v329 = vld [vmem:[%s275 + $0xa4] sm:$0xf]
      %v330 = vld [vmem:[%s275 + $0xa8] sm:$0xf]
      %v331 = vld [vmem:[%s275 + $0xac] sm:$0xf]
      %v332 = vld [vmem:[%s275 + $0xb0] sm:$0xf]
      %v333 = vld [vmem:[%s275 + $0xb4] sm:$0xf]
      %v334 = vld [vmem:[%s275 + $0xb8] sm:$0xf]
      %v335 = vld [vmem:[%s275 + $0xbc] sm:$0xf]
      %v336 = vld [vmem:[%s275 + $0xc0] sm:$0xf]
      %v337 = vld [vmem:[%s275 + $0xc4] sm:$0xf]
      %v338 = vld [vmem:[%s275 + $0xc8] sm:$0xf]
      %v339 = vld [vmem:[%s275 + $0xcc] sm:$0xf]
      %v340 = vld [vmem:[%s275 + $0xd0] sm:$0xf]
      %v341 = vld [vmem:[%s275 + $0xd4] sm:$0xf]
      %v342 = vld [vmem:[%s275 + $0xd8] sm:$0xf]
      %v343 = vld [vmem:[%s275 + $0xdc] sm:$0xf]
      %v344 = vld [vmem:[%s275 + $0xe0] sm:$0xf]
      %v345 = vld [vmem:[%s275 + $0xe4] sm:$0xf]
      %v346 = vld [vmem:[%s275 + $0xe8] sm:$0xf]
      %v347 = vld [vmem:[%s275 + $0xec] sm:$0xf]
      %v348 = vld [vmem:[%s275 + $0xf0] sm:$0xf]
      %v349 = vld [vmem:[%s275 + $0xf4] sm:$0xf]
      %v350 = vld [vmem:[%s275 + $0xf8] sm:$0xf]
      %v351 = vld [vmem:[%s275 + $0xfc] sm:$0xf]
      %v352 = vld [vmem:[%s275 + $0x100] sm:$0xf]
      %v353 = vld [vmem:[%s275 + $0x104] sm:$0xf]
      %v354 = vld [vmem:[%s275 + $0x108] sm:$0xf]
      %v355 = vld [vmem:[%s275 + $0x10c] sm:$0xf]
      %v356 = vld [vmem:[%s275 + $0x110] sm:$0xf]
      %v357 = vld [vmem:[%s275 + $0x114] sm:$0xf]
      %v358 = vld [vmem:[%s275 + $0x118] sm:$0xf]
      %v359 = vld [vmem:[%s275 + $0x11c] sm:$0xf]
      %v360 = vld [vmem:[%s275 + $0x120] sm:$0xf]
      %v361 = vld [vmem:[%s275 + $0x124] sm:$0xf]
      %v362 = vld [vmem:[%s275 + $0x128] sm:$0xf]
      %v363 = vld [vmem:[%s275 + $0x12c] sm:$0xf]
      %v364 = vld [vmem:[%s275 + $0x130] sm:$0xf]
      %v365 = vld [vmem:[%s275 + $0x134] sm:$0xf]
      %v366 = vld [vmem:[%s275 + $0x138] sm:$0xf]
      %v367 = vld [vmem:[%s275 + $0x13c] sm:$0xf]
      %v368 = vld [vmem:[%s275 + $0x140] sm:$0xf]
      %v369 = vld [vmem:[%s275 + $0x144] sm:$0xf]
      %v370 = vld [vmem:[%s275 + $0x148] sm:$0xf]
      %v371 = vld [vmem:[%s275 + $0x14c] sm:$0xf]
      %v372 = vld [vmem:[%s275 + $0x150] sm:$0xf]
      %v373 = vld [vmem:[%s275 + $0x154] sm:$0xf]
      %v374 = vld [vmem:[%s275 + $0x158] sm:$0xf]
      %v375 = vld [vmem:[%s275 + $0x15c] sm:$0xf]
      %v376 = vld [vmem:[%s275 + $0x160] sm:$0xf]
      %v377 = vld [vmem:[%s275 + $0x164] sm:$0xf]
      %v378 = vld [vmem:[%s275 + $0x168] sm:$0xf]
      %v379 = vld [vmem:[%s275 + $0x16c] sm:$0xf]
      %v380 = vld [vmem:[%s275 + $0x170] sm:$0xf]
      %v381 = vld [vmem:[%s275 + $0x174] sm:$0xf]
      %v382 = vld [vmem:[%s275 + $0x178] sm:$0xf]
      %v383 = vld [vmem:[%s275 + $0x17c] sm:$0xf]
      %v384 = vld [vmem:[%s275 + $0x180] sm:$0xf]
      %v385 = vld [vmem:[%s275 + $0x184] sm:$0xf]
      %v386 = vld [vmem:[%s275 + $0x188] sm:$0xf]
      %v387 = vld [vmem:[%s275 + $0x18c] sm:$0xf]
      %v388 = vld [vmem:[%s275 + $0x190] sm:$0xf]
      %v389 = vld [vmem:[%s275 + $0x194] sm:$0xf]
      %v390 = vld [vmem:[%s275 + $0x198] sm:$0xf]
      %v391 = vld [vmem:[%s275 + $0x19c] sm:$0xf]
      %v392 = vld [vmem:[%s275 + $0x1a0] sm:$0xf]
      %v393 = vld [vmem:[%s275 + $0x1a4] sm:$0xf]
      %v394 = vld [vmem:[%s275 + $0x1a8] sm:$0xf]
      %v395 = vld [vmem:[%s275 + $0x1ac] sm:$0xf]
      %v396 = vld [vmem:[%s275 + $0x1b0] sm:$0xf]
      %v397 = vld [vmem:[%s275 + $0x1b4] sm:$0xf]
      %v398 = vld [vmem:[%s275 + $0x1b8] sm:$0xf]
      %v399 = vld [vmem:[%s275 + $0x1bc] sm:$0xf]
      %v400 = vld [vmem:[%s275 + $0x1c0] sm:$0xf]
      %v401 = vld [vmem:[%s275 + $0x1c4] sm:$0xf]
      %v402 = vld [vmem:[%s275 + $0x1c8] sm:$0xf]
      %v403 = vld [vmem:[%s275 + $0x1cc] sm:$0xf]
      %v404 = vld [vmem:[%s275 + $0x1d0] sm:$0xf]
      %v405 = vld [vmem:[%s275 + $0x1d4] sm:$0xf]
      %v406 = vld [vmem:[%s275 + $0x1d8] sm:$0xf]
      %v407 = vld [vmem:[%s275 + $0x1dc] sm:$0xf]
      %v408 = vld [vmem:[%s275 + $0x1e0] sm:$0xf]
      %v409 = vld [vmem:[%s275 + $0x1e4] sm:$0xf]
      %v410 = vld [vmem:[%s275 + $0x1e8] sm:$0xf]
      %v411 = vld [vmem:[%s275 + $0x1ec] sm:$0xf]
      %v412 = vld [vmem:[%s275 + $0x1f0] sm:$0xf]
      %v413 = vld [vmem:[%s275 + $0x1f4] sm:$0xf]
      %v414 = vld [vmem:[%s275 + $0x1f8] sm:$0xf]
      %v415 = vld [vmem:[%s275 + $0x1fc] sm:$0xf]
      %v416 = vld [vmem:[%s275 + $0x200] sm:$0xf]
      %v417 = vld [vmem:[%s275 + $0x204] sm:$0xf]
      %v418 = vld [vmem:[%s275 + $0x208] sm:$0xf]
      %v419 = vld [vmem:[%s275 + $0x20c] sm:$0xf]
      %v420 = vld [vmem:[%s275 + $0x210] sm:$0xf]
      %v421 = vld [vmem:[%s275 + $0x214] sm:$0xf]
      %v422 = vld [vmem:[%s275 + $0x218] sm:$0xf]
      %v423 = vld [vmem:[%s275 + $0x21c] sm:$0xf]
      %v424 = vld [vmem:[%s275 + $0x220] sm:$0xf]
      %v425 = vld [vmem:[%s275 + $0x224] sm:$0xf]
      %v426 = vld [vmem:[%s275 + $0x228] sm:$0xf]
      %v427 = vld [vmem:[%s275 + $0x22c] sm:$0xf]
      %v428 = vld [vmem:[%s275 + $0x230] sm:$0xf]
      %v429 = vld [vmem:[%s275 + $0x234] sm:$0xf]
      %v430 = vld [vmem:[%s275 + $0x238] sm:$0xf]
      %v431 = vld [vmem:[%s275 + $0x23c] sm:$0xf]
      %v432 = vld [vmem:[%s275 + $0x240] sm:$0xf]
      %v433 = vld [vmem:[%s275 + $0x244] sm:$0xf]
      %v434 = vld [vmem:[%s275 + $0x248] sm:$0xf]
      %v435 = vld [vmem:[%s275 + $0x24c] sm:$0xf]
      %v436 = vld [vmem:[%s275 + $0x250] sm:$0xf]
      %v437 = vld [vmem:[%s275 + $0x254] sm:$0xf]
      %v438 = vld [vmem:[%s275 + $0x258] sm:$0xf]
      %v439 = vld [vmem:[%s275 + $0x25c] sm:$0xf]
      %v440 = vld [vmem:[%s275 + $0x260] sm:$0xf]
      %v441 = vld [vmem:[%s275 + $0x264] sm:$0xf]
      %v442 = vld [vmem:[%s275 + $0x268] sm:$0xf]
      %v443 = vld [vmem:[%s275 + $0x26c] sm:$0xf]
      %v444 = vld [vmem:[%s275 + $0x270] sm:$0xf]
      %v445 = vld [vmem:[%s275 + $0x274] sm:$0xf]
      %v446 = vld [vmem:[%s275 + $0x278] sm:$0xf]
      %v447 = vld [vmem:[%s275 + $0x27c] sm:$0xf]
      %v448 = vld [vmem:[%s275 + $0x280] sm:$0xf]
      %v449 = vld [vmem:[%s275 + $0x284] sm:$0xf]
      %v450 = vld [vmem:[%s275 + $0x288] sm:$0xf]
      %v451 = vld [vmem:[%s275 + $0x28c] sm:$0xf]
      %v452 = vld [vmem:[%s275 + $0x290] sm:$0xf]
      %v453 = vld [vmem:[%s275 + $0x294] sm:$0xf]
      %v454 = vld [vmem:[%s275 + $0x298] sm:$0xf]
      %v455 = vld [vmem:[%s275 + $0x29c] sm:$0xf]
      %v456 = vld [vmem:[%s275 + $0x2a0] sm:$0xf]
      %v457 = vld [vmem:[%s275 + $0x2a4] sm:$0xf]
      %v458 = vld [vmem:[%s275 + $0x2a8] sm:$0xf]
      %v459 = vld [vmem:[%s275 + $0x2ac] sm:$0xf]
      %v460 = vld [vmem:[%s275 + $0x2b0] sm:$0xf]
      %v461 = vld [vmem:[%s275 + $0x2b4] sm:$0xf]
      %v462 = vld [vmem:[%s275 + $0x2b8] sm:$0xf]
      %v463 = vld [vmem:[%s275 + $0x2bc] sm:$0xf]
      %v464 = vld [vmem:[%s275 + $0x2c0] sm:$0xf]
      %v465 = vld [vmem:[%s275 + $0x2c4] sm:$0xf]
      %v466 = vld [vmem:[%s275 + $0x2c8] sm:$0xf]
      %v467 = vld [vmem:[%s275 + $0x2cc] sm:$0xf]
      %v468 = vld [vmem:[%s275 + $0x2d0] sm:$0xf]
      %v469 = vld [vmem:[%s275 + $0x2d4] sm:$0xf]
      %v470 = vld [vmem:[%s275 + $0x2d8] sm:$0xf]
      %v471 = vld [vmem:[%s275 + $0x2dc] sm:$0xf]
      %v472 = vld [vmem:[%s275 + $0x2e0] sm:$0xf]
      %v473 = vld [vmem:[%s275 + $0x2e4] sm:$0xf]
      %v474 = vld [vmem:[%s275 + $0x2e8] sm:$0xf]
      %v475 = vld [vmem:[%s275 + $0x2ec] sm:$0xf]
      %v476 = vld [vmem:[%s275 + $0x2f0] sm:$0xf]
      %v477 = vld [vmem:[%s275 + $0x2f4] sm:$0xf]
      %v478 = vld [vmem:[%s275 + $0x2f8] sm:$0xf]
      %v479 = vld [vmem:[%s275 + $0x2fc] sm:$0xf]
      %v480 = vld [vmem:[%s275 + $0x300] sm:$0xf]
      %v481 = vld [vmem:[%s275 + $0x304] sm:$0xf]
      %v482 = vld [vmem:[%s275 + $0x308] sm:$0xf]
      %v483 = vld [vmem:[%s275 + $0x30c] sm:$0xf]
      %v484 = vld [vmem:[%s275 + $0x310] sm:$0xf]
      %v485 = vld [vmem:[%s275 + $0x314] sm:$0xf]
      %v486 = vld [vmem:[%s275 + $0x318] sm:$0xf]
      %v487 = vld [vmem:[%s275 + $0x31c] sm:$0xf]
      %v488 = vld [vmem:[%s275 + $0x320] sm:$0xf]
      %v489 = vld [vmem:[%s275 + $0x324] sm:$0xf]
      %v490 = vld [vmem:[%s275 + $0x328] sm:$0xf]
      %v491 = vld [vmem:[%s275 + $0x32c] sm:$0xf]
      %v492 = vld [vmem:[%s275 + $0x330] sm:$0xf]
      %v493 = vld [vmem:[%s275 + $0x334] sm:$0xf]
      %v494 = vld [vmem:[%s275 + $0x338] sm:$0xf]
      %v495 = vld [vmem:[%s275 + $0x33c] sm:$0xf]
      %v496 = vld [vmem:[%s275 + $0x340] sm:$0xf]
      %v497 = vld [vmem:[%s275 + $0x344] sm:$0xf]
      %v498 = vld [vmem:[%s275 + $0x348] sm:$0xf]
      %v499 = vld [vmem:[%s275 + $0x34c] sm:$0xf]
      %v500 = vld [vmem:[%s275 + $0x350] sm:$0xf]
      %v501 = vld [vmem:[%s275 + $0x354] sm:$0xf]
      %v502 = vld [vmem:[%s275 + $0x358] sm:$0xf]
      %v503 = vld [vmem:[%s275 + $0x35c] sm:$0xf]
      %v504 = vld [vmem:[%s275 + $0x360] sm:$0xf]
      %v505 = vld [vmem:[%s275 + $0x364] sm:$0xf]
      %v506 = vld [vmem:[%s275 + $0x368] sm:$0xf]
      %v507 = vld [vmem:[%s275 + $0x36c] sm:$0xf]
      %v508 = vld [vmem:[%s275 + $0x370] sm:$0xf]
      %v509 = vld [vmem:[%s275 + $0x374] sm:$0xf]
      %v510 = vld [vmem:[%s275 + $0x378] sm:$0xf]
      %v511 = vld [vmem:[%s275 + $0x37c] sm:$0xf]
      %v512 = vld [vmem:[%s275 + $0x380] sm:$0xf]
      %v513 = vld [vmem:[%s275 + $0x384] sm:$0xf]
      %v514 = vld [vmem:[%s275 + $0x388] sm:$0xf]
      %v515 = vld [vmem:[%s275 + $0x38c] sm:$0xf]
      %v516 = vld [vmem:[%s275 + $0x390] sm:$0xf]
      %v517 = vld [vmem:[%s275 + $0x394] sm:$0xf]
      %v518 = vld [vmem:[%s275 + $0x398] sm:$0xf]
      %v519 = vld [vmem:[%s275 + $0x39c] sm:$0xf]
      %v520 = vld [vmem:[%s275 + $0x3a0] sm:$0xf]
      %v521 = vld [vmem:[%s275 + $0x3a4] sm:$0xf]
      %v522 = vld [vmem:[%s275 + $0x3a8] sm:$0xf]
      %v523 = vld [vmem:[%s275 + $0x3ac] sm:$0xf]
      %v524 = vld [vmem:[%s275 + $0x3b0] sm:$0xf]
      %v525 = vld [vmem:[%s275 + $0x3b4] sm:$0xf]
      %v526 = vld [vmem:[%s275 + $0x3b8] sm:$0xf]
      %v527 = vld [vmem:[%s275 + $0x3bc] sm:$0xf]
      %v528 = vld [vmem:[%s275 + $0x3c0] sm:$0xf]
      %v529 = vld [vmem:[%s275 + $0x3c4] sm:$0xf]
      %v530 = vld [vmem:[%s275 + $0x3c8] sm:$0xf]
      %v531 = vld [vmem:[%s275 + $0x3cc] sm:$0xf]
      %v532 = vld [vmem:[%s275 + $0x3d0] sm:$0xf]
      %v533 = vld [vmem:[%s275 + $0x3d4] sm:$0xf]
      %v534 = vld [vmem:[%s275 + $0x3d8] sm:$0xf]
      %v535 = vld [vmem:[%s275 + $0x3dc] sm:$0xf]
      %v536 = vld [vmem:[%s275 + $0x3e0] sm:$0xf]
      %v537 = vld [vmem:[%s275 + $0x3e4] sm:$0xf]
      %v538 = vld [vmem:[%s275 + $0x3e8] sm:$0xf]
      %v539 = vld [vmem:[%s275 + $0x3ec] sm:$0xf]
      %v540 = vld [vmem:[%s275 + $0x3f0] sm:$0xf]
      %v541 = vld [vmem:[%s275 + $0x3f4] sm:$0xf]
      %v542 = vld [vmem:[%s275 + $0x3f8] sm:$0xf]
      %v543 = vld [vmem:[%s275 + $0x3fc] sm:$0xf]
      %v544 = vld [vmem:[%s275 + $0x400] sm:$0xf]
      %v545 = vld [vmem:[%s275 + $0x404] sm:$0xf]
      %v546 = vld [vmem:[%s275 + $0x408] sm:$0xf]
      %v547 = vld [vmem:[%s275 + $0x40c] sm:$0xf]
      %v548 = vld [vmem:[%s275 + $0x410] sm:$0xf]
      %v549 = vld [vmem:[%s275 + $0x414] sm:$0xf]
      %v550 = vld [vmem:[%s275 + $0x418] sm:$0xf]
      %v551 = vld [vmem:[%s275 + $0x41c] sm:$0xf]
      %v552 = vld [vmem:[%s275 + $0x420] sm:$0xf]
      %v553 = vld [vmem:[%s275 + $0x424] sm:$0xf]
      %v554 = vld [vmem:[%s275 + $0x428] sm:$0xf]
      %v555 = vld [vmem:[%s275 + $0x42c] sm:$0xf]
      %v556 = vld [vmem:[%s275 + $0x430] sm:$0xf]
      %v557 = vld [vmem:[%s275 + $0x434] sm:$0xf]
      %v558 = vld [vmem:[%s275 + $0x438] sm:$0xf]
      %v559 = vld [vmem:[%s275 + $0x43c] sm:$0xf]
      %v560 = vld [vmem:[%s275 + $0x440] sm:$0xf]
      %v561 = vld [vmem:[%s275 + $0x444] sm:$0xf]
      %v562 = vld [vmem:[%s275 + $0x448] sm:$0xf]
      %v563 = vld [vmem:[%s275 + $0x44c] sm:$0xf]
      %v564 = vld [vmem:[%s275 + $0x450] sm:$0xf]
      %v565 = vld [vmem:[%s275 + $0x454] sm:$0xf]
      %v566 = vld [vmem:[%s275 + $0x458] sm:$0xf]
      %v567 = vld [vmem:[%s275 + $0x45c] sm:$0xf]
      %v568 = vld [vmem:[%s275 + $0x460] sm:$0xf]
      %v569 = vld [vmem:[%s275 + $0x464] sm:$0xf]
      %v570 = vld [vmem:[%s275 + $0x468] sm:$0xf]
      %v571 = vld [vmem:[%s275 + $0x46c] sm:$0xf]
      %v572 = vld [vmem:[%s275 + $0x470] sm:$0xf]
      %v573 = vld [vmem:[%s275 + $0x474] sm:$0xf]
      %v574 = vld [vmem:[%s275 + $0x478] sm:$0xf]
      %v575 = vld [vmem:[%s275 + $0x47c] sm:$0xf]
      %v576 = vld [vmem:[%s275 + $0x480] sm:$0xf]
      %v577 = vld [vmem:[%s275 + $0x484] sm:$0xf]
      %v578 = vld [vmem:[%s275 + $0x488] sm:$0xf]
      %v579 = vld [vmem:[%s275 + $0x48c] sm:$0xf]
      %v580 = vld [vmem:[%s275 + $0x490] sm:$0xf]
      %v581 = vld [vmem:[%s275 + $0x494] sm:$0xf]
      %v582 = vld [vmem:[%s275 + $0x498] sm:$0xf]
      %v583 = vld [vmem:[%s275 + $0x49c] sm:$0xf]
      %v584 = vld [vmem:[%s275 + $0x4a0] sm:$0xf]
      %v585 = vld [vmem:[%s275 + $0x4a4] sm:$0xf]
      %v586 = vld [vmem:[%s275 + $0x4a8] sm:$0xf]
      %v587 = vld [vmem:[%s275 + $0x4ac] sm:$0xf]
      %v588 = vld [vmem:[%s275 + $0x4b0] sm:$0xf]
      %v589 = vld [vmem:[%s275 + $0x4b4] sm:$0xf]
      %v590 = vld [vmem:[%s275 + $0x4b8] sm:$0xf]
      %v591 = vld [vmem:[%s275 + $0x4bc] sm:$0xf]
      %v592 = vld [vmem:[%s275 + $0x4c0] sm:$0xf]
      %v593 = vld [vmem:[%s275 + $0x4c4] sm:$0xf]
      %v594 = vld [vmem:[%s275 + $0x4c8] sm:$0xf]
      %v595 = vld [vmem:[%s275 + $0x4cc] sm:$0xf]
      %v596 = vld [vmem:[%s275 + $0x4d0] sm:$0xf]
      %v597 = vld [vmem:[%s275 + $0x4d4] sm:$0xf]
      %v598 = vld [vmem:[%s275 + $0x4d8] sm:$0xf]
      %v599 = vld [vmem:[%s275 + $0x4dc] sm:$0xf]
      %v600 = vld [vmem:[%s275 + $0x4e0] sm:$0xf]
      %v601 = vld [vmem:[%s275 + $0x4e4] sm:$0xf]
      %v602 = vld [vmem:[%s275 + $0x4e8] sm:$0xf]
      %v603 = vld [vmem:[%s275 + $0x4ec] sm:$0xf]
      %v604 = vld [vmem:[%s275 + $0x4f0] sm:$0xf]
      %v605 = vld [vmem:[%s275 + $0x4f4] sm:$0xf]
      %v606 = vld [vmem:[%s275 + $0x4f8] sm:$0xf]
      %v607 = vld [vmem:[%s275 + $0x4fc] sm:$0xf]
      %v608 = vld [vmem:[%s275 + $0x500] sm:$0xf]
      %v609 = vld [vmem:[%s275 + $0x504] sm:$0xf]
      %v610 = vld [vmem:[%s275 + $0x508] sm:$0xf]
      %v611 = vld [vmem:[%s275 + $0x50c] sm:$0xf]
      %v612 = vld [vmem:[%s275 + $0x510] sm:$0xf]
      %v613 = vld [vmem:[%s275 + $0x514] sm:$0xf]
      %v614 = vld [vmem:[%s275 + $0x518] sm:$0xf]
      %v615 = vld [vmem:[%s275 + $0x51c] sm:$0xf]
      %v616 = vld [vmem:[%s275 + $0x520] sm:$0xf]
      %v617 = vld [vmem:[%s275 + $0x524] sm:$0xf]
      %v618 = vld [vmem:[%s275 + $0x528] sm:$0xf]
      %v619 = vld [vmem:[%s275 + $0x52c] sm:$0xf]
      %v620 = vld [vmem:[%s275 + $0x530] sm:$0xf]
      %v621 = vld [vmem:[%s275 + $0x534] sm:$0xf]
      %v622 = vld [vmem:[%s275 + $0x538] sm:$0xf]
      %v623 = vld [vmem:[%s275 + $0x53c] sm:$0xf]
      %v624 = vld [vmem:[%s275 + $0x540] sm:$0xf]
      %v625 = vld [vmem:[%s275 + $0x544] sm:$0xf]
      %v626 = vld [vmem:[%s275 + $0x548] sm:$0xf]
      %v627 = vld [vmem:[%s275 + $0x54c] sm:$0xf]
      %v628 = vld [vmem:[%s275 + $0x550] sm:$0xf]
      %v629 = vld [vmem:[%s275 + $0x554] sm:$0xf]
      %v630 = vld [vmem:[%s275 + $0x558] sm:$0xf]
      %v631 = vld [vmem:[%s275 + $0x55c] sm:$0xf]
      %v632 = vld [vmem:[%s275 + $0x560] sm:$0xf]
      %v633 = vld [vmem:[%s275 + $0x564] sm:$0xf]
      %v634 = vld [vmem:[%s275 + $0x568] sm:$0xf]
      %v635 = vld [vmem:[%s275 + $0x56c] sm:$0xf]
      %v636 = vld [vmem:[%s275 + $0x570] sm:$0xf]
      %v637 = vld [vmem:[%s275 + $0x574] sm:$0xf]
      %v638 = vld [vmem:[%s275 + $0x578] sm:$0xf]
      %v639 = vld [vmem:[%s275 + $0x57c] sm:$0xf]
      %v640 = vld [vmem:[%s275 + $0x580] sm:$0xf]
      %v641 = vld [vmem:[%s275 + $0x584] sm:$0xf]
      %v642 = vld [vmem:[%s275 + $0x588] sm:$0xf]
      %v643 = vld [vmem:[%s275 + $0x58c] sm:$0xf]
      %v644 = vld [vmem:[%s275 + $0x590] sm:$0xf]
      %v645 = vld [vmem:[%s275 + $0x594] sm:$0xf]
      %v646 = vld [vmem:[%s275 + $0x598] sm:$0xf]
      %v647 = vld [vmem:[%s275 + $0x59c] sm:$0xf]
      %v648 = vld [vmem:[%s275 + $0x5a0] sm:$0xf]
      %v649 = vld [vmem:[%s275 + $0x5a4] sm:$0xf]
      %v650 = vld [vmem:[%s275 + $0x5a8] sm:$0xf]
      %v651 = vld [vmem:[%s275 + $0x5ac] sm:$0xf]
      %v652 = vld [vmem:[%s275 + $0x5b0] sm:$0xf]
      %v653 = vld [vmem:[%s275 + $0x5b4] sm:$0xf]
      %v654 = vld [vmem:[%s275 + $0x5b8] sm:$0xf]
      %v655 = vld [vmem:[%s275 + $0x5bc] sm:$0xf]
      %v656 = vld [vmem:[%s275 + $0x5c0] sm:$0xf]
      %v657 = vld [vmem:[%s275 + $0x5c4] sm:$0xf]
      %v658 = vld [vmem:[%s275 + $0x5c8] sm:$0xf]
      %v659 = vld [vmem:[%s275 + $0x5cc] sm:$0xf]
      %v660 = vld [vmem:[%s275 + $0x5d0] sm:$0xf]
      %v661 = vld [vmem:[%s275 + $0x5d4] sm:$0xf]
      %v662 = vld [vmem:[%s275 + $0x5d8] sm:$0xf]
      %v663 = vld [vmem:[%s275 + $0x5dc] sm:$0xf]
      %v664 = vld [vmem:[%s275 + $0x5e0] sm:$0xf]
      %v665 = vld [vmem:[%s275 + $0x5e4] sm:$0xf]
      %v666 = vld [vmem:[%s275 + $0x5e8] sm:$0xf]
      %v667 = vld [vmem:[%s275 + $0x5ec] sm:$0xf]
      %v668 = vld [vmem:[%s275 + $0x5f0] sm:$0xf]
      %v669 = vld [vmem:[%s275 + $0x5f4] sm:$0xf]
      %v670 = vld [vmem:[%s275 + $0x5f8] sm:$0xf]
      %v671 = vld [vmem:[%s275 + $0x5fc] sm:$0xf]
      %v672 = vld [vmem:[%s275 + $0x600] sm:$0xf]
      %v673 = vld [vmem:[%s275 + $0x604] sm:$0xf]
      %v674 = vld [vmem:[%s275 + $0x608] sm:$0xf]
      %v675 = vld [vmem:[%s275 + $0x60c] sm:$0xf]
      %v676 = vld [vmem:[%s275 + $0x610] sm:$0xf]
      %v677 = vld [vmem:[%s275 + $0x614] sm:$0xf]
      %v678 = vld [vmem:[%s275 + $0x618] sm:$0xf]
      %v679 = vld [vmem:[%s275 + $0x61c] sm:$0xf]
      %v680 = vld [vmem:[%s275 + $0x620] sm:$0xf]
      %v681 = vld [vmem:[%s275 + $0x624] sm:$0xf]
      %v682 = vld [vmem:[%s275 + $0x628] sm:$0xf]
      %v683 = vld [vmem:[%s275 + $0x62c] sm:$0xf]
      %v684 = vld [vmem:[%s275 + $0x630] sm:$0xf]
      %v685 = vld [vmem:[%s275 + $0x634] sm:$0xf]
      %v686 = vld [vmem:[%s275 + $0x638] sm:$0xf]
      %v687 = vld [vmem:[%s275 + $0x63c] sm:$0xf]
      %v688 = vld [vmem:[%s275 + $0x640] sm:$0xf]
      %v689 = vld [vmem:[%s275 + $0x644] sm:$0xf]
      %v690 = vld [vmem:[%s275 + $0x648] sm:$0xf]
      %v691 = vld [vmem:[%s275 + $0x64c] sm:$0xf]
      %v692 = vld [vmem:[%s275 + $0x650] sm:$0xf]
      %v693 = vld [vmem:[%s275 + $0x654] sm:$0xf]
      %v694 = vld [vmem:[%s275 + $0x658] sm:$0xf]
      %v695 = vld [vmem:[%s275 + $0x65c] sm:$0xf]
      %v696 = vld [vmem:[%s275 + $0x660] sm:$0xf]
      %v697 = vld [vmem:[%s275 + $0x664] sm:$0xf]
      %v698 = vld [vmem:[%s275 + $0x668] sm:$0xf]
      %v699 = vld [vmem:[%s275 + $0x66c] sm:$0xf]
      %v700 = vld [vmem:[%s275 + $0x670] sm:$0xf]
      %v701 = vld [vmem:[%s275 + $0x674] sm:$0xf]
      %v702 = vld [vmem:[%s275 + $0x678] sm:$0xf]
      %v703 = vld [vmem:[%s275 + $0x67c] sm:$0xf]
      %v704 = vld [vmem:[%s275 + $0x680] sm:$0xf]
      %v705 = vld [vmem:[%s275 + $0x684] sm:$0xf]
      %v706 = vld [vmem:[%s275 + $0x688] sm:$0xf]
      %v707 = vld [vmem:[%s275 + $0x68c] sm:$0xf]
      %v708 = vld [vmem:[%s275 + $0x690] sm:$0xf]
      %v709 = vld [vmem:[%s275 + $0x694] sm:$0xf]
      %v710 = vld [vmem:[%s275 + $0x698] sm:$0xf]
      %v711 = vld [vmem:[%s275 + $0x69c] sm:$0xf]
      %v712 = vld [vmem:[%s275 + $0x6a0] sm:$0xf]
      %v713 = vld [vmem:[%s275 + $0x6a4] sm:$0xf]
      %v714 = vld [vmem:[%s275 + $0x6a8] sm:$0xf]
      %v715 = vld [vmem:[%s275 + $0x6ac] sm:$0xf]
      %v716 = vld [vmem:[%s275 + $0x6b0] sm:$0xf]
      %v717 = vld [vmem:[%s275 + $0x6b4] sm:$0xf]
      %v718 = vld [vmem:[%s275 + $0x6b8] sm:$0xf]
      %v719 = vld [vmem:[%s275 + $0x6bc] sm:$0xf]
      %v720 = vld [vmem:[%s275 + $0x6c0] sm:$0xf]
      %v721 = vld [vmem:[%s275 + $0x6c4] sm:$0xf]
      %v722 = vld [vmem:[%s275 + $0x6c8] sm:$0xf]
      %v723 = vld [vmem:[%s275 + $0x6cc] sm:$0xf]
      %v724 = vld [vmem:[%s275 + $0x6d0] sm:$0xf]
      %v725 = vld [vmem:[%s275 + $0x6d4] sm:$0xf]
      %v726 = vld [vmem:[%s275 + $0x6d8] sm:$0xf]
      %v727 = vld [vmem:[%s275 + $0x6dc] sm:$0xf]
      %v728 = vld [vmem:[%s275 + $0x6e0] sm:$0xf]
      %v729 = vld [vmem:[%s275 + $0x6e4] sm:$0xf]
      %v730 = vld [vmem:[%s275 + $0x6e8] sm:$0xf]
      %v731 = vld [vmem:[%s275 + $0x6ec] sm:$0xf]
      %v732 = vld [vmem:[%s275 + $0x6f0] sm:$0xf]
      %v733 = vld [vmem:[%s275 + $0x6f4] sm:$0xf]
      %v734 = vld [vmem:[%s275 + $0x6f8] sm:$0xf]
      %v735 = vld [vmem:[%s275 + $0x6fc] sm:$0xf]
      %v736 = vld [vmem:[%s275 + $0x700] sm:$0xf]
      %v737 = vld [vmem:[%s275 + $0x704] sm:$0xf]
      %v738 = vld [vmem:[%s275 + $0x708] sm:$0xf]
      %v739 = vld [vmem:[%s275 + $0x70c] sm:$0xf]
      %v740 = vld [vmem:[%s275 + $0x710] sm:$0xf]
      %v741 = vld [vmem:[%s275 + $0x714] sm:$0xf]
      %v742 = vld [vmem:[%s275 + $0x718] sm:$0xf]
      %v743 = vld [vmem:[%s275 + $0x71c] sm:$0xf]
      %v744 = vld [vmem:[%s275 + $0x720] sm:$0xf]
      %v745 = vld [vmem:[%s275 + $0x724] sm:$0xf]
      %v746 = vld [vmem:[%s275 + $0x728] sm:$0xf]
      %v747 = vld [vmem:[%s275 + $0x72c] sm:$0xf]
      %v748 = vld [vmem:[%s275 + $0x730] sm:$0xf]
      %v749 = vld [vmem:[%s275 + $0x734] sm:$0xf]
      %v750 = vld [vmem:[%s275 + $0x738] sm:$0xf]
      %v751 = vld [vmem:[%s275 + $0x73c] sm:$0xf]
      %v752 = vld [vmem:[%s275 + $0x740] sm:$0xf]
      %v753 = vld [vmem:[%s275 + $0x744] sm:$0xf]
      %v754 = vld [vmem:[%s275 + $0x748] sm:$0xf]
      %v755 = vld [vmem:[%s275 + $0x74c] sm:$0xf]
      %v756 = vld [vmem:[%s275 + $0x750] sm:$0xf]
      %v757 = vld [vmem:[%s275 + $0x754] sm:$0xf]
      %v758 = vld [vmem:[%s275 + $0x758] sm:$0xf]
      %v759 = vld [vmem:[%s275 + $0x75c] sm:$0xf]
      %v760 = vld [vmem:[%s275 + $0x760] sm:$0xf]
      %v761 = vld [vmem:[%s275 + $0x764] sm:$0xf]
      %v762 = vld [vmem:[%s275 + $0x768] sm:$0xf]
      %v763 = vld [vmem:[%s275 + $0x76c] sm:$0xf]
      %v764 = vld [vmem:[%s275 + $0x770] sm:$0xf]
      %v765 = vld [vmem:[%s275 + $0x774] sm:$0xf]
      %v766 = vld [vmem:[%s275 + $0x778] sm:$0xf]
      %v767 = vld [vmem:[%s275 + $0x77c] sm:$0xf]
      %v768 = vld [vmem:[%s275 + $0x780] sm:$0xf]
      %v769 = vld [vmem:[%s275 + $0x784] sm:$0xf]
      %v770 = vld [vmem:[%s275 + $0x788] sm:$0xf]
      %v771 = vld [vmem:[%s275 + $0x78c] sm:$0xf]
      %v772 = vld [vmem:[%s275 + $0x790] sm:$0xf]
      %v773 = vld [vmem:[%s275 + $0x794] sm:$0xf]
      %v774 = vld [vmem:[%s275 + $0x798] sm:$0xf]
      %v775 = vld [vmem:[%s275 + $0x79c] sm:$0xf]
      %v776 = vld [vmem:[%s275 + $0x7a0] sm:$0xf]
      %v777 = vld [vmem:[%s275 + $0x7a4] sm:$0xf]
      %v778 = vld [vmem:[%s275 + $0x7a8] sm:$0xf]
      %v779 = vld [vmem:[%s275 + $0x7ac] sm:$0xf]
      %v780 = vld [vmem:[%s275 + $0x7b0] sm:$0xf]
      %v781 = vld [vmem:[%s275 + $0x7b4] sm:$0xf]
      %v782 = vld [vmem:[%s275 + $0x7b8] sm:$0xf]
      %v783 = vld [vmem:[%s275 + $0x7bc] sm:$0xf]
      %v784 = vld [vmem:[%s275 + $0x7c0] sm:$0xf]
      %v785 = vld [vmem:[%s275 + $0x7c4] sm:$0xf]
      %v786 = vld [vmem:[%s275 + $0x7c8] sm:$0xf]
      %v787 = vld [vmem:[%s275 + $0x7cc] sm:$0xf]
      %v788 = vld [vmem:[%s275 + $0x7d0] sm:$0xf]
      %v789 = vld [vmem:[%s275 + $0x7d4] sm:$0xf]
      %v790 = vld [vmem:[%s275 + $0x7d8] sm:$0xf]
      %v791 = vld [vmem:[%s275 + $0x7dc] sm:$0xf]
      %v792 = vld [vmem:[%s275 + $0x7e0] sm:$0xf]
      %v793 = vld [vmem:[%s275 + $0x7e4] sm:$0xf]
      %v794 = vld [vmem:[%s275 + $0x7e8] sm:$0xf]
      %v795 = vld [vmem:[%s275 + $0x7ec] sm:$0xf]
      %v796 = vld [vmem:[%s275 + $0x7f0] sm:$0xf]
      %v797 = vld [vmem:[%s275 + $0x7f4] sm:$0xf]
      %v798 = vld [vmem:[%s275 + $0x7f8] sm:$0xf]
      %v799 = vld [vmem:[%s275 + $0x7fc] sm:$0xf]
      %v800 = vld [vmem:[%s275 + $0x800] sm:$0xf]
      %v801 = vld [vmem:[%s275 + $0x804] sm:$0xf]
      %v802 = vld [vmem:[%s275 + $0x808] sm:$0xf]
      %v803 = vld [vmem:[%s275 + $0x80c] sm:$0xf]
      %v804 = vld [vmem:[%s275 + $0x810] sm:$0xf]
      %v805 = vld [vmem:[%s275 + $0x814] sm:$0xf]
      %v806 = vld [vmem:[%s275 + $0x818] sm:$0xf]
      %v807 = vld [vmem:[%s275 + $0x81c] sm:$0xf]
      %v808 = vld [vmem:[%s275 + $0x820] sm:$0xf]
      %v809 = vld [vmem:[%s275 + $0x824] sm:$0xf]
      %v810 = vld [vmem:[%s275 + $0x828] sm:$0xf]
      %v811 = vld [vmem:[%s275 + $0x82c] sm:$0xf]
      %v812 = vld [vmem:[%s275 + $0x830] sm:$0xf]
      %v813 = vld [vmem:[%s275 + $0x834] sm:$0xf]
      %v814 = vld [vmem:[%s275 + $0x838] sm:$0xf]
      %v815 = vld [vmem:[%s275 + $0x83c] sm:$0xf]
      %v816 = vld [vmem:[%s275 + $0x840] sm:$0xf]
      %v817 = vld [vmem:[%s275 + $0x844] sm:$0xf]
      %v818 = vld [vmem:[%s275 + $0x848] sm:$0xf]
      %v819 = vld [vmem:[%s275 + $0x84c] sm:$0xf]
      %v820 = vld [vmem:[%s275 + $0x850] sm:$0xf]
      %v821 = vld [vmem:[%s275 + $0x854] sm:$0xf]
      %v822 = vld [vmem:[%s275 + $0x858] sm:$0xf]
      %v823 = vld [vmem:[%s275 + $0x85c] sm:$0xf]
      %v824 = vld [vmem:[%s275 + $0x860] sm:$0xf]
      %v825 = vld [vmem:[%s275 + $0x864] sm:$0xf]
      %v826 = vld [vmem:[%s275 + $0x868] sm:$0xf]
      %v827 = vld [vmem:[%s275 + $0x86c] sm:$0xf]
      %v828 = vld [vmem:[%s275 + $0x870] sm:$0xf]
      %v829 = vld [vmem:[%s275 + $0x874] sm:$0xf]
      %v830 = vld [vmem:[%s275 + $0x878] sm:$0xf]
      %v831 = vld [vmem:[%s275 + $0x87c] sm:$0xf]
      %v832 = vld [vmem:[%s275 + $0x880] sm:$0xf]
      %v833 = vld [vmem:[%s275 + $0x884] sm:$0xf]
      %v834 = vld [vmem:[%s275 + $0x888] sm:$0xf]
      %v835 = vld [vmem:[%s275 + $0x88c] sm:$0xf]
      %v836 = vld [vmem:[%s275 + $0x890] sm:$0xf]
      %v837 = vld [vmem:[%s275 + $0x894] sm:$0xf]
      %v838 = vld [vmem:[%s275 + $0x898] sm:$0xf]
      %v839 = vld [vmem:[%s275 + $0x89c] sm:$0xf]
      %v840 = vld [vmem:[%s275 + $0x8a0] sm:$0xf]
      %v841 = vld [vmem:[%s275 + $0x8a4] sm:$0xf]
      %v842 = vld [vmem:[%s275 + $0x8a8] sm:$0xf]
      %v843 = vld [vmem:[%s275 + $0x8ac] sm:$0xf]
      %v844 = vld [vmem:[%s275 + $0x8b0] sm:$0xf]
      %v845 = vld [vmem:[%s275 + $0x8b4] sm:$0xf]
      %v846 = vld [vmem:[%s275 + $0x8b8] sm:$0xf]
      %v847 = vld [vmem:[%s275 + $0x8bc] sm:$0xf]
      %v848 = vld [vmem:[%s275 + $0x8c0] sm:$0xf]
      %v849 = vld [vmem:[%s275 + $0x8c4] sm:$0xf]
      %v850 = vld [vmem:[%s275 + $0x8c8] sm:$0xf]
      %v851 = vld [vmem:[%s275 + $0x8cc] sm:$0xf]
      %v852 = vld [vmem:[%s275 + $0x8d0] sm:$0xf]
      %v853 = vld [vmem:[%s275 + $0x8d4] sm:$0xf]
      %v854 = vld [vmem:[%s275 + $0x8d8] sm:$0xf]
      %v855 = vld [vmem:[%s275 + $0x8dc] sm:$0xf]
      %v856 = vld [vmem:[%s275 + $0x8e0] sm:$0xf]
      %v857 = vld [vmem:[%s275 + $0x8e4] sm:$0xf]
      %v858 = vld [vmem:[%s275 + $0x8e8] sm:$0xf]
      %v859 = vld [vmem:[%s275 + $0x8ec] sm:$0xf]
      %v860 = vld [vmem:[%s275 + $0x8f0] sm:$0xf]
      %v861 = vld [vmem:[%s275 + $0x8f4] sm:$0xf]
      %v862 = vld [vmem:[%s275 + $0x8f8] sm:$0xf]
      %v863 = vld [vmem:[%s275 + $0x8fc] sm:$0xf]
      %v864 = vld [vmem:[%s275 + $0x900] sm:$0xf]
      %v865 = vld [vmem:[%s275 + $0x904] sm:$0xf]
      %v866 = vld [vmem:[%s275 + $0x908] sm:$0xf]
      %v867 = vld [vmem:[%s275 + $0x90c] sm:$0xf]
      %v868 = vld [vmem:[%s275 + $0x910] sm:$0xf]
      %v869 = vld [vmem:[%s275 + $0x914] sm:$0xf]
      %v870 = vld [vmem:[%s275 + $0x918] sm:$0xf]
      %v871 = vld [vmem:[%s275 + $0x91c] sm:$0xf]
      %v872 = vld [vmem:[%s275 + $0x920] sm:$0xf]
      %v873 = vld [vmem:[%s275 + $0x924] sm:$0xf]
      %v874 = vld [vmem:[%s275 + $0x928] sm:$0xf]
      %v875 = vld [vmem:[%s275 + $0x92c] sm:$0xf]
      %v876 = vld [vmem:[%s275 + $0x930] sm:$0xf]
      %v877 = vld [vmem:[%s275 + $0x934] sm:$0xf]
      %v878 = vld [vmem:[%s275 + $0x938] sm:$0xf]
      %v879 = vld [vmem:[%s275 + $0x93c] sm:$0xf]
      %v880 = vld [vmem:[%s275 + $0x940] sm:$0xf]
      %v881 = vld [vmem:[%s275 + $0x944] sm:$0xf]
      %v882 = vld [vmem:[%s275 + $0x948] sm:$0xf]
      %v883 = vld [vmem:[%s275 + $0x94c] sm:$0xf]
      %v884 = vld [vmem:[%s275 + $0x950] sm:$0xf]
      %v885 = vld [vmem:[%s275 + $0x954] sm:$0xf]
      %v886 = vld [vmem:[%s275 + $0x958] sm:$0xf]
      %v887 = vld [vmem:[%s275 + $0x95c] sm:$0xf]
      %v888 = vld [vmem:[%s275 + $0x960] sm:$0xf]
      %v889 = vld [vmem:[%s275 + $0x964] sm:$0xf]
      %v890 = vld [vmem:[%s275 + $0x968] sm:$0xf]
      %v891 = vld [vmem:[%s275 + $0x96c] sm:$0xf]
      %v892 = vld [vmem:[%s275 + $0x970] sm:$0xf]
      %v893 = vld [vmem:[%s275 + $0x974] sm:$0xf]
      %v894 = vld [vmem:[%s275 + $0x978] sm:$0xf]
      %v895 = vld [vmem:[%s275 + $0x97c] sm:$0xf]
      %v896 = vld [vmem:[%s275 + $0x980] sm:$0xf]
      %v897 = vld [vmem:[%s275 + $0x984] sm:$0xf]
      %v898 = vld [vmem:[%s275 + $0x988] sm:$0xf]
      %v899 = vld [vmem:[%s275 + $0x98c] sm:$0xf]
      %v900 = vld [vmem:[%s275 + $0x990] sm:$0xf]
      %v901 = vld [vmem:[%s275 + $0x994] sm:$0xf]
      %v902 = vld [vmem:[%s275 + $0x998] sm:$0xf]
      %v903 = vld [vmem:[%s275 + $0x99c] sm:$0xf]
      %v904 = vld [vmem:[%s275 + $0x9a0] sm:$0xf]
      %v905 = vld [vmem:[%s275 + $0x9a4] sm:$0xf]
      %v906 = vld [vmem:[%s275 + $0x9a8] sm:$0xf]
      %v907 = vld [vmem:[%s275 + $0x9ac] sm:$0xf]
      %v908 = vld [vmem:[%s275 + $0x9b0] sm:$0xf]
      %v909 = vld [vmem:[%s275 + $0x9b4] sm:$0xf]
      %v910 = vld [vmem:[%s275 + $0x9b8] sm:$0xf]
      %v911 = vld [vmem:[%s275 + $0x9bc] sm:$0xf]
      %v912 = vld [vmem:[%s275 + $0x9c0] sm:$0xf]
      %v913 = vld [vmem:[%s275 + $0x9c4] sm:$0xf]
      %v914 = vld [vmem:[%s275 + $0x9c8] sm:$0xf]
      %v915 = vld [vmem:[%s275 + $0x9cc] sm:$0xf]
      %v916 = vld [vmem:[%s275 + $0x9d0] sm:$0xf]
      %v917 = vld [vmem:[%s275 + $0x9d4] sm:$0xf]
      %v918 = vld [vmem:[%s275 + $0x9d8] sm:$0xf]
      %v919 = vld [vmem:[%s275 + $0x9dc] sm:$0xf]
      %v920 = vld [vmem:[%s275 + $0x9e0] sm:$0xf]
      %v921 = vld [vmem:[%s275 + $0x9e4] sm:$0xf]
      %v922 = vld [vmem:[%s275 + $0x9e8] sm:$0xf]
      %v923 = vld [vmem:[%s275 + $0x9ec] sm:$0xf]
      %v924 = vld [vmem:[%s275 + $0x9f0] sm:$0xf]
      %v925 = vld [vmem:[%s275 + $0x9f4] sm:$0xf]
      %v926 = vld [vmem:[%s275 + $0x9f8] sm:$0xf]
      %v927 = vld [vmem:[%s275 + $0x9fc] sm:$0xf]
      %v928 = vld [vmem:[%s275 + $0xa00] sm:$0xf]
      %v929 = vld [vmem:[%s275 + $0xa04] sm:$0xf]
      %v930 = vld [vmem:[%s275 + $0xa08] sm:$0xf]
      %v931 = vld [vmem:[%s275 + $0xa0c] sm:$0xf]
      %v932 = vld [vmem:[%s275 + $0xa10] sm:$0xf]
      %v933 = vld [vmem:[%s275 + $0xa14] sm:$0xf]
      %v934 = vld [vmem:[%s275 + $0xa18] sm:$0xf]
      %v935 = vld [vmem:[%s275 + $0xa1c] sm:$0xf]
      %v936 = vld [vmem:[%s275 + $0xa20] sm:$0xf]
      %v937 = vld [vmem:[%s275 + $0xa24] sm:$0xf]
      %v938 = vld [vmem:[%s275 + $0xa28] sm:$0xf]
      %v939 = vld [vmem:[%s275 + $0xa2c] sm:$0xf]
      %v940 = vld [vmem:[%s275 + $0xa30] sm:$0xf]
      %v941 = vld [vmem:[%s275 + $0xa34] sm:$0xf]
      %v942 = vld [vmem:[%s275 + $0xa38] sm:$0xf]
      %v943 = vld [vmem:[%s275 + $0xa3c] sm:$0xf]
      %v944 = vld [vmem:[%s275 + $0xa40] sm:$0xf]
      %v945 = vld [vmem:[%s275 + $0xa44] sm:$0xf]
      %v946 = vld [vmem:[%s275 + $0xa48] sm:$0xf]
      %v947 = vld [vmem:[%s275 + $0xa4c] sm:$0xf]
      %v948 = vld [vmem:[%s275 + $0xa50] sm:$0xf]
      %v949 = vld [vmem:[%s275 + $0xa54] sm:$0xf]
      %v950 = vld [vmem:[%s275 + $0xa58] sm:$0xf]
      %v951 = vld [vmem:[%s275 + $0xa5c] sm:$0xf]
      %v952 = vld [vmem:[%s275 + $0xa60] sm:$0xf]
      %v953 = vld [vmem:[%s275 + $0xa64] sm:$0xf]
      %v954 = vld [vmem:[%s275 + $0xa68] sm:$0xf]
      %v955 = vld [vmem:[%s275 + $0xa6c] sm:$0xf]
      %v956 = vld [vmem:[%s275 + $0xa70] sm:$0xf]
      %v957 = vld [vmem:[%s275 + $0xa74] sm:$0xf]
      %v958 = vld [vmem:[%s275 + $0xa78] sm:$0xf]
      %v959 = vld [vmem:[%s275 + $0xa7c] sm:$0xf]
      %v960 = vld [vmem:[%s275 + $0xa80] sm:$0xf]
      %v961 = vld [vmem:[%s275 + $0xa84] sm:$0xf]
      %v962 = vld [vmem:[%s275 + $0xa88] sm:$0xf]
      %v963 = vld [vmem:[%s275 + $0xa8c] sm:$0xf]
      %v964 = vld [vmem:[%s275 + $0xa90] sm:$0xf]
      %v965 = vld [vmem:[%s275 + $0xa94] sm:$0xf]
      %v966 = vld [vmem:[%s275 + $0xa98] sm:$0xf]
      %v967 = vld [vmem:[%s275 + $0xa9c] sm:$0xf]
      %v968 = vld [vmem:[%s275 + $0xaa0] sm:$0xf]
      %v969 = vld [vmem:[%s275 + $0xaa4] sm:$0xf]
      %v970 = vld [vmem:[%s275 + $0xaa8] sm:$0xf]
      %v971 = vld [vmem:[%s275 + $0xaac] sm:$0xf]
      %v972 = vld [vmem:[%s275 + $0xab0] sm:$0xf]
      %v973 = vld [vmem:[%s275 + $0xab4] sm:$0xf]
      %v974 = vld [vmem:[%s275 + $0xab8] sm:$0xf]
      %v975 = vld [vmem:[%s275 + $0xabc] sm:$0xf]
      %v976 = vld [vmem:[%s275 + $0xac0] sm:$0xf]
      %v977 = vld [vmem:[%s275 + $0xac4] sm:$0xf]
      %v978 = vld [vmem:[%s275 + $0xac8] sm:$0xf]
      %v979 = vld [vmem:[%s275 + $0xacc] sm:$0xf]
      %v980 = vld [vmem:[%s275 + $0xad0] sm:$0xf]
      %v981 = vld [vmem:[%s275 + $0xad4] sm:$0xf]
      %v982 = vld [vmem:[%s275 + $0xad8] sm:$0xf]
      %v983 = vld [vmem:[%s275 + $0xadc] sm:$0xf]
      %v984 = vld [vmem:[%s275 + $0xae0] sm:$0xf]
      %v985 = vld [vmem:[%s275 + $0xae4] sm:$0xf]
      %v986 = vld [vmem:[%s275 + $0xae8] sm:$0xf]
      %v987 = vld [vmem:[%s275 + $0xaec] sm:$0xf]
      %v988 = vld [vmem:[%s275 + $0xaf0] sm:$0xf]
      %v989 = vld [vmem:[%s275 + $0xaf4] sm:$0xf]
      %v990 = vld [vmem:[%s275 + $0xaf8] sm:$0xf]
      %v991 = vld [vmem:[%s275 + $0xafc] sm:$0xf]
      %v992 = vld [vmem:[%s275 + $0xb00] sm:$0xf]
      %v993 = vld [vmem:[%s275 + $0xb04] sm:$0xf]
      %v994 = vld [vmem:[%s275 + $0xb08] sm:$0xf]
      %v995 = vld [vmem:[%s275 + $0xb0c] sm:$0xf]
      %v996 = vld [vmem:[%s275 + $0xb10] sm:$0xf]
      %v997 = vld [vmem:[%s275 + $0xb14] sm:$0xf]
      %v998 = vld [vmem:[%s275 + $0xb18] sm:$0xf]
      %v999 = vld [vmem:[%s275 + $0xb1c] sm:$0xf]
      %v1000 = vld [vmem:[%s275 + $0xb20] sm:$0xf]
      %v1001 = vld [vmem:[%s275 + $0xb24] sm:$0xf]
      %v1002 = vld [vmem:[%s275 + $0xb28] sm:$0xf]
      %v1003 = vld [vmem:[%s275 + $0xb2c] sm:$0xf]
      %v1004 = vld [vmem:[%s275 + $0xb30] sm:$0xf]
      %v1005 = vld [vmem:[%s275 + $0xb34] sm:$0xf]
      %v1006 = vld [vmem:[%s275 + $0xb38] sm:$0xf]
      %v1007 = vld [vmem:[%s275 + $0xb3c] sm:$0xf]
      %v1008 = vld [vmem:[%s275 + $0xb40] sm:$0xf]
      %v1009 = vld [vmem:[%s275 + $0xb44] sm:$0xf]
      %v1010 = vld [vmem:[%s275 + $0xb48] sm:$0xf]
      %v1011 = vld [vmem:[%s275 + $0xb4c] sm:$0xf]
      %v1012 = vld [vmem:[%s275 + $0xb50] sm:$0xf]
      %v1013 = vld [vmem:[%s275 + $0xb54] sm:$0xf]
      %v1014 = vld [vmem:[%s275 + $0xb58] sm:$0xf]
      %v1015 = vld [vmem:[%s275 + $0xb5c] sm:$0xf]
      %v1016 = vld [vmem:[%s275 + $0xb60] sm:$0xf]
      %v1017 = vld [vmem:[%s275 + $0xb64] sm:$0xf]
      %v1018 = vld [vmem:[%s275 + $0xb68] sm:$0xf]
      %v1019 = vld [vmem:[%s275 + $0xb6c] sm:$0xf]
      %v1020 = vld [vmem:[%s275 + $0xb70] sm:$0xf]
      %v1021 = vld [vmem:[%s275 + $0xb74] sm:$0xf]
      %v1022 = vld [vmem:[%s275 + $0xb78] sm:$0xf]
      %v1023 = vld [vmem:[%s275 + $0xb7c] sm:$0xf]
      %v1024 = vld [vmem:[%s275 + $0xb80] sm:$0xf]
      %v1025 = vld [vmem:[%s275 + $0xb84] sm:$0xf]
      %v1026 = vld [vmem:[%s275 + $0xb88] sm:$0xf]
      %v1027 = vld [vmem:[%s275 + $0xb8c] sm:$0xf]
      %v1028 = vld [vmem:[%s275 + $0xb90] sm:$0xf]
      %v1029 = vld [vmem:[%s275 + $0xb94] sm:$0xf]
      %v1030 = vld [vmem:[%s275 + $0xb98] sm:$0xf]
      %v1031 = vld [vmem:[%s275 + $0xb9c] sm:$0xf]
      %v1032 = vld [vmem:[%s275 + $0xba0] sm:$0xf]
      %v1033 = vld [vmem:[%s275 + $0xba4] sm:$0xf]
      %v1034 = vld [vmem:[%s275 + $0xba8] sm:$0xf]
      %v1035 = vld [vmem:[%s275 + $0xbac] sm:$0xf]
      %v1036 = vld [vmem:[%s275 + $0xbb0] sm:$0xf]
      %v1037 = vld [vmem:[%s275 + $0xbb4] sm:$0xf]
      %v1038 = vld [vmem:[%s275 + $0xbb8] sm:$0xf]
      %v1039 = vld [vmem:[%s275 + $0xbbc] sm:$0xf]
      %v1040 = vld [vmem:[%s275 + $0xbc0] sm:$0xf]
      %v1041 = vld [vmem:[%s275 + $0xbc4] sm:$0xf]
      %v1042 = vld [vmem:[%s275 + $0xbc8] sm:$0xf]
      %v1043 = vld [vmem:[%s275 + $0xbcc] sm:$0xf]
      %v1044 = vld [vmem:[%s275 + $0xbd0] sm:$0xf]
      %v1045 = vld [vmem:[%s275 + $0xbd4] sm:$0xf]
      %v1046 = vld [vmem:[%s275 + $0xbd8] sm:$0xf]
      %v1047 = vld [vmem:[%s275 + $0xbdc] sm:$0xf]
      %v1048 = vld [vmem:[%s275 + $0xbe0] sm:$0xf]
      %v1049 = vld [vmem:[%s275 + $0xbe4] sm:$0xf]
      %v1050 = vld [vmem:[%s275 + $0xbe8] sm:$0xf]
      %v1051 = vld [vmem:[%s275 + $0xbec] sm:$0xf]
      %v1052 = vld [vmem:[%s275 + $0xbf0] sm:$0xf]
      %v1053 = vld [vmem:[%s275 + $0xbf4] sm:$0xf]
      %v1054 = vld [vmem:[%s275 + $0xbf8] sm:$0xf]
      %v1055 = vld [vmem:[%s275 + $0xbfc] sm:$0xf]
      %v1056 = vld [vmem:[%s275 + $0xc00] sm:$0xf]
      %v1057 = vld [vmem:[%s275 + $0xc04] sm:$0xf]
      %v1058 = vld [vmem:[%s275 + $0xc08] sm:$0xf]
      %v1059 = vld [vmem:[%s275 + $0xc0c] sm:$0xf]
      %v1060 = vld [vmem:[%s275 + $0xc10] sm:$0xf]
      %v1061 = vld [vmem:[%s275 + $0xc14] sm:$0xf]
      %v1062 = vld [vmem:[%s275 + $0xc18] sm:$0xf]
      %v1063 = vld [vmem:[%s275 + $0xc1c] sm:$0xf]
      %v1064 = vld [vmem:[%s275 + $0xc20] sm:$0xf]
      %v1065 = vld [vmem:[%s275 + $0xc24] sm:$0xf]
      %v1066 = vld [vmem:[%s275 + $0xc28] sm:$0xf]
      %v1067 = vld [vmem:[%s275 + $0xc2c] sm:$0xf]
      %v1068 = vld [vmem:[%s275 + $0xc30] sm:$0xf]
      %v1069 = vld [vmem:[%s275 + $0xc34] sm:$0xf]
      %v1070 = vld [vmem:[%s275 + $0xc38] sm:$0xf]
      %v1071 = vld [vmem:[%s275 + $0xc3c] sm:$0xf]
      %v1072 = vld [vmem:[%s1] sm:$0xf]
      %v1073 = vld [vmem:[%s1 + $0x4] sm:$0xf]
      %v1074 = vld [vmem:[%s1 + $0x8] sm:$0xf]
      %v1075 = vld [vmem:[%s1 + $0xc] sm:$0xf]
      %v1076 = vld [vmem:[%s2] sm:$0x1]
      %v1078 = vlaneseq
      %v1079 = vshrl.u32 %v1078, 7
      %v1080 = vsub.s32 0, %v1079
      %v1081 = vrot.slane %v1076, %v1080
      %v1867 = vunpack.c.l.b16 %v288
      %v1868 = vunpack.c.l.b16 %v289
      %v1869 = vunpack.c.l.b16 %v290
      %v1870 = vunpack.c.l.b16 %v291
      %v1871 = vunpack.c.l.b16 %v292
      %v1872 = vunpack.c.l.b16 %v293
      %v1873 = vunpack.c.l.b16 %v294
      %v1874 = vunpack.c.l.b16 %v295
      %v1875 = vunpack.c.l.b16 %v296
      %v1876 = vunpack.c.l.b16 %v297
      %v1877 = vunpack.c.l.b16 %v298
      %v1878 = vunpack.c.l.b16 %v299
      %v1879 = vunpack.c.l.b16 %v300
      %v1880 = vunpack.c.l.b16 %v301
      %v1881 = vunpack.c.l.b16 %v302
      %v1882 = vunpack.c.l.b16 %v303
      %v1883 = vunpack.c.l.b16 %v304
      %v1884 = vunpack.c.l.b16 %v305
      %v1885 = vunpack.c.l.b16 %v306
      %v1886 = vunpack.c.l.b16 %v307
      %v1887 = vunpack.c.l.b16 %v308
      %v1888 = vunpack.c.l.b16 %v309
      %v1889 = vunpack.c.l.b16 %v310
      %v1890 = vunpack.c.l.b16 %v311
      %v1891 = vunpack.c.l.b16 %v312
      %v1892 = vunpack.c.l.b16 %v313
      %v1893 = vunpack.c.l.b16 %v314
      %v1894 = vunpack.c.l.b16 %v315
      %v1895 = vunpack.c.l.b16 %v316
      %v1896 = vunpack.c.l.b16 %v317
      %v1897 = vunpack.c.l.b16 %v318
      %v1898 = vunpack.c.l.b16 %v319
      %v1899 = vunpack.c.l.b16 %v320
      %v1900 = vunpack.c.l.b16 %v321
      %v1901 = vunpack.c.l.b16 %v322
      %v1902 = vunpack.c.l.b16 %v323
      %v1903 = vunpack.c.l.b16 %v324
      %v1904 = vunpack.c.l.b16 %v325
      %v1905 = vunpack.c.l.b16 %v326
      %v1906 = vunpack.c.l.b16 %v327
      %v1907 = vunpack.c.l.b16 %v328
      %v1908 = vunpack.c.l.b16 %v329
      %v1909 = vunpack.c.l.b16 %v330
      %v1910 = vunpack.c.l.b16 %v331
      %v1911 = vunpack.c.l.b16 %v332
      %v1912 = vunpack.c.l.b16 %v333
      %v1913 = vunpack.c.l.b16 %v334
      %v1914 = vunpack.c.l.b16 %v335
      %v1915 = vunpack.c.l.b16 %v336
      %v1916 = vunpack.c.l.b16 %v337
      %v1917 = vunpack.c.l.b16 %v338
      %v1918 = vunpack.c.l.b16 %v339
      %v1919 = vunpack.c.l.b16 %v340
      %v1920 = vunpack.c.l.b16 %v341
      %v1921 = vunpack.c.l.b16 %v342
      %v1922 = vunpack.c.l.b16 %v343
      %v1923 = vunpack.c.l.b16 %v344
      %v1924 = vunpack.c.l.b16 %v345
      %v1925 = vunpack.c.l.b16 %v346
      %v1926 = vunpack.c.l.b16 %v347
      %v1927 = vunpack.c.l.b16 %v348
      %v1928 = vunpack.c.l.b16 %v349
      %v1929 = vunpack.c.l.b16 %v350
      %v1930 = vunpack.c.l.b16 %v351
      %v1931 = vunpack.c.l.b16 %v352
      %v1932 = vunpack.c.l.b16 %v353
      %v1933 = vunpack.c.l.b16 %v354
      %v1934 = vunpack.c.l.b16 %v355
      %v1935 = vunpack.c.l.b16 %v356
      %v1936 = vunpack.c.l.b16 %v357
      %v1937 = vunpack.c.l.b16 %v358
      %v1938 = vunpack.c.l.b16 %v359
      %v1939 = vunpack.c.l.b16 %v360
      %v1940 = vunpack.c.l.b16 %v361
      %v1941 = vunpack.c.l.b16 %v362
      %v1942 = vunpack.c.l.b16 %v363
      %v1943 = vunpack.c.l.b16 %v364
      %v1944 = vunpack.c.l.b16 %v365
      %v1945 = vunpack.c.l.b16 %v366
      %v1946 = vunpack.c.l.b16 %v367
      %v1947 = vunpack.c.l.b16 %v368
      %v1948 = vunpack.c.l.b16 %v369
      %v1949 = vunpack.c.l.b16 %v370
      %v1950 = vunpack.c.l.b16 %v371
      %v1951 = vunpack.c.l.b16 %v372
      %v1952 = vunpack.c.l.b16 %v373
      %v1953 = vunpack.c.l.b16 %v374
      %v1954 = vunpack.c.l.b16 %v375
      %v1955 = vunpack.c.l.b16 %v376
      %v1956 = vunpack.c.l.b16 %v377
      %v1957 = vunpack.c.l.b16 %v378
      %v1958 = vunpack.c.l.b16 %v379
      %v1959 = vunpack.c.l.b16 %v380
      %v1960 = vunpack.c.l.b16 %v381
      %v1961 = vunpack.c.l.b16 %v382
      %v1962 = vunpack.c.l.b16 %v383
      %v1963 = vunpack.c.l.b16 %v384
      %v1964 = vunpack.c.l.b16 %v385
      %v1965 = vunpack.c.l.b16 %v386
      %v1966 = vunpack.c.l.b16 %v387
      %v1967 = vunpack.c.l.b16 %v388
      %v1968 = vunpack.c.l.b16 %v389
      %v1969 = vunpack.c.l.b16 %v390
      %v1970 = vunpack.c.l.b16 %v391
      %v1971 = vunpack.c.l.b16 %v392
      %v1972 = vunpack.c.l.b16 %v393
      %v1973 = vunpack.c.l.b16 %v394
      %v1974 = vunpack.c.l.b16 %v395
      %v1975 = vunpack.c.l.b16 %v396
      %v1976 = vunpack.c.l.b16 %v397
      %v1977 = vunpack.c.l.b16 %v398
      %v1978 = vunpack.c.l.b16 %v399
      %v1979 = vunpack.c.l.b16 %v400
      %v1980 = vunpack.c.l.b16 %v401
      %v1981 = vunpack.c.l.b16 %v402
      %v1982 = vunpack.c.l.b16 %v403
      %v1983 = vunpack.c.l.b16 %v404
      %v1984 = vunpack.c.l.b16 %v405
      %v1985 = vunpack.c.l.b16 %v406
      %v1986 = vunpack.c.l.b16 %v407
      %v1987 = vunpack.c.l.b16 %v408
      %v1988 = vunpack.c.l.b16 %v409
      %v1989 = vunpack.c.l.b16 %v410
      %v1990 = vunpack.c.l.b16 %v411
      %v1991 = vunpack.c.l.b16 %v412
      %v1992 = vunpack.c.l.b16 %v413
      %v1993 = vunpack.c.l.b16 %v414
      %v1994 = vunpack.c.l.b16 %v415
      %v1995 = vunpack.c.l.b16 %v416
      %v1996 = vunpack.c.l.b16 %v417
      %v1997 = vunpack.c.l.b16 %v418
      %v1998 = vunpack.c.l.b16 %v419
      %v1999 = vunpack.c.l.b16 %v420
      %v2000 = vunpack.c.l.b16 %v421
      %v2001 = vunpack.c.l.b16 %v422
      %v2002 = vunpack.c.l.b16 %v423
      %v2003 = vunpack.c.l.b16 %v424
      %v2004 = vunpack.c.l.b16 %v425
      %v2005 = vunpack.c.l.b16 %v426
      %v2006 = vunpack.c.l.b16 %v427
      %v2007 = vunpack.c.l.b16 %v428
      %v2008 = vunpack.c.l.b16 %v429
      %v2009 = vunpack.c.l.b16 %v430
      %v2010 = vunpack.c.l.b16 %v431
      %v2011 = vunpack.c.l.b16 %v432
      %v2012 = vunpack.c.l.b16 %v433
      %v2013 = vunpack.c.l.b16 %v434
      %v2014 = vunpack.c.l.b16 %v435
      %v2015 = vunpack.c.l.b16 %v436
      %v2016 = vunpack.c.l.b16 %v437
      %v2017 = vunpack.c.l.b16 %v438
      %v2018 = vunpack.c.l.b16 %v439
      %v2019 = vunpack.c.l.b16 %v440
      %v2020 = vunpack.c.l.b16 %v441
      %v2021 = vunpack.c.l.b16 %v442
      %v2022 = vunpack.c.l.b16 %v443
      %v2023 = vunpack.c.l.b16 %v444
      %v2024 = vunpack.c.l.b16 %v445
      %v2025 = vunpack.c.l.b16 %v446
      %v2026 = vunpack.c.l.b16 %v447
      %v2027 = vunpack.c.l.b16 %v448
      %v2028 = vunpack.c.l.b16 %v449
      %v2029 = vunpack.c.l.b16 %v450
      %v2030 = vunpack.c.l.b16 %v451
      %v2031 = vunpack.c.l.b16 %v452
      %v2032 = vunpack.c.l.b16 %v453
      %v2033 = vunpack.c.l.b16 %v454
      %v2034 = vunpack.c.l.b16 %v455
      %v2035 = vunpack.c.l.b16 %v456
      %v2036 = vunpack.c.l.b16 %v457
      %v2037 = vunpack.c.l.b16 %v458
      %v2038 = vunpack.c.l.b16 %v459
      %v2039 = vunpack.c.l.b16 %v460
      %v2040 = vunpack.c.l.b16 %v461
      %v2041 = vunpack.c.l.b16 %v462
      %v2042 = vunpack.c.l.b16 %v463
      %v2043 = vunpack.c.l.b16 %v464
      %v2044 = vunpack.c.l.b16 %v465
      %v2045 = vunpack.c.l.b16 %v466
      %v2046 = vunpack.c.l.b16 %v467
      %v2047 = vunpack.c.l.b16 %v468
      %v2048 = vunpack.c.l.b16 %v469
      %v2049 = vunpack.c.l.b16 %v470
      %v2050 = vunpack.c.l.b16 %v471
      %v2051 = vunpack.c.l.b16 %v472
      %v2052 = vunpack.c.l.b16 %v473
      %v2053 = vunpack.c.l.b16 %v474
      %v2054 = vunpack.c.l.b16 %v475
      %v2055 = vunpack.c.l.b16 %v476
      %v2056 = vunpack.c.l.b16 %v477
      %v2057 = vunpack.c.l.b16 %v478
      %v2058 = vunpack.c.l.b16 %v479
      %v2059 = vunpack.c.l.b16 %v480
      %v2060 = vunpack.c.l.b16 %v481
      %v2061 = vunpack.c.l.b16 %v482
      %v2062 = vunpack.c.l.b16 %v483
      %v2063 = vunpack.c.l.b16 %v484
      %v2064 = vunpack.c.l.b16 %v485
      %v2065 = vunpack.c.l.b16 %v486
      %v2066 = vunpack.c.l.b16 %v487
      %v2067 = vunpack.c.l.b16 %v488
      %v2068 = vunpack.c.l.b16 %v489
      %v2069 = vunpack.c.l.b16 %v490
      %v2070 = vunpack.c.l.b16 %v491
      %v2071 = vunpack.c.l.b16 %v492
      %v2072 = vunpack.c.l.b16 %v493
      %v2073 = vunpack.c.l.b16 %v494
      %v2074 = vunpack.c.l.b16 %v495
      %v2075 = vunpack.c.l.b16 %v496
      %v2076 = vunpack.c.l.b16 %v497
      %v2077 = vunpack.c.l.b16 %v498
      %v2078 = vunpack.c.l.b16 %v499
      %v2079 = vunpack.c.l.b16 %v500
      %v2080 = vunpack.c.l.b16 %v501
      %v2081 = vunpack.c.l.b16 %v502
      %v2082 = vunpack.c.l.b16 %v503
      %v2083 = vunpack.c.l.b16 %v504
      %v2084 = vunpack.c.l.b16 %v505
      %v2085 = vunpack.c.l.b16 %v506
      %v2086 = vunpack.c.l.b16 %v507
      %v2087 = vunpack.c.l.b16 %v508
      %v2088 = vunpack.c.l.b16 %v509
      %v2089 = vunpack.c.l.b16 %v510
      %v2090 = vunpack.c.l.b16 %v511
      %v2091 = vunpack.c.l.b16 %v512
      %v2092 = vunpack.c.l.b16 %v513
      %v2093 = vunpack.c.l.b16 %v514
      %v2094 = vunpack.c.l.b16 %v515
      %v2095 = vunpack.c.l.b16 %v516
      %v2096 = vunpack.c.l.b16 %v517
      %v2097 = vunpack.c.l.b16 %v518
      %v2098 = vunpack.c.l.b16 %v519
      %v2099 = vunpack.c.l.b16 %v520
      %v2100 = vunpack.c.l.b16 %v521
      %v2101 = vunpack.c.l.b16 %v522
      %v2102 = vunpack.c.l.b16 %v523
      %v2103 = vunpack.c.l.b16 %v524
      %v2104 = vunpack.c.l.b16 %v525
      %v2105 = vunpack.c.l.b16 %v526
      %v2106 = vunpack.c.l.b16 %v527
      %v2107 = vunpack.c.l.b16 %v528
      %v2108 = vunpack.c.l.b16 %v529
      %v2109 = vunpack.c.l.b16 %v530
      %v2110 = vunpack.c.l.b16 %v531
      %v2111 = vunpack.c.l.b16 %v532
      %v2112 = vunpack.c.l.b16 %v533
      %v2113 = vunpack.c.l.b16 %v534
      %v2114 = vunpack.c.l.b16 %v535
      %v2115 = vunpack.c.l.b16 %v536
      %v2116 = vunpack.c.l.b16 %v537
      %v2117 = vunpack.c.l.b16 %v538
      %v2118 = vunpack.c.l.b16 %v539
      %v2119 = vunpack.c.l.b16 %v540
      %v2120 = vunpack.c.l.b16 %v541
      %v2121 = vunpack.c.l.b16 %v542
      %v2122 = vunpack.c.l.b16 %v543
      %v2123 = vunpack.c.l.b16 %v544
      %v2124 = vunpack.c.l.b16 %v545
      %v2125 = vunpack.c.l.b16 %v546
      %v2126 = vunpack.c.l.b16 %v547
      %v2127 = vunpack.c.l.b16 %v548
      %v2128 = vunpack.c.l.b16 %v549
      %v2129 = vunpack.c.l.b16 %v550
      %v2130 = vunpack.c.l.b16 %v551
      %v2131 = vunpack.c.l.b16 %v552
      %v2132 = vunpack.c.l.b16 %v553
      %v2133 = vunpack.c.l.b16 %v554
      %v2134 = vunpack.c.l.b16 %v555
      %v2135 = vunpack.c.l.b16 %v556
      %v2136 = vunpack.c.l.b16 %v557
      %v2137 = vunpack.c.l.b16 %v558
      %v2138 = vunpack.c.l.b16 %v559
      %v2139 = vunpack.c.l.b16 %v560
      %v2140 = vunpack.c.l.b16 %v561
      %v2141 = vunpack.c.l.b16 %v562
      %v2142 = vunpack.c.l.b16 %v563
      %v2143 = vunpack.c.l.b16 %v564
      %v2144 = vunpack.c.l.b16 %v565
      %v2145 = vunpack.c.l.b16 %v566
      %v2146 = vunpack.c.l.b16 %v567
      %v2147 = vunpack.c.l.b16 %v568
      %v2148 = vunpack.c.l.b16 %v569
      %v2149 = vunpack.c.l.b16 %v570
      %v2150 = vunpack.c.l.b16 %v571
      %v2151 = vunpack.c.l.b16 %v572
      %v2152 = vunpack.c.l.b16 %v573
      %v2153 = vunpack.c.l.b16 %v574
      %v2154 = vunpack.c.l.b16 %v575
      %v2155 = vunpack.c.l.b16 %v576
      %v2156 = vunpack.c.l.b16 %v577
      %v2157 = vunpack.c.l.b16 %v578
      %v2158 = vunpack.c.l.b16 %v579
      %v2159 = vunpack.c.l.b16 %v580
      %v2160 = vunpack.c.l.b16 %v581
      %v2161 = vunpack.c.l.b16 %v582
      %v2162 = vunpack.c.l.b16 %v583
      %v2163 = vunpack.c.l.b16 %v584
      %v2164 = vunpack.c.l.b16 %v585
      %v2165 = vunpack.c.l.b16 %v586
      %v2166 = vunpack.c.l.b16 %v587
      %v2167 = vunpack.c.l.b16 %v588
      %v2168 = vunpack.c.l.b16 %v589
      %v2169 = vunpack.c.l.b16 %v590
      %v2170 = vunpack.c.l.b16 %v591
      %v2171 = vunpack.c.l.b16 %v592
      %v2172 = vunpack.c.l.b16 %v593
      %v2173 = vunpack.c.l.b16 %v594
      %v2174 = vunpack.c.l.b16 %v595
      %v2175 = vunpack.c.l.b16 %v596
      %v2176 = vunpack.c.l.b16 %v597
      %v2177 = vunpack.c.l.b16 %v598
      %v2178 = vunpack.c.l.b16 %v599
      %v2179 = vunpack.c.l.b16 %v600
      %v2180 = vunpack.c.l.b16 %v601
      %v2181 = vunpack.c.l.b16 %v602
      %v2182 = vunpack.c.l.b16 %v603
      %v2183 = vunpack.c.l.b16 %v604
      %v2184 = vunpack.c.l.b16 %v605
      %v2185 = vunpack.c.l.b16 %v606
      %v2186 = vunpack.c.l.b16 %v607
      %v2187 = vunpack.c.l.b16 %v608
      %v2188 = vunpack.c.l.b16 %v609
      %v2189 = vunpack.c.l.b16 %v610
      %v2190 = vunpack.c.l.b16 %v611
      %v2191 = vunpack.c.l.b16 %v612
      %v2192 = vunpack.c.l.b16 %v613
      %v2193 = vunpack.c.l.b16 %v614
      %v2194 = vunpack.c.l.b16 %v615
      %v2195 = vunpack.c.l.b16 %v616
      %v2196 = vunpack.c.l.b16 %v617
      %v2197 = vunpack.c.l.b16 %v618
      %v2198 = vunpack.c.l.b16 %v619
      %v2199 = vunpack.c.l.b16 %v620
      %v2200 = vunpack.c.l.b16 %v621
      %v2201 = vunpack.c.l.b16 %v622
      %v2202 = vunpack.c.l.b16 %v623
      %v2203 = vunpack.c.l.b16 %v624
      %v2204 = vunpack.c.l.b16 %v625
      %v2205 = vunpack.c.l.b16 %v626
      %v2206 = vunpack.c.l.b16 %v627
      %v2207 = vunpack.c.l.b16 %v628
      %v2208 = vunpack.c.l.b16 %v629
      %v2209 = vunpack.c.l.b16 %v630
      %v2210 = vunpack.c.l.b16 %v631
      %v2211 = vunpack.c.l.b16 %v632
      %v2212 = vunpack.c.l.b16 %v633
      %v2213 = vunpack.c.l.b16 %v634
      %v2214 = vunpack.c.l.b16 %v635
      %v2215 = vunpack.c.l.b16 %v636
      %v2216 = vunpack.c.l.b16 %v637
      %v2217 = vunpack.c.l.b16 %v638
      %v2218 = vunpack.c.l.b16 %v639
      %v2219 = vunpack.c.l.b16 %v640
      %v2220 = vunpack.c.l.b16 %v641
      %v2221 = vunpack.c.l.b16 %v642
      %v2222 = vunpack.c.l.b16 %v643
      %v2223 = vunpack.c.l.b16 %v644
      %v2224 = vunpack.c.l.b16 %v645
      %v2225 = vunpack.c.l.b16 %v646
      %v2226 = vunpack.c.l.b16 %v647
      %v2227 = vunpack.c.l.b16 %v648
      %v2228 = vunpack.c.l.b16 %v649
      %v2229 = vunpack.c.l.b16 %v650
      %v2230 = vunpack.c.l.b16 %v651
      %v2231 = vunpack.c.l.b16 %v652
      %v2232 = vunpack.c.l.b16 %v653
      %v2233 = vunpack.c.l.b16 %v654
      %v2234 = vunpack.c.l.b16 %v655
      %v2235 = vunpack.c.l.b16 %v656
      %v2236 = vunpack.c.l.b16 %v657
      %v2237 = vunpack.c.l.b16 %v658
      %v2238 = vunpack.c.l.b16 %v659
      %v2239 = vunpack.c.l.b16 %v660
      %v2240 = vunpack.c.l.b16 %v661
      %v2241 = vunpack.c.l.b16 %v662
      %v2242 = vunpack.c.l.b16 %v663
      %v2243 = vunpack.c.l.b16 %v664
      %v2244 = vunpack.c.l.b16 %v665
      %v2245 = vunpack.c.l.b16 %v666
      %v2246 = vunpack.c.l.b16 %v667
      %v2247 = vunpack.c.l.b16 %v668
      %v2248 = vunpack.c.l.b16 %v669
      %v2249 = vunpack.c.l.b16 %v670
      %v2250 = vunpack.c.l.b16 %v671
      %v2251 = vunpack.c.l.b16 %v672
      %v2252 = vunpack.c.l.b16 %v673
      %v2253 = vunpack.c.l.b16 %v674
      %v2254 = vunpack.c.l.b16 %v675
      %v2255 = vunpack.c.l.b16 %v676
      %v2256 = vunpack.c.l.b16 %v677
      %v2257 = vunpack.c.l.b16 %v678
      %v2258 = vunpack.c.l.b16 %v679
      %v2259 = vunpack.c.l.b16 %v680
      %v2260 = vunpack.c.l.b16 %v681
      %v2261 = vunpack.c.l.b16 %v682
      %v2262 = vunpack.c.l.b16 %v683
      %v2263 = vunpack.c.l.b16 %v684
      %v2264 = vunpack.c.l.b16 %v685
      %v2265 = vunpack.c.l.b16 %v686
      %v2266 = vunpack.c.l.b16 %v687
      %v2267 = vunpack.c.l.b16 %v688
      %v2268 = vunpack.c.l.b16 %v689
      %v2269 = vunpack.c.l.b16 %v690
      %v2270 = vunpack.c.l.b16 %v691
      %v2271 = vunpack.c.l.b16 %v692
      %v2272 = vunpack.c.l.b16 %v693
      %v2273 = vunpack.c.l.b16 %v694
      %v2274 = vunpack.c.l.b16 %v695
      %v2275 = vunpack.c.l.b16 %v696
      %v2276 = vunpack.c.l.b16 %v697
      %v2277 = vunpack.c.l.b16 %v698
      %v2278 = vunpack.c.l.b16 %v699
      %v2279 = vunpack.c.l.b16 %v700
      %v2280 = vunpack.c.l.b16 %v701
      %v2281 = vunpack.c.l.b16 %v702
      %v2282 = vunpack.c.l.b16 %v703
      %v2283 = vunpack.c.l.b16 %v704
      %v2284 = vunpack.c.l.b16 %v705
      %v2285 = vunpack.c.l.b16 %v706
      %v2286 = vunpack.c.l.b16 %v707
      %v2287 = vunpack.c.l.b16 %v708
      %v2288 = vunpack.c.l.b16 %v709
      %v2289 = vunpack.c.l.b16 %v710
      %v2290 = vunpack.c.l.b16 %v711
      %v2291 = vunpack.c.l.b16 %v712
      %v2292 = vunpack.c.l.b16 %v713
      %v2293 = vunpack.c.l.b16 %v714
      %v2294 = vunpack.c.l.b16 %v715
      %v2295 = vunpack.c.l.b16 %v716
      %v2296 = vunpack.c.l.b16 %v717
      %v2297 = vunpack.c.l.b16 %v718
      %v2298 = vunpack.c.l.b16 %v719
      %v2299 = vunpack.c.l.b16 %v720
      %v2300 = vunpack.c.l.b16 %v721
      %v2301 = vunpack.c.l.b16 %v722
      %v2302 = vunpack.c.l.b16 %v723
      %v2303 = vunpack.c.l.b16 %v724
      %v2304 = vunpack.c.l.b16 %v725
      %v2305 = vunpack.c.l.b16 %v726
      %v2306 = vunpack.c.l.b16 %v727
      %v2307 = vunpack.c.l.b16 %v728
      %v2308 = vunpack.c.l.b16 %v729
      %v2309 = vunpack.c.l.b16 %v730
      %v2310 = vunpack.c.l.b16 %v731
      %v2311 = vunpack.c.l.b16 %v732
      %v2312 = vunpack.c.l.b16 %v733
      %v2313 = vunpack.c.l.b16 %v734
      %v2314 = vunpack.c.l.b16 %v735
      %v2315 = vunpack.c.l.b16 %v736
      %v2316 = vunpack.c.l.b16 %v737
      %v2317 = vunpack.c.l.b16 %v738
      %v2318 = vunpack.c.l.b16 %v739
      %v2319 = vunpack.c.l.b16 %v740
      %v2320 = vunpack.c.l.b16 %v741
      %v2321 = vunpack.c.l.b16 %v742
      %v2322 = vunpack.c.l.b16 %v743
      %v2323 = vunpack.c.l.b16 %v744
      %v2324 = vunpack.c.l.b16 %v745
      %v2325 = vunpack.c.l.b16 %v746
      %v2326 = vunpack.c.l.b16 %v747
      %v2327 = vunpack.c.l.b16 %v748
      %v2328 = vunpack.c.l.b16 %v749
      %v2329 = vunpack.c.l.b16 %v750
      %v2330 = vunpack.c.l.b16 %v751
      %v2331 = vunpack.c.l.b16 %v752
      %v2332 = vunpack.c.l.b16 %v753
      %v2333 = vunpack.c.l.b16 %v754
      %v2334 = vunpack.c.l.b16 %v755
      %v2335 = vunpack.c.l.b16 %v756
      %v2336 = vunpack.c.l.b16 %v757
      %v2337 = vunpack.c.l.b16 %v758
      %v2338 = vunpack.c.l.b16 %v759
      %v2339 = vunpack.c.l.b16 %v760
      %v2340 = vunpack.c.l.b16 %v761
      %v2341 = vunpack.c.l.b16 %v762
      %v2342 = vunpack.c.l.b16 %v763
      %v2343 = vunpack.c.l.b16 %v764
      %v2344 = vunpack.c.l.b16 %v765
      %v2345 = vunpack.c.l.b16 %v766
      %v2346 = vunpack.c.l.b16 %v767
      %v2347 = vunpack.c.l.b16 %v768
      %v2348 = vunpack.c.l.b16 %v769
      %v2349 = vunpack.c.l.b16 %v770
      %v2350 = vunpack.c.l.b16 %v771
      %v2351 = vunpack.c.l.b16 %v772
      %v2352 = vunpack.c.l.b16 %v773
      %v2353 = vunpack.c.l.b16 %v774
      %v2354 = vunpack.c.l.b16 %v775
      %v2355 = vunpack.c.l.b16 %v776
      %v2356 = vunpack.c.l.b16 %v777
      %v2357 = vunpack.c.l.b16 %v778
      %v2358 = vunpack.c.l.b16 %v779
      %v2359 = vunpack.c.l.b16 %v780
      %v2360 = vunpack.c.l.b16 %v781
      %v2361 = vunpack.c.l.b16 %v782
      %v2362 = vunpack.c.l.b16 %v783
      %v2363 = vunpack.c.l.b16 %v784
      %v2364 = vunpack.c.l.b16 %v785
      %v2365 = vunpack.c.l.b16 %v786
      %v2366 = vunpack.c.l.b16 %v787
      %v2367 = vunpack.c.l.b16 %v788
      %v2368 = vunpack.c.l.b16 %v789
      %v2369 = vunpack.c.l.b16 %v790
      %v2370 = vunpack.c.l.b16 %v791
      %v2371 = vunpack.c.l.b16 %v792
      %v2372 = vunpack.c.l.b16 %v793
      %v2373 = vunpack.c.l.b16 %v794
      %v2374 = vunpack.c.l.b16 %v795
      %v2375 = vunpack.c.l.b16 %v796
      %v2376 = vunpack.c.l.b16 %v797
      %v2377 = vunpack.c.l.b16 %v798
      %v2378 = vunpack.c.l.b16 %v799
      %v2379 = vunpack.c.l.b16 %v800
      %v2380 = vunpack.c.l.b16 %v801
      %v2381 = vunpack.c.l.b16 %v802
      %v2382 = vunpack.c.l.b16 %v803
      %v2383 = vunpack.c.l.b16 %v804
      %v2384 = vunpack.c.l.b16 %v805
      %v2385 = vunpack.c.l.b16 %v806
      %v2386 = vunpack.c.l.b16 %v807
      %v2387 = vunpack.c.l.b16 %v808
      %v2388 = vunpack.c.l.b16 %v809
      %v2389 = vunpack.c.l.b16 %v810
      %v2390 = vunpack.c.l.b16 %v811
      %v2391 = vunpack.c.l.b16 %v812
      %v2392 = vunpack.c.l.b16 %v813
      %v2393 = vunpack.c.l.b16 %v814
      %v2394 = vunpack.c.l.b16 %v815
      %v2395 = vunpack.c.l.b16 %v816
      %v2396 = vunpack.c.l.b16 %v817
      %v2397 = vunpack.c.l.b16 %v818
      %v2398 = vunpack.c.l.b16 %v819
      %v2399 = vunpack.c.l.b16 %v820
      %v2400 = vunpack.c.l.b16 %v821
      %v2401 = vunpack.c.l.b16 %v822
      %v2402 = vunpack.c.l.b16 %v823
      %v2403 = vunpack.c.l.b16 %v824
      %v2404 = vunpack.c.l.b16 %v825
      %v2405 = vunpack.c.l.b16 %v826
      %v2406 = vunpack.c.l.b16 %v827
      %v2407 = vunpack.c.l.b16 %v828
      %v2408 = vunpack.c.l.b16 %v829
      %v2409 = vunpack.c.l.b16 %v830
      %v2410 = vunpack.c.l.b16 %v831
      %v2411 = vunpack.c.l.b16 %v832
      %v2412 = vunpack.c.l.b16 %v833
      %v2413 = vunpack.c.l.b16 %v834
      %v2414 = vunpack.c.l.b16 %v835
      %v2415 = vunpack.c.l.b16 %v836
      %v2416 = vunpack.c.l.b16 %v837
      %v2417 = vunpack.c.l.b16 %v838
      %v2418 = vunpack.c.l.b16 %v839
      %v2419 = vunpack.c.l.b16 %v840
      %v2420 = vunpack.c.l.b16 %v841
      %v2421 = vunpack.c.l.b16 %v842
      %v2422 = vunpack.c.l.b16 %v843
      %v2423 = vunpack.c.l.b16 %v844
      %v2424 = vunpack.c.l.b16 %v845
      %v2425 = vunpack.c.l.b16 %v846
      %v2426 = vunpack.c.l.b16 %v847
      %v2427 = vunpack.c.l.b16 %v848
      %v2428 = vunpack.c.l.b16 %v849
      %v2429 = vunpack.c.l.b16 %v850
      %v2430 = vunpack.c.l.b16 %v851
      %v2431 = vunpack.c.l.b16 %v852
      %v2432 = vunpack.c.l.b16 %v853
      %v2433 = vunpack.c.l.b16 %v854
      %v2434 = vunpack.c.l.b16 %v855
      %v2435 = vunpack.c.l.b16 %v856
      %v2436 = vunpack.c.l.b16 %v857
      %v2437 = vunpack.c.l.b16 %v858
      %v2438 = vunpack.c.l.b16 %v859
      %v2439 = vunpack.c.l.b16 %v860
      %v2440 = vunpack.c.l.b16 %v861
      %v2441 = vunpack.c.l.b16 %v862
      %v2442 = vunpack.c.l.b16 %v863
      %v2443 = vunpack.c.l.b16 %v864
      %v2444 = vunpack.c.l.b16 %v865
      %v2445 = vunpack.c.l.b16 %v866
      %v2446 = vunpack.c.l.b16 %v867
      %v2447 = vunpack.c.l.b16 %v868
      %v2448 = vunpack.c.l.b16 %v869
      %v2449 = vunpack.c.l.b16 %v870
      %v2450 = vunpack.c.l.b16 %v871
      %v2451 = vunpack.c.l.b16 %v872
      %v2452 = vunpack.c.l.b16 %v873
      %v2453 = vunpack.c.l.b16 %v874
      %v2454 = vunpack.c.l.b16 %v875
      %v2455 = vunpack.c.l.b16 %v876
      %v2456 = vunpack.c.l.b16 %v877
      %v2457 = vunpack.c.l.b16 %v878
      %v2458 = vunpack.c.l.b16 %v879
      %v2459 = vunpack.c.l.b16 %v880
      %v2460 = vunpack.c.l.b16 %v881
      %v2461 = vunpack.c.l.b16 %v882
      %v2462 = vunpack.c.l.b16 %v883
      %v2463 = vunpack.c.l.b16 %v884
      %v2464 = vunpack.c.l.b16 %v885
      %v2465 = vunpack.c.l.b16 %v886
      %v2466 = vunpack.c.l.b16 %v887
      %v2467 = vunpack.c.l.b16 %v888
      %v2468 = vunpack.c.l.b16 %v889
      %v2469 = vunpack.c.l.b16 %v890
      %v2470 = vunpack.c.l.b16 %v891
      %v2471 = vunpack.c.l.b16 %v892
      %v2472 = vunpack.c.l.b16 %v893
      %v2473 = vunpack.c.l.b16 %v894
      %v2474 = vunpack.c.l.b16 %v895
      %v2475 = vunpack.c.l.b16 %v896
      %v2476 = vunpack.c.l.b16 %v897
      %v2477 = vunpack.c.l.b16 %v898
      %v2478 = vunpack.c.l.b16 %v899
      %v2479 = vunpack.c.l.b16 %v900
      %v2480 = vunpack.c.l.b16 %v901
      %v2481 = vunpack.c.l.b16 %v902
      %v2482 = vunpack.c.l.b16 %v903
      %v2483 = vunpack.c.l.b16 %v904
      %v2484 = vunpack.c.l.b16 %v905
      %v2485 = vunpack.c.l.b16 %v906
      %v2486 = vunpack.c.l.b16 %v907
      %v2487 = vunpack.c.l.b16 %v908
      %v2488 = vunpack.c.l.b16 %v909
      %v2489 = vunpack.c.l.b16 %v910
      %v2490 = vunpack.c.l.b16 %v911
      %v2491 = vunpack.c.l.b16 %v912
      %v2492 = vunpack.c.l.b16 %v913
      %v2493 = vunpack.c.l.b16 %v914
      %v2494 = vunpack.c.l.b16 %v915
      %v2495 = vunpack.c.l.b16 %v916
      %v2496 = vunpack.c.l.b16 %v917
      %v2497 = vunpack.c.l.b16 %v918
      %v2498 = vunpack.c.l.b16 %v919
      %v2499 = vunpack.c.l.b16 %v920
      %v2500 = vunpack.c.l.b16 %v921
      %v2501 = vunpack.c.l.b16 %v922
      %v2502 = vunpack.c.l.b16 %v923
      %v2503 = vunpack.c.l.b16 %v924
      %v2504 = vunpack.c.l.b16 %v925
      %v2505 = vunpack.c.l.b16 %v926
      %v2506 = vunpack.c.l.b16 %v927
      %v2507 = vunpack.c.l.b16 %v928
      %v2508 = vunpack.c.l.b16 %v929
      %v2509 = vunpack.c.l.b16 %v930
      %v2510 = vunpack.c.l.b16 %v931
      %v2511 = vunpack.c.l.b16 %v932
      %v2512 = vunpack.c.l.b16 %v933
      %v2513 = vunpack.c.l.b16 %v934
      %v2514 = vunpack.c.l.b16 %v935
      %v2515 = vunpack.c.l.b16 %v936
      %v2516 = vunpack.c.l.b16 %v937
      %v2517 = vunpack.c.l.b16 %v938
      %v2518 = vunpack.c.l.b16 %v939
      %v2519 = vunpack.c.l.b16 %v940
      %v2520 = vunpack.c.l.b16 %v941
      %v2521 = vunpack.c.l.b16 %v942
      %v2522 = vunpack.c.l.b16 %v943
      %v2523 = vunpack.c.l.b16 %v944
      %v2524 = vunpack.c.l.b16 %v945
      %v2525 = vunpack.c.l.b16 %v946
      %v2526 = vunpack.c.l.b16 %v947
      %v2527 = vunpack.c.l.b16 %v948
      %v2528 = vunpack.c.l.b16 %v949
      %v2529 = vunpack.c.l.b16 %v950
      %v2530 = vunpack.c.l.b16 %v951
      %v2531 = vunpack.c.l.b16 %v952
      %v2532 = vunpack.c.l.b16 %v953
      %v2533 = vunpack.c.l.b16 %v954
      %v2534 = vunpack.c.l.b16 %v955
      %v2535 = vunpack.c.l.b16 %v956
      %v2536 = vunpack.c.l.b16 %v957
      %v2537 = vunpack.c.l.b16 %v958
      %v2538 = vunpack.c.l.b16 %v959
      %v2539 = vunpack.c.l.b16 %v960
      %v2540 = vunpack.c.l.b16 %v961
      %v2541 = vunpack.c.l.b16 %v962
      %v2542 = vunpack.c.l.b16 %v963
      %v2543 = vunpack.c.l.b16 %v964
      %v2544 = vunpack.c.l.b16 %v965
      %v2545 = vunpack.c.l.b16 %v966
      %v2546 = vunpack.c.l.b16 %v967
      %v2547 = vunpack.c.l.b16 %v968
      %v2548 = vunpack.c.l.b16 %v969
      %v2549 = vunpack.c.l.b16 %v970
      %v2550 = vunpack.c.l.b16 %v971
      %v2551 = vunpack.c.l.b16 %v972
      %v2552 = vunpack.c.l.b16 %v973
      %v2553 = vunpack.c.l.b16 %v974
      %v2554 = vunpack.c.l.b16 %v975
      %v2555 = vunpack.c.l.b16 %v976
      %v2556 = vunpack.c.l.b16 %v977
      %v2557 = vunpack.c.l.b16 %v978
      %v2558 = vunpack.c.l.b16 %v979
      %v2559 = vunpack.c.l.b16 %v980
      %v2560 = vunpack.c.l.b16 %v981
      %v2561 = vunpack.c.l.b16 %v982
      %v2562 = vunpack.c.l.b16 %v983
      %v2563 = vunpack.c.l.b16 %v984
      %v2564 = vunpack.c.l.b16 %v985
      %v2565 = vunpack.c.l.b16 %v986
      %v2566 = vunpack.c.l.b16 %v987
      %v2567 = vunpack.c.l.b16 %v988
      %v2568 = vunpack.c.l.b16 %v989
      %v2569 = vunpack.c.l.b16 %v990
      %v2570 = vunpack.c.l.b16 %v991
      %v2571 = vunpack.c.l.b16 %v992
      %v2572 = vunpack.c.l.b16 %v993
      %v2573 = vunpack.c.l.b16 %v994
      %v2574 = vunpack.c.l.b16 %v995
      %v2575 = vunpack.c.l.b16 %v996
      %v2576 = vunpack.c.l.b16 %v997
      %v2577 = vunpack.c.l.b16 %v998
      %v2578 = vunpack.c.l.b16 %v999
      %v2579 = vunpack.c.l.b16 %v1000
      %v2580 = vunpack.c.l.b16 %v1001
      %v2581 = vunpack.c.l.b16 %v1002
      %v2582 = vunpack.c.l.b16 %v1003
      %v2583 = vunpack.c.l.b16 %v1004
      %v2584 = vunpack.c.l.b16 %v1005
      %v2585 = vunpack.c.l.b16 %v1006
      %v2586 = vunpack.c.l.b16 %v1007
      %v2587 = vunpack.c.l.b16 %v1008
      %v2588 = vunpack.c.l.b16 %v1009
      %v2589 = vunpack.c.l.b16 %v1010
      %v2590 = vunpack.c.l.b16 %v1011
      %v2591 = vunpack.c.l.b16 %v1012
      %v2592 = vunpack.c.l.b16 %v1013
      %v2593 = vunpack.c.l.b16 %v1014
      %v2594 = vunpack.c.l.b16 %v1015
      %v2595 = vunpack.c.l.b16 %v1016
      %v2596 = vunpack.c.l.b16 %v1017
      %v2597 = vunpack.c.l.b16 %v1018
      %v2598 = vunpack.c.l.b16 %v1019
      %v2599 = vunpack.c.l.b16 %v1020
      %v2600 = vunpack.c.l.b16 %v1021
      %v2601 = vunpack.c.l.b16 %v1022
      %v2602 = vunpack.c.l.b16 %v1023
      %v2603 = vunpack.c.l.b16 %v1024
      %v2604 = vunpack.c.l.b16 %v1025
      %v2605 = vunpack.c.l.b16 %v1026
      %v2606 = vunpack.c.l.b16 %v1027
      %v2607 = vunpack.c.l.b16 %v1028
      %v2608 = vunpack.c.l.b16 %v1029
      %v2609 = vunpack.c.l.b16 %v1030
      %v2610 = vunpack.c.l.b16 %v1031
      %v2611 = vunpack.c.l.b16 %v1032
      %v2612 = vunpack.c.l.b16 %v1033
      %v2613 = vunpack.c.l.b16 %v1034
      %v2614 = vunpack.c.l.b16 %v1035
      %v2615 = vunpack.c.l.b16 %v1036
      %v2616 = vunpack.c.l.b16 %v1037
      %v2617 = vunpack.c.l.b16 %v1038
      %v2618 = vunpack.c.l.b16 %v1039
      %v2619 = vunpack.c.l.b16 %v1040
      %v2620 = vunpack.c.l.b16 %v1041
      %v2621 = vunpack.c.l.b16 %v1042
      %v2622 = vunpack.c.l.b16 %v1043
      %v2623 = vunpack.c.l.b16 %v1044
      %v2624 = vunpack.c.l.b16 %v1045
      %v2625 = vunpack.c.l.b16 %v1046
      %v2626 = vunpack.c.l.b16 %v1047
      %v2627 = vunpack.c.l.b16 %v1048
      %v2628 = vunpack.c.l.b16 %v1049
      %v2629 = vunpack.c.l.b16 %v1050
      %v2630 = vunpack.c.l.b16 %v1051
      %v2631 = vunpack.c.l.b16 %v1052
      %v2632 = vunpack.c.l.b16 %v1053
      %v2633 = vunpack.c.l.b16 %v1054
      %v2634 = vunpack.c.l.b16 %v1055
      %v2635 = vunpack.c.l.b16 %v1056
      %v2636 = vunpack.c.l.b16 %v1057
      %v2637 = vunpack.c.l.b16 %v1058
      %v2638 = vunpack.c.l.b16 %v1059
      %v2639 = vunpack.c.l.b16 %v1060
      %v2640 = vunpack.c.l.b16 %v1061
      %v2641 = vunpack.c.l.b16 %v1062
      %v2642 = vunpack.c.l.b16 %v1063
      %v2643 = vunpack.c.l.b16 %v1064
      %v2644 = vunpack.c.l.b16 %v1065
      %v2645 = vunpack.c.l.b16 %v1066
      %v2646 = vunpack.c.l.b16 %v1067
      %v2647 = vunpack.c.l.b16 %v1068
      %v2648 = vunpack.c.l.b16 %v1069
      %v2649 = vunpack.c.l.b16 %v1070
      %v2650 = vunpack.c.l.b16 %v1071
      %v2651 = vpack.c.b16 %v1868, %v1867
      %v2652 = vpack.c.b16 %v1870, %v1869
      %v2653 = vpack.c.b16 %v1872, %v1871
      %v2654 = vpack.c.b16 %v1874, %v1873
      %v2655 = vpack.c.b16 %v1876, %v1875
      %v2656 = vpack.c.b16 %v1878, %v1877
      %v2657 = vpack.c.b16 %v1880, %v1879
      %v2658 = vpack.c.b16 %v1882, %v1881
      %v2659 = vpack.c.b16 %v1884, %v1883
      %v2660 = vpack.c.b16 %v1886, %v1885
      %v2661 = vpack.c.b16 %v1888, %v1887
      %v2662 = vpack.c.b16 %v1890, %v1889
      %v2663 = vpack.c.b16 %v1892, %v1891
      %v2664 = vpack.c.b16 %v1894, %v1893
      %v2665 = vpack.c.b16 %v1896, %v1895
      %v2666 = vpack.c.b16 %v1898, %v1897
      %v2667 = vpack.c.b16 %v1900, %v1899
      %v2668 = vpack.c.b16 %v1902, %v1901
      %v2669 = vpack.c.b16 %v1904, %v1903
      %v2670 = vpack.c.b16 %v1906, %v1905
      %v2671 = vpack.c.b16 %v1908, %v1907
      %v2672 = vpack.c.b16 %v1910, %v1909
      %v2673 = vpack.c.b16 %v1912, %v1911
      %v2674 = vpack.c.b16 %v1914, %v1913
      %v2675 = vpack.c.b16 %v1916, %v1915
      %v2676 = vpack.c.b16 %v1918, %v1917
      %v2677 = vpack.c.b16 %v1920, %v1919
      %v2678 = vpack.c.b16 %v1922, %v1921
      %v2679 = vpack.c.b16 %v1924, %v1923
      %v2680 = vpack.c.b16 %v1926, %v1925
      %v2681 = vpack.c.b16 %v1928, %v1927
      %v2682 = vpack.c.b16 %v1930, %v1929
      %v2683 = vpack.c.b16 %v1932, %v1931
      %v2684 = vpack.c.b16 %v1934, %v1933
      %v2685 = vpack.c.b16 %v1936, %v1935
      %v2686 = vpack.c.b16 %v1938, %v1937
      %v2687 = vpack.c.b16 %v1940, %v1939
      %v2688 = vpack.c.b16 %v1942, %v1941
      %v2689 = vpack.c.b16 %v1944, %v1943
      %v2690 = vpack.c.b16 %v1946, %v1945
      %v2691 = vpack.c.b16 %v1948, %v1947
      %v2692 = vpack.c.b16 %v1950, %v1949
      %v2693 = vpack.c.b16 %v1952, %v1951
      %v2694 = vpack.c.b16 %v1954, %v1953
      %v2695 = vpack.c.b16 %v1956, %v1955
      %v2696 = vpack.c.b16 %v1958, %v1957
      %v2697 = vpack.c.b16 %v1960, %v1959
      %v2698 = vpack.c.b16 %v1962, %v1961
      %v2699 = vpack.c.b16 %v1964, %v1963
      %v2700 = vpack.c.b16 %v1966, %v1965
      %v2701 = vpack.c.b16 %v1968, %v1967
      %v2702 = vpack.c.b16 %v1970, %v1969
      %v2703 = vpack.c.b16 %v1972, %v1971
      %v2704 = vpack.c.b16 %v1974, %v1973
      %v2705 = vpack.c.b16 %v1976, %v1975
      %v2706 = vpack.c.b16 %v1978, %v1977
      %v2707 = vpack.c.b16 %v1980, %v1979
      %v2708 = vpack.c.b16 %v1982, %v1981
      %v2709 = vpack.c.b16 %v1984, %v1983
      %v2710 = vpack.c.b16 %v1986, %v1985
      %v2711 = vpack.c.b16 %v1988, %v1987
      %v2712 = vpack.c.b16 %v1990, %v1989
      %v2713 = vpack.c.b16 %v1992, %v1991
      %v2714 = vpack.c.b16 %v1994, %v1993
      %v2715 = vpack.c.b16 %v1996, %v1995
      %v2716 = vpack.c.b16 %v1998, %v1997
      %v2717 = vpack.c.b16 %v2000, %v1999
      %v2718 = vpack.c.b16 %v2002, %v2001
      %v2719 = vpack.c.b16 %v2004, %v2003
      %v2720 = vpack.c.b16 %v2006, %v2005
      %v2721 = vpack.c.b16 %v2008, %v2007
      %v2722 = vpack.c.b16 %v2010, %v2009
      %v2723 = vpack.c.b16 %v2012, %v2011
      %v2724 = vpack.c.b16 %v2014, %v2013
      %v2725 = vpack.c.b16 %v2016, %v2015
      %v2726 = vpack.c.b16 %v2018, %v2017
      %v2727 = vpack.c.b16 %v2020, %v2019
      %v2728 = vpack.c.b16 %v2022, %v2021
      %v2729 = vpack.c.b16 %v2024, %v2023
      %v2730 = vpack.c.b16 %v2026, %v2025
      %v2731 = vpack.c.b16 %v2028, %v2027
      %v2732 = vpack.c.b16 %v2030, %v2029
      %v2733 = vpack.c.b16 %v2032, %v2031
      %v2734 = vpack.c.b16 %v2034, %v2033
      %v2735 = vpack.c.b16 %v2036, %v2035
      %v2736 = vpack.c.b16 %v2038, %v2037
      %v2737 = vpack.c.b16 %v2040, %v2039
      %v2738 = vpack.c.b16 %v2042, %v2041
      %v2739 = vpack.c.b16 %v2044, %v2043
      %v2740 = vpack.c.b16 %v2046, %v2045
      %v2741 = vpack.c.b16 %v2048, %v2047
      %v2742 = vpack.c.b16 %v2050, %v2049
      %v2743 = vpack.c.b16 %v2052, %v2051
      %v2744 = vpack.c.b16 %v2054, %v2053
      %v2745 = vpack.c.b16 %v2056, %v2055
      %v2746 = vpack.c.b16 %v2058, %v2057
      %v2747 = vpack.c.b16 %v2060, %v2059
      %v2748 = vpack.c.b16 %v2062, %v2061
      %v2749 = vpack.c.b16 %v2064, %v2063
      %v2750 = vpack.c.b16 %v2066, %v2065
      %v2751 = vpack.c.b16 %v2068, %v2067
      %v2752 = vpack.c.b16 %v2070, %v2069
      %v2753 = vpack.c.b16 %v2072, %v2071
      %v2754 = vpack.c.b16 %v2074, %v2073
      %v2755 = vpack.c.b16 %v2076, %v2075
      %v2756 = vpack.c.b16 %v2078, %v2077
      %v2757 = vpack.c.b16 %v2080, %v2079
      %v2758 = vpack.c.b16 %v2082, %v2081
      %v2759 = vpack.c.b16 %v2084, %v2083
      %v2760 = vpack.c.b16 %v2086, %v2085
      %v2761 = vpack.c.b16 %v2088, %v2087
      %v2762 = vpack.c.b16 %v2090, %v2089
      %v2763 = vpack.c.b16 %v2092, %v2091
      %v2764 = vpack.c.b16 %v2094, %v2093
      %v2765 = vpack.c.b16 %v2096, %v2095
      %v2766 = vpack.c.b16 %v2098, %v2097
      %v2767 = vpack.c.b16 %v2100, %v2099
      %v2768 = vpack.c.b16 %v2102, %v2101
      %v2769 = vpack.c.b16 %v2104, %v2103
      %v2770 = vpack.c.b16 %v2106, %v2105
      %v2771 = vpack.c.b16 %v2108, %v2107
      %v2772 = vpack.c.b16 %v2110, %v2109
      %v2773 = vpack.c.b16 %v2112, %v2111
      %v2774 = vpack.c.b16 %v2114, %v2113
      %v2775 = vpack.c.b16 %v2116, %v2115
      %v2776 = vpack.c.b16 %v2118, %v2117
      %v2777 = vpack.c.b16 %v2120, %v2119
      %v2778 = vpack.c.b16 %v2122, %v2121
      %v2779 = vpack.c.b16 %v2124, %v2123
      %v2780 = vpack.c.b16 %v2126, %v2125
      %v2781 = vpack.c.b16 %v2128, %v2127
      %v2782 = vpack.c.b16 %v2130, %v2129
      %v2783 = vpack.c.b16 %v2132, %v2131
      %v2784 = vpack.c.b16 %v2134, %v2133
      %v2785 = vpack.c.b16 %v2136, %v2135
      %v2786 = vpack.c.b16 %v2138, %v2137
      %v2787 = vpack.c.b16 %v2140, %v2139
      %v2788 = vpack.c.b16 %v2142, %v2141
      %v2789 = vpack.c.b16 %v2144, %v2143
      %v2790 = vpack.c.b16 %v2146, %v2145
      %v2791 = vpack.c.b16 %v2148, %v2147
      %v2792 = vpack.c.b16 %v2150, %v2149
      %v2793 = vpack.c.b16 %v2152, %v2151
      %v2794 = vpack.c.b16 %v2154, %v2153
      %v2795 = vpack.c.b16 %v2156, %v2155
      %v2796 = vpack.c.b16 %v2158, %v2157
      %v2797 = vpack.c.b16 %v2160, %v2159
      %v2798 = vpack.c.b16 %v2162, %v2161
      %v2799 = vpack.c.b16 %v2164, %v2163
      %v2800 = vpack.c.b16 %v2166, %v2165
      %v2801 = vpack.c.b16 %v2168, %v2167
      %v2802 = vpack.c.b16 %v2170, %v2169
      %v2803 = vpack.c.b16 %v2172, %v2171
      %v2804 = vpack.c.b16 %v2174, %v2173
      %v2805 = vpack.c.b16 %v2176, %v2175
      %v2806 = vpack.c.b16 %v2178, %v2177
      %v2807 = vpack.c.b16 %v2180, %v2179
      %v2808 = vpack.c.b16 %v2182, %v2181
      %v2809 = vpack.c.b16 %v2184, %v2183
      %v2810 = vpack.c.b16 %v2186, %v2185
      %v2811 = vpack.c.b16 %v2188, %v2187
      %v2812 = vpack.c.b16 %v2190, %v2189
      %v2813 = vpack.c.b16 %v2192, %v2191
      %v2814 = vpack.c.b16 %v2194, %v2193
      %v2815 = vpack.c.b16 %v2196, %v2195
      %v2816 = vpack.c.b16 %v2198, %v2197
      %v2817 = vpack.c.b16 %v2200, %v2199
      %v2818 = vpack.c.b16 %v2202, %v2201
      %v2819 = vpack.c.b16 %v2204, %v2203
      %v2820 = vpack.c.b16 %v2206, %v2205
      %v2821 = vpack.c.b16 %v2208, %v2207
      %v2822 = vpack.c.b16 %v2210, %v2209
      %v2823 = vpack.c.b16 %v2212, %v2211
      %v2824 = vpack.c.b16 %v2214, %v2213
      %v2825 = vpack.c.b16 %v2216, %v2215
      %v2826 = vpack.c.b16 %v2218, %v2217
      %v2827 = vpack.c.b16 %v2220, %v2219
      %v2828 = vpack.c.b16 %v2222, %v2221
      %v2829 = vpack.c.b16 %v2224, %v2223
      %v2830 = vpack.c.b16 %v2226, %v2225
      %v2831 = vpack.c.b16 %v2228, %v2227
      %v2832 = vpack.c.b16 %v2230, %v2229
      %v2833 = vpack.c.b16 %v2232, %v2231
      %v2834 = vpack.c.b16 %v2234, %v2233
      %v2835 = vpack.c.b16 %v2236, %v2235
      %v2836 = vpack.c.b16 %v2238, %v2237
      %v2837 = vpack.c.b16 %v2240, %v2239
      %v2838 = vpack.c.b16 %v2242, %v2241
      %v2839 = vpack.c.b16 %v2244, %v2243
      %v2840 = vpack.c.b16 %v2246, %v2245
      %v2841 = vpack.c.b16 %v2248, %v2247
      %v2842 = vpack.c.b16 %v2250, %v2249
      %v2843 = vpack.c.b16 %v2252, %v2251
      %v2844 = vpack.c.b16 %v2254, %v2253
      %v2845 = vpack.c.b16 %v2256, %v2255
      %v2846 = vpack.c.b16 %v2258, %v2257
      %v2847 = vpack.c.b16 %v2260, %v2259
      %v2848 = vpack.c.b16 %v2262, %v2261
      %v2849 = vpack.c.b16 %v2264, %v2263
      %v2850 = vpack.c.b16 %v2266, %v2265
      %v2851 = vpack.c.b16 %v2268, %v2267
      %v2852 = vpack.c.b16 %v2270, %v2269
      %v2853 = vpack.c.b16 %v2272, %v2271
      %v2854 = vpack.c.b16 %v2274, %v2273
      %v2855 = vpack.c.b16 %v2276, %v2275
      %v2856 = vpack.c.b16 %v2278, %v2277
      %v2857 = vpack.c.b16 %v2280, %v2279
      %v2858 = vpack.c.b16 %v2282, %v2281
      %v2859 = vpack.c.b16 %v2284, %v2283
      %v2860 = vpack.c.b16 %v2286, %v2285
      %v2861 = vpack.c.b16 %v2288, %v2287
      %v2862 = vpack.c.b16 %v2290, %v2289
      %v2863 = vpack.c.b16 %v2292, %v2291
      %v2864 = vpack.c.b16 %v2294, %v2293
      %v2865 = vpack.c.b16 %v2296, %v2295
      %v2866 = vpack.c.b16 %v2298, %v2297
      %v2867 = vpack.c.b16 %v2300, %v2299
      %v2868 = vpack.c.b16 %v2302, %v2301
      %v2869 = vpack.c.b16 %v2304, %v2303
      %v2870 = vpack.c.b16 %v2306, %v2305
      %v2871 = vpack.c.b16 %v2308, %v2307
      %v2872 = vpack.c.b16 %v2310, %v2309
      %v2873 = vpack.c.b16 %v2312, %v2311
      %v2874 = vpack.c.b16 %v2314, %v2313
      %v2875 = vpack.c.b16 %v2316, %v2315
      %v2876 = vpack.c.b16 %v2318, %v2317
      %v2877 = vpack.c.b16 %v2320, %v2319
      %v2878 = vpack.c.b16 %v2322, %v2321
      %v2879 = vpack.c.b16 %v2324, %v2323
      %v2880 = vpack.c.b16 %v2326, %v2325
      %v2881 = vpack.c.b16 %v2328, %v2327
      %v2882 = vpack.c.b16 %v2330, %v2329
      %v2883 = vpack.c.b16 %v2332, %v2331
      %v2884 = vpack.c.b16 %v2334, %v2333
      %v2885 = vpack.c.b16 %v2336, %v2335
      %v2886 = vpack.c.b16 %v2338, %v2337
      %v2887 = vpack.c.b16 %v2340, %v2339
      %v2888 = vpack.c.b16 %v2342, %v2341
      %v2889 = vpack.c.b16 %v2344, %v2343
      %v2890 = vpack.c.b16 %v2346, %v2345
      %v2891 = vpack.c.b16 %v2348, %v2347
      %v2892 = vpack.c.b16 %v2350, %v2349
      %v2893 = vpack.c.b16 %v2352, %v2351
      %v2894 = vpack.c.b16 %v2354, %v2353
      %v2895 = vpack.c.b16 %v2356, %v2355
      %v2896 = vpack.c.b16 %v2358, %v2357
      %v2897 = vpack.c.b16 %v2360, %v2359
      %v2898 = vpack.c.b16 %v2362, %v2361
      %v2899 = vpack.c.b16 %v2364, %v2363
      %v2900 = vpack.c.b16 %v2366, %v2365
      %v2901 = vpack.c.b16 %v2368, %v2367
      %v2902 = vpack.c.b16 %v2370, %v2369
      %v2903 = vpack.c.b16 %v2372, %v2371
      %v2904 = vpack.c.b16 %v2374, %v2373
      %v2905 = vpack.c.b16 %v2376, %v2375
      %v2906 = vpack.c.b16 %v2378, %v2377
      %v2907 = vpack.c.b16 %v2380, %v2379
      %v2908 = vpack.c.b16 %v2382, %v2381
      %v2909 = vpack.c.b16 %v2384, %v2383
      %v2910 = vpack.c.b16 %v2386, %v2385
      %v2911 = vpack.c.b16 %v2388, %v2387
      %v2912 = vpack.c.b16 %v2390, %v2389
      %v2913 = vpack.c.b16 %v2392, %v2391
      %v2914 = vpack.c.b16 %v2394, %v2393
      %v2915 = vpack.c.b16 %v2396, %v2395
      %v2916 = vpack.c.b16 %v2398, %v2397
      %v2917 = vpack.c.b16 %v2400, %v2399
      %v2918 = vpack.c.b16 %v2402, %v2401
      %v2919 = vpack.c.b16 %v2404, %v2403
      %v2920 = vpack.c.b16 %v2406, %v2405
      %v2921 = vpack.c.b16 %v2408, %v2407
      %v2922 = vpack.c.b16 %v2410, %v2409
      %v2923 = vpack.c.b16 %v2412, %v2411
      %v2924 = vpack.c.b16 %v2414, %v2413
      %v2925 = vpack.c.b16 %v2416, %v2415
      %v2926 = vpack.c.b16 %v2418, %v2417
      %v2927 = vpack.c.b16 %v2420, %v2419
      %v2928 = vpack.c.b16 %v2422, %v2421
      %v2929 = vpack.c.b16 %v2424, %v2423
      %v2930 = vpack.c.b16 %v2426, %v2425
      %v2931 = vpack.c.b16 %v2428, %v2427
      %v2932 = vpack.c.b16 %v2430, %v2429
      %v2933 = vpack.c.b16 %v2432, %v2431
      %v2934 = vpack.c.b16 %v2434, %v2433
      %v2935 = vpack.c.b16 %v2436, %v2435
      %v2936 = vpack.c.b16 %v2438, %v2437
      %v2937 = vpack.c.b16 %v2440, %v2439
      %v2938 = vpack.c.b16 %v2442, %v2441
      %v2939 = vpack.c.b16 %v2444, %v2443
      %v2940 = vpack.c.b16 %v2446, %v2445
      %v2941 = vpack.c.b16 %v2448, %v2447
      %v2942 = vpack.c.b16 %v2450, %v2449
      %v2943 = vpack.c.b16 %v2452, %v2451
      %v2944 = vpack.c.b16 %v2454, %v2453
      %v2945 = vpack.c.b16 %v2456, %v2455
      %v2946 = vpack.c.b16 %v2458, %v2457
      %v2947 = vpack.c.b16 %v2460, %v2459
      %v2948 = vpack.c.b16 %v2462, %v2461
      %v2949 = vpack.c.b16 %v2464, %v2463
      %v2950 = vpack.c.b16 %v2466, %v2465
      %v2951 = vpack.c.b16 %v2468, %v2467
      %v2952 = vpack.c.b16 %v2470, %v2469
      %v2953 = vpack.c.b16 %v2472, %v2471
      %v2954 = vpack.c.b16 %v2474, %v2473
      %v2955 = vpack.c.b16 %v2476, %v2475
      %v2956 = vpack.c.b16 %v2478, %v2477
      %v2957 = vpack.c.b16 %v2480, %v2479
      %v2958 = vpack.c.b16 %v2482, %v2481
      %v2959 = vpack.c.b16 %v2484, %v2483
      %v2960 = vpack.c.b16 %v2486, %v2485
      %v2961 = vpack.c.b16 %v2488, %v2487
      %v2962 = vpack.c.b16 %v2490, %v2489
      %v2963 = vpack.c.b16 %v2492, %v2491
      %v2964 = vpack.c.b16 %v2494, %v2493
      %v2965 = vpack.c.b16 %v2496, %v2495
      %v2966 = vpack.c.b16 %v2498, %v2497
      %v2967 = vpack.c.b16 %v2500, %v2499
      %v2968 = vpack.c.b16 %v2502, %v2501
      %v2969 = vpack.c.b16 %v2504, %v2503
      %v2970 = vpack.c.b16 %v2506, %v2505
      %v2971 = vpack.c.b16 %v2508, %v2507
      %v2972 = vpack.c.b16 %v2510, %v2509
      %v2973 = vpack.c.b16 %v2512, %v2511
      %v2974 = vpack.c.b16 %v2514, %v2513
      %v2975 = vpack.c.b16 %v2516, %v2515
      %v2976 = vpack.c.b16 %v2518, %v2517
      %v2977 = vpack.c.b16 %v2520, %v2519
      %v2978 = vpack.c.b16 %v2522, %v2521
      %v2979 = vpack.c.b16 %v2524, %v2523
      %v2980 = vpack.c.b16 %v2526, %v2525
      %v2981 = vpack.c.b16 %v2528, %v2527
      %v2982 = vpack.c.b16 %v2530, %v2529
      %v2983 = vpack.c.b16 %v2532, %v2531
      %v2984 = vpack.c.b16 %v2534, %v2533
      %v2985 = vpack.c.b16 %v2536, %v2535
      %v2986 = vpack.c.b16 %v2538, %v2537
      %v2987 = vpack.c.b16 %v2540, %v2539
      %v2988 = vpack.c.b16 %v2542, %v2541
      %v2989 = vpack.c.b16 %v2544, %v2543
      %v2990 = vpack.c.b16 %v2546, %v2545
      %v2991 = vpack.c.b16 %v2548, %v2547
      %v2992 = vpack.c.b16 %v2550, %v2549
      %v2993 = vpack.c.b16 %v2552, %v2551
      %v2994 = vpack.c.b16 %v2554, %v2553
      %v2995 = vpack.c.b16 %v2556, %v2555
      %v2996 = vpack.c.b16 %v2558, %v2557
      %v2997 = vpack.c.b16 %v2560, %v2559
      %v2998 = vpack.c.b16 %v2562, %v2561
      %v2999 = vpack.c.b16 %v2564, %v2563
      %v3000 = vpack.c.b16 %v2566, %v2565
      %v3001 = vpack.c.b16 %v2568, %v2567
      %v3002 = vpack.c.b16 %v2570, %v2569
      %v3003 = vpack.c.b16 %v2572, %v2571
      %v3004 = vpack.c.b16 %v2574, %v2573
      %v3005 = vpack.c.b16 %v2576, %v2575
      %v3006 = vpack.c.b16 %v2578, %v2577
      %v3007 = vpack.c.b16 %v2580, %v2579
      %v3008 = vpack.c.b16 %v2582, %v2581
      %v3009 = vpack.c.b16 %v2584, %v2583
      %v3010 = vpack.c.b16 %v2586, %v2585
      %v3011 = vpack.c.b16 %v2588, %v2587
      %v3012 = vpack.c.b16 %v2590, %v2589
      %v3013 = vpack.c.b16 %v2592, %v2591
      %v3014 = vpack.c.b16 %v2594, %v2593
      %v3015 = vpack.c.b16 %v2596, %v2595
      %v3016 = vpack.c.b16 %v2598, %v2597
      %v3017 = vpack.c.b16 %v2600, %v2599
      %v3018 = vpack.c.b16 %v2602, %v2601
      %v3019 = vpack.c.b16 %v2604, %v2603
      %v3020 = vpack.c.b16 %v2606, %v2605
      %v3021 = vpack.c.b16 %v2608, %v2607
      %v3022 = vpack.c.b16 %v2610, %v2609
      %v3023 = vpack.c.b16 %v2612, %v2611
      %v3024 = vpack.c.b16 %v2614, %v2613
      %v3025 = vpack.c.b16 %v2616, %v2615
      %v3026 = vpack.c.b16 %v2618, %v2617
      %v3027 = vpack.c.b16 %v2620, %v2619
      %v3028 = vpack.c.b16 %v2622, %v2621
      %v3029 = vpack.c.b16 %v2624, %v2623
      %v3030 = vpack.c.b16 %v2626, %v2625
      %v3031 = vpack.c.b16 %v2628, %v2627
      %v3032 = vpack.c.b16 %v2630, %v2629
      %v3033 = vpack.c.b16 %v2632, %v2631
      %v3034 = vpack.c.b16 %v2634, %v2633
      %v3035 = vpack.c.b16 %v2636, %v2635
      %v3036 = vpack.c.b16 %v2638, %v2637
      %v3037 = vpack.c.b16 %v2640, %v2639
      %v3038 = vpack.c.b16 %v2642, %v2641
      %v3039 = vpack.c.b16 %v2644, %v2643
      %v3040 = vpack.c.b16 %v2646, %v2645
      %v3041 = vpack.c.b16 %v2648, %v2647
      %v3042 = vpack.c.b16 %v2650, %v2649
      %v3047 = vunpack.c.l.b16 %v1072
      %v3048 = vunpack.c.l.b16 %v1073
      %v3049 = vunpack.c.l.b16 %v1074
      %v3050 = vunpack.c.l.b16 %v1075
      %v3051 = vpack.c.b16 %v3048, %v3047
      %v3052 = vpack.c.b16 %v3050, %v3049
      %vm3055 = vcmask 261120
      %v3057 = vsel %vm3055, %v2651, 0
      %v3060 = vsel %vm3055, %v2652, 0
      %v3063 = vsel %vm3055, %v2653, 0
      %v3066 = vsel %vm3055, %v2654, 0
      %v3069 = vsel %vm3055, %v2655, 0
      %v3072 = vsel %vm3055, %v2656, 0
      %v3075 = vsel %vm3055, %v2657, 0
      %v3078 = vsel %vm3055, %v2658, 0
      %v3081 = vsel %vm3055, %v2659, 0
      %v3084 = vsel %vm3055, %v2660, 0
      %v3087 = vsel %vm3055, %v2661, 0
      %v3090 = vsel %vm3055, %v2662, 0
      %v3093 = vsel %vm3055, %v2663, 0
      %v3096 = vsel %vm3055, %v2664, 0
      %v3099 = vsel %vm3055, %v2665, 0
      %v3102 = vsel %vm3055, %v2666, 0
      %v3105 = vsel %vm3055, %v2667, 0
      %v3108 = vsel %vm3055, %v2668, 0
      %v3111 = vsel %vm3055, %v2669, 0
      %v3114 = vsel %vm3055, %v2670, 0
      %v3117 = vsel %vm3055, %v2671, 0
      %v3120 = vsel %vm3055, %v2672, 0
      %v3123 = vsel %vm3055, %v2673, 0
      %v3126 = vsel %vm3055, %v2674, 0
      %v3129 = vsel %vm3055, %v2675, 0
      %v3132 = vsel %vm3055, %v2676, 0
      %v3135 = vsel %vm3055, %v2677, 0
      %v3138 = vsel %vm3055, %v2678, 0
      %v3141 = vsel %vm3055, %v2679, 0
      %v3144 = vsel %vm3055, %v2680, 0
      %v3147 = vsel %vm3055, %v2681, 0
      %v3150 = vsel %vm3055, %v2682, 0
      %v3153 = vsel %vm3055, %v2683, 0
      %v3156 = vsel %vm3055, %v2684, 0
      %v3159 = vsel %vm3055, %v2685, 0
      %v3162 = vsel %vm3055, %v2686, 0
      %v3165 = vsel %vm3055, %v2687, 0
      %v3168 = vsel %vm3055, %v2688, 0
      %v3171 = vsel %vm3055, %v2689, 0
      %v3174 = vsel %vm3055, %v2690, 0
      %v3177 = vsel %vm3055, %v2691, 0
      %v3180 = vsel %vm3055, %v2692, 0
      %v3183 = vsel %vm3055, %v2693, 0
      %v3186 = vsel %vm3055, %v2694, 0
      %v3189 = vsel %vm3055, %v2695, 0
      %v3192 = vsel %vm3055, %v2696, 0
      %v3195 = vsel %vm3055, %v2697, 0
      %v3198 = vsel %vm3055, %v2698, 0
      %v3201 = vsel %vm3055, %v2699, 0
      %v3204 = vsel %vm3055, %v2700, 0
      %v3207 = vsel %vm3055, %v2701, 0
      %v3210 = vsel %vm3055, %v2702, 0
      %v3213 = vsel %vm3055, %v2703, 0
      %v3216 = vsel %vm3055, %v2704, 0
      %v3219 = vsel %vm3055, %v2705, 0
      %v3222 = vsel %vm3055, %v2706, 0
      %v3225 = vsel %vm3055, %v2707, 0
      %v3228 = vsel %vm3055, %v2708, 0
      %v3231 = vsel %vm3055, %v2709, 0
      %v3234 = vsel %vm3055, %v2710, 0
      %v3237 = vsel %vm3055, %v2711, 0
      %v3240 = vsel %vm3055, %v2712, 0
      %v3243 = vsel %vm3055, %v2713, 0
      %v3246 = vsel %vm3055, %v2714, 0
      %v3249 = vsel %vm3055, %v2715, 0
      %v3252 = vsel %vm3055, %v2716, 0
      %v3255 = vsel %vm3055, %v2717, 0
      %v3258 = vsel %vm3055, %v2718, 0
      %v3261 = vsel %vm3055, %v2719, 0
      %v3264 = vsel %vm3055, %v2720, 0
      %v3267 = vsel %vm3055, %v2721, 0
      %v3270 = vsel %vm3055, %v2722, 0
      %v3273 = vsel %vm3055, %v2723, 0
      %v3276 = vsel %vm3055, %v2724, 0
      %v3279 = vsel %vm3055, %v2725, 0
      %v3282 = vsel %vm3055, %v2726, 0
      %v3285 = vsel %vm3055, %v2727, 0
      %v3288 = vsel %vm3055, %v2728, 0
      %v3291 = vsel %vm3055, %v2729, 0
      %v3294 = vsel %vm3055, %v2730, 0
      %v3297 = vsel %vm3055, %v2731, 0
      %v3300 = vsel %vm3055, %v2732, 0
      %v3303 = vsel %vm3055, %v2733, 0
      %v3306 = vsel %vm3055, %v2734, 0
      %v3309 = vsel %vm3055, %v2735, 0
      %v3312 = vsel %vm3055, %v2736, 0
      %v3315 = vsel %vm3055, %v2737, 0
      %v3318 = vsel %vm3055, %v2738, 0
      %v3321 = vsel %vm3055, %v2739, 0
      %v3324 = vsel %vm3055, %v2740, 0
      %v3327 = vsel %vm3055, %v2741, 0
      %v3330 = vsel %vm3055, %v2742, 0
      %v3333 = vsel %vm3055, %v2743, 0
      %v3336 = vsel %vm3055, %v2744, 0
      %v3339 = vsel %vm3055, %v2745, 0
      %v3342 = vsel %vm3055, %v2746, 0
      %v3345 = vsel %vm3055, %v2747, 0
      %v3348 = vsel %vm3055, %v2748, 0
      %v3351 = vsel %vm3055, %v2749, 0
      %v3354 = vsel %vm3055, %v2750, 0
      %v3357 = vsel %vm3055, %v2751, 0
      %v3360 = vsel %vm3055, %v2752, 0
      %v3363 = vsel %vm3055, %v2753, 0
      %v3366 = vsel %vm3055, %v2754, 0
      %v3369 = vsel %vm3055, %v2755, 0
      %v3372 = vsel %vm3055, %v2756, 0
      %v3375 = vsel %vm3055, %v2757, 0
      %v3378 = vsel %vm3055, %v2758, 0
      %v3381 = vsel %vm3055, %v2759, 0
      %v3384 = vsel %vm3055, %v2760, 0
      %v3387 = vsel %vm3055, %v2761, 0
      %v3390 = vsel %vm3055, %v2762, 0
      %v3393 = vsel %vm3055, %v2763, 0
      %v3396 = vsel %vm3055, %v2764, 0
      %v3399 = vsel %vm3055, %v2765, 0
      %v3402 = vsel %vm3055, %v2766, 0
      %v3405 = vsel %vm3055, %v2767, 0
      %v3408 = vsel %vm3055, %v2768, 0
      %v3411 = vsel %vm3055, %v2769, 0
      %v3414 = vsel %vm3055, %v2770, 0
      %v3417 = vsel %vm3055, %v2771, 0
      %v3420 = vsel %vm3055, %v2772, 0
      %v3423 = vsel %vm3055, %v2773, 0
      %v3426 = vsel %vm3055, %v2774, 0
      %v3429 = vsel %vm3055, %v2775, 0
      %v3432 = vsel %vm3055, %v2776, 0
      %v3435 = vsel %vm3055, %v2777, 0
      %v3438 = vsel %vm3055, %v2778, 0
      %v3441 = vsel %vm3055, %v2779, 0
      %v3444 = vsel %vm3055, %v2780, 0
      %v3447 = vsel %vm3055, %v2781, 0
      %v3450 = vsel %vm3055, %v2782, 0
      %v3453 = vsel %vm3055, %v2783, 0
      %v3456 = vsel %vm3055, %v2784, 0
      %v3459 = vsel %vm3055, %v2785, 0
      %v3462 = vsel %vm3055, %v2786, 0
      %v3465 = vsel %vm3055, %v2787, 0
      %v3468 = vsel %vm3055, %v2788, 0
      %v3471 = vsel %vm3055, %v2789, 0
      %v3474 = vsel %vm3055, %v2790, 0
      %v3477 = vsel %vm3055, %v2791, 0
      %v3480 = vsel %vm3055, %v2792, 0
      %v3483 = vsel %vm3055, %v2793, 0
      %v3486 = vsel %vm3055, %v2794, 0
      %v3489 = vsel %vm3055, %v2795, 0
      %v3492 = vsel %vm3055, %v2796, 0
      %v3495 = vsel %vm3055, %v2797, 0
      %v3498 = vsel %vm3055, %v2798, 0
      %v3501 = vsel %vm3055, %v2799, 0
      %v3504 = vsel %vm3055, %v2800, 0
      %v3507 = vsel %vm3055, %v2801, 0
      %v3510 = vsel %vm3055, %v2802, 0
      %v3513 = vsel %vm3055, %v2803, 0
      %v3516 = vsel %vm3055, %v2804, 0
      %v3519 = vsel %vm3055, %v2805, 0
      %v3522 = vsel %vm3055, %v2806, 0
      %v3525 = vsel %vm3055, %v2807, 0
      %v3528 = vsel %vm3055, %v2808, 0
      %v3531 = vsel %vm3055, %v2809, 0
      %v3534 = vsel %vm3055, %v2810, 0
      %v3537 = vsel %vm3055, %v2811, 0
      %v3540 = vsel %vm3055, %v2812, 0
      %v3543 = vsel %vm3055, %v2813, 0
      %v3546 = vsel %vm3055, %v2814, 0
      %v3549 = vsel %vm3055, %v2815, 0
      %v3552 = vsel %vm3055, %v2816, 0
      %v3555 = vsel %vm3055, %v2817, 0
      %v3558 = vsel %vm3055, %v2818, 0
      %v3561 = vsel %vm3055, %v2819, 0
      %v3564 = vsel %vm3055, %v2820, 0
      %v3567 = vsel %vm3055, %v2821, 0
      %v3570 = vsel %vm3055, %v2822, 0
      %v3573 = vsel %vm3055, %v2823, 0
      %v3576 = vsel %vm3055, %v2824, 0
      %v3579 = vsel %vm3055, %v2825, 0
      %v3582 = vsel %vm3055, %v2826, 0
      %v3585 = vsel %vm3055, %v2827, 0
      %v3588 = vsel %vm3055, %v2828, 0
      %v3591 = vsel %vm3055, %v2829, 0
      %v3594 = vsel %vm3055, %v2830, 0
      %v3597 = vsel %vm3055, %v2831, 0
      %v3600 = vsel %vm3055, %v2832, 0
      %v3603 = vsel %vm3055, %v2833, 0
      %v3606 = vsel %vm3055, %v2834, 0
      %v3609 = vsel %vm3055, %v2835, 0
      %v3612 = vsel %vm3055, %v2836, 0
      %v3615 = vsel %vm3055, %v2837, 0
      %v3618 = vsel %vm3055, %v2838, 0
      %v3621 = vsel %vm3055, %v2839, 0
      %v3624 = vsel %vm3055, %v2840, 0
      %v3627 = vsel %vm3055, %v2841, 0
      %v3630 = vsel %vm3055, %v2842, 0
      %v3633 = vsel %vm3055, %v2843, 0
      %v3636 = vsel %vm3055, %v2844, 0
      %v3639 = vsel %vm3055, %v2845, 0
      %v3642 = vsel %vm3055, %v2846, 0
      %v3645 = vsel %vm3055, %v2847, 0
      %v3648 = vsel %vm3055, %v2848, 0
      %v3651 = vsel %vm3055, %v2849, 0
      %v3654 = vsel %vm3055, %v2850, 0
      %v3657 = vsel %vm3055, %v2851, 0
      %v3660 = vsel %vm3055, %v2852, 0
      %v3663 = vsel %vm3055, %v2853, 0
      %v3666 = vsel %vm3055, %v2854, 0
      %v3669 = vsel %vm3055, %v2855, 0
      %v3672 = vsel %vm3055, %v2856, 0
      %v3675 = vsel %vm3055, %v2857, 0
      %v3678 = vsel %vm3055, %v2858, 0
      %v3681 = vsel %vm3055, %v2859, 0
      %v3684 = vsel %vm3055, %v2860, 0
      %v3687 = vsel %vm3055, %v2861, 0
      %v3690 = vsel %vm3055, %v2862, 0
      %v3693 = vsel %vm3055, %v2863, 0
      %v3696 = vsel %vm3055, %v2864, 0
      %v3699 = vsel %vm3055, %v2865, 0
      %v3702 = vsel %vm3055, %v2866, 0
      %v3705 = vsel %vm3055, %v2867, 0
      %v3708 = vsel %vm3055, %v2868, 0
      %v3711 = vsel %vm3055, %v2869, 0
      %v3714 = vsel %vm3055, %v2870, 0
      %v3717 = vsel %vm3055, %v2871, 0
      %v3720 = vsel %vm3055, %v2872, 0
      %v3723 = vsel %vm3055, %v2873, 0
      %v3726 = vsel %vm3055, %v2874, 0
      %v3729 = vsel %vm3055, %v2875, 0
      %v3732 = vsel %vm3055, %v2876, 0
      %v3735 = vsel %vm3055, %v2877, 0
      %v3738 = vsel %vm3055, %v2878, 0
      %v3741 = vsel %vm3055, %v2879, 0
      %v3744 = vsel %vm3055, %v2880, 0
      %v3747 = vsel %vm3055, %v2881, 0
      %v3750 = vsel %vm3055, %v2882, 0
      %v3753 = vsel %vm3055, %v2883, 0
      %v3756 = vsel %vm3055, %v2884, 0
      %v3759 = vsel %vm3055, %v2885, 0
      %v3762 = vsel %vm3055, %v2886, 0
      %v3765 = vsel %vm3055, %v2887, 0
      %v3768 = vsel %vm3055, %v2888, 0
      %v3771 = vsel %vm3055, %v2889, 0
      %v3774 = vsel %vm3055, %v2890, 0
      %v3777 = vsel %vm3055, %v2891, 0
      %v3780 = vsel %vm3055, %v2892, 0
      %v3783 = vsel %vm3055, %v2893, 0
      %v3786 = vsel %vm3055, %v2894, 0
      %v3789 = vsel %vm3055, %v2895, 0
      %v3792 = vsel %vm3055, %v2896, 0
      %v3795 = vsel %vm3055, %v2897, 0
      %v3798 = vsel %vm3055, %v2898, 0
      %v3801 = vsel %vm3055, %v2899, 0
      %v3804 = vsel %vm3055, %v2900, 0
      %v3807 = vsel %vm3055, %v2901, 0
      %v3810 = vsel %vm3055, %v2902, 0
      %v3813 = vsel %vm3055, %v2903, 0
      %v3816 = vsel %vm3055, %v2904, 0
      %v3819 = vsel %vm3055, %v2905, 0
      %v3822 = vsel %vm3055, %v2906, 0
      %v3825 = vsel %vm3055, %v2907, 0
      %v3828 = vsel %vm3055, %v2908, 0
      %v3831 = vsel %vm3055, %v2909, 0
      %v3834 = vsel %vm3055, %v2910, 0
      %v3837 = vsel %vm3055, %v2911, 0
      %v3840 = vsel %vm3055, %v2912, 0
      %v3843 = vsel %vm3055, %v2913, 0
      %v3846 = vsel %vm3055, %v2914, 0
      %v3849 = vsel %vm3055, %v2915, 0
      %v3852 = vsel %vm3055, %v2916, 0
      %v3855 = vsel %vm3055, %v2917, 0
      %v3858 = vsel %vm3055, %v2918, 0
      %v3861 = vsel %vm3055, %v2919, 0
      %v3864 = vsel %vm3055, %v2920, 0
      %v3867 = vsel %vm3055, %v2921, 0
      %v3870 = vsel %vm3055, %v2922, 0
      %v3873 = vsel %vm3055, %v2923, 0
      %v3876 = vsel %vm3055, %v2924, 0
      %v3879 = vsel %vm3055, %v2925, 0
      %v3882 = vsel %vm3055, %v2926, 0
      %v3885 = vsel %vm3055, %v2927, 0
      %v3888 = vsel %vm3055, %v2928, 0
      %v3891 = vsel %vm3055, %v2929, 0
      %v3894 = vsel %vm3055, %v2930, 0
      %v3897 = vsel %vm3055, %v2931, 0
      %v3900 = vsel %vm3055, %v2932, 0
      %v3903 = vsel %vm3055, %v2933, 0
      %v3906 = vsel %vm3055, %v2934, 0
      %v3909 = vsel %vm3055, %v2935, 0
      %v3912 = vsel %vm3055, %v2936, 0
      %v3915 = vsel %vm3055, %v2937, 0
      %v3918 = vsel %vm3055, %v2938, 0
      %v3921 = vsel %vm3055, %v2939, 0
      %v3924 = vsel %vm3055, %v2940, 0
      %v3927 = vsel %vm3055, %v2941, 0
      %v3930 = vsel %vm3055, %v2942, 0
      %v3933 = vsel %vm3055, %v2943, 0
      %v3936 = vsel %vm3055, %v2944, 0
      %v3939 = vsel %vm3055, %v2945, 0
      %v3942 = vsel %vm3055, %v2946, 0
      %v3945 = vsel %vm3055, %v2947, 0
      %v3948 = vsel %vm3055, %v2948, 0
      %v3951 = vsel %vm3055, %v2949, 0
      %v3954 = vsel %vm3055, %v2950, 0
      %v3957 = vsel %vm3055, %v2951, 0
      %v3960 = vsel %vm3055, %v2952, 0
      %v3963 = vsel %vm3055, %v2953, 0
      %v3966 = vsel %vm3055, %v2954, 0
      %v3969 = vsel %vm3055, %v2955, 0
      %v3972 = vsel %vm3055, %v2956, 0
      %v3975 = vsel %vm3055, %v2957, 0
      %v3978 = vsel %vm3055, %v2958, 0
      %v3981 = vsel %vm3055, %v2959, 0
      %v3984 = vsel %vm3055, %v2960, 0
      %v3987 = vsel %vm3055, %v2961, 0
      %v3990 = vsel %vm3055, %v2962, 0
      %v3993 = vsel %vm3055, %v2963, 0
      %v3996 = vsel %vm3055, %v2964, 0
      %v3999 = vsel %vm3055, %v2965, 0
      %v4002 = vsel %vm3055, %v2966, 0
      %v4005 = vsel %vm3055, %v2967, 0
      %v4008 = vsel %vm3055, %v2968, 0
      %v4011 = vsel %vm3055, %v2969, 0
      %v4014 = vsel %vm3055, %v2970, 0
      %v4017 = vsel %vm3055, %v2971, 0
      %v4020 = vsel %vm3055, %v2972, 0
      %v4023 = vsel %vm3055, %v2973, 0
      %v4026 = vsel %vm3055, %v2974, 0
      %v4029 = vsel %vm3055, %v2975, 0
      %v4032 = vsel %vm3055, %v2976, 0
      %v4035 = vsel %vm3055, %v2977, 0
      %v4038 = vsel %vm3055, %v2978, 0
      %v4041 = vsel %vm3055, %v2979, 0
      %v4044 = vsel %vm3055, %v2980, 0
      %v4047 = vsel %vm3055, %v2981, 0
      %v4050 = vsel %vm3055, %v2982, 0
      %v4053 = vsel %vm3055, %v2983, 0
      %v4056 = vsel %vm3055, %v2984, 0
      %v4059 = vsel %vm3055, %v2985, 0
      %v4062 = vsel %vm3055, %v2986, 0
      %v4065 = vsel %vm3055, %v2987, 0
      %v4068 = vsel %vm3055, %v2988, 0
      %v4071 = vsel %vm3055, %v2989, 0
      %v4074 = vsel %vm3055, %v2990, 0
      %v4077 = vsel %vm3055, %v2991, 0
      %v4080 = vsel %vm3055, %v2992, 0
      %v4083 = vsel %vm3055, %v2993, 0
      %v4086 = vsel %vm3055, %v2994, 0
      %v4089 = vsel %vm3055, %v2995, 0
      %v4092 = vsel %vm3055, %v2996, 0
      %v4095 = vsel %vm3055, %v2997, 0
      %v4098 = vsel %vm3055, %v2998, 0
      %v4101 = vsel %vm3055, %v2999, 0
      %v4104 = vsel %vm3055, %v3000, 0
      %v4107 = vsel %vm3055, %v3001, 0
      %v4110 = vsel %vm3055, %v3002, 0
      %v4113 = vsel %vm3055, %v3003, 0
      %v4116 = vsel %vm3055, %v3004, 0
      %v4119 = vsel %vm3055, %v3005, 0
      %v4122 = vsel %vm3055, %v3006, 0
      %v4125 = vsel %vm3055, %v3007, 0
      %v4128 = vsel %vm3055, %v3008, 0
      %v4131 = vsel %vm3055, %v3009, 0
      %v4134 = vsel %vm3055, %v3010, 0
      %v4137 = vsel %vm3055, %v3011, 0
      %v4140 = vsel %vm3055, %v3012, 0
      %v4143 = vsel %vm3055, %v3013, 0
      %v4146 = vsel %vm3055, %v3014, 0
      %v4149 = vsel %vm3055, %v3015, 0
      %v4152 = vsel %vm3055, %v3016, 0
      %v4155 = vsel %vm3055, %v3017, 0
      %v4158 = vsel %vm3055, %v3018, 0
      %v4161 = vsel %vm3055, %v3019, 0
      %v4164 = vsel %vm3055, %v3020, 0
      %v4167 = vsel %vm3055, %v3021, 0
      %v4170 = vsel %vm3055, %v3022, 0
      %v4173 = vsel %vm3055, %v3023, 0
      %v4176 = vsel %vm3055, %v3024, 0
      %v4179 = vsel %vm3055, %v3025, 0
      %v4182 = vsel %vm3055, %v3026, 0
      %v4185 = vsel %vm3055, %v3027, 0
      %v4188 = vsel %vm3055, %v3028, 0
      %v4191 = vsel %vm3055, %v3029, 0
      %v4194 = vsel %vm3055, %v3030, 0
      %v4197 = vsel %vm3055, %v3031, 0
      %v4200 = vsel %vm3055, %v3032, 0
      %v4203 = vsel %vm3055, %v3033, 0
      %v4206 = vsel %vm3055, %v3034, 0
      %v4209 = vsel %vm3055, %v3035, 0
      %v4212 = vsel %vm3055, %v3036, 0
      %v4215 = vsel %vm3055, %v3037, 0
      %v4218 = vsel %vm3055, %v3038, 0
      %v4221 = vsel %vm3055, %v3039, 0
      %v4224 = vsel %vm3055, %v3040, 0
      %v4227 = vsel %vm3055, %v3041, 0
      %v4230 = vsel %vm3055, %v3042, 0
      %4232 = vmatprep.subr.bf16.mxu0 0
      %4233 = vmatpush1.bf16.msra.mxu0 %v3051
      %4234 = vmatprep.subr.bf16.mxu0 0
      %4235 = vmatpush1.bf16.msra.mxu0 %v3052
      %4236 = vmatprep.subr.bf16.mxu0 0
      %4237 = vmatpush1.bf16.msra.mxu0 0
      %4238 = vmatprep.subr.bf16.mxu0 0
      %4239 = vmatpush1.bf16.msra.mxu0 0
      %4240 = vmatprep.subr.bf16.mxu0 0
      %4241 = vmatpush1.bf16.msra.mxu0 0
      %4242 = vmatprep.subr.bf16.mxu0 0
      %4243 = vmatpush1.bf16.msra.mxu0 0
      %4244 = vmatprep.subr.bf16.mxu0 0
      %4245 = vmatpush1.bf16.msra.mxu0 0
      %4246 = vmatprep.subr.bf16.mxu0 0
      %4247 = vmatpush1.bf16.msra.mxu0 0
      %4248 = vmatprep.subr.bf16.mxu0 0
      %4249 = vmatpush1.bf16.msra.mxu0 0
      %4250 = vmatprep.subr.bf16.mxu0 0
      %4251 = vmatpush1.bf16.msra.mxu0 0
      %4252 = vmatprep.subr.bf16.mxu0 0
      %4253 = vmatpush1.bf16.msra.mxu0 0
      %4254 = vmatprep.subr.bf16.mxu0 0
      %4255 = vmatpush1.bf16.msra.mxu0 0
      %4256 = vmatprep.subr.bf16.mxu0 0
      %4257 = vmatpush1.bf16.msra.mxu0 0
      %4258 = vmatprep.subr.bf16.mxu0 0
      %4259 = vmatpush1.bf16.msra.mxu0 0
      %4260 = vmatprep.subr.bf16.mxu0 0
      %4261 = vmatpush1.bf16.msra.mxu0 0
      %4262 = vmatprep.subr.bf16.mxu0 0
      %4263 = vmatpush1.bf16.msra.mxu0 0
      %4264 = vmatprep.mubr.bf16.mxu0 0
      %4265 = vmatmul.mubr.bf16.gmra.mrb[0].mxu0 %v3057
      %v4266 = vpop.f32.mrb[0].mxu0
      %v4267 = vadd.f32 %v1081, %v4266
      %v4268 = vpop.f32.mrb[0].mxu0
      %v4269 = vpop.f32.mrb[0].mxu0
      %v4270 = vadd.f32 %v1081, %v4269
      %v4271 = vpop.f32.mrb[0].mxu0
      %4272 = vmatprep.mubr.bf16.mxu0 0
      %4273 = vmatmul.mubr.bf16.gmra.mrb[0].mxu0 %v3060
      %v4274 = vpop.f32.mrb[0].mxu0
      %v4275 = vadd.f32 %v1081, %v4274
      %v4276 = vpop.f32.mrb[0].mxu0
      %v4277 = vpop.f32.mrb[0].mxu0
      %v4278 = vadd.f32 %v1081, %v4277
      %v4279 = vpop.f32.mrb[0].mxu0
      %4280 = vmatprep.mubr.bf16.mxu0 0
      %4281 = vmatmul.mubr.bf16.gmra.mrb[0].mxu0 %v3063
      %v4282 = vpop.f32.mrb[0].mxu0
      %v4283 = vadd.f32 %v1081, %v4282
      %v4284 = vpop.f32.mrb[0].mxu0
      %v4285 = vpop.f32.mrb[0].mxu0
      %v4286 = vadd.f32 %v1081, %v4285
      %v4287 = vpop.f32.mrb[0].mxu0
      %4288 = vmatprep.mubr.bf16.mxu0 0
      %4289 = vmatmul.mubr.bf16.gmra.mrb[0].mxu0 %v3066
      %v4290 = vpop.f32.mrb[0].mxu0
      %v4291 = vadd.f32 %v1081, %v4290
      %v4292 = vpop.f32.mrb[0].mxu0
      %v4293 = vpop.f32.mrb[0].mxu0
      %v4294 = vadd.f32 %v1081, %v4293
      %v4295 = vpop.f32.mrb[0].mxu0
      %4296 = vmatprep.mubr.bf16.mxu0 0
      %4297 = vmatmul.mubr.bf16.gmra.mrb[0].mxu0 %v3069
      %v4298 = vpop.f32.mrb[0].mxu0
      %v4299 = vadd.f32 %v1081, %v4298
      %v4300 = vpop.f32.mrb[0].mxu0
      %v4301 = vpop.f32.mrb[0].mxu0
      %v4302 = vadd.f32 %v1081, %v4301
      %v4303 = vpop.f32.mrb[0].mxu0
      %4304 = vmatprep.mubr.bf16.mxu0 0
      %4305 = vmatmul.mubr.bf16.gmra.mrb[0].mxu0 %v3072
      %v4306 = vpop.f32.mrb[0].mxu0
      %v4307 = vadd.f32 %v1081, %v4306
      %v4308 = vpop.f32.mrb[0].mxu0
      %v4309 = vpop.f32.mrb[0].mxu0
      %v4310 = vadd.f32 %v1081, %v4309
      %v4311 = vpop.f32.mrb[0].mxu0
      %4312 = vmatprep.mubr.bf16.mxu0 0
      %4313 = vmatmul.mubr.bf16.gmra.mrb[0].mxu0 %v3075
      %v4314 = vpop.f32.mrb[0].mxu0
      %v4315 = vadd.f32 %v1081, %v4314
      %v4316 = vpop.f32.mrb[0].mxu0
      %v4317 = vpop.f32.mrb[0].mxu0
      %v4318 = vadd.f32 %v1081, %v4317
      %v4319 = vpop.f32.mrb[0].mxu0
      %4320 = vmatprep.mubr.bf16.mxu0 0
      %4321 = vmatmul.mubr.bf16.gmra.mrb[0].mxu0 %v3078
      %v4322 = vpop.f32.mrb[0].mxu0
      %v4323 = vadd.f32 %v1081, %v4322
      %v4324 = vpop.f32.mrb[0].mxu0
      %v4325 = vpop.f32.mrb[0].mxu0
      %v4326 = vadd.f32 %v1081, %v4325
      %v4327 = vpop.f32.mrb[0].mxu0
      %4328 = vmatprep.mubr.bf16.mxu0 0
      %4329 = vmatmul.mubr.bf16.gmra.mrb[0].mxu0 %v3081
      %v4330 = vpop.f32.mrb[0].mxu0
      %v4331 = vadd.f32 %v1081, %v4330
      %v4332 = vpop.f32.mrb[0].mxu0
      %v4333 = vpop.f32.mrb[0].mxu0
      %v4334 = vadd.f32 %v1081, %v4333
      %v4335 = vpop.f32.mrb[0].mxu0
      %4336 = vmatprep.mubr.bf16.mxu0 0
      %4337 = vmatmul.mubr.bf16.gmra.mrb[0].mxu0 %v3084
      %v4338 = vpop.f32.mrb[0].mxu0
      %v4339 = vadd.f32 %v1081, %v4338
      %v4340 = vpop.f32.mrb[0].mxu0
      %v4341 = vpop.f32.mrb[0].mxu0
      %v4342 = vadd.f32 %v1081, %v4341
      %v4343 = vpop.f32.mrb[0].mxu0
      %4344 = vmatprep.mubr.bf16.mxu0 0
      %4345 = vmatmul.mubr.bf16.gmra.mrb[0].mxu0 %v3087
      %v4346 = vpop.f32.mrb[0].mxu0
      %v4347 = vadd.f32 %v1081, %v4346
      %v4348 = vpop.f32.mrb[0].mxu0
      %v4349 = vpop.f32.mrb[0].mxu0
      %v4350 = vadd.f32 %v1081, %v4349
      %v4351 = vpop.f32.mrb[0].mxu0
      %4352 = vmatprep.mubr.bf16.mxu0 0
      %4353 = vmatmul.mubr.bf16.gmra.mrb[0].mxu0 %v3090
      %v4354 = vpop.f32.mrb[0].mxu0
      %v4355 = vadd.f32 %v1081, %v4354
      %v4356 = vpop.f32.mrb[0].mxu0
      %v4357 = vpop.f32.mrb[0].mxu0
      %v4358 = vadd.f32 %v1081, %v4357
      %v4359 = vpop.f32.mrb[0].mxu0
      %4360 = vmatprep.mubr.bf16.mxu0 0
      %4361 = vmatmul.mubr.bf16.gmra.mrb[0].mxu0 %v3093
      %v4362 = vpop.f32.mrb[0].mxu0
      %v4363 = vadd.f32 %v1081, %v4362
      %v4364 = vpop.f32.mrb[0].mxu0
      %v4365 = vpop.f32.mrb[0].mxu0
      %v4366 = vadd.f32 %v1081, %v4365
      %v4367 = vpop.f32.mrb[0].mxu0
      %4368 = vmatprep.mubr.bf16.mxu0 0
      %4369 = vmatmul.mubr.bf16.gmra.mrb[0].mxu0 %v3096
      %v4370 = vpop.f32.mrb[0].mxu0
      %v4371 = vadd.f32 %v1081, %v4370
      %v4372 = vpop.f32.mrb[0].mxu0
      %v4373 = vpop.f32.mrb[0].mxu0
      %v4374 = vadd.f32 %v1081, %v4373
      %v4375 = vpop.f32.mrb[0].mxu0
      %4376 = vmatprep.mubr.bf16.mxu0 0
      %4377 = vmatmul.mubr.bf16.gmra.mrb[0].mxu0 %v3099
      %v4378 = vpop.f32.mrb[0].mxu0
      %v4379 = vadd.f32 %v1081, %v4378
      %v4380 = vpop.f32.mrb[0].mxu0
      %v4381 = vpop.f32.mrb[0].mxu0
      %v4382 = vadd.f32 %v1081, %v4381
      %v4383 = vpop.f32.mrb[0].mxu0
      %4384 = vmatprep.mubr.bf16.mxu0 0
      %4385 = vmatmul.mubr.bf16.gmra.mrb[0].mxu0 %v3102
      %v4386 = vpop.f32.mrb[0].mxu0
      %v4387 = vadd.f32 %v1081, %v4386
      %v4388 = vpop.f32.mrb[0].mxu0
      %v4389 = vpop.f32.mrb[0].mxu0
      %v4390 = vadd.f32 %v1081, %v4389
      %v4391 = vpop.f32.mrb[0].mxu0
      %4392 = vmatprep.mubr.bf16.mxu0 0
      %4393 = vmatmul.mubr.bf16.gmra.mrb[0].mxu0 %v3105
      %v4394 = vpop.f32.mrb[0].mxu0
      %v4395 = vadd.f32 %v1081, %v4394
      %v4396 = vpop.f32.mrb[0].mxu0
      %v4397 = vpop.f32.mrb[0].mxu0
      %v4398 = vadd.f32 %v1081, %v4397
      %v4399 = vpop.f32.mrb[0].mxu0
      %4400 = vmatprep.mubr.bf16.mxu0 0
      %4401 = vmatmul.mubr.bf16.gmra.mrb[0].mxu0 %v3108
      %v4402 = vpop.f32.mrb[0].mxu0
      %v4403 = vadd.f32 %v1081, %v4402
      %v4404 = vpop.f32.mrb[0].mxu0
      %v4405 = vpop.f32.mrb[0].mxu0
      %v4406 = vadd.f32 %v1081, %v4405
      %v4407 = vpop.f32.mrb[0].mxu0
      %4408 = vmatprep.mubr.bf16.mxu0 0
      %4409 = vmatmul.mubr.bf16.gmra.mrb[0].mxu0 %v3111
      %v4410 = vpop.f32.mrb[0].mxu0
      %v4411 = vadd.f32 %v1081, %v4410
      %v4412 = vpop.f32.mrb[0].mxu0
      %v4413 = vpop.f32.mrb[0].mxu0
      %v4414 = vadd.f32 %v1081, %v4413
      %v4415 = vpop.f32.mrb[0].mxu0
      %4416 = vmatprep.mubr.bf16.mxu0 0
      %4417 = vmatmul.mubr.bf16.gmra.mrb[0].mxu0 %v3114
      %v4418 = vpop.f32.mrb[0].mxu0
      %v4419 = vadd.f32 %v1081, %v4418
      %v4420 = vpop.f32.mrb[0].mxu0
      %v4421 = vpop.f32.mrb[0].mxu0
      %v4422 = vadd.f32 %v1081, %v4421
      %v4423 = vpop.f32.mrb[0].mxu0
      %4424 = vmatprep.mubr.bf16.mxu0 0
      %4425 = vmatmul.mubr.bf16.gmra.mrb[0].mxu0 %v3117
      %v4426 = vpop.f32.mrb[0].mxu0
      %v4427 = vadd.f32 %v1081, %v4426
      %v4428 = vpop.f32.mrb[0].mxu0
      %v4429 = vpop.f32.mrb[0].mxu0
      %v4430 = vadd.f32 %v1081, %v4429
      %v4431 = vpop.f32.mrb[0].mxu0
      %4432 = vmatprep.mubr.bf16.mxu0 0
      %4433 = vmatmul.mubr.bf16.gmra.mrb[0].mxu0 %v3120
      %v4434 = vpop.f32.mrb[0].mxu0
      %v4435 = vadd.f32 %v1081, %v4434
      %v4436 = vpop.f32.mrb[0].mxu0
      %v4437 = vpop.f32.mrb[0].mxu0
      %v4438 = vadd.f32 %v1081, %v4437
      %v4439 = vpop.f32.mrb[0].mxu0
      %4440 = vmatprep.mubr.bf16.mxu0 0
      %4441 = vmatmul.mubr.bf16.gmra.mrb[0].mxu0 %v3123
      %v4442 = vpop.f32.mrb[0].mxu0
      %v4443 = vadd.f32 %v1081, %v4442
      %v4444 = vpop.f32.mrb[0].mxu0
      %v4445 = vpop.f32.mrb[0].mxu0
      %v4446 = vadd.f32 %v1081, %v4445
      %v4447 = vpop.f32.mrb[0].mxu0
      %4448 = vmatprep.mubr.bf16.mxu0 0
      %4449 = vmatmul.mubr.bf16.gmra.mrb[0].mxu0 %v3126
      %v4450 = vpop.f32.mrb[0].mxu0
      %v4451 = vadd.f32 %v1081, %v4450
      %v4452 = vpop.f32.mrb[0].mxu0
      %v4453 = vpop.f32.mrb[0].mxu0
      %v4454 = vadd.f32 %v1081, %v4453
      %v4455 = vpop.f32.mrb[0].mxu0
      %4456 = vmatprep.mubr.bf16.mxu0 0
      %4457 = vmatmul.mubr.bf16.gmra.mrb[0].mxu0 %v3129
      %v4458 = vpop.f32.mrb[0].mxu0
      %v4459 = vadd.f32 %v1081, %v4458
      %v4460 = vpop.f32.mrb[0].mxu0
      %v4461 = vpop.f32.mrb[0].mxu0
      %v4462 = vadd.f32 %v1081, %v4461
      %v4463 = vpop.f32.mrb[0].mxu0
      %4464 = vmatprep.mubr.bf16.mxu0 0
      %4465 = vmatmul.mubr.bf16.gmra.mrb[0].mxu0 %v3132
      %v4466 = vpop.f32.mrb[0].mxu0
      %v4467 = vadd.f32 %v1081, %v4466
      %v4468 = vpop.f32.mrb[0].mxu0
      %v4469 = vpop.f32.mrb[0].mxu0
      %v4470 = vadd.f32 %v1081, %v4469
      %v4471 = vpop.f32.mrb[0].mxu0
      %4472 = vmatprep.mubr.bf16.mxu0 0
      %4473 = vmatmul.mubr.bf16.gmra.mrb[0].mxu0 %v3135
      %v4474 = vpop.f32.mrb[0].mxu0
      %v4475 = vadd.f32 %v1081, %v4474
      %v4476 = vpop.f32.mrb[0].mxu0
      %v4477 = vpop.f32.mrb[0].mxu0
      %v4478 = vadd.f32 %v1081, %v4477
      %v4479 = vpop.f32.mrb[0].mxu0
      %4480 = vmatprep.mubr.bf16.mxu0 0
      %4481 = vmatmul.mubr.bf16.gmra.mrb[0].mxu0 %v3138
      %v4482 = vpop.f32.mrb[0].mxu0
      %v4483 = vadd.f32 %v1081, %v4482
      %v4484 = vpop.f32.mrb[0].mxu0
      %v4485 = vpop.f32.mrb[0].mxu0
      %v4486 = vadd.f32 %v1081, %v4485
      %v4487 = vpop.f32.mrb[0].mxu0
      %4488 = vmatprep.mubr.bf16.mxu0 0
      %4489 = vmatmul.mubr.bf16.gmra.mrb[0].mxu0 %v3141
      %v4490 = vpop.f32.mrb[0].mxu0
      %v4491 = vadd.f32 %v1081, %v4490
      %v4492 = vpop.f32.mrb[0].mxu0
      %v4493 = vpop.f32.mrb[0].mxu0
      %v4494 = vadd.f32 %v1081, %v4493
      %v4495 = vpop.f32.mrb[0].mxu0
      %4496 = vmatprep.mubr.bf16.mxu0 0
      %4497 = vmatmul.mubr.bf16.gmra.mrb[0].mxu0 %v3144
      %v4498 = vpop.f32.mrb[0].mxu0
      %v4499 = vadd.f32 %v1081, %v4498
      %v4500 = vpop.f32.mrb[0].mxu0
      %v4501 = vpop.f32.mrb[0].mxu0
      %v4502 = vadd.f32 %v1081, %v4501
      %v4503 = vpop.f32.mrb[0].mxu0
      %4504 = vmatprep.mubr.bf16.mxu0 0
      %4505 = vmatmul.mubr.bf16.gmra.mrb[0].mxu0 %v3147
      %v4506 = vpop.f32.mrb[0].mxu0
      %v4507 = vadd.f32 %v1081, %v4506
      %v4508 = vpop.f32.mrb[0].mxu0
      %v4509 = vpop.f32.mrb[0].mxu0
      %v4510 = vadd.f32 %v1081, %v4509
      %v4511 = vpop.f32.mrb[0].mxu0
      %4512 = vmatprep.mubr.bf16.mxu0 0
      %4513 = vmatmul.mubr.bf16.gmra.mrb[0].mxu0 %v3150
      %v4514 = vpop.f32.mrb[0].mxu0
      %v4515 = vadd.f32 %v1081, %v4514
      %v4516 = vpop.f32.mrb[0].mxu0
      %v4517 = vpop.f32.mrb[0].mxu0
      %v4518 = vadd.f32 %v1081, %v4517
      %v4519 = vpop.f32.mrb[0].mxu0
      %4520 = vmatprep.mubr.bf16.mxu0 0
      %4521 = vmatmul.mubr.bf16.gmra.mrb[0].mxu0 %v3153
      %v4522 = vpop.f32.mrb[0].mxu0
      %v4523 = vadd.f32 %v1081, %v4522
      %v4524 = vpop.f32.mrb[0].mxu0
      %v4525 = vpop.f32.mrb[0].mxu0
      %v4526 = vadd.f32 %v1081, %v4525
      %v4527 = vpop.f32.mrb[0].mxu0
      %4528 = vmatprep.mubr.bf16.mxu0 0
      %4529 = vmatmul.mubr.bf16.gmra.mrb[0].mxu0 %v3156
      %v4530 = vpop.f32.mrb[0].mxu0
      %v4531 = vadd.f32 %v1081, %v4530
      %v4532 = vpop.f32.mrb[0].mxu0
      %v4533 = vpop.f32.mrb[0].mxu0
      %v4534 = vadd.f32 %v1081, %v4533
      %v4535 = vpop.f32.mrb[0].mxu0
      %4536 = vmatprep.mubr.bf16.mxu0 0
      %4537 = vmatmul.mubr.bf16.gmra.mrb[0].mxu0 %v3159
      %v4538 = vpop.f32.mrb[0].mxu0
      %v4539 = vadd.f32 %v1081, %v4538
      %v4540 = vpop.f32.mrb[0].mxu0
      %v4541 = vpop.f32.mrb[0].mxu0
      %v4542 = vadd.f32 %v1081, %v4541
      %v4543 = vpop.f32.mrb[0].mxu0
      %4544 = vmatprep.mubr.bf16.mxu0 0
      %4545 = vmatmul.mubr.bf16.gmra.mrb[0].mxu0 %v3162
      %v4546 = vpop.f32.mrb[0].mxu0
      %v4547 = vadd.f32 %v1081, %v4546
      %v4548 = vpop.f32.mrb[0].mxu0
      %v4549 = vpop.f32.mrb[0].mxu0
      %v4550 = vadd.f32 %v1081, %v4549
      %v4551 = vpop.f32.mrb[0].mxu0
      %4552 = vmatprep.mubr.bf16.mxu0 0
      %4553 = vmatmul.mubr.bf16.gmra.mrb[0].mxu0 %v3165
      %v4554 = vpop.f32.mrb[0].mxu0
      %v4555 = vadd.f32 %v1081, %v4554
      %v4556 = vpop.f32.mrb[0].mxu0
      %v4557 = vpop.f32.mrb[0].mxu0
      %v4558 = vadd.f32 %v1081, %v4557
      %v4559 = vpop.f32.mrb[0].mxu0
      %4560 = vmatprep.mubr.bf16.mxu0 0
      %4561 = vmatmul.mubr.bf16.gmra.mrb[0].mxu0 %v3168
      %v4562 = vpop.f32.mrb[0].mxu0
      %v4563 = vadd.f32 %v1081, %v4562
      %v4564 = vpop.f32.mrb[0].mxu0
      %v4565 = vpop.f32.mrb[0].mxu0
      %v4566 = vadd.f32 %v1081, %v4565
      %v4567 = vpop.f32.mrb[0].mxu0
      %4568 = vmatprep.mubr.bf16.mxu0 0
      %4569 = vmatmul.mubr.bf16.gmra.mrb[0].mxu0 %v3171
      %v4570 = vpop.f32.mrb[0].mxu0
      %v4571 = vadd.f32 %v1081, %v4570
      %v4572 = vpop.f32.mrb[0].mxu0
      %v4573 = vpop.f32.mrb[0].mxu0
      %v4574 = vadd.f32 %v1081, %v4573
      %v4575 = vpop.f32.mrb[0].mxu0
      %4576 = vmatprep.mubr.bf16.mxu0 0
      %4577 = vmatmul.mubr.bf16.gmra.mrb[0].mxu0 %v3174
      %v4578 = vpop.f32.mrb[0].mxu0
      %v4579 = vadd.f32 %v1081, %v4578
      %v4580 = vpop.f32.mrb[0].mxu0
      %v4581 = vpop.f32.mrb[0].mxu0
      %v4582 = vadd.f32 %v1081, %v4581
      %v4583 = vpop.f32.mrb[0].mxu0
      %4584 = vmatprep.mubr.bf16.mxu0 0
      %4585 = vmatmul.mubr.bf16.gmra.mrb[0].mxu0 %v3177
      %v4586 = vpop.f32.mrb[0].mxu0
      %v4587 = vadd.f32 %v1081, %v4586
      %v4588 = vpop.f32.mrb[0].mxu0
      %v4589 = vpop.f32.mrb[0].mxu0
      %v4590 = vadd.f32 %v1081, %v4589
      %v4591 = vpop.f32.mrb[0].mxu0
      %4592 = vmatprep.mubr.bf16.mxu0 0
      %4593 = vmatmul.mubr.bf16.gmra.mrb[0].mxu0 %v3180
      %v4594 = vpop.f32.mrb[0].mxu0
      %v4595 = vadd.f32 %v1081, %v4594
      %v4596 = vpop.f32.mrb[0].mxu0
      %v4597 = vpop.f32.mrb[0].mxu0
      %v4598 = vadd.f32 %v1081, %v4597
      %v4599 = vpop.f32.mrb[0].mxu0
      %4600 = vmatprep.mubr.bf16.mxu0 0
      %4601 = vmatmul.mubr.bf16.gmra.mrb[0].mxu0 %v3183
      %v4602 = vpop.f32.mrb[0].mxu0
      %v4603 = vadd.f32 %v1081, %v4602
      %v4604 = vpop.f32.mrb[0].mxu0
      %v4605 = vpop.f32.mrb[0].mxu0
      %v4606 = vadd.f32 %v1081, %v4605
      %v4607 = vpop.f32.mrb[0].mxu0
      %4608 = vmatprep.mubr.bf16.mxu0 0
      %4609 = vmatmul.mubr.bf16.gmra.mrb[0].mxu0 %v3186
      %v4610 = vpop.f32.mrb[0].mxu0
      %v4611 = vadd.f32 %v1081, %v4610
      %v4612 = vpop.f32.mrb[0].mxu0
      %v4613 = vpop.f32.mrb[0].mxu0
      %v4614 = vadd.f32 %v1081, %v4613
      %v4615 = vpop.f32.mrb[0].mxu0
      %4616 = vmatprep.mubr.bf16.mxu0 0
      %4617 = vmatmul.mubr.bf16.gmra.mrb[0].mxu0 %v3189
      %v4618 = vpop.f32.mrb[0].mxu0
      %v4619 = vadd.f32 %v1081, %v4618
      %v4620 = vpop.f32.mrb[0].mxu0
      %v4621 = vpop.f32.mrb[0].mxu0
      %v4622 = vadd.f32 %v1081, %v4621
      %v4623 = vpop.f32.mrb[0].mxu0
      %4624 = vmatprep.mubr.bf16.mxu0 0
      %4625 = vmatmul.mubr.bf16.gmra.mrb[0].mxu0 %v3192
      %v4626 = vpop.f32.mrb[0].mxu0
      %v4627 = vadd.f32 %v1081, %v4626
      %v4628 = vpop.f32.mrb[0].mxu0
      %v4629 = vpop.f32.mrb[0].mxu0
      %v4630 = vadd.f32 %v1081, %v4629
      %v4631 = vpop.f32.mrb[0].mxu0
      %4632 = vmatprep.mubr.bf16.mxu0 0
      %4633 = vmatmul.mubr.bf16.gmra.mrb[0].mxu0 %v3195
      %v4634 = vpop.f32.mrb[0].mxu0
      %v4635 = vadd.f32 %v1081, %v4634
      %v4636 = vpop.f32.mrb[0].mxu0
      %v4637 = vpop.f32.mrb[0].mxu0
      %v4638 = vadd.f32 %v1081, %v4637
      %v4639 = vpop.f32.mrb[0].mxu0
      %4640 = vmatprep.mubr.bf16.mxu0 0
      %4641 = vmatmul.mubr.bf16.gmra.mrb[0].mxu0 %v3198
      %v4642 = vpop.f32.mrb[0].mxu0
      %v4643 = vadd.f32 %v1081, %v4642
      %v4644 = vpop.f32.mrb[0].mxu0
      %v4645 = vpop.f32.mrb[0].mxu0
      %v4646 = vadd.f32 %v1081, %v4645
      %v4647 = vpop.f32.mrb[0].mxu0
      %4648 = vmatprep.mubr.bf16.mxu0 0
      %4649 = vmatmul.mubr.bf16.gmra.mrb[0].mxu0 %v3201
      %v4650 = vpop.f32.mrb[0].mxu0
      %v4651 = vadd.f32 %v1081, %v4650
      %v4652 = vpop.f32.mrb[0].mxu0
      %v4653 = vpop.f32.mrb[0].mxu0
      %v4654 = vadd.f32 %v1081, %v4653
      %v4655 = vpop.f32.mrb[0].mxu0
      %4656 = vmatprep.mubr.bf16.mxu0 0
      %4657 = vmatmul.mubr.bf16.gmra.mrb[0].mxu0 %v3204
      %v4658 = vpop.f32.mrb[0].mxu0
      %v4659 = vadd.f32 %v1081, %v4658
      %v4660 = vpop.f32.mrb[0].mxu0
      %v4661 = vpop.f32.mrb[0].mxu0
      %v4662 = vadd.f32 %v1081, %v4661
      %v4663 = vpop.f32.mrb[0].mxu0
      %4664 = vmatprep.mubr.bf16.mxu0 0
      %4665 = vmatmul.mubr.bf16.gmra.mrb[0].mxu0 %v3207
      %v4666 = vpop.f32.mrb[0].mxu0
      %v4667 = vadd.f32 %v1081, %v4666
      %v4668 = vpop.f32.mrb[0].mxu0
      %v4669 = vpop.f32.mrb[0].mxu0
      %v4670 = vadd.f32 %v1081, %v4669
      %v4671 = vpop.f32.mrb[0].mxu0
      %4672 = vmatprep.mubr.bf16.mxu0 0
      %4673 = vmatmul.mubr.bf16.gmra.mrb[0].mxu0 %v3210
      %v4674 = vpop.f32.mrb[0].mxu0
      %v4675 = vadd.f32 %v1081, %v4674
      %v4676 = vpop.f32.mrb[0].mxu0
      %v4677 = vpop.f32.mrb[0].mxu0
      %v4678 = vadd.f32 %v1081, %v4677
      %v4679 = vpop.f32.mrb[0].mxu0
      %4680 = vmatprep.mubr.bf16.mxu0 0
      %4681 = vmatmul.mubr.bf16.gmra.mrb[0].mxu0 %v3213
      %v4682 = vpop.f32.mrb[0].mxu0
      %v4683 = vadd.f32 %v1081, %v4682
      %v4684 = vpop.f32.mrb[0].mxu0
      %v4685 = vpop.f32.mrb[0].mxu0
      %v4686 = vadd.f32 %v1081, %v4685
      %v4687 = vpop.f32.mrb[0].mxu0
      %4688 = vmatprep.mubr.bf16.mxu0 0
      %4689 = vmatmul.mubr.bf16.gmra.mrb[0].mxu0 %v3216
      %v4690 = vpop.f32.mrb[0].mxu0
      %v4691 = vadd.f32 %v1081, %v4690
      %v4692 = vpop.f32.mrb[0].mxu0
      %v4693 = vpop.f32.mrb[0].mxu0
      %v4694 = vadd.f32 %v1081, %v4693
      %v4695 = vpop.f32.mrb[0].mxu0
      %4696 = vmatprep.mubr.bf16.mxu0 0
      %4697 = vmatmul.mubr.bf16.gmra.mrb[0].mxu0 %v3219
      %v4698 = vpop.f32.mrb[0].mxu0
      %v4699 = vadd.f32 %v1081, %v4698
      %v4700 = vpop.f32.mrb[0].mxu0
      %v4701 = vpop.f32.mrb[0].mxu0
      %v4702 = vadd.f32 %v1081, %v4701
      %v4703 = vpop.f32.mrb[0].mxu0
      %4704 = vmatprep.mubr.bf16.mxu0 0
      %4705 = vmatmul.mubr.bf16.gmra.mrb[0].mxu0 %v3222
      %v4706 = vpop.f32.mrb[0].mxu0
      %v4707 = vadd.f32 %v1081, %v4706
      %v4708 = vpop.f32.mrb[0].mxu0
      %v4709 = vpop.f32.mrb[0].mxu0
      %v4710 = vadd.f32 %v1081, %v4709
      %v4711 = vpop.f32.mrb[0].mxu0
      %4712 = vmatprep.mubr.bf16.mxu0 0
      %4713 = vmatmul.mubr.bf16.gmra.mrb[0].mxu0 %v3225
      %v4714 = vpop.f32.mrb[0].mxu0
      %v4715 = vadd.f32 %v1081, %v4714
      %v4716 = vpop.f32.mrb[0].mxu0
      %v4717 = vpop.f32.mrb[0].mxu0
      %v4718 = vadd.f32 %v1081, %v4717
      %v4719 = vpop.f32.mrb[0].mxu0
      %4720 = vmatprep.mubr.bf16.mxu0 0
      %4721 = vmatmul.mubr.bf16.gmra.mrb[0].mxu0 %v3228
      %v4722 = vpop.f32.mrb[0].mxu0
      %v4723 = vadd.f32 %v1081, %v4722
      %v4724 = vpop.f32.mrb[0].mxu0
      %v4725 = vpop.f32.mrb[0].mxu0
      %v4726 = vadd.f32 %v1081, %v4725
      %v4727 = vpop.f32.mrb[0].mxu0
      %4728 = vmatprep.mubr.bf16.mxu0 0
      %4729 = vmatmul.mubr.bf16.gmra.mrb[0].mxu0 %v3231
      %v4730 = vpop.f32.mrb[0].mxu0
      %v4731 = vadd.f32 %v1081, %v4730
      %v4732 = vpop.f32.mrb[0].mxu0
      %v4733 = vpop.f32.mrb[0].mxu0
      %v4734 = vadd.f32 %v1081, %v4733
      %v4735 = vpop.f32.mrb[0].mxu0
      %4736 = vmatprep.mubr.bf16.mxu0 0
      %4737 = vmatmul.mubr.bf16.gmra.mrb[0].mxu0 %v3234
      %v4738 = vpop.f32.mrb[0].mxu0
      %v4739 = vadd.f32 %v1081, %v4738
      %v4740 = vpop.f32.mrb[0].mxu0
      %v4741 = vpop.f32.mrb[0].mxu0
      %v4742 = vadd.f32 %v1081, %v4741
      %v4743 = vpop.f32.mrb[0].mxu0
      %4744 = vmatprep.mubr.bf16.mxu0 0
      %4745 = vmatmul.mubr.bf16.gmra.mrb[0].mxu0 %v3237
      %v4746 = vpop.f32.mrb[0].mxu0
      %v4747 = vadd.f32 %v1081, %v4746
      %v4748 = vpop.f32.mrb[0].mxu0
      %v4749 = vpop.f32.mrb[0].mxu0
      %v4750 = vadd.f32 %v1081, %v4749
      %v4751 = vpop.f32.mrb[0].mxu0
      %4752 = vmatprep.mubr.bf16.mxu0 0
      %4753 = vmatmul.mubr.bf16.gmra.mrb[0].mxu0 %v3240
      %v4754 = vpop.f32.mrb[0].mxu0
      %v4755 = vadd.f32 %v1081, %v4754
      %v4756 = vpop.f32.mrb[0].mxu0
      %v4757 = vpop.f32.mrb[0].mxu0
      %v4758 = vadd.f32 %v1081, %v4757
      %v4759 = vpop.f32.mrb[0].mxu0
      %4760 = vmatprep.mubr.bf16.mxu0 0
      %4761 = vmatmul.mubr.bf16.gmra.mrb[0].mxu0 %v3243
      %v4762 = vpop.f32.mrb[0].mxu0
      %v4763 = vadd.f32 %v1081, %v4762
      %v4764 = vpop.f32.mrb[0].mxu0
      %v4765 = vpop.f32.mrb[0].mxu0
      %v4766 = vadd.f32 %v1081, %v4765
      %v4767 = vpop.f32.mrb[0].mxu0
      %4768 = vmatprep.mubr.bf16.mxu0 0
      %4769 = vmatmul.mubr.bf16.gmra.mrb[0].mxu0 %v3246
      %v4770 = vpop.f32.mrb[0].mxu0
      %v4771 = vadd.f32 %v1081, %v4770
      %v4772 = vpop.f32.mrb[0].mxu0
      %v4773 = vpop.f32.mrb[0].mxu0
      %v4774 = vadd.f32 %v1081, %v4773
      %v4775 = vpop.f32.mrb[0].mxu0
      %4776 = vmatprep.mubr.bf16.mxu0 0
      %4777 = vmatmul.mubr.bf16.gmra.mrb[0].mxu0 %v3249
      %v4778 = vpop.f32.mrb[0].mxu0
      %v4779 = vadd.f32 %v1081, %v4778
      %v4780 = vpop.f32.mrb[0].mxu0
      %v4781 = vpop.f32.mrb[0].mxu0
      %v4782 = vadd.f32 %v1081, %v4781
      %v4783 = vpop.f32.mrb[0].mxu0
      %4784 = vmatprep.mubr.bf16.mxu0 0
      %4785 = vmatmul.mubr.bf16.gmra.mrb[0].mxu0 %v3252
      %v4786 = vpop.f32.mrb[0].mxu0
      %v4787 = vadd.f32 %v1081, %v4786
      %v4788 = vpop.f32.mrb[0].mxu0
      %v4789 = vpop.f32.mrb[0].mxu0
      %v4790 = vadd.f32 %v1081, %v4789
      %v4791 = vpop.f32.mrb[0].mxu0
      %4792 = vmatprep.mubr.bf16.mxu0 0
      %4793 = vmatmul.mubr.bf16.gmra.mrb[0].mxu0 %v3255
      %v4794 = vpop.f32.mrb[0].mxu0
      %v4795 = vadd.f32 %v1081, %v4794
      %v4796 = vpop.f32.mrb[0].mxu0
      %v4797 = vpop.f32.mrb[0].mxu0
      %v4798 = vadd.f32 %v1081, %v4797
      %v4799 = vpop.f32.mrb[0].mxu0
      %4800 = vmatprep.mubr.bf16.mxu0 0
      %4801 = vmatmul.mubr.bf16.gmra.mrb[0].mxu0 %v3258
      %v4802 = vpop.f32.mrb[0].mxu0
      %v4803 = vadd.f32 %v1081, %v4802
      %v4804 = vpop.f32.mrb[0].mxu0
      %v4805 = vpop.f32.mrb[0].mxu0
      %v4806 = vadd.f32 %v1081, %v4805
      %v4807 = vpop.f32.mrb[0].mxu0
      %4808 = vmatprep.mubr.bf16.mxu0 0
      %4809 = vmatmul.mubr.bf16.gmra.mrb[0].mxu0 %v3261
      %v4810 = vpop.f32.mrb[0].mxu0
      %v4811 = vadd.f32 %v1081, %v4810
      %v4812 = vpop.f32.mrb[0].mxu0
      %v4813 = vpop.f32.mrb[0].mxu0
      %v4814 = vadd.f32 %v1081, %v4813
      %v4815 = vpop.f32.mrb[0].mxu0
      %4816 = vmatprep.mubr.bf16.mxu0 0
      %4817 = vmatmul.mubr.bf16.gmra.mrb[0].mxu0 %v3264
      %v4818 = vpop.f32.mrb[0].mxu0
      %v4819 = vadd.f32 %v1081, %v4818
      %v4820 = vpop.f32.mrb[0].mxu0
      %v4821 = vpop.f32.mrb[0].mxu0
      %v4822 = vadd.f32 %v1081, %v4821
      %v4823 = vpop.f32.mrb[0].mxu0
      %4824 = vmatprep.mubr.bf16.mxu0 0
      %4825 = vmatmul.mubr.bf16.gmra.mrb[0].mxu0 %v3267
      %v4826 = vpop.f32.mrb[0].mxu0
      %v4827 = vadd.f32 %v1081, %v4826
      %v4828 = vpop.f32.mrb[0].mxu0
      %v4829 = vpop.f32.mrb[0].mxu0
      %v4830 = vadd.f32 %v1081, %v4829
      %v4831 = vpop.f32.mrb[0].mxu0
      %4832 = vmatprep.mubr.bf16.mxu0 0
      %4833 = vmatmul.mubr.bf16.gmra.mrb[0].mxu0 %v3270
      %v4834 = vpop.f32.mrb[0].mxu0
      %v4835 = vadd.f32 %v1081, %v4834
      %v4836 = vpop.f32.mrb[0].mxu0
      %v4837 = vpop.f32.mrb[0].mxu0
      %v4838 = vadd.f32 %v1081, %v4837
      %v4839 = vpop.f32.mrb[0].mxu0
      %4840 = vmatprep.mubr.bf16.mxu0 0
      %4841 = vmatmul.mubr.bf16.gmra.mrb[0].mxu0 %v3273
      %v4842 = vpop.f32.mrb[0].mxu0
      %v4843 = vadd.f32 %v1081, %v4842
      %v4844 = vpop.f32.mrb[0].mxu0
      %v4845 = vpop.f32.mrb[0].mxu0
      %v4846 = vadd.f32 %v1081, %v4845
      %v4847 = vpop.f32.mrb[0].mxu0
      %4848 = vmatprep.mubr.bf16.mxu0 0
      %4849 = vmatmul.mubr.bf16.gmra.mrb[0].mxu0 %v3276
      %v4850 = vpop.f32.mrb[0].mxu0
      %v4851 = vadd.f32 %v1081, %v4850
      %v4852 = vpop.f32.mrb[0].mxu0
      %v4853 = vpop.f32.mrb[0].mxu0
      %v4854 = vadd.f32 %v1081, %v4853
      %v4855 = vpop.f32.mrb[0].mxu0
      %4856 = vmatprep.mubr.bf16.mxu0 0
      %4857 = vmatmul.mubr.bf16.gmra.mrb[0].mxu0 %v3279
      %v4858 = vpop.f32.mrb[0].mxu0
      %v4859 = vadd.f32 %v1081, %v4858
      %v4860 = vpop.f32.mrb[0].mxu0
      %v4861 = vpop.f32.mrb[0].mxu0
      %v4862 = vadd.f32 %v1081, %v4861
      %v4863 = vpop.f32.mrb[0].mxu0
      %4864 = vmatprep.mubr.bf16.mxu0 0
      %4865 = vmatmul.mubr.bf16.gmra.mrb[0].mxu0 %v3282
      %v4866 = vpop.f32.mrb[0].mxu0
      %v4867 = vadd.f32 %v1081, %v4866
      %v4868 = vpop.f32.mrb[0].mxu0
      %v4869 = vpop.f32.mrb[0].mxu0
      %v4870 = vadd.f32 %v1081, %v4869
      %v4871 = vpop.f32.mrb[0].mxu0
      %4872 = vmatprep.mubr.bf16.mxu0 0
      %4873 = vmatmul.mubr.bf16.gmra.mrb[0].mxu0 %v3285
      %v4874 = vpop.f32.mrb[0].mxu0
      %v4875 = vadd.f32 %v1081, %v4874
      %v4876 = vpop.f32.mrb[0].mxu0
      %v4877 = vpop.f32.mrb[0].mxu0
      %v4878 = vadd.f32 %v1081, %v4877
      %v4879 = vpop.f32.mrb[0].mxu0
      %4880 = vmatprep.mubr.bf16.mxu0 0
      %4881 = vmatmul.mubr.bf16.gmra.mrb[0].mxu0 %v3288
      %v4882 = vpop.f32.mrb[0].mxu0
      %v4883 = vadd.f32 %v1081, %v4882
      %v4884 = vpop.f32.mrb[0].mxu0
      %v4885 = vpop.f32.mrb[0].mxu0
      %v4886 = vadd.f32 %v1081, %v4885
      %v4887 = vpop.f32.mrb[0].mxu0
      %4888 = vmatprep.mubr.bf16.mxu0 0
      %4889 = vmatmul.mubr.bf16.gmra.mrb[0].mxu0 %v3291
      %v4890 = vpop.f32.mrb[0].mxu0
      %v4891 = vadd.f32 %v1081, %v4890
      %v4892 = vpop.f32.mrb[0].mxu0
      %v4893 = vpop.f32.mrb[0].mxu0
      %v4894 = vadd.f32 %v1081, %v4893
      %v4895 = vpop.f32.mrb[0].mxu0
      %4896 = vmatprep.mubr.bf16.mxu0 0
      %4897 = vmatmul.mubr.bf16.gmra.mrb[0].mxu0 %v3294
      %v4898 = vpop.f32.mrb[0].mxu0
      %v4899 = vadd.f32 %v1081, %v4898
      %v4900 = vpop.f32.mrb[0].mxu0
      %v4901 = vpop.f32.mrb[0].mxu0
      %v4902 = vadd.f32 %v1081, %v4901
      %v4903 = vpop.f32.mrb[0].mxu0
      %4904 = vmatprep.mubr.bf16.mxu0 0
      %4905 = vmatmul.mubr.bf16.gmra.mrb[0].mxu0 %v3297
      %v4906 = vpop.f32.mrb[0].mxu0
      %v4907 = vadd.f32 %v1081, %v4906
      %v4908 = vpop.f32.mrb[0].mxu0
      %v4909 = vpop.f32.mrb[0].mxu0
      %v4910 = vadd.f32 %v1081, %v4909
      %v4911 = vpop.f32.mrb[0].mxu0
      %4912 = vmatprep.mubr.bf16.mxu0 0
      %4913 = vmatmul.mubr.bf16.gmra.mrb[0].mxu0 %v3300
      %v4914 = vpop.f32.mrb[0].mxu0
      %v4915 = vadd.f32 %v1081, %v4914
      %v4916 = vpop.f32.mrb[0].mxu0
      %v4917 = vpop.f32.mrb[0].mxu0
      %v4918 = vadd.f32 %v1081, %v4917
      %v4919 = vpop.f32.mrb[0].mxu0
      %4920 = vmatprep.mubr.bf16.mxu0 0
      %4921 = vmatmul.mubr.bf16.gmra.mrb[0].mxu0 %v3303
      %v4922 = vpop.f32.mrb[0].mxu0
      %v4923 = vadd.f32 %v1081, %v4922
      %v4924 = vpop.f32.mrb[0].mxu0
      %v4925 = vpop.f32.mrb[0].mxu0
      %v4926 = vadd.f32 %v1081, %v4925
      %v4927 = vpop.f32.mrb[0].mxu0
      %4928 = vmatprep.mubr.bf16.mxu0 0
      %4929 = vmatmul.mubr.bf16.gmra.mrb[0].mxu0 %v3306
      %v4930 = vpop.f32.mrb[0].mxu0
      %v4931 = vadd.f32 %v1081, %v4930
      %v4932 = vpop.f32.mrb[0].mxu0
      %v4933 = vpop.f32.mrb[0].mxu0
      %v4934 = vadd.f32 %v1081, %v4933
      %v4935 = vpop.f32.mrb[0].mxu0
      %4936 = vmatprep.mubr.bf16.mxu0 0
      %4937 = vmatmul.mubr.bf16.gmra.mrb[0].mxu0 %v3309
      %v4938 = vpop.f32.mrb[0].mxu0
      %v4939 = vadd.f32 %v1081, %v4938
      %v4940 = vpop.f32.mrb[0].mxu0
      %v4941 = vpop.f32.mrb[0].mxu0
      %v4942 = vadd.f32 %v1081, %v4941
      %v4943 = vpop.f32.mrb[0].mxu0
      %4944 = vmatprep.mubr.bf16.mxu0 0
      %4945 = vmatmul.mubr.bf16.gmra.mrb[0].mxu0 %v3312
      %v4946 = vpop.f32.mrb[0].mxu0
      %v4947 = vadd.f32 %v1081, %v4946
      %v4948 = vpop.f32.mrb[0].mxu0
      %v4949 = vpop.f32.mrb[0].mxu0
      %v4950 = vadd.f32 %v1081, %v4949
      %v4951 = vpop.f32.mrb[0].mxu0
      %4952 = vmatprep.mubr.bf16.mxu0 0
      %4953 = vmatmul.mubr.bf16.gmra.mrb[0].mxu0 %v3315
      %v4954 = vpop.f32.mrb[0].mxu0
      %v4955 = vadd.f32 %v1081, %v4954
      %v4956 = vpop.f32.mrb[0].mxu0
      %v4957 = vpop.f32.mrb[0].mxu0
      %v4958 = vadd.f32 %v1081, %v4957
      %v4959 = vpop.f32.mrb[0].mxu0
      %4960 = vmatprep.mubr.bf16.mxu0 0
      %4961 = vmatmul.mubr.bf16.gmra.mrb[0].mxu0 %v3318
      %v4962 = vpop.f32.mrb[0].mxu0
      %v4963 = vadd.f32 %v1081, %v4962
      %v4964 = vpop.f32.mrb[0].mxu0
      %v4965 = vpop.f32.mrb[0].mxu0
      %v4966 = vadd.f32 %v1081, %v4965
      %v4967 = vpop.f32.mrb[0].mxu0
      %4968 = vmatprep.mubr.bf16.mxu0 0
      %4969 = vmatmul.mubr.bf16.gmra.mrb[0].mxu0 %v3321
      %v4970 = vpop.f32.mrb[0].mxu0
      %v4971 = vadd.f32 %v1081, %v4970
      %v4972 = vpop.f32.mrb[0].mxu0
      %v4973 = vpop.f32.mrb[0].mxu0
      %v4974 = vadd.f32 %v1081, %v4973
      %v4975 = vpop.f32.mrb[0].mxu0
      %4976 = vmatprep.mubr.bf16.mxu0 0
      %4977 = vmatmul.mubr.bf16.gmra.mrb[0].mxu0 %v3324
      %v4978 = vpop.f32.mrb[0].mxu0
      %v4979 = vadd.f32 %v1081, %v4978
      %v4980 = vpop.f32.mrb[0].mxu0
      %v4981 = vpop.f32.mrb[0].mxu0
      %v4982 = vadd.f32 %v1081, %v4981
      %v4983 = vpop.f32.mrb[0].mxu0
      %4984 = vmatprep.mubr.bf16.mxu0 0
      %4985 = vmatmul.mubr.bf16.gmra.mrb[0].mxu0 %v3327
      %v4986 = vpop.f32.mrb[0].mxu0
      %v4987 = vadd.f32 %v1081, %v4986
      %v4988 = vpop.f32.mrb[0].mxu0
      %v4989 = vpop.f32.mrb[0].mxu0
      %v4990 = vadd.f32 %v1081, %v4989
      %v4991 = vpop.f32.mrb[0].mxu0
      %4992 = vmatprep.mubr.bf16.mxu0 0
      %4993 = vmatmul.mubr.bf16.gmra.mrb[0].mxu0 %v3330
      %v4994 = vpop.f32.mrb[0].mxu0
      %v4995 = vadd.f32 %v1081, %v4994
      %v4996 = vpop.f32.mrb[0].mxu0
      %v4997 = vpop.f32.mrb[0].mxu0
      %v4998 = vadd.f32 %v1081, %v4997
      %v4999 = vpop.f32.mrb[0].mxu0
      %5000 = vmatprep.mubr.bf16.mxu0 0
      %5001 = vmatmul.mubr.bf16.gmra.mrb[0].mxu0 %v3333
      %v5002 = vpop.f32.mrb[0].mxu0
      %v5003 = vadd.f32 %v1081, %v5002
      %v5004 = vpop.f32.mrb[0].mxu0
      %v5005 = vpop.f32.mrb[0].mxu0
      %v5006 = vadd.f32 %v1081, %v5005
      %v5007 = vpop.f32.mrb[0].mxu0
      %5008 = vmatprep.mubr.bf16.mxu0 0
      %5009 = vmatmul.mubr.bf16.gmra.mrb[0].mxu0 %v3336
      %v5010 = vpop.f32.mrb[0].mxu0
      %v5011 = vadd.f32 %v1081, %v5010
      %v5012 = vpop.f32.mrb[0].mxu0
      %v5013 = vpop.f32.mrb[0].mxu0
      %v5014 = vadd.f32 %v1081, %v5013
      %v5015 = vpop.f32.mrb[0].mxu0
      %5016 = vmatprep.mubr.bf16.mxu0 0
      %5017 = vmatmul.mubr.bf16.gmra.mrb[0].mxu0 %v3339
      %v5018 = vpop.f32.mrb[0].mxu0
      %v5019 = vadd.f32 %v1081, %v5018
      %v5020 = vpop.f32.mrb[0].mxu0
      %v5021 = vpop.f32.mrb[0].mxu0
      %v5022 = vadd.f32 %v1081, %v5021
      %v5023 = vpop.f32.mrb[0].mxu0
      %5024 = vmatprep.mubr.bf16.mxu0 0
      %5025 = vmatmul.mubr.bf16.gmra.mrb[0].mxu0 %v3342
      %v5026 = vpop.f32.mrb[0].mxu0
      %v5027 = vadd.f32 %v1081, %v5026
      %v5028 = vpop.f32.mrb[0].mxu0
      %v5029 = vpop.f32.mrb[0].mxu0
      %v5030 = vadd.f32 %v1081, %v5029
      %v5031 = vpop.f32.mrb[0].mxu0
      %5032 = vmatprep.mubr.bf16.mxu0 0
      %5033 = vmatmul.mubr.bf16.gmra.mrb[0].mxu0 %v3345
      %v5034 = vpop.f32.mrb[0].mxu0
      %v5035 = vadd.f32 %v1081, %v5034
      %v5036 = vpop.f32.mrb[0].mxu0
      %v5037 = vpop.f32.mrb[0].mxu0
      %v5038 = vadd.f32 %v1081, %v5037
      %v5039 = vpop.f32.mrb[0].mxu0
      %5040 = vmatprep.mubr.bf16.mxu0 0
      %5041 = vmatmul.mubr.bf16.gmra.mrb[0].mxu0 %v3348
      %v5042 = vpop.f32.mrb[0].mxu0
      %v5043 = vadd.f32 %v1081, %v5042
      %v5044 = vpop.f32.mrb[0].mxu0
      %v5045 = vpop.f32.mrb[0].mxu0
      %v5046 = vadd.f32 %v1081, %v5045
      %v5047 = vpop.f32.mrb[0].mxu0
      %5048 = vmatprep.mubr.bf16.mxu0 0
      %5049 = vmatmul.mubr.bf16.gmra.mrb[0].mxu0 %v3351
      %v5050 = vpop.f32.mrb[0].mxu0
      %v5051 = vadd.f32 %v1081, %v5050
      %v5052 = vpop.f32.mrb[0].mxu0
      %v5053 = vpop.f32.mrb[0].mxu0
      %v5054 = vadd.f32 %v1081, %v5053
      %v5055 = vpop.f32.mrb[0].mxu0
      %5056 = vmatprep.mubr.bf16.mxu0 0
      %5057 = vmatmul.mubr.bf16.gmra.mrb[0].mxu0 %v3354
      %v5058 = vpop.f32.mrb[0].mxu0
      %v5059 = vadd.f32 %v1081, %v5058
      %v5060 = vpop.f32.mrb[0].mxu0
      %v5061 = vpop.f32.mrb[0].mxu0
      %v5062 = vadd.f32 %v1081, %v5061
      %v5063 = vpop.f32.mrb[0].mxu0
      %5064 = vmatprep.mubr.bf16.mxu0 0
      %5065 = vmatmul.mubr.bf16.gmra.mrb[0].mxu0 %v3357
      %v5066 = vpop.f32.mrb[0].mxu0
      %v5067 = vadd.f32 %v1081, %v5066
      %v5068 = vpop.f32.mrb[0].mxu0
      %v5069 = vpop.f32.mrb[0].mxu0
      %v5070 = vadd.f32 %v1081, %v5069
      %v5071 = vpop.f32.mrb[0].mxu0
      %5072 = vmatprep.mubr.bf16.mxu0 0
      %5073 = vmatmul.mubr.bf16.gmra.mrb[0].mxu0 %v3360
      %v5074 = vpop.f32.mrb[0].mxu0
      %v5075 = vadd.f32 %v1081, %v5074
      %v5076 = vpop.f32.mrb[0].mxu0
      %v5077 = vpop.f32.mrb[0].mxu0
      %v5078 = vadd.f32 %v1081, %v5077
      %v5079 = vpop.f32.mrb[0].mxu0
      %5080 = vmatprep.mubr.bf16.mxu0 0
      %5081 = vmatmul.mubr.bf16.gmra.mrb[0].mxu0 %v3363
      %v5082 = vpop.f32.mrb[0].mxu0
      %v5083 = vadd.f32 %v1081, %v5082
      %v5084 = vpop.f32.mrb[0].mxu0
      %v5085 = vpop.f32.mrb[0].mxu0
      %v5086 = vadd.f32 %v1081, %v5085
      %v5087 = vpop.f32.mrb[0].mxu0
      %5088 = vmatprep.mubr.bf16.mxu0 0
      %5089 = vmatmul.mubr.bf16.gmra.mrb[0].mxu0 %v3366
      %v5090 = vpop.f32.mrb[0].mxu0
      %v5091 = vadd.f32 %v1081, %v5090
      %v5092 = vpop.f32.mrb[0].mxu0
      %v5093 = vpop.f32.mrb[0].mxu0
      %v5094 = vadd.f32 %v1081, %v5093
      %v5095 = vpop.f32.mrb[0].mxu0
      %5096 = vmatprep.mubr.bf16.mxu0 0
      %5097 = vmatmul.mubr.bf16.gmra.mrb[0].mxu0 %v3369
      %v5098 = vpop.f32.mrb[0].mxu0
      %v5099 = vadd.f32 %v1081, %v5098
      %v5100 = vpop.f32.mrb[0].mxu0
      %v5101 = vpop.f32.mrb[0].mxu0
      %v5102 = vadd.f32 %v1081, %v5101
      %v5103 = vpop.f32.mrb[0].mxu0
      %5104 = vmatprep.mubr.bf16.mxu0 0
      %5105 = vmatmul.mubr.bf16.gmra.mrb[0].mxu0 %v3372
      %v5106 = vpop.f32.mrb[0].mxu0
      %v5107 = vadd.f32 %v1081, %v5106
      %v5108 = vpop.f32.mrb[0].mxu0
      %v5109 = vpop.f32.mrb[0].mxu0
      %v5110 = vadd.f32 %v1081, %v5109
      %v5111 = vpop.f32.mrb[0].mxu0
      %5112 = vmatprep.mubr.bf16.mxu0 0
      %5113 = vmatmul.mubr.bf16.gmra.mrb[0].mxu0 %v3375
      %v5114 = vpop.f32.mrb[0].mxu0
      %v5115 = vadd.f32 %v1081, %v5114
      %v5116 = vpop.f32.mrb[0].mxu0
      %v5117 = vpop.f32.mrb[0].mxu0
      %v5118 = vadd.f32 %v1081, %v5117
      %v5119 = vpop.f32.mrb[0].mxu0
      %5120 = vmatprep.mubr.bf16.mxu0 0
      %5121 = vmatmul.mubr.bf16.gmra.mrb[0].mxu0 %v3378
      %v5122 = vpop.f32.mrb[0].mxu0
      %v5123 = vadd.f32 %v1081, %v5122
      %v5124 = vpop.f32.mrb[0].mxu0
      %v5125 = vpop.f32.mrb[0].mxu0
      %v5126 = vadd.f32 %v1081, %v5125
      %v5127 = vpop.f32.mrb[0].mxu0
      %5128 = vmatprep.mubr.bf16.mxu0 0
      %5129 = vmatmul.mubr.bf16.gmra.mrb[0].mxu0 %v3381
      %v5130 = vpop.f32.mrb[0].mxu0
      %v5131 = vadd.f32 %v1081, %v5130
      %v5132 = vpop.f32.mrb[0].mxu0
      %v5133 = vpop.f32.mrb[0].mxu0
      %v5134 = vadd.f32 %v1081, %v5133
      %v5135 = vpop.f32.mrb[0].mxu0
      %5136 = vmatprep.mubr.bf16.mxu0 0
      %5137 = vmatmul.mubr.bf16.gmra.mrb[0].mxu0 %v3384
      %v5138 = vpop.f32.mrb[0].mxu0
      %v5139 = vadd.f32 %v1081, %v5138
      %v5140 = vpop.f32.mrb[0].mxu0
      %v5141 = vpop.f32.mrb[0].mxu0
      %v5142 = vadd.f32 %v1081, %v5141
      %v5143 = vpop.f32.mrb[0].mxu0
      %5144 = vmatprep.mubr.bf16.mxu0 0
      %5145 = vmatmul.mubr.bf16.gmra.mrb[0].mxu0 %v3387
      %v5146 = vpop.f32.mrb[0].mxu0
      %v5147 = vadd.f32 %v1081, %v5146
      %v5148 = vpop.f32.mrb[0].mxu0
      %v5149 = vpop.f32.mrb[0].mxu0
      %v5150 = vadd.f32 %v1081, %v5149
      %v5151 = vpop.f32.mrb[0].mxu0
      %5152 = vmatprep.mubr.bf16.mxu0 0
      %5153 = vmatmul.mubr.bf16.gmra.mrb[0].mxu0 %v3390
      %v5154 = vpop.f32.mrb[0].mxu0
      %v5155 = vadd.f32 %v1081, %v5154
      %v5156 = vpop.f32.mrb[0].mxu0
      %v5157 = vpop.f32.mrb[0].mxu0
      %v5158 = vadd.f32 %v1081, %v5157
      %v5159 = vpop.f32.mrb[0].mxu0
      %5160 = vmatprep.mubr.bf16.mxu0 0
      %5161 = vmatmul.mubr.bf16.gmra.mrb[0].mxu0 %v3393
      %v5162 = vpop.f32.mrb[0].mxu0
      %v5163 = vadd.f32 %v1081, %v5162
      %v5164 = vpop.f32.mrb[0].mxu0
      %v5165 = vpop.f32.mrb[0].mxu0
      %v5166 = vadd.f32 %v1081, %v5165
      %v5167 = vpop.f32.mrb[0].mxu0
      %5168 = vmatprep.mubr.bf16.mxu0 0
      %5169 = vmatmul.mubr.bf16.gmra.mrb[0].mxu0 %v3396
      %v5170 = vpop.f32.mrb[0].mxu0
      %v5171 = vadd.f32 %v1081, %v5170
      %v5172 = vpop.f32.mrb[0].mxu0
      %v5173 = vpop.f32.mrb[0].mxu0
      %v5174 = vadd.f32 %v1081, %v5173
      %v5175 = vpop.f32.mrb[0].mxu0
      %5176 = vmatprep.mubr.bf16.mxu0 0
      %5177 = vmatmul.mubr.bf16.gmra.mrb[0].mxu0 %v3399
      %v5178 = vpop.f32.mrb[0].mxu0
      %v5179 = vadd.f32 %v1081, %v5178
      %v5180 = vpop.f32.mrb[0].mxu0
      %v5181 = vpop.f32.mrb[0].mxu0
      %v5182 = vadd.f32 %v1081, %v5181
      %v5183 = vpop.f32.mrb[0].mxu0
      %5184 = vmatprep.mubr.bf16.mxu0 0
      %5185 = vmatmul.mubr.bf16.gmra.mrb[0].mxu0 %v3402
      %v5186 = vpop.f32.mrb[0].mxu0
      %v5187 = vadd.f32 %v1081, %v5186
      %v5188 = vpop.f32.mrb[0].mxu0
      %v5189 = vpop.f32.mrb[0].mxu0
      %v5190 = vadd.f32 %v1081, %v5189
      %v5191 = vpop.f32.mrb[0].mxu0
      %5192 = vmatprep.mubr.bf16.mxu0 0
      %5193 = vmatmul.mubr.bf16.gmra.mrb[0].mxu0 %v3405
      %v5194 = vpop.f32.mrb[0].mxu0
      %v5195 = vadd.f32 %v1081, %v5194
      %v5196 = vpop.f32.mrb[0].mxu0
      %v5197 = vpop.f32.mrb[0].mxu0
      %v5198 = vadd.f32 %v1081, %v5197
      %v5199 = vpop.f32.mrb[0].mxu0
      %5200 = vmatprep.mubr.bf16.mxu0 0
      %5201 = vmatmul.mubr.bf16.gmra.mrb[0].mxu0 %v3408
      %v5202 = vpop.f32.mrb[0].mxu0
      %v5203 = vadd.f32 %v1081, %v5202
      %v5204 = vpop.f32.mrb[0].mxu0
      %v5205 = vpop.f32.mrb[0].mxu0
      %v5206 = vadd.f32 %v1081, %v5205
      %v5207 = vpop.f32.mrb[0].mxu0
      %5208 = vmatprep.mubr.bf16.mxu0 0
      %5209 = vmatmul.mubr.bf16.gmra.mrb[0].mxu0 %v3411
      %v5210 = vpop.f32.mrb[0].mxu0
      %v5211 = vadd.f32 %v1081, %v5210
      %v5212 = vpop.f32.mrb[0].mxu0
      %v5213 = vpop.f32.mrb[0].mxu0
      %v5214 = vadd.f32 %v1081, %v5213
      %v5215 = vpop.f32.mrb[0].mxu0
      %5216 = vmatprep.mubr.bf16.mxu0 0
      %5217 = vmatmul.mubr.bf16.gmra.mrb[0].mxu0 %v3414
      %v5218 = vpop.f32.mrb[0].mxu0
      %v5219 = vadd.f32 %v1081, %v5218
      %v5220 = vpop.f32.mrb[0].mxu0
      %v5221 = vpop.f32.mrb[0].mxu0
      %v5222 = vadd.f32 %v1081, %v5221
      %v5223 = vpop.f32.mrb[0].mxu0
      %5224 = vmatprep.mubr.bf16.mxu0 0
      %5225 = vmatmul.mubr.bf16.gmra.mrb[0].mxu0 %v3417
      %v5226 = vpop.f32.mrb[0].mxu0
      %v5227 = vadd.f32 %v1081, %v5226
      %v5228 = vpop.f32.mrb[0].mxu0
      %v5229 = vpop.f32.mrb[0].mxu0
      %v5230 = vadd.f32 %v1081, %v5229
      %v5231 = vpop.f32.mrb[0].mxu0
      %5232 = vmatprep.mubr.bf16.mxu0 0
      %5233 = vmatmul.mubr.bf16.gmra.mrb[0].mxu0 %v3420
      %v5234 = vpop.f32.mrb[0].mxu0
      %v5235 = vadd.f32 %v1081, %v5234
      %v5236 = vpop.f32.mrb[0].mxu0
      %v5237 = vpop.f32.mrb[0].mxu0
      %v5238 = vadd.f32 %v1081, %v5237
      %v5239 = vpop.f32.mrb[0].mxu0
      %5240 = vmatprep.mubr.bf16.mxu0 0
      %5241 = vmatmul.mubr.bf16.gmra.mrb[0].mxu0 %v3423
      %v5242 = vpop.f32.mrb[0].mxu0
      %v5243 = vadd.f32 %v1081, %v5242
      %v5244 = vpop.f32.mrb[0].mxu0
      %v5245 = vpop.f32.mrb[0].mxu0
      %v5246 = vadd.f32 %v1081, %v5245
      %v5247 = vpop.f32.mrb[0].mxu0
      %5248 = vmatprep.mubr.bf16.mxu0 0
      %5249 = vmatmul.mubr.bf16.gmra.mrb[0].mxu0 %v3426
      %v5250 = vpop.f32.mrb[0].mxu0
      %v5251 = vadd.f32 %v1081, %v5250
      %v5252 = vpop.f32.mrb[0].mxu0
      %v5253 = vpop.f32.mrb[0].mxu0
      %v5254 = vadd.f32 %v1081, %v5253
      %v5255 = vpop.f32.mrb[0].mxu0
      %5256 = vmatprep.mubr.bf16.mxu0 0
      %5257 = vmatmul.mubr.bf16.gmra.mrb[0].mxu0 %v3429
      %v5258 = vpop.f32.mrb[0].mxu0
      %v5259 = vadd.f32 %v1081, %v5258
      %v5260 = vpop.f32.mrb[0].mxu0
      %v5261 = vpop.f32.mrb[0].mxu0
      %v5262 = vadd.f32 %v1081, %v5261
      %v5263 = vpop.f32.mrb[0].mxu0
      %5264 = vmatprep.mubr.bf16.mxu0 0
      %5265 = vmatmul.mubr.bf16.gmra.mrb[0].mxu0 %v3432
      %v5266 = vpop.f32.mrb[0].mxu0
      %v5267 = vadd.f32 %v1081, %v5266
      %v5268 = vpop.f32.mrb[0].mxu0
      %v5269 = vpop.f32.mrb[0].mxu0
      %v5270 = vadd.f32 %v1081, %v5269
      %v5271 = vpop.f32.mrb[0].mxu0
      %5272 = vmatprep.mubr.bf16.mxu0 0
      %5273 = vmatmul.mubr.bf16.gmra.mrb[0].mxu0 %v3435
      %v5274 = vpop.f32.mrb[0].mxu0
      %v5275 = vadd.f32 %v1081, %v5274
      %v5276 = vpop.f32.mrb[0].mxu0
      %v5277 = vpop.f32.mrb[0].mxu0
      %v5278 = vadd.f32 %v1081, %v5277
      %v5279 = vpop.f32.mrb[0].mxu0
      %5280 = vmatprep.mubr.bf16.mxu0 0
      %5281 = vmatmul.mubr.bf16.gmra.mrb[0].mxu0 %v3438
      %v5282 = vpop.f32.mrb[0].mxu0
      %v5283 = vadd.f32 %v1081, %v5282
      %v5284 = vpop.f32.mrb[0].mxu0
      %v5285 = vpop.f32.mrb[0].mxu0
      %v5286 = vadd.f32 %v1081, %v5285
      %v5287 = vpop.f32.mrb[0].mxu0
      %5288 = vmatprep.mubr.bf16.mxu0 0
      %5289 = vmatmul.mubr.bf16.gmra.mrb[0].mxu0 %v3441
      %v5290 = vpop.f32.mrb[0].mxu0
      %v5291 = vadd.f32 %v1081, %v5290
      %v5292 = vpop.f32.mrb[0].mxu0
      %v5293 = vpop.f32.mrb[0].mxu0
      %v5294 = vadd.f32 %v1081, %v5293
      %v5295 = vpop.f32.mrb[0].mxu0
      %5296 = vmatprep.mubr.bf16.mxu0 0
      %5297 = vmatmul.mubr.bf16.gmra.mrb[0].mxu0 %v3444
      %v5298 = vpop.f32.mrb[0].mxu0
      %v5299 = vadd.f32 %v1081, %v5298
      %v5300 = vpop.f32.mrb[0].mxu0
      %v5301 = vpop.f32.mrb[0].mxu0
      %v5302 = vadd.f32 %v1081, %v5301
      %v5303 = vpop.f32.mrb[0].mxu0
      %5304 = vmatprep.mubr.bf16.mxu0 0
      %5305 = vmatmul.mubr.bf16.gmra.mrb[0].mxu0 %v3447
      %v5306 = vpop.f32.mrb[0].mxu0
      %v5307 = vadd.f32 %v1081, %v5306
      %v5308 = vpop.f32.mrb[0].mxu0
      %v5309 = vpop.f32.mrb[0].mxu0
      %v5310 = vadd.f32 %v1081, %v5309
      %v5311 = vpop.f32.mrb[0].mxu0
      %5312 = vmatprep.mubr.bf16.mxu0 0
      %5313 = vmatmul.mubr.bf16.gmra.mrb[0].mxu0 %v3450
      %v5314 = vpop.f32.mrb[0].mxu0
      %v5315 = vadd.f32 %v1081, %v5314
      %v5316 = vpop.f32.mrb[0].mxu0
      %v5317 = vpop.f32.mrb[0].mxu0
      %v5318 = vadd.f32 %v1081, %v5317
      %v5319 = vpop.f32.mrb[0].mxu0
      %5320 = vmatprep.mubr.bf16.mxu0 0
      %5321 = vmatmul.mubr.bf16.gmra.mrb[0].mxu0 %v3453
      %v5322 = vpop.f32.mrb[0].mxu0
      %v5323 = vadd.f32 %v1081, %v5322
      %v5324 = vpop.f32.mrb[0].mxu0
      %v5325 = vpop.f32.mrb[0].mxu0
      %v5326 = vadd.f32 %v1081, %v5325
      %v5327 = vpop.f32.mrb[0].mxu0
      %5328 = vmatprep.mubr.bf16.mxu0 0
      %5329 = vmatmul.mubr.bf16.gmra.mrb[0].mxu0 %v3456
      %v5330 = vpop.f32.mrb[0].mxu0
      %v5331 = vadd.f32 %v1081, %v5330
      %v5332 = vpop.f32.mrb[0].mxu0
      %v5333 = vpop.f32.mrb[0].mxu0
      %v5334 = vadd.f32 %v1081, %v5333
      %v5335 = vpop.f32.mrb[0].mxu0
      %5336 = vmatprep.mubr.bf16.mxu0 0
      %5337 = vmatmul.mubr.bf16.gmra.mrb[0].mxu0 %v3459
      %v5338 = vpop.f32.mrb[0].mxu0
      %v5339 = vadd.f32 %v1081, %v5338
      %v5340 = vpop.f32.mrb[0].mxu0
      %v5341 = vpop.f32.mrb[0].mxu0
      %v5342 = vadd.f32 %v1081, %v5341
      %v5343 = vpop.f32.mrb[0].mxu0
      %5344 = vmatprep.mubr.bf16.mxu0 0
      %5345 = vmatmul.mubr.bf16.gmra.mrb[0].mxu0 %v3462
      %v5346 = vpop.f32.mrb[0].mxu0
      %v5347 = vadd.f32 %v1081, %v5346
      %v5348 = vpop.f32.mrb[0].mxu0
      %v5349 = vpop.f32.mrb[0].mxu0
      %v5350 = vadd.f32 %v1081, %v5349
      %v5351 = vpop.f32.mrb[0].mxu0
      %5352 = vmatprep.mubr.bf16.mxu0 0
      %5353 = vmatmul.mubr.bf16.gmra.mrb[0].mxu0 %v3465
      %v5354 = vpop.f32.mrb[0].mxu0
      %v5355 = vadd.f32 %v1081, %v5354
      %v5356 = vpop.f32.mrb[0].mxu0
      %v5357 = vpop.f32.mrb[0].mxu0
      %v5358 = vadd.f32 %v1081, %v5357
      %v5359 = vpop.f32.mrb[0].mxu0
      %5360 = vmatprep.mubr.bf16.mxu0 0
      %5361 = vmatmul.mubr.bf16.gmra.mrb[0].mxu0 %v3468
      %v5362 = vpop.f32.mrb[0].mxu0
      %v5363 = vadd.f32 %v1081, %v5362
      %v5364 = vpop.f32.mrb[0].mxu0
      %v5365 = vpop.f32.mrb[0].mxu0
      %v5366 = vadd.f32 %v1081, %v5365
      %v5367 = vpop.f32.mrb[0].mxu0
      %5368 = vmatprep.mubr.bf16.mxu0 0
      %5369 = vmatmul.mubr.bf16.gmra.mrb[0].mxu0 %v3471
      %v5370 = vpop.f32.mrb[0].mxu0
      %v5371 = vadd.f32 %v1081, %v5370
      %v5372 = vpop.f32.mrb[0].mxu0
      %v5373 = vpop.f32.mrb[0].mxu0
      %v5374 = vadd.f32 %v1081, %v5373
      %v5375 = vpop.f32.mrb[0].mxu0
      %5376 = vmatprep.mubr.bf16.mxu0 0
      %5377 = vmatmul.mubr.bf16.gmra.mrb[0].mxu0 %v3474
      %v5378 = vpop.f32.mrb[0].mxu0
      %v5379 = vadd.f32 %v1081, %v5378
      %v5380 = vpop.f32.mrb[0].mxu0
      %v5381 = vpop.f32.mrb[0].mxu0
      %v5382 = vadd.f32 %v1081, %v5381
      %v5383 = vpop.f32.mrb[0].mxu0
      %5384 = vmatprep.mubr.bf16.mxu0 0
      %5385 = vmatmul.mubr.bf16.gmra.mrb[0].mxu0 %v3477
      %v5386 = vpop.f32.mrb[0].mxu0
      %v5387 = vadd.f32 %v1081, %v5386
      %v5388 = vpop.f32.mrb[0].mxu0
      %v5389 = vpop.f32.mrb[0].mxu0
      %v5390 = vadd.f32 %v1081, %v5389
      %v5391 = vpop.f32.mrb[0].mxu0
      %5392 = vmatprep.mubr.bf16.mxu0 0
      %5393 = vmatmul.mubr.bf16.gmra.mrb[0].mxu0 %v3480
      %v5394 = vpop.f32.mrb[0].mxu0
      %v5395 = vadd.f32 %v1081, %v5394
      %v5396 = vpop.f32.mrb[0].mxu0
      %v5397 = vpop.f32.mrb[0].mxu0
      %v5398 = vadd.f32 %v1081, %v5397
      %v5399 = vpop.f32.mrb[0].mxu0
      %5400 = vmatprep.mubr.bf16.mxu0 0
      %5401 = vmatmul.mubr.bf16.gmra.mrb[0].mxu0 %v3483
      %v5402 = vpop.f32.mrb[0].mxu0
      %v5403 = vadd.f32 %v1081, %v5402
      %v5404 = vpop.f32.mrb[0].mxu0
      %v5405 = vpop.f32.mrb[0].mxu0
      %v5406 = vadd.f32 %v1081, %v5405
      %v5407 = vpop.f32.mrb[0].mxu0
      %5408 = vmatprep.mubr.bf16.mxu0 0
      %5409 = vmatmul.mubr.bf16.gmra.mrb[0].mxu0 %v3486
      %v5410 = vpop.f32.mrb[0].mxu0
      %v5411 = vadd.f32 %v1081, %v5410
      %v5412 = vpop.f32.mrb[0].mxu0
      %v5413 = vpop.f32.mrb[0].mxu0
      %v5414 = vadd.f32 %v1081, %v5413
      %v5415 = vpop.f32.mrb[0].mxu0
      %5416 = vmatprep.mubr.bf16.mxu0 0
      %5417 = vmatmul.mubr.bf16.gmra.mrb[0].mxu0 %v3489
      %v5418 = vpop.f32.mrb[0].mxu0
      %v5419 = vadd.f32 %v1081, %v5418
      %v5420 = vpop.f32.mrb[0].mxu0
      %v5421 = vpop.f32.mrb[0].mxu0
      %v5422 = vadd.f32 %v1081, %v5421
      %v5423 = vpop.f32.mrb[0].mxu0
      %5424 = vmatprep.mubr.bf16.mxu0 0
      %5425 = vmatmul.mubr.bf16.gmra.mrb[0].mxu0 %v3492
      %v5426 = vpop.f32.mrb[0].mxu0
      %v5427 = vadd.f32 %v1081, %v5426
      %v5428 = vpop.f32.mrb[0].mxu0
      %v5429 = vpop.f32.mrb[0].mxu0
      %v5430 = vadd.f32 %v1081, %v5429
      %v5431 = vpop.f32.mrb[0].mxu0
      %5432 = vmatprep.mubr.bf16.mxu0 0
      %5433 = vmatmul.mubr.bf16.gmra.mrb[0].mxu0 %v3495
      %v5434 = vpop.f32.mrb[0].mxu0
      %v5435 = vadd.f32 %v1081, %v5434
      %v5436 = vpop.f32.mrb[0].mxu0
      %v5437 = vpop.f32.mrb[0].mxu0
      %v5438 = vadd.f32 %v1081, %v5437
      %v5439 = vpop.f32.mrb[0].mxu0
      %5440 = vmatprep.mubr.bf16.mxu0 0
      %5441 = vmatmul.mubr.bf16.gmra.mrb[0].mxu0 %v3498
      %v5442 = vpop.f32.mrb[0].mxu0
      %v5443 = vadd.f32 %v1081, %v5442
      %v5444 = vpop.f32.mrb[0].mxu0
      %v5445 = vpop.f32.mrb[0].mxu0
      %v5446 = vadd.f32 %v1081, %v5445
      %v5447 = vpop.f32.mrb[0].mxu0
      %5448 = vmatprep.mubr.bf16.mxu0 0
      %5449 = vmatmul.mubr.bf16.gmra.mrb[0].mxu0 %v3501
      %v5450 = vpop.f32.mrb[0].mxu0
      %v5451 = vadd.f32 %v1081, %v5450
      %v5452 = vpop.f32.mrb[0].mxu0
      %v5453 = vpop.f32.mrb[0].mxu0
      %v5454 = vadd.f32 %v1081, %v5453
      %v5455 = vpop.f32.mrb[0].mxu0
      %5456 = vmatprep.mubr.bf16.mxu0 0
      %5457 = vmatmul.mubr.bf16.gmra.mrb[0].mxu0 %v3504
      %v5458 = vpop.f32.mrb[0].mxu0
      %v5459 = vadd.f32 %v1081, %v5458
      %v5460 = vpop.f32.mrb[0].mxu0
      %v5461 = vpop.f32.mrb[0].mxu0
      %v5462 = vadd.f32 %v1081, %v5461
      %v5463 = vpop.f32.mrb[0].mxu0
      %5464 = vmatprep.mubr.bf16.mxu0 0
      %5465 = vmatmul.mubr.bf16.gmra.mrb[0].mxu0 %v3507
      %v5466 = vpop.f32.mrb[0].mxu0
      %v5467 = vadd.f32 %v1081, %v5466
      %v5468 = vpop.f32.mrb[0].mxu0
      %v5469 = vpop.f32.mrb[0].mxu0
      %v5470 = vadd.f32 %v1081, %v5469
      %v5471 = vpop.f32.mrb[0].mxu0
      %5472 = vmatprep.mubr.bf16.mxu0 0
      %5473 = vmatmul.mubr.bf16.gmra.mrb[0].mxu0 %v3510
      %v5474 = vpop.f32.mrb[0].mxu0
      %v5475 = vadd.f32 %v1081, %v5474
      %v5476 = vpop.f32.mrb[0].mxu0
      %v5477 = vpop.f32.mrb[0].mxu0
      %v5478 = vadd.f32 %v1081, %v5477
      %v5479 = vpop.f32.mrb[0].mxu0
      %5480 = vmatprep.mubr.bf16.mxu0 0
      %5481 = vmatmul.mubr.bf16.gmra.mrb[0].mxu0 %v3513
      %v5482 = vpop.f32.mrb[0].mxu0
      %v5483 = vadd.f32 %v1081, %v5482
      %v5484 = vpop.f32.mrb[0].mxu0
      %v5485 = vpop.f32.mrb[0].mxu0
      %v5486 = vadd.f32 %v1081, %v5485
      %v5487 = vpop.f32.mrb[0].mxu0
      %5488 = vmatprep.mubr.bf16.mxu0 0
      %5489 = vmatmul.mubr.bf16.gmra.mrb[0].mxu0 %v3516
      %v5490 = vpop.f32.mrb[0].mxu0
      %v5491 = vadd.f32 %v1081, %v5490
      %v5492 = vpop.f32.mrb[0].mxu0
      %v5493 = vpop.f32.mrb[0].mxu0
      %v5494 = vadd.f32 %v1081, %v5493
      %v5495 = vpop.f32.mrb[0].mxu0
      %5496 = vmatprep.mubr.bf16.mxu0 0
      %5497 = vmatmul.mubr.bf16.gmra.mrb[0].mxu0 %v3519
      %v5498 = vpop.f32.mrb[0].mxu0
      %v5499 = vadd.f32 %v1081, %v5498
      %v5500 = vpop.f32.mrb[0].mxu0
      %v5501 = vpop.f32.mrb[0].mxu0
      %v5502 = vadd.f32 %v1081, %v5501
      %v5503 = vpop.f32.mrb[0].mxu0
      %5504 = vmatprep.mubr.bf16.mxu0 0
      %5505 = vmatmul.mubr.bf16.gmra.mrb[0].mxu0 %v3522
      %v5506 = vpop.f32.mrb[0].mxu0
      %v5507 = vadd.f32 %v1081, %v5506
      %v5508 = vpop.f32.mrb[0].mxu0
      %v5509 = vpop.f32.mrb[0].mxu0
      %v5510 = vadd.f32 %v1081, %v5509
      %v5511 = vpop.f32.mrb[0].mxu0
      %5512 = vmatprep.mubr.bf16.mxu0 0
      %5513 = vmatmul.mubr.bf16.gmra.mrb[0].mxu0 %v3525
      %v5514 = vpop.f32.mrb[0].mxu0
      %v5515 = vadd.f32 %v1081, %v5514
      %v5516 = vpop.f32.mrb[0].mxu0
      %v5517 = vpop.f32.mrb[0].mxu0
      %v5518 = vadd.f32 %v1081, %v5517
      %v5519 = vpop.f32.mrb[0].mxu0
      %5520 = vmatprep.mubr.bf16.mxu0 0
      %5521 = vmatmul.mubr.bf16.gmra.mrb[0].mxu0 %v3528
      %v5522 = vpop.f32.mrb[0].mxu0
      %v5523 = vadd.f32 %v1081, %v5522
      %v5524 = vpop.f32.mrb[0].mxu0
      %v5525 = vpop.f32.mrb[0].mxu0
      %v5526 = vadd.f32 %v1081, %v5525
      %v5527 = vpop.f32.mrb[0].mxu0
      %5528 = vmatprep.mubr.bf16.mxu0 0
      %5529 = vmatmul.mubr.bf16.gmra.mrb[0].mxu0 %v3531
      %v5530 = vpop.f32.mrb[0].mxu0
      %v5531 = vadd.f32 %v1081, %v5530
      %v5532 = vpop.f32.mrb[0].mxu0
      %v5533 = vpop.f32.mrb[0].mxu0
      %v5534 = vadd.f32 %v1081, %v5533
      %v5535 = vpop.f32.mrb[0].mxu0
      %5536 = vmatprep.mubr.bf16.mxu0 0
      %5537 = vmatmul.mubr.bf16.gmra.mrb[0].mxu0 %v3534
      %v5538 = vpop.f32.mrb[0].mxu0
      %v5539 = vadd.f32 %v1081, %v5538
      %v5540 = vpop.f32.mrb[0].mxu0
      %v5541 = vpop.f32.mrb[0].mxu0
      %v5542 = vadd.f32 %v1081, %v5541
      %v5543 = vpop.f32.mrb[0].mxu0
      %5544 = vmatprep.mubr.bf16.mxu0 0
      %5545 = vmatmul.mubr.bf16.gmra.mrb[0].mxu0 %v3537
      %v5546 = vpop.f32.mrb[0].mxu0
      %v5547 = vadd.f32 %v1081, %v5546
      %v5548 = vpop.f32.mrb[0].mxu0
      %v5549 = vpop.f32.mrb[0].mxu0
      %v5550 = vadd.f32 %v1081, %v5549
      %v5551 = vpop.f32.mrb[0].mxu0
      %5552 = vmatprep.mubr.bf16.mxu0 0
      %5553 = vmatmul.mubr.bf16.gmra.mrb[0].mxu0 %v3540
      %v5554 = vpop.f32.mrb[0].mxu0
      %v5555 = vadd.f32 %v1081, %v5554
      %v5556 = vpop.f32.mrb[0].mxu0
      %v5557 = vpop.f32.mrb[0].mxu0
      %v5558 = vadd.f32 %v1081, %v5557
      %v5559 = vpop.f32.mrb[0].mxu0
      %5560 = vmatprep.mubr.bf16.mxu0 0
      %5561 = vmatmul.mubr.bf16.gmra.mrb[0].mxu0 %v3543
      %v5562 = vpop.f32.mrb[0].mxu0
      %v5563 = vadd.f32 %v1081, %v5562
      %v5564 = vpop.f32.mrb[0].mxu0
      %v5565 = vpop.f32.mrb[0].mxu0
      %v5566 = vadd.f32 %v1081, %v5565
      %v5567 = vpop.f32.mrb[0].mxu0
      %5568 = vmatprep.mubr.bf16.mxu0 0
      %5569 = vmatmul.mubr.bf16.gmra.mrb[0].mxu0 %v3546
      %v5570 = vpop.f32.mrb[0].mxu0
      %v5571 = vadd.f32 %v1081, %v5570
      %v5572 = vpop.f32.mrb[0].mxu0
      %v5573 = vpop.f32.mrb[0].mxu0
      %v5574 = vadd.f32 %v1081, %v5573
      %v5575 = vpop.f32.mrb[0].mxu0
      %5576 = vmatprep.mubr.bf16.mxu0 0
      %5577 = vmatmul.mubr.bf16.gmra.mrb[0].mxu0 %v3549
      %v5578 = vpop.f32.mrb[0].mxu0
      %v5579 = vadd.f32 %v1081, %v5578
      %v5580 = vpop.f32.mrb[0].mxu0
      %v5581 = vpop.f32.mrb[0].mxu0
      %v5582 = vadd.f32 %v1081, %v5581
      %v5583 = vpop.f32.mrb[0].mxu0
      %5584 = vmatprep.mubr.bf16.mxu0 0
      %5585 = vmatmul.mubr.bf16.gmra.mrb[0].mxu0 %v3552
      %v5586 = vpop.f32.mrb[0].mxu0
      %v5587 = vadd.f32 %v1081, %v5586
      %v5588 = vpop.f32.mrb[0].mxu0
      %v5589 = vpop.f32.mrb[0].mxu0
      %v5590 = vadd.f32 %v1081, %v5589
      %v5591 = vpop.f32.mrb[0].mxu0
      %5592 = vmatprep.mubr.bf16.mxu0 0
      %5593 = vmatmul.mubr.bf16.gmra.mrb[0].mxu0 %v3555
      %v5594 = vpop.f32.mrb[0].mxu0
      %v5595 = vadd.f32 %v1081, %v5594
      %v5596 = vpop.f32.mrb[0].mxu0
      %v5597 = vpop.f32.mrb[0].mxu0
      %v5598 = vadd.f32 %v1081, %v5597
      %v5599 = vpop.f32.mrb[0].mxu0
      %5600 = vmatprep.mubr.bf16.mxu0 0
      %5601 = vmatmul.mubr.bf16.gmra.mrb[0].mxu0 %v3558
      %v5602 = vpop.f32.mrb[0].mxu0
      %v5603 = vadd.f32 %v1081, %v5602
      %v5604 = vpop.f32.mrb[0].mxu0
      %v5605 = vpop.f32.mrb[0].mxu0
      %v5606 = vadd.f32 %v1081, %v5605
      %v5607 = vpop.f32.mrb[0].mxu0
      %5608 = vmatprep.mubr.bf16.mxu0 0
      %5609 = vmatmul.mubr.bf16.gmra.mrb[0].mxu0 %v3561
      %v5610 = vpop.f32.mrb[0].mxu0
      %v5611 = vadd.f32 %v1081, %v5610
      %v5612 = vpop.f32.mrb[0].mxu0
      %v5613 = vpop.f32.mrb[0].mxu0
      %v5614 = vadd.f32 %v1081, %v5613
      %v5615 = vpop.f32.mrb[0].mxu0
      %5616 = vmatprep.mubr.bf16.mxu0 0
      %5617 = vmatmul.mubr.bf16.gmra.mrb[0].mxu0 %v3564
      %v5618 = vpop.f32.mrb[0].mxu0
      %v5619 = vadd.f32 %v1081, %v5618
      %v5620 = vpop.f32.mrb[0].mxu0
      %v5621 = vpop.f32.mrb[0].mxu0
      %v5622 = vadd.f32 %v1081, %v5621
      %v5623 = vpop.f32.mrb[0].mxu0
      %5624 = vmatprep.mubr.bf16.mxu0 0
      %5625 = vmatmul.mubr.bf16.gmra.mrb[0].mxu0 %v3567
      %v5626 = vpop.f32.mrb[0].mxu0
      %v5627 = vadd.f32 %v1081, %v5626
      %v5628 = vpop.f32.mrb[0].mxu0
      %v5629 = vpop.f32.mrb[0].mxu0
      %v5630 = vadd.f32 %v1081, %v5629
      %v5631 = vpop.f32.mrb[0].mxu0
      %5632 = vmatprep.mubr.bf16.mxu0 0
      %5633 = vmatmul.mubr.bf16.gmra.mrb[0].mxu0 %v3570
      %v5634 = vpop.f32.mrb[0].mxu0
      %v5635 = vadd.f32 %v1081, %v5634
      %v5636 = vpop.f32.mrb[0].mxu0
      %v5637 = vpop.f32.mrb[0].mxu0
      %v5638 = vadd.f32 %v1081, %v5637
      %v5639 = vpop.f32.mrb[0].mxu0
      %5640 = vmatprep.mubr.bf16.mxu0 0
      %5641 = vmatmul.mubr.bf16.gmra.mrb[0].mxu0 %v3573
      %v5642 = vpop.f32.mrb[0].mxu0
      %v5643 = vadd.f32 %v1081, %v5642
      %v5644 = vpop.f32.mrb[0].mxu0
      %v5645 = vpop.f32.mrb[0].mxu0
      %v5646 = vadd.f32 %v1081, %v5645
      %v5647 = vpop.f32.mrb[0].mxu0
      %5648 = vmatprep.mubr.bf16.mxu0 0
      %5649 = vmatmul.mubr.bf16.gmra.mrb[0].mxu0 %v3576
      %v5650 = vpop.f32.mrb[0].mxu0
      %v5651 = vadd.f32 %v1081, %v5650
      %v5652 = vpop.f32.mrb[0].mxu0
      %v5653 = vpop.f32.mrb[0].mxu0
      %v5654 = vadd.f32 %v1081, %v5653
      %v5655 = vpop.f32.mrb[0].mxu0
      %5656 = vmatprep.mubr.bf16.mxu0 0
      %5657 = vmatmul.mubr.bf16.gmra.mrb[0].mxu0 %v3579
      %v5658 = vpop.f32.mrb[0].mxu0
      %v5659 = vadd.f32 %v1081, %v5658
      %v5660 = vpop.f32.mrb[0].mxu0
      %v5661 = vpop.f32.mrb[0].mxu0
      %v5662 = vadd.f32 %v1081, %v5661
      %v5663 = vpop.f32.mrb[0].mxu0
      %5664 = vmatprep.mubr.bf16.mxu0 0
      %5665 = vmatmul.mubr.bf16.gmra.mrb[0].mxu0 %v3582
      %v5666 = vpop.f32.mrb[0].mxu0
      %v5667 = vadd.f32 %v1081, %v5666
      %v5668 = vpop.f32.mrb[0].mxu0
      %v5669 = vpop.f32.mrb[0].mxu0
      %v5670 = vadd.f32 %v1081, %v5669
      %v5671 = vpop.f32.mrb[0].mxu0
      %5672 = vmatprep.mubr.bf16.mxu0 0
      %5673 = vmatmul.mubr.bf16.gmra.mrb[0].mxu0 %v3585
      %v5674 = vpop.f32.mrb[0].mxu0
      %v5675 = vadd.f32 %v1081, %v5674
      %v5676 = vpop.f32.mrb[0].mxu0
      %v5677 = vpop.f32.mrb[0].mxu0
      %v5678 = vadd.f32 %v1081, %v5677
      %v5679 = vpop.f32.mrb[0].mxu0
      %5680 = vmatprep.mubr.bf16.mxu0 0
      %5681 = vmatmul.mubr.bf16.gmra.mrb[0].mxu0 %v3588
      %v5682 = vpop.f32.mrb[0].mxu0
      %v5683 = vadd.f32 %v1081, %v5682
      %v5684 = vpop.f32.mrb[0].mxu0
      %v5685 = vpop.f32.mrb[0].mxu0
      %v5686 = vadd.f32 %v1081, %v5685
      %v5687 = vpop.f32.mrb[0].mxu0
      %5688 = vmatprep.mubr.bf16.mxu0 0
      %5689 = vmatmul.mubr.bf16.gmra.mrb[0].mxu0 %v3591
      %v5690 = vpop.f32.mrb[0].mxu0
      %v5691 = vadd.f32 %v1081, %v5690
      %v5692 = vpop.f32.mrb[0].mxu0
      %v5693 = vpop.f32.mrb[0].mxu0
      %v5694 = vadd.f32 %v1081, %v5693
      %v5695 = vpop.f32.mrb[0].mxu0
      %5696 = vmatprep.mubr.bf16.mxu0 0
      %5697 = vmatmul.mubr.bf16.gmra.mrb[0].mxu0 %v3594
      %v5698 = vpop.f32.mrb[0].mxu0
      %v5699 = vadd.f32 %v1081, %v5698
      %v5700 = vpop.f32.mrb[0].mxu0
      %v5701 = vpop.f32.mrb[0].mxu0
      %v5702 = vadd.f32 %v1081, %v5701
      %v5703 = vpop.f32.mrb[0].mxu0
      %5704 = vmatprep.mubr.bf16.mxu0 0
      %5705 = vmatmul.mubr.bf16.gmra.mrb[0].mxu0 %v3597
      %v5706 = vpop.f32.mrb[0].mxu0
      %v5707 = vadd.f32 %v1081, %v5706
      %v5708 = vpop.f32.mrb[0].mxu0
      %v5709 = vpop.f32.mrb[0].mxu0
      %v5710 = vadd.f32 %v1081, %v5709
      %v5711 = vpop.f32.mrb[0].mxu0
      %5712 = vmatprep.mubr.bf16.mxu0 0
      %5713 = vmatmul.mubr.bf16.gmra.mrb[0].mxu0 %v3600
      %v5714 = vpop.f32.mrb[0].mxu0
      %v5715 = vadd.f32 %v1081, %v5714
      %v5716 = vpop.f32.mrb[0].mxu0
      %v5717 = vpop.f32.mrb[0].mxu0
      %v5718 = vadd.f32 %v1081, %v5717
      %v5719 = vpop.f32.mrb[0].mxu0
      %5720 = vmatprep.mubr.bf16.mxu0 0
      %5721 = vmatmul.mubr.bf16.gmra.mrb[0].mxu0 %v3603
      %v5722 = vpop.f32.mrb[0].mxu0
      %v5723 = vadd.f32 %v1081, %v5722
      %v5724 = vpop.f32.mrb[0].mxu0
      %v5725 = vpop.f32.mrb[0].mxu0
      %v5726 = vadd.f32 %v1081, %v5725
      %v5727 = vpop.f32.mrb[0].mxu0
      %5728 = vmatprep.mubr.bf16.mxu0 0
      %5729 = vmatmul.mubr.bf16.gmra.mrb[0].mxu0 %v3606
      %v5730 = vpop.f32.mrb[0].mxu0
      %v5731 = vadd.f32 %v1081, %v5730
      %v5732 = vpop.f32.mrb[0].mxu0
      %v5733 = vpop.f32.mrb[0].mxu0
      %v5734 = vadd.f32 %v1081, %v5733
      %v5735 = vpop.f32.mrb[0].mxu0
      %5736 = vmatprep.mubr.bf16.mxu0 0
      %5737 = vmatmul.mubr.bf16.gmra.mrb[0].mxu0 %v3609
      %v5738 = vpop.f32.mrb[0].mxu0
      %v5739 = vadd.f32 %v1081, %v5738
      %v5740 = vpop.f32.mrb[0].mxu0
      %v5741 = vpop.f32.mrb[0].mxu0
      %v5742 = vadd.f32 %v1081, %v5741
      %v5743 = vpop.f32.mrb[0].mxu0
      %5744 = vmatprep.mubr.bf16.mxu0 0
      %5745 = vmatmul.mubr.bf16.gmra.mrb[0].mxu0 %v3612
      %v5746 = vpop.f32.mrb[0].mxu0
      %v5747 = vadd.f32 %v1081, %v5746
      %v5748 = vpop.f32.mrb[0].mxu0
      %v5749 = vpop.f32.mrb[0].mxu0
      %v5750 = vadd.f32 %v1081, %v5749
      %v5751 = vpop.f32.mrb[0].mxu0
      %5752 = vmatprep.mubr.bf16.mxu0 0
      %5753 = vmatmul.mubr.bf16.gmra.mrb[0].mxu0 %v3615
      %v5754 = vpop.f32.mrb[0].mxu0
      %v5755 = vadd.f32 %v1081, %v5754
      %v5756 = vpop.f32.mrb[0].mxu0
      %v5757 = vpop.f32.mrb[0].mxu0
      %v5758 = vadd.f32 %v1081, %v5757
      %v5759 = vpop.f32.mrb[0].mxu0
      %5760 = vmatprep.mubr.bf16.mxu0 0
      %5761 = vmatmul.mubr.bf16.gmra.mrb[0].mxu0 %v3618
      %v5762 = vpop.f32.mrb[0].mxu0
      %v5763 = vadd.f32 %v1081, %v5762
      %v5764 = vpop.f32.mrb[0].mxu0
      %v5765 = vpop.f32.mrb[0].mxu0
      %v5766 = vadd.f32 %v1081, %v5765
      %v5767 = vpop.f32.mrb[0].mxu0
      %5768 = vmatprep.mubr.bf16.mxu0 0
      %5769 = vmatmul.mubr.bf16.gmra.mrb[0].mxu0 %v3621
      %v5770 = vpop.f32.mrb[0].mxu0
      %v5771 = vadd.f32 %v1081, %v5770
      %v5772 = vpop.f32.mrb[0].mxu0
      %v5773 = vpop.f32.mrb[0].mxu0
      %v5774 = vadd.f32 %v1081, %v5773
      %v5775 = vpop.f32.mrb[0].mxu0
      %5776 = vmatprep.mubr.bf16.mxu0 0
      %5777 = vmatmul.mubr.bf16.gmra.mrb[0].mxu0 %v3624
      %v5778 = vpop.f32.mrb[0].mxu0
      %v5779 = vadd.f32 %v1081, %v5778
      %v5780 = vpop.f32.mrb[0].mxu0
      %v5781 = vpop.f32.mrb[0].mxu0
      %v5782 = vadd.f32 %v1081, %v5781
      %v5783 = vpop.f32.mrb[0].mxu0
      %5784 = vmatprep.mubr.bf16.mxu0 0
      %5785 = vmatmul.mubr.bf16.gmra.mrb[0].mxu0 %v3627
      %v5786 = vpop.f32.mrb[0].mxu0
      %v5787 = vadd.f32 %v1081, %v5786
      %v5788 = vpop.f32.mrb[0].mxu0
      %v5789 = vpop.f32.mrb[0].mxu0
      %v5790 = vadd.f32 %v1081, %v5789
      %v5791 = vpop.f32.mrb[0].mxu0
      %5792 = vmatprep.mubr.bf16.mxu0 0
      %5793 = vmatmul.mubr.bf16.gmra.mrb[0].mxu0 %v3630
      %v5794 = vpop.f32.mrb[0].mxu0
      %v5795 = vadd.f32 %v1081, %v5794
      %v5796 = vpop.f32.mrb[0].mxu0
      %v5797 = vpop.f32.mrb[0].mxu0
      %v5798 = vadd.f32 %v1081, %v5797
      %v5799 = vpop.f32.mrb[0].mxu0
      %5800 = vmatprep.mubr.bf16.mxu0 0
      %5801 = vmatmul.mubr.bf16.gmra.mrb[0].mxu0 %v3633
      %v5802 = vpop.f32.mrb[0].mxu0
      %v5803 = vadd.f32 %v1081, %v5802
      %v5804 = vpop.f32.mrb[0].mxu0
      %v5805 = vpop.f32.mrb[0].mxu0
      %v5806 = vadd.f32 %v1081, %v5805
      %v5807 = vpop.f32.mrb[0].mxu0
      %5808 = vmatprep.mubr.bf16.mxu0 0
      %5809 = vmatmul.mubr.bf16.gmra.mrb[0].mxu0 %v3636
      %v5810 = vpop.f32.mrb[0].mxu0
      %v5811 = vadd.f32 %v1081, %v5810
      %v5812 = vpop.f32.mrb[0].mxu0
      %v5813 = vpop.f32.mrb[0].mxu0
      %v5814 = vadd.f32 %v1081, %v5813
      %v5815 = vpop.f32.mrb[0].mxu0
      %5816 = vmatprep.mubr.bf16.mxu0 0
      %5817 = vmatmul.mubr.bf16.gmra.mrb[0].mxu0 %v3639
      %v5818 = vpop.f32.mrb[0].mxu0
      %v5819 = vadd.f32 %v1081, %v5818
      %v5820 = vpop.f32.mrb[0].mxu0
      %v5821 = vpop.f32.mrb[0].mxu0
      %v5822 = vadd.f32 %v1081, %v5821
      %v5823 = vpop.f32.mrb[0].mxu0
      %5824 = vmatprep.mubr.bf16.mxu0 0
      %5825 = vmatmul.mubr.bf16.gmra.mrb[0].mxu0 %v3642
      %v5826 = vpop.f32.mrb[0].mxu0
      %v5827 = vadd.f32 %v1081, %v5826
      %v5828 = vpop.f32.mrb[0].mxu0
      %v5829 = vpop.f32.mrb[0].mxu0
      %v5830 = vadd.f32 %v1081, %v5829
      %v5831 = vpop.f32.mrb[0].mxu0
      %5832 = vmatprep.mubr.bf16.mxu0 0
      %5833 = vmatmul.mubr.bf16.gmra.mrb[0].mxu0 %v3645
      %v5834 = vpop.f32.mrb[0].mxu0
      %v5835 = vadd.f32 %v1081, %v5834
      %v5836 = vpop.f32.mrb[0].mxu0
      %v5837 = vpop.f32.mrb[0].mxu0
      %v5838 = vadd.f32 %v1081, %v5837
      %v5839 = vpop.f32.mrb[0].mxu0
      %5840 = vmatprep.mubr.bf16.mxu0 0
      %5841 = vmatmul.mubr.bf16.gmra.mrb[0].mxu0 %v3648
      %v5842 = vpop.f32.mrb[0].mxu0
      %v5843 = vadd.f32 %v1081, %v5842
      %v5844 = vpop.f32.mrb[0].mxu0
      %v5845 = vpop.f32.mrb[0].mxu0
      %v5846 = vadd.f32 %v1081, %v5845
      %v5847 = vpop.f32.mrb[0].mxu0
      %5848 = vmatprep.mubr.bf16.mxu0 0
      %5849 = vmatmul.mubr.bf16.gmra.mrb[0].mxu0 %v3651
      %v5850 = vpop.f32.mrb[0].mxu0
      %v5851 = vadd.f32 %v1081, %v5850
      %v5852 = vpop.f32.mrb[0].mxu0
      %v5853 = vpop.f32.mrb[0].mxu0
      %v5854 = vadd.f32 %v1081, %v5853
      %v5855 = vpop.f32.mrb[0].mxu0
      %5856 = vmatprep.mubr.bf16.mxu0 0
      %5857 = vmatmul.mubr.bf16.gmra.mrb[0].mxu0 %v3654
      %v5858 = vpop.f32.mrb[0].mxu0
      %v5859 = vadd.f32 %v1081, %v5858
      %v5860 = vpop.f32.mrb[0].mxu0
      %v5861 = vpop.f32.mrb[0].mxu0
      %v5862 = vadd.f32 %v1081, %v5861
      %v5863 = vpop.f32.mrb[0].mxu0
      %5864 = vmatprep.mubr.bf16.mxu0 0
      %5865 = vmatmul.mubr.bf16.gmra.mrb[0].mxu0 %v3657
      %v5866 = vpop.f32.mrb[0].mxu0
      %v5867 = vadd.f32 %v1081, %v5866
      %v5868 = vpop.f32.mrb[0].mxu0
      %v5869 = vpop.f32.mrb[0].mxu0
      %v5870 = vadd.f32 %v1081, %v5869
      %v5871 = vpop.f32.mrb[0].mxu0
      %5872 = vmatprep.mubr.bf16.mxu0 0
      %5873 = vmatmul.mubr.bf16.gmra.mrb[0].mxu0 %v3660
      %v5874 = vpop.f32.mrb[0].mxu0
      %v5875 = vadd.f32 %v1081, %v5874
      %v5876 = vpop.f32.mrb[0].mxu0
      %v5877 = vpop.f32.mrb[0].mxu0
      %v5878 = vadd.f32 %v1081, %v5877
      %v5879 = vpop.f32.mrb[0].mxu0
      %5880 = vmatprep.mubr.bf16.mxu0 0
      %5881 = vmatmul.mubr.bf16.gmra.mrb[0].mxu0 %v3663
      %v5882 = vpop.f32.mrb[0].mxu0
      %v5883 = vadd.f32 %v1081, %v5882
      %v5884 = vpop.f32.mrb[0].mxu0
      %v5885 = vpop.f32.mrb[0].mxu0
      %v5886 = vadd.f32 %v1081, %v5885
      %v5887 = vpop.f32.mrb[0].mxu0
      %5888 = vmatprep.mubr.bf16.mxu0 0
      %5889 = vmatmul.mubr.bf16.gmra.mrb[0].mxu0 %v3666
      %v5890 = vpop.f32.mrb[0].mxu0
      %v5891 = vadd.f32 %v1081, %v5890
      %v5892 = vpop.f32.mrb[0].mxu0
      %v5893 = vpop.f32.mrb[0].mxu0
      %v5894 = vadd.f32 %v1081, %v5893
      %v5895 = vpop.f32.mrb[0].mxu0
      %5896 = vmatprep.mubr.bf16.mxu0 0
      %5897 = vmatmul.mubr.bf16.gmra.mrb[0].mxu0 %v3669
      %v5898 = vpop.f32.mrb[0].mxu0
      %v5899 = vadd.f32 %v1081, %v5898
      %v5900 = vpop.f32.mrb[0].mxu0
      %v5901 = vpop.f32.mrb[0].mxu0
      %v5902 = vadd.f32 %v1081, %v5901
      %v5903 = vpop.f32.mrb[0].mxu0
      %5904 = vmatprep.mubr.bf16.mxu0 0
      %5905 = vmatmul.mubr.bf16.gmra.mrb[0].mxu0 %v3672
      %v5906 = vpop.f32.mrb[0].mxu0
      %v5907 = vadd.f32 %v1081, %v5906
      %v5908 = vpop.f32.mrb[0].mxu0
      %v5909 = vpop.f32.mrb[0].mxu0
      %v5910 = vadd.f32 %v1081, %v5909
      %v5911 = vpop.f32.mrb[0].mxu0
      %5912 = vmatprep.mubr.bf16.mxu0 0
      %5913 = vmatmul.mubr.bf16.gmra.mrb[0].mxu0 %v3675
      %v5914 = vpop.f32.mrb[0].mxu0
      %v5915 = vadd.f32 %v1081, %v5914
      %v5916 = vpop.f32.mrb[0].mxu0
      %v5917 = vpop.f32.mrb[0].mxu0
      %v5918 = vadd.f32 %v1081, %v5917
      %v5919 = vpop.f32.mrb[0].mxu0
      %5920 = vmatprep.mubr.bf16.mxu0 0
      %5921 = vmatmul.mubr.bf16.gmra.mrb[0].mxu0 %v3678
      %v5922 = vpop.f32.mrb[0].mxu0
      %v5923 = vadd.f32 %v1081, %v5922
      %v5924 = vpop.f32.mrb[0].mxu0
      %v5925 = vpop.f32.mrb[0].mxu0
      %v5926 = vadd.f32 %v1081, %v5925
      %v5927 = vpop.f32.mrb[0].mxu0
      %5928 = vmatprep.mubr.bf16.mxu0 0
      %5929 = vmatmul.mubr.bf16.gmra.mrb[0].mxu0 %v3681
      %v5930 = vpop.f32.mrb[0].mxu0
      %v5931 = vadd.f32 %v1081, %v5930
      %v5932 = vpop.f32.mrb[0].mxu0
      %v5933 = vpop.f32.mrb[0].mxu0
      %v5934 = vadd.f32 %v1081, %v5933
      %v5935 = vpop.f32.mrb[0].mxu0
      %5936 = vmatprep.mubr.bf16.mxu0 0
      %5937 = vmatmul.mubr.bf16.gmra.mrb[0].mxu0 %v3684
      %v5938 = vpop.f32.mrb[0].mxu0
      %v5939 = vadd.f32 %v1081, %v5938
      %v5940 = vpop.f32.mrb[0].mxu0
      %v5941 = vpop.f32.mrb[0].mxu0
      %v5942 = vadd.f32 %v1081, %v5941
      %v5943 = vpop.f32.mrb[0].mxu0
      %5944 = vmatprep.mubr.bf16.mxu0 0
      %5945 = vmatmul.mubr.bf16.gmra.mrb[0].mxu0 %v3687
      %v5946 = vpop.f32.mrb[0].mxu0
      %v5947 = vadd.f32 %v1081, %v5946
      %v5948 = vpop.f32.mrb[0].mxu0
      %v5949 = vpop.f32.mrb[0].mxu0
      %v5950 = vadd.f32 %v1081, %v5949
      %v5951 = vpop.f32.mrb[0].mxu0
      %5952 = vmatprep.mubr.bf16.mxu0 0
      %5953 = vmatmul.mubr.bf16.gmra.mrb[0].mxu0 %v3690
      %v5954 = vpop.f32.mrb[0].mxu0
      %v5955 = vadd.f32 %v1081, %v5954
      %v5956 = vpop.f32.mrb[0].mxu0
      %v5957 = vpop.f32.mrb[0].mxu0
      %v5958 = vadd.f32 %v1081, %v5957
      %v5959 = vpop.f32.mrb[0].mxu0
      %5960 = vmatprep.mubr.bf16.mxu0 0
      %5961 = vmatmul.mubr.bf16.gmra.mrb[0].mxu0 %v3693
      %v5962 = vpop.f32.mrb[0].mxu0
      %v5963 = vadd.f32 %v1081, %v5962
      %v5964 = vpop.f32.mrb[0].mxu0
      %v5965 = vpop.f32.mrb[0].mxu0
      %v5966 = vadd.f32 %v1081, %v5965
      %v5967 = vpop.f32.mrb[0].mxu0
      %5968 = vmatprep.mubr.bf16.mxu0 0
      %5969 = vmatmul.mubr.bf16.gmra.mrb[0].mxu0 %v3696
      %v5970 = vpop.f32.mrb[0].mxu0
      %v5971 = vadd.f32 %v1081, %v5970
      %v5972 = vpop.f32.mrb[0].mxu0
      %v5973 = vpop.f32.mrb[0].mxu0
      %v5974 = vadd.f32 %v1081, %v5973
      %v5975 = vpop.f32.mrb[0].mxu0
      %5976 = vmatprep.mubr.bf16.mxu0 0
      %5977 = vmatmul.mubr.bf16.gmra.mrb[0].mxu0 %v3699
      %v5978 = vpop.f32.mrb[0].mxu0
      %v5979 = vadd.f32 %v1081, %v5978
      %v5980 = vpop.f32.mrb[0].mxu0
      %v5981 = vpop.f32.mrb[0].mxu0
      %v5982 = vadd.f32 %v1081, %v5981
      %v5983 = vpop.f32.mrb[0].mxu0
      %5984 = vmatprep.mubr.bf16.mxu0 0
      %5985 = vmatmul.mubr.bf16.gmra.mrb[0].mxu0 %v3702
      %v5986 = vpop.f32.mrb[0].mxu0
      %v5987 = vadd.f32 %v1081, %v5986
      %v5988 = vpop.f32.mrb[0].mxu0
      %v5989 = vpop.f32.mrb[0].mxu0
      %v5990 = vadd.f32 %v1081, %v5989
      %v5991 = vpop.f32.mrb[0].mxu0
      %5992 = vmatprep.mubr.bf16.mxu0 0
      %5993 = vmatmul.mubr.bf16.gmra.mrb[0].mxu0 %v3705
      %v5994 = vpop.f32.mrb[0].mxu0
      %v5995 = vadd.f32 %v1081, %v5994
      %v5996 = vpop.f32.mrb[0].mxu0
      %v5997 = vpop.f32.mrb[0].mxu0
      %v5998 = vadd.f32 %v1081, %v5997
      %v5999 = vpop.f32.mrb[0].mxu0
      %6000 = vmatprep.mubr.bf16.mxu0 0
      %6001 = vmatmul.mubr.bf16.gmra.mrb[0].mxu0 %v3708
      %v6002 = vpop.f32.mrb[0].mxu0
      %v6003 = vadd.f32 %v1081, %v6002
      %v6004 = vpop.f32.mrb[0].mxu0
      %v6005 = vpop.f32.mrb[0].mxu0
      %v6006 = vadd.f32 %v1081, %v6005
      %v6007 = vpop.f32.mrb[0].mxu0
      %6008 = vmatprep.mubr.bf16.mxu0 0
      %6009 = vmatmul.mubr.bf16.gmra.mrb[0].mxu0 %v3711
      %v6010 = vpop.f32.mrb[0].mxu0
      %v6011 = vadd.f32 %v1081, %v6010
      %v6012 = vpop.f32.mrb[0].mxu0
      %v6013 = vpop.f32.mrb[0].mxu0
      %v6014 = vadd.f32 %v1081, %v6013
      %v6015 = vpop.f32.mrb[0].mxu0
      %6016 = vmatprep.mubr.bf16.mxu0 0
      %6017 = vmatmul.mubr.bf16.gmra.mrb[0].mxu0 %v3714
      %v6018 = vpop.f32.mrb[0].mxu0
      %v6019 = vadd.f32 %v1081, %v6018
      %v6020 = vpop.f32.mrb[0].mxu0
      %v6021 = vpop.f32.mrb[0].mxu0
      %v6022 = vadd.f32 %v1081, %v6021
      %v6023 = vpop.f32.mrb[0].mxu0
      %6024 = vmatprep.mubr.bf16.mxu0 0
      %6025 = vmatmul.mubr.bf16.gmra.mrb[0].mxu0 %v3717
      %v6026 = vpop.f32.mrb[0].mxu0
      %v6027 = vadd.f32 %v1081, %v6026
      %v6028 = vpop.f32.mrb[0].mxu0
      %v6029 = vpop.f32.mrb[0].mxu0
      %v6030 = vadd.f32 %v1081, %v6029
      %v6031 = vpop.f32.mrb[0].mxu0
      %6032 = vmatprep.mubr.bf16.mxu0 0
      %6033 = vmatmul.mubr.bf16.gmra.mrb[0].mxu0 %v3720
      %v6034 = vpop.f32.mrb[0].mxu0
      %v6035 = vadd.f32 %v1081, %v6034
      %v6036 = vpop.f32.mrb[0].mxu0
      %v6037 = vpop.f32.mrb[0].mxu0
      %v6038 = vadd.f32 %v1081, %v6037
      %v6039 = vpop.f32.mrb[0].mxu0
      %6040 = vmatprep.mubr.bf16.mxu0 0
      %6041 = vmatmul.mubr.bf16.gmra.mrb[0].mxu0 %v3723
      %v6042 = vpop.f32.mrb[0].mxu0
      %v6043 = vadd.f32 %v1081, %v6042
      %v6044 = vpop.f32.mrb[0].mxu0
      %v6045 = vpop.f32.mrb[0].mxu0
      %v6046 = vadd.f32 %v1081, %v6045
      %v6047 = vpop.f32.mrb[0].mxu0
      %6048 = vmatprep.mubr.bf16.mxu0 0
      %6049 = vmatmul.mubr.bf16.gmra.mrb[0].mxu0 %v3726
      %v6050 = vpop.f32.mrb[0].mxu0
      %v6051 = vadd.f32 %v1081, %v6050
      %v6052 = vpop.f32.mrb[0].mxu0
      %v6053 = vpop.f32.mrb[0].mxu0
      %v6054 = vadd.f32 %v1081, %v6053
      %v6055 = vpop.f32.mrb[0].mxu0
      %6056 = vmatprep.mubr.bf16.mxu0 0
      %6057 = vmatmul.mubr.bf16.gmra.mrb[0].mxu0 %v3729
      %v6058 = vpop.f32.mrb[0].mxu0
      %v6059 = vadd.f32 %v1081, %v6058
      %v6060 = vpop.f32.mrb[0].mxu0
      %v6061 = vpop.f32.mrb[0].mxu0
      %v6062 = vadd.f32 %v1081, %v6061
      %v6063 = vpop.f32.mrb[0].mxu0
      %6064 = vmatprep.mubr.bf16.mxu0 0
      %6065 = vmatmul.mubr.bf16.gmra.mrb[0].mxu0 %v3732
      %v6066 = vpop.f32.mrb[0].mxu0
      %v6067 = vadd.f32 %v1081, %v6066
      %v6068 = vpop.f32.mrb[0].mxu0
      %v6069 = vpop.f32.mrb[0].mxu0
      %v6070 = vadd.f32 %v1081, %v6069
      %v6071 = vpop.f32.mrb[0].mxu0
      %6072 = vmatprep.mubr.bf16.mxu0 0
      %6073 = vmatmul.mubr.bf16.gmra.mrb[0].mxu0 %v3735
      %v6074 = vpop.f32.mrb[0].mxu0
      %v6075 = vadd.f32 %v1081, %v6074
      %v6076 = vpop.f32.mrb[0].mxu0
      %v6077 = vpop.f32.mrb[0].mxu0
      %v6078 = vadd.f32 %v1081, %v6077
      %v6079 = vpop.f32.mrb[0].mxu0
      %6080 = vmatprep.mubr.bf16.mxu0 0
      %6081 = vmatmul.mubr.bf16.gmra.mrb[0].mxu0 %v3738
      %v6082 = vpop.f32.mrb[0].mxu0
      %v6083 = vadd.f32 %v1081, %v6082
      %v6084 = vpop.f32.mrb[0].mxu0
      %v6085 = vpop.f32.mrb[0].mxu0
      %v6086 = vadd.f32 %v1081, %v6085
      %v6087 = vpop.f32.mrb[0].mxu0
      %6088 = vmatprep.mubr.bf16.mxu0 0
      %6089 = vmatmul.mubr.bf16.gmra.mrb[0].mxu0 %v3741
      %v6090 = vpop.f32.mrb[0].mxu0
      %v6091 = vadd.f32 %v1081, %v6090
      %v6092 = vpop.f32.mrb[0].mxu0
      %v6093 = vpop.f32.mrb[0].mxu0
      %v6094 = vadd.f32 %v1081, %v6093
      %v6095 = vpop.f32.mrb[0].mxu0
      %6096 = vmatprep.mubr.bf16.mxu0 0
      %6097 = vmatmul.mubr.bf16.gmra.mrb[0].mxu0 %v3744
      %v6098 = vpop.f32.mrb[0].mxu0
      %v6099 = vadd.f32 %v1081, %v6098
      %v6100 = vpop.f32.mrb[0].mxu0
      %v6101 = vpop.f32.mrb[0].mxu0
      %v6102 = vadd.f32 %v1081, %v6101
      %v6103 = vpop.f32.mrb[0].mxu0
      %6104 = vmatprep.mubr.bf16.mxu0 0
      %6105 = vmatmul.mubr.bf16.gmra.mrb[0].mxu0 %v3747
      %v6106 = vpop.f32.mrb[0].mxu0
      %v6107 = vadd.f32 %v1081, %v6106
      %v6108 = vpop.f32.mrb[0].mxu0
      %v6109 = vpop.f32.mrb[0].mxu0
      %v6110 = vadd.f32 %v1081, %v6109
      %v6111 = vpop.f32.mrb[0].mxu0
      %6112 = vmatprep.mubr.bf16.mxu0 0
      %6113 = vmatmul.mubr.bf16.gmra.mrb[0].mxu0 %v3750
      %v6114 = vpop.f32.mrb[0].mxu0
      %v6115 = vadd.f32 %v1081, %v6114
      %v6116 = vpop.f32.mrb[0].mxu0
      %v6117 = vpop.f32.mrb[0].mxu0
      %v6118 = vadd.f32 %v1081, %v6117
      %v6119 = vpop.f32.mrb[0].mxu0
      %6120 = vmatprep.mubr.bf16.mxu0 0
      %6121 = vmatmul.mubr.bf16.gmra.mrb[0].mxu0 %v3753
      %v6122 = vpop.f32.mrb[0].mxu0
      %v6123 = vadd.f32 %v1081, %v6122
      %v6124 = vpop.f32.mrb[0].mxu0
      %v6125 = vpop.f32.mrb[0].mxu0
      %v6126 = vadd.f32 %v1081, %v6125
      %v6127 = vpop.f32.mrb[0].mxu0
      %6128 = vmatprep.mubr.bf16.mxu0 0
      %6129 = vmatmul.mubr.bf16.gmra.mrb[0].mxu0 %v3756
      %v6130 = vpop.f32.mrb[0].mxu0
      %v6131 = vadd.f32 %v1081, %v6130
      %v6132 = vpop.f32.mrb[0].mxu0
      %v6133 = vpop.f32.mrb[0].mxu0
      %v6134 = vadd.f32 %v1081, %v6133
      %v6135 = vpop.f32.mrb[0].mxu0
      %6136 = vmatprep.mubr.bf16.mxu0 0
      %6137 = vmatmul.mubr.bf16.gmra.mrb[0].mxu0 %v3759
      %v6138 = vpop.f32.mrb[0].mxu0
      %v6139 = vadd.f32 %v1081, %v6138
      %v6140 = vpop.f32.mrb[0].mxu0
      %v6141 = vpop.f32.mrb[0].mxu0
      %v6142 = vadd.f32 %v1081, %v6141
      %v6143 = vpop.f32.mrb[0].mxu0
      %6144 = vmatprep.mubr.bf16.mxu0 0
      %6145 = vmatmul.mubr.bf16.gmra.mrb[0].mxu0 %v3762
      %v6146 = vpop.f32.mrb[0].mxu0
      %v6147 = vadd.f32 %v1081, %v6146
      %v6148 = vpop.f32.mrb[0].mxu0
      %v6149 = vpop.f32.mrb[0].mxu0
      %v6150 = vadd.f32 %v1081, %v6149
      %v6151 = vpop.f32.mrb[0].mxu0
      %6152 = vmatprep.mubr.bf16.mxu0 0
      %6153 = vmatmul.mubr.bf16.gmra.mrb[0].mxu0 %v3765
      %v6154 = vpop.f32.mrb[0].mxu0
      %v6155 = vadd.f32 %v1081, %v6154
      %v6156 = vpop.f32.mrb[0].mxu0
      %v6157 = vpop.f32.mrb[0].mxu0
      %v6158 = vadd.f32 %v1081, %v6157
      %v6159 = vpop.f32.mrb[0].mxu0
      %6160 = vmatprep.mubr.bf16.mxu0 0
      %6161 = vmatmul.mubr.bf16.gmra.mrb[0].mxu0 %v3768
      %v6162 = vpop.f32.mrb[0].mxu0
      %v6163 = vadd.f32 %v1081, %v6162
      %v6164 = vpop.f32.mrb[0].mxu0
      %v6165 = vpop.f32.mrb[0].mxu0
      %v6166 = vadd.f32 %v1081, %v6165
      %v6167 = vpop.f32.mrb[0].mxu0
      %6168 = vmatprep.mubr.bf16.mxu0 0
      %6169 = vmatmul.mubr.bf16.gmra.mrb[0].mxu0 %v3771
      %v6170 = vpop.f32.mrb[0].mxu0
      %v6171 = vadd.f32 %v1081, %v6170
      %v6172 = vpop.f32.mrb[0].mxu0
      %v6173 = vpop.f32.mrb[0].mxu0
      %v6174 = vadd.f32 %v1081, %v6173
      %v6175 = vpop.f32.mrb[0].mxu0
      %6176 = vmatprep.mubr.bf16.mxu0 0
      %6177 = vmatmul.mubr.bf16.gmra.mrb[0].mxu0 %v3774
      %v6178 = vpop.f32.mrb[0].mxu0
      %v6179 = vadd.f32 %v1081, %v6178
      %v6180 = vpop.f32.mrb[0].mxu0
      %v6181 = vpop.f32.mrb[0].mxu0
      %v6182 = vadd.f32 %v1081, %v6181
      %v6183 = vpop.f32.mrb[0].mxu0
      %6184 = vmatprep.mubr.bf16.mxu0 0
      %6185 = vmatmul.mubr.bf16.gmra.mrb[0].mxu0 %v3777
      %v6186 = vpop.f32.mrb[0].mxu0
      %v6187 = vadd.f32 %v1081, %v6186
      %v6188 = vpop.f32.mrb[0].mxu0
      %v6189 = vpop.f32.mrb[0].mxu0
      %v6190 = vadd.f32 %v1081, %v6189
      %v6191 = vpop.f32.mrb[0].mxu0
      %6192 = vmatprep.mubr.bf16.mxu0 0
      %6193 = vmatmul.mubr.bf16.gmra.mrb[0].mxu0 %v3780
      %v6194 = vpop.f32.mrb[0].mxu0
      %v6195 = vadd.f32 %v1081, %v6194
      %v6196 = vpop.f32.mrb[0].mxu0
      %v6197 = vpop.f32.mrb[0].mxu0
      %v6198 = vadd.f32 %v1081, %v6197
      %v6199 = vpop.f32.mrb[0].mxu0
      %6200 = vmatprep.mubr.bf16.mxu0 0
      %6201 = vmatmul.mubr.bf16.gmra.mrb[0].mxu0 %v3783
      %v6202 = vpop.f32.mrb[0].mxu0
      %v6203 = vadd.f32 %v1081, %v6202
      %v6204 = vpop.f32.mrb[0].mxu0
      %v6205 = vpop.f32.mrb[0].mxu0
      %v6206 = vadd.f32 %v1081, %v6205
      %v6207 = vpop.f32.mrb[0].mxu0
      %6208 = vmatprep.mubr.bf16.mxu0 0
      %6209 = vmatmul.mubr.bf16.gmra.mrb[0].mxu0 %v3786
      %v6210 = vpop.f32.mrb[0].mxu0
      %v6211 = vadd.f32 %v1081, %v6210
      %v6212 = vpop.f32.mrb[0].mxu0
      %v6213 = vpop.f32.mrb[0].mxu0
      %v6214 = vadd.f32 %v1081, %v6213
      %v6215 = vpop.f32.mrb[0].mxu0
      %6216 = vmatprep.mubr.bf16.mxu0 0
      %6217 = vmatmul.mubr.bf16.gmra.mrb[0].mxu0 %v3789
      %v6218 = vpop.f32.mrb[0].mxu0
      %v6219 = vadd.f32 %v1081, %v6218
      %v6220 = vpop.f32.mrb[0].mxu0
      %v6221 = vpop.f32.mrb[0].mxu0
      %v6222 = vadd.f32 %v1081, %v6221
      %v6223 = vpop.f32.mrb[0].mxu0
      %6224 = vmatprep.mubr.bf16.mxu0 0
      %6225 = vmatmul.mubr.bf16.gmra.mrb[0].mxu0 %v3792
      %v6226 = vpop.f32.mrb[0].mxu0
      %v6227 = vadd.f32 %v1081, %v6226
      %v6228 = vpop.f32.mrb[0].mxu0
      %v6229 = vpop.f32.mrb[0].mxu0
      %v6230 = vadd.f32 %v1081, %v6229
      %v6231 = vpop.f32.mrb[0].mxu0
      %6232 = vmatprep.mubr.bf16.mxu0 0
      %6233 = vmatmul.mubr.bf16.gmra.mrb[0].mxu0 %v3795
      %v6234 = vpop.f32.mrb[0].mxu0
      %v6235 = vadd.f32 %v1081, %v6234
      %v6236 = vpop.f32.mrb[0].mxu0
      %v6237 = vpop.f32.mrb[0].mxu0
      %v6238 = vadd.f32 %v1081, %v6237
      %v6239 = vpop.f32.mrb[0].mxu0
      %6240 = vmatprep.mubr.bf16.mxu0 0
      %6241 = vmatmul.mubr.bf16.gmra.mrb[0].mxu0 %v3798
      %v6242 = vpop.f32.mrb[0].mxu0
      %v6243 = vadd.f32 %v1081, %v6242
      %v6244 = vpop.f32.mrb[0].mxu0
      %v6245 = vpop.f32.mrb[0].mxu0
      %v6246 = vadd.f32 %v1081, %v6245
      %v6247 = vpop.f32.mrb[0].mxu0
      %6248 = vmatprep.mubr.bf16.mxu0 0
      %6249 = vmatmul.mubr.bf16.gmra.mrb[0].mxu0 %v3801
      %v6250 = vpop.f32.mrb[0].mxu0
      %v6251 = vadd.f32 %v1081, %v6250
      %v6252 = vpop.f32.mrb[0].mxu0
      %v6253 = vpop.f32.mrb[0].mxu0
      %v6254 = vadd.f32 %v1081, %v6253
      %v6255 = vpop.f32.mrb[0].mxu0
      %6256 = vmatprep.mubr.bf16.mxu0 0
      %6257 = vmatmul.mubr.bf16.gmra.mrb[0].mxu0 %v3804
      %v6258 = vpop.f32.mrb[0].mxu0
      %v6259 = vadd.f32 %v1081, %v6258
      %v6260 = vpop.f32.mrb[0].mxu0
      %v6261 = vpop.f32.mrb[0].mxu0
      %v6262 = vadd.f32 %v1081, %v6261
      %v6263 = vpop.f32.mrb[0].mxu0
      %6264 = vmatprep.mubr.bf16.mxu0 0
      %6265 = vmatmul.mubr.bf16.gmra.mrb[0].mxu0 %v3807
      %v6266 = vpop.f32.mrb[0].mxu0
      %v6267 = vadd.f32 %v1081, %v6266
      %v6268 = vpop.f32.mrb[0].mxu0
      %v6269 = vpop.f32.mrb[0].mxu0
      %v6270 = vadd.f32 %v1081, %v6269
      %v6271 = vpop.f32.mrb[0].mxu0
      %6272 = vmatprep.mubr.bf16.mxu0 0
      %6273 = vmatmul.mubr.bf16.gmra.mrb[0].mxu0 %v3810
      %v6274 = vpop.f32.mrb[0].mxu0
      %v6275 = vadd.f32 %v1081, %v6274
      %v6276 = vpop.f32.mrb[0].mxu0
      %v6277 = vpop.f32.mrb[0].mxu0
      %v6278 = vadd.f32 %v1081, %v6277
      %v6279 = vpop.f32.mrb[0].mxu0
      %6280 = vmatprep.mubr.bf16.mxu0 0
      %6281 = vmatmul.mubr.bf16.gmra.mrb[0].mxu0 %v3813
      %v6282 = vpop.f32.mrb[0].mxu0
      %v6283 = vadd.f32 %v1081, %v6282
      %v6284 = vpop.f32.mrb[0].mxu0
      %v6285 = vpop.f32.mrb[0].mxu0
      %v6286 = vadd.f32 %v1081, %v6285
      %v6287 = vpop.f32.mrb[0].mxu0
      %6288 = vmatprep.mubr.bf16.mxu0 0
      %6289 = vmatmul.mubr.bf16.gmra.mrb[0].mxu0 %v3816
      %v6290 = vpop.f32.mrb[0].mxu0
      %v6291 = vadd.f32 %v1081, %v6290
      %v6292 = vpop.f32.mrb[0].mxu0
      %v6293 = vpop.f32.mrb[0].mxu0
      %v6294 = vadd.f32 %v1081, %v6293
      %v6295 = vpop.f32.mrb[0].mxu0
      %6296 = vmatprep.mubr.bf16.mxu0 0
      %6297 = vmatmul.mubr.bf16.gmra.mrb[0].mxu0 %v3819
      %v6298 = vpop.f32.mrb[0].mxu0
      %v6299 = vadd.f32 %v1081, %v6298
      %v6300 = vpop.f32.mrb[0].mxu0
      %v6301 = vpop.f32.mrb[0].mxu0
      %v6302 = vadd.f32 %v1081, %v6301
      %v6303 = vpop.f32.mrb[0].mxu0
      %6304 = vmatprep.mubr.bf16.mxu0 0
      %6305 = vmatmul.mubr.bf16.gmra.mrb[0].mxu0 %v3822
      %v6306 = vpop.f32.mrb[0].mxu0
      %v6307 = vadd.f32 %v1081, %v6306
      %v6308 = vpop.f32.mrb[0].mxu0
      %v6309 = vpop.f32.mrb[0].mxu0
      %v6310 = vadd.f32 %v1081, %v6309
      %v6311 = vpop.f32.mrb[0].mxu0
      %6312 = vmatprep.mubr.bf16.mxu0 0
      %6313 = vmatmul.mubr.bf16.gmra.mrb[0].mxu0 %v3825
      %v6314 = vpop.f32.mrb[0].mxu0
      %v6315 = vadd.f32 %v1081, %v6314
      %v6316 = vpop.f32.mrb[0].mxu0
      %v6317 = vpop.f32.mrb[0].mxu0
      %v6318 = vadd.f32 %v1081, %v6317
      %v6319 = vpop.f32.mrb[0].mxu0
      %6320 = vmatprep.mubr.bf16.mxu0 0
      %6321 = vmatmul.mubr.bf16.gmra.mrb[0].mxu0 %v3828
      %v6322 = vpop.f32.mrb[0].mxu0
      %v6323 = vadd.f32 %v1081, %v6322
      %v6324 = vpop.f32.mrb[0].mxu0
      %v6325 = vpop.f32.mrb[0].mxu0
      %v6326 = vadd.f32 %v1081, %v6325
      %v6327 = vpop.f32.mrb[0].mxu0
      %6328 = vmatprep.mubr.bf16.mxu0 0
      %6329 = vmatmul.mubr.bf16.gmra.mrb[0].mxu0 %v3831
      %v6330 = vpop.f32.mrb[0].mxu0
      %v6331 = vadd.f32 %v1081, %v6330
      %v6332 = vpop.f32.mrb[0].mxu0
      %v6333 = vpop.f32.mrb[0].mxu0
      %v6334 = vadd.f32 %v1081, %v6333
      %v6335 = vpop.f32.mrb[0].mxu0
      %6336 = vmatprep.mubr.bf16.mxu0 0
      %6337 = vmatmul.mubr.bf16.gmra.mrb[0].mxu0 %v3834
      %v6338 = vpop.f32.mrb[0].mxu0
      %v6339 = vadd.f32 %v1081, %v6338
      %v6340 = vpop.f32.mrb[0].mxu0
      %v6341 = vpop.f32.mrb[0].mxu0
      %v6342 = vadd.f32 %v1081, %v6341
      %v6343 = vpop.f32.mrb[0].mxu0
      %6344 = vmatprep.mubr.bf16.mxu0 0
      %6345 = vmatmul.mubr.bf16.gmra.mrb[0].mxu0 %v3837
      %v6346 = vpop.f32.mrb[0].mxu0
      %v6347 = vadd.f32 %v1081, %v6346
      %v6348 = vpop.f32.mrb[0].mxu0
      %v6349 = vpop.f32.mrb[0].mxu0
      %v6350 = vadd.f32 %v1081, %v6349
      %v6351 = vpop.f32.mrb[0].mxu0
      %6352 = vmatprep.mubr.bf16.mxu0 0
      %6353 = vmatmul.mubr.bf16.gmra.mrb[0].mxu0 %v3840
      %v6354 = vpop.f32.mrb[0].mxu0
      %v6355 = vadd.f32 %v1081, %v6354
      %v6356 = vpop.f32.mrb[0].mxu0
      %v6357 = vpop.f32.mrb[0].mxu0
      %v6358 = vadd.f32 %v1081, %v6357
      %v6359 = vpop.f32.mrb[0].mxu0
      %6360 = vmatprep.mubr.bf16.mxu0 0
      %6361 = vmatmul.mubr.bf16.gmra.mrb[0].mxu0 %v3843
      %v6362 = vpop.f32.mrb[0].mxu0
      %v6363 = vadd.f32 %v1081, %v6362
      %v6364 = vpop.f32.mrb[0].mxu0
      %v6365 = vpop.f32.mrb[0].mxu0
      %v6366 = vadd.f32 %v1081, %v6365
      %v6367 = vpop.f32.mrb[0].mxu0
      %6368 = vmatprep.mubr.bf16.mxu0 0
      %6369 = vmatmul.mubr.bf16.gmra.mrb[0].mxu0 %v3846
      %v6370 = vpop.f32.mrb[0].mxu0
      %v6371 = vadd.f32 %v1081, %v6370
      %v6372 = vpop.f32.mrb[0].mxu0
      %v6373 = vpop.f32.mrb[0].mxu0
      %v6374 = vadd.f32 %v1081, %v6373
      %v6375 = vpop.f32.mrb[0].mxu0
      %6376 = vmatprep.mubr.bf16.mxu0 0
      %6377 = vmatmul.mubr.bf16.gmra.mrb[0].mxu0 %v3849
      %v6378 = vpop.f32.mrb[0].mxu0
      %v6379 = vadd.f32 %v1081, %v6378
      %v6380 = vpop.f32.mrb[0].mxu0
      %v6381 = vpop.f32.mrb[0].mxu0
      %v6382 = vadd.f32 %v1081, %v6381
      %v6383 = vpop.f32.mrb[0].mxu0
      %6384 = vmatprep.mubr.bf16.mxu0 0
      %6385 = vmatmul.mubr.bf16.gmra.mrb[0].mxu0 %v3852
      %v6386 = vpop.f32.mrb[0].mxu0
      %v6387 = vadd.f32 %v1081, %v6386
      %v6388 = vpop.f32.mrb[0].mxu0
      %v6389 = vpop.f32.mrb[0].mxu0
      %v6390 = vadd.f32 %v1081, %v6389
      %v6391 = vpop.f32.mrb[0].mxu0
      %6392 = vmatprep.mubr.bf16.mxu0 0
      %6393 = vmatmul.mubr.bf16.gmra.mrb[0].mxu0 %v3855
      %v6394 = vpop.f32.mrb[0].mxu0
      %v6395 = vadd.f32 %v1081, %v6394
      %v6396 = vpop.f32.mrb[0].mxu0
      %v6397 = vpop.f32.mrb[0].mxu0
      %v6398 = vadd.f32 %v1081, %v6397
      %v6399 = vpop.f32.mrb[0].mxu0
      %6400 = vmatprep.mubr.bf16.mxu0 0
      %6401 = vmatmul.mubr.bf16.gmra.mrb[0].mxu0 %v3858
      %v6402 = vpop.f32.mrb[0].mxu0
      %v6403 = vadd.f32 %v1081, %v6402
      %v6404 = vpop.f32.mrb[0].mxu0
      %v6405 = vpop.f32.mrb[0].mxu0
      %v6406 = vadd.f32 %v1081, %v6405
      %v6407 = vpop.f32.mrb[0].mxu0
      %6408 = vmatprep.mubr.bf16.mxu0 0
      %6409 = vmatmul.mubr.bf16.gmra.mrb[0].mxu0 %v3861
      %v6410 = vpop.f32.mrb[0].mxu0
      %v6411 = vadd.f32 %v1081, %v6410
      %v6412 = vpop.f32.mrb[0].mxu0
      %v6413 = vpop.f32.mrb[0].mxu0
      %v6414 = vadd.f32 %v1081, %v6413
      %v6415 = vpop.f32.mrb[0].mxu0
      %6416 = vmatprep.mubr.bf16.mxu0 0
      %6417 = vmatmul.mubr.bf16.gmra.mrb[0].mxu0 %v3864
      %v6418 = vpop.f32.mrb[0].mxu0
      %v6419 = vadd.f32 %v1081, %v6418
      %v6420 = vpop.f32.mrb[0].mxu0
      %v6421 = vpop.f32.mrb[0].mxu0
      %v6422 = vadd.f32 %v1081, %v6421
      %v6423 = vpop.f32.mrb[0].mxu0
      %6424 = vmatprep.mubr.bf16.mxu0 0
      %6425 = vmatmul.mubr.bf16.gmra.mrb[0].mxu0 %v3867
      %v6426 = vpop.f32.mrb[0].mxu0
      %v6427 = vadd.f32 %v1081, %v6426
      %v6428 = vpop.f32.mrb[0].mxu0
      %v6429 = vpop.f32.mrb[0].mxu0
      %v6430 = vadd.f32 %v1081, %v6429
      %v6431 = vpop.f32.mrb[0].mxu0
      %6432 = vmatprep.mubr.bf16.mxu0 0
      %6433 = vmatmul.mubr.bf16.gmra.mrb[0].mxu0 %v3870
      %v6434 = vpop.f32.mrb[0].mxu0
      %v6435 = vadd.f32 %v1081, %v6434
      %v6436 = vpop.f32.mrb[0].mxu0
      %v6437 = vpop.f32.mrb[0].mxu0
      %v6438 = vadd.f32 %v1081, %v6437
      %v6439 = vpop.f32.mrb[0].mxu0
      %6440 = vmatprep.mubr.bf16.mxu0 0
      %6441 = vmatmul.mubr.bf16.gmra.mrb[0].mxu0 %v3873
      %v6442 = vpop.f32.mrb[0].mxu0
      %v6443 = vadd.f32 %v1081, %v6442
      %v6444 = vpop.f32.mrb[0].mxu0
      %v6445 = vpop.f32.mrb[0].mxu0
      %v6446 = vadd.f32 %v1081, %v6445
      %v6447 = vpop.f32.mrb[0].mxu0
      %6448 = vmatprep.mubr.bf16.mxu0 0
      %6449 = vmatmul.mubr.bf16.gmra.mrb[0].mxu0 %v3876
      %v6450 = vpop.f32.mrb[0].mxu0
      %v6451 = vadd.f32 %v1081, %v6450
      %v6452 = vpop.f32.mrb[0].mxu0
      %v6453 = vpop.f32.mrb[0].mxu0
      %v6454 = vadd.f32 %v1081, %v6453
      %v6455 = vpop.f32.mrb[0].mxu0
      %6456 = vmatprep.mubr.bf16.mxu0 0
      %6457 = vmatmul.mubr.bf16.gmra.mrb[0].mxu0 %v3879
      %v6458 = vpop.f32.mrb[0].mxu0
      %v6459 = vadd.f32 %v1081, %v6458
      %v6460 = vpop.f32.mrb[0].mxu0
      %v6461 = vpop.f32.mrb[0].mxu0
      %v6462 = vadd.f32 %v1081, %v6461
      %v6463 = vpop.f32.mrb[0].mxu0
      %6464 = vmatprep.mubr.bf16.mxu0 0
      %6465 = vmatmul.mubr.bf16.gmra.mrb[0].mxu0 %v3882
      %v6466 = vpop.f32.mrb[0].mxu0
      %v6467 = vadd.f32 %v1081, %v6466
      %v6468 = vpop.f32.mrb[0].mxu0
      %v6469 = vpop.f32.mrb[0].mxu0
      %v6470 = vadd.f32 %v1081, %v6469
      %v6471 = vpop.f32.mrb[0].mxu0
      %6472 = vmatprep.mubr.bf16.mxu0 0
      %6473 = vmatmul.mubr.bf16.gmra.mrb[0].mxu0 %v3885
      %v6474 = vpop.f32.mrb[0].mxu0
      %v6475 = vadd.f32 %v1081, %v6474
      %v6476 = vpop.f32.mrb[0].mxu0
      %v6477 = vpop.f32.mrb[0].mxu0
      %v6478 = vadd.f32 %v1081, %v6477
      %v6479 = vpop.f32.mrb[0].mxu0
      %6480 = vmatprep.mubr.bf16.mxu0 0
      %6481 = vmatmul.mubr.bf16.gmra.mrb[0].mxu0 %v3888
      %v6482 = vpop.f32.mrb[0].mxu0
      %v6483 = vadd.f32 %v1081, %v6482
      %v6484 = vpop.f32.mrb[0].mxu0
      %v6485 = vpop.f32.mrb[0].mxu0
      %v6486 = vadd.f32 %v1081, %v6485
      %v6487 = vpop.f32.mrb[0].mxu0
      %6488 = vmatprep.mubr.bf16.mxu0 0
      %6489 = vmatmul.mubr.bf16.gmra.mrb[0].mxu0 %v3891
      %v6490 = vpop.f32.mrb[0].mxu0
      %v6491 = vadd.f32 %v1081, %v6490
      %v6492 = vpop.f32.mrb[0].mxu0
      %v6493 = vpop.f32.mrb[0].mxu0
      %v6494 = vadd.f32 %v1081, %v6493
      %v6495 = vpop.f32.mrb[0].mxu0
      %6496 = vmatprep.mubr.bf16.mxu0 0
      %6497 = vmatmul.mubr.bf16.gmra.mrb[0].mxu0 %v3894
      %v6498 = vpop.f32.mrb[0].mxu0
      %v6499 = vadd.f32 %v1081, %v6498
      %v6500 = vpop.f32.mrb[0].mxu0
      %v6501 = vpop.f32.mrb[0].mxu0
      %v6502 = vadd.f32 %v1081, %v6501
      %v6503 = vpop.f32.mrb[0].mxu0
      %6504 = vmatprep.mubr.bf16.mxu0 0
      %6505 = vmatmul.mubr.bf16.gmra.mrb[0].mxu0 %v3897
      %v6506 = vpop.f32.mrb[0].mxu0
      %v6507 = vadd.f32 %v1081, %v6506
      %v6508 = vpop.f32.mrb[0].mxu0
      %v6509 = vpop.f32.mrb[0].mxu0
      %v6510 = vadd.f32 %v1081, %v6509
      %v6511 = vpop.f32.mrb[0].mxu0
      %6512 = vmatprep.mubr.bf16.mxu0 0
      %6513 = vmatmul.mubr.bf16.gmra.mrb[0].mxu0 %v3900
      %v6514 = vpop.f32.mrb[0].mxu0
      %v6515 = vadd.f32 %v1081, %v6514
      %v6516 = vpop.f32.mrb[0].mxu0
      %v6517 = vpop.f32.mrb[0].mxu0
      %v6518 = vadd.f32 %v1081, %v6517
      %v6519 = vpop.f32.mrb[0].mxu0
      %6520 = vmatprep.mubr.bf16.mxu0 0
      %6521 = vmatmul.mubr.bf16.gmra.mrb[0].mxu0 %v3903
      %v6522 = vpop.f32.mrb[0].mxu0
      %v6523 = vadd.f32 %v1081, %v6522
      %v6524 = vpop.f32.mrb[0].mxu0
      %v6525 = vpop.f32.mrb[0].mxu0
      %v6526 = vadd.f32 %v1081, %v6525
      %v6527 = vpop.f32.mrb[0].mxu0
      %6528 = vmatprep.mubr.bf16.mxu0 0
      %6529 = vmatmul.mubr.bf16.gmra.mrb[0].mxu0 %v3906
      %v6530 = vpop.f32.mrb[0].mxu0
      %v6531 = vadd.f32 %v1081, %v6530
      %v6532 = vpop.f32.mrb[0].mxu0
      %v6533 = vpop.f32.mrb[0].mxu0
      %v6534 = vadd.f32 %v1081, %v6533
      %v6535 = vpop.f32.mrb[0].mxu0
      %6536 = vmatprep.mubr.bf16.mxu0 0
      %6537 = vmatmul.mubr.bf16.gmra.mrb[0].mxu0 %v3909
      %v6538 = vpop.f32.mrb[0].mxu0
      %v6539 = vadd.f32 %v1081, %v6538
      %v6540 = vpop.f32.mrb[0].mxu0
      %v6541 = vpop.f32.mrb[0].mxu0
      %v6542 = vadd.f32 %v1081, %v6541
      %v6543 = vpop.f32.mrb[0].mxu0
      %6544 = vmatprep.mubr.bf16.mxu0 0
      %6545 = vmatmul.mubr.bf16.gmra.mrb[0].mxu0 %v3912
      %v6546 = vpop.f32.mrb[0].mxu0
      %v6547 = vadd.f32 %v1081, %v6546
      %v6548 = vpop.f32.mrb[0].mxu0
      %v6549 = vpop.f32.mrb[0].mxu0
      %v6550 = vadd.f32 %v1081, %v6549
      %v6551 = vpop.f32.mrb[0].mxu0
      %6552 = vmatprep.mubr.bf16.mxu0 0
      %6553 = vmatmul.mubr.bf16.gmra.mrb[0].mxu0 %v3915
      %v6554 = vpop.f32.mrb[0].mxu0
      %v6555 = vadd.f32 %v1081, %v6554
      %v6556 = vpop.f32.mrb[0].mxu0
      %v6557 = vpop.f32.mrb[0].mxu0
      %v6558 = vadd.f32 %v1081, %v6557
      %v6559 = vpop.f32.mrb[0].mxu0
      %6560 = vmatprep.mubr.bf16.mxu0 0
      %6561 = vmatmul.mubr.bf16.gmra.mrb[0].mxu0 %v3918
      %v6562 = vpop.f32.mrb[0].mxu0
      %v6563 = vadd.f32 %v1081, %v6562
      %v6564 = vpop.f32.mrb[0].mxu0
      %v6565 = vpop.f32.mrb[0].mxu0
      %v6566 = vadd.f32 %v1081, %v6565
      %v6567 = vpop.f32.mrb[0].mxu0
      %6568 = vmatprep.mubr.bf16.mxu0 0
      %6569 = vmatmul.mubr.bf16.gmra.mrb[0].mxu0 %v3921
      %v6570 = vpop.f32.mrb[0].mxu0
      %v6571 = vadd.f32 %v1081, %v6570
      %v6572 = vpop.f32.mrb[0].mxu0
      %v6573 = vpop.f32.mrb[0].mxu0
      %v6574 = vadd.f32 %v1081, %v6573
      %v6575 = vpop.f32.mrb[0].mxu0
      %6576 = vmatprep.mubr.bf16.mxu0 0
      %6577 = vmatmul.mubr.bf16.gmra.mrb[0].mxu0 %v3924
      %v6578 = vpop.f32.mrb[0].mxu0
      %v6579 = vadd.f32 %v1081, %v6578
      %v6580 = vpop.f32.mrb[0].mxu0
      %v6581 = vpop.f32.mrb[0].mxu0
      %v6582 = vadd.f32 %v1081, %v6581
      %v6583 = vpop.f32.mrb[0].mxu0
      %6584 = vmatprep.mubr.bf16.mxu0 0
      %6585 = vmatmul.mubr.bf16.gmra.mrb[0].mxu0 %v3927
      %v6586 = vpop.f32.mrb[0].mxu0
      %v6587 = vadd.f32 %v1081, %v6586
      %v6588 = vpop.f32.mrb[0].mxu0
      %v6589 = vpop.f32.mrb[0].mxu0
      %v6590 = vadd.f32 %v1081, %v6589
      %v6591 = vpop.f32.mrb[0].mxu0
      %6592 = vmatprep.mubr.bf16.mxu0 0
      %6593 = vmatmul.mubr.bf16.gmra.mrb[0].mxu0 %v3930
      %v6594 = vpop.f32.mrb[0].mxu0
      %v6595 = vadd.f32 %v1081, %v6594
      %v6596 = vpop.f32.mrb[0].mxu0
      %v6597 = vpop.f32.mrb[0].mxu0
      %v6598 = vadd.f32 %v1081, %v6597
      %v6599 = vpop.f32.mrb[0].mxu0
      %6600 = vmatprep.mubr.bf16.mxu0 0
      %6601 = vmatmul.mubr.bf16.gmra.mrb[0].mxu0 %v3933
      %v6602 = vpop.f32.mrb[0].mxu0
      %v6603 = vadd.f32 %v1081, %v6602
      %v6604 = vpop.f32.mrb[0].mxu0
      %v6605 = vpop.f32.mrb[0].mxu0
      %v6606 = vadd.f32 %v1081, %v6605
      %v6607 = vpop.f32.mrb[0].mxu0
      %6608 = vmatprep.mubr.bf16.mxu0 0
      %6609 = vmatmul.mubr.bf16.gmra.mrb[0].mxu0 %v3936
      %v6610 = vpop.f32.mrb[0].mxu0
      %v6611 = vadd.f32 %v1081, %v6610
      %v6612 = vpop.f32.mrb[0].mxu0
      %v6613 = vpop.f32.mrb[0].mxu0
      %v6614 = vadd.f32 %v1081, %v6613
      %v6615 = vpop.f32.mrb[0].mxu0
      %6616 = vmatprep.mubr.bf16.mxu0 0
      %6617 = vmatmul.mubr.bf16.gmra.mrb[0].mxu0 %v3939
      %v6618 = vpop.f32.mrb[0].mxu0
      %v6619 = vadd.f32 %v1081, %v6618
      %v6620 = vpop.f32.mrb[0].mxu0
      %v6621 = vpop.f32.mrb[0].mxu0
      %v6622 = vadd.f32 %v1081, %v6621
      %v6623 = vpop.f32.mrb[0].mxu0
      %6624 = vmatprep.mubr.bf16.mxu0 0
      %6625 = vmatmul.mubr.bf16.gmra.mrb[0].mxu0 %v3942
      %v6626 = vpop.f32.mrb[0].mxu0
      %v6627 = vadd.f32 %v1081, %v6626
      %v6628 = vpop.f32.mrb[0].mxu0
      %v6629 = vpop.f32.mrb[0].mxu0
      %v6630 = vadd.f32 %v1081, %v6629
      %v6631 = vpop.f32.mrb[0].mxu0
      %6632 = vmatprep.mubr.bf16.mxu0 0
      %6633 = vmatmul.mubr.bf16.gmra.mrb[0].mxu0 %v3945
      %v6634 = vpop.f32.mrb[0].mxu0
      %v6635 = vadd.f32 %v1081, %v6634
      %v6636 = vpop.f32.mrb[0].mxu0
      %v6637 = vpop.f32.mrb[0].mxu0
      %v6638 = vadd.f32 %v1081, %v6637
      %v6639 = vpop.f32.mrb[0].mxu0
      %6640 = vmatprep.mubr.bf16.mxu0 0
      %6641 = vmatmul.mubr.bf16.gmra.mrb[0].mxu0 %v3948
      %v6642 = vpop.f32.mrb[0].mxu0
      %v6643 = vadd.f32 %v1081, %v6642
      %v6644 = vpop.f32.mrb[0].mxu0
      %v6645 = vpop.f32.mrb[0].mxu0
      %v6646 = vadd.f32 %v1081, %v6645
      %v6647 = vpop.f32.mrb[0].mxu0
      %6648 = vmatprep.mubr.bf16.mxu0 0
      %6649 = vmatmul.mubr.bf16.gmra.mrb[0].mxu0 %v3951
      %v6650 = vpop.f32.mrb[0].mxu0
      %v6651 = vadd.f32 %v1081, %v6650
      %v6652 = vpop.f32.mrb[0].mxu0
      %v6653 = vpop.f32.mrb[0].mxu0
      %v6654 = vadd.f32 %v1081, %v6653
      %v6655 = vpop.f32.mrb[0].mxu0
      %6656 = vmatprep.mubr.bf16.mxu0 0
      %6657 = vmatmul.mubr.bf16.gmra.mrb[0].mxu0 %v3954
      %v6658 = vpop.f32.mrb[0].mxu0
      %v6659 = vadd.f32 %v1081, %v6658
      %v6660 = vpop.f32.mrb[0].mxu0
      %v6661 = vpop.f32.mrb[0].mxu0
      %v6662 = vadd.f32 %v1081, %v6661
      %v6663 = vpop.f32.mrb[0].mxu0
      %6664 = vmatprep.mubr.bf16.mxu0 0
      %6665 = vmatmul.mubr.bf16.gmra.mrb[0].mxu0 %v3957
      %v6666 = vpop.f32.mrb[0].mxu0
      %v6667 = vadd.f32 %v1081, %v6666
      %v6668 = vpop.f32.mrb[0].mxu0
      %v6669 = vpop.f32.mrb[0].mxu0
      %v6670 = vadd.f32 %v1081, %v6669
      %v6671 = vpop.f32.mrb[0].mxu0
      %6672 = vmatprep.mubr.bf16.mxu0 0
      %6673 = vmatmul.mubr.bf16.gmra.mrb[0].mxu0 %v3960
      %v6674 = vpop.f32.mrb[0].mxu0
      %v6675 = vadd.f32 %v1081, %v6674
      %v6676 = vpop.f32.mrb[0].mxu0
      %v6677 = vpop.f32.mrb[0].mxu0
      %v6678 = vadd.f32 %v1081, %v6677
      %v6679 = vpop.f32.mrb[0].mxu0
      %6680 = vmatprep.mubr.bf16.mxu0 0
      %6681 = vmatmul.mubr.bf16.gmra.mrb[0].mxu0 %v3963
      %v6682 = vpop.f32.mrb[0].mxu0
      %v6683 = vadd.f32 %v1081, %v6682
      %v6684 = vpop.f32.mrb[0].mxu0
      %v6685 = vpop.f32.mrb[0].mxu0
      %v6686 = vadd.f32 %v1081, %v6685
      %v6687 = vpop.f32.mrb[0].mxu0
      %6688 = vmatprep.mubr.bf16.mxu0 0
      %6689 = vmatmul.mubr.bf16.gmra.mrb[0].mxu0 %v3966
      %v6690 = vpop.f32.mrb[0].mxu0
      %v6691 = vadd.f32 %v1081, %v6690
      %v6692 = vpop.f32.mrb[0].mxu0
      %v6693 = vpop.f32.mrb[0].mxu0
      %v6694 = vadd.f32 %v1081, %v6693
      %v6695 = vpop.f32.mrb[0].mxu0
      %6696 = vmatprep.mubr.bf16.mxu0 0
      %6697 = vmatmul.mubr.bf16.gmra.mrb[0].mxu0 %v3969
      %v6698 = vpop.f32.mrb[0].mxu0
      %v6699 = vadd.f32 %v1081, %v6698
      %v6700 = vpop.f32.mrb[0].mxu0
      %v6701 = vpop.f32.mrb[0].mxu0
      %v6702 = vadd.f32 %v1081, %v6701
      %v6703 = vpop.f32.mrb[0].mxu0
      %6704 = vmatprep.mubr.bf16.mxu0 0
      %6705 = vmatmul.mubr.bf16.gmra.mrb[0].mxu0 %v3972
      %v6706 = vpop.f32.mrb[0].mxu0
      %v6707 = vadd.f32 %v1081, %v6706
      %v6708 = vpop.f32.mrb[0].mxu0
      %v6709 = vpop.f32.mrb[0].mxu0
      %v6710 = vadd.f32 %v1081, %v6709
      %v6711 = vpop.f32.mrb[0].mxu0
      %6712 = vmatprep.mubr.bf16.mxu0 0
      %6713 = vmatmul.mubr.bf16.gmra.mrb[0].mxu0 %v3975
      %v6714 = vpop.f32.mrb[0].mxu0
      %v6715 = vadd.f32 %v1081, %v6714
      %v6716 = vpop.f32.mrb[0].mxu0
      %v6717 = vpop.f32.mrb[0].mxu0
      %v6718 = vadd.f32 %v1081, %v6717
      %v6719 = vpop.f32.mrb[0].mxu0
      %6720 = vmatprep.mubr.bf16.mxu0 0
      %6721 = vmatmul.mubr.bf16.gmra.mrb[0].mxu0 %v3978
      %v6722 = vpop.f32.mrb[0].mxu0
      %v6723 = vadd.f32 %v1081, %v6722
      %v6724 = vpop.f32.mrb[0].mxu0
      %v6725 = vpop.f32.mrb[0].mxu0
      %v6726 = vadd.f32 %v1081, %v6725
      %v6727 = vpop.f32.mrb[0].mxu0
      %6728 = vmatprep.mubr.bf16.mxu0 0
      %6729 = vmatmul.mubr.bf16.gmra.mrb[0].mxu0 %v3981
      %v6730 = vpop.f32.mrb[0].mxu0
      %v6731 = vadd.f32 %v1081, %v6730
      %v6732 = vpop.f32.mrb[0].mxu0
      %v6733 = vpop.f32.mrb[0].mxu0
      %v6734 = vadd.f32 %v1081, %v6733
      %v6735 = vpop.f32.mrb[0].mxu0
      %6736 = vmatprep.mubr.bf16.mxu0 0
      %6737 = vmatmul.mubr.bf16.gmra.mrb[0].mxu0 %v3984
      %v6738 = vpop.f32.mrb[0].mxu0
      %v6739 = vadd.f32 %v1081, %v6738
      %v6740 = vpop.f32.mrb[0].mxu0
      %v6741 = vpop.f32.mrb[0].mxu0
      %v6742 = vadd.f32 %v1081, %v6741
      %v6743 = vpop.f32.mrb[0].mxu0
      %6744 = vmatprep.mubr.bf16.mxu0 0
      %6745 = vmatmul.mubr.bf16.gmra.mrb[0].mxu0 %v3987
      %v6746 = vpop.f32.mrb[0].mxu0
      %v6747 = vadd.f32 %v1081, %v6746
      %v6748 = vpop.f32.mrb[0].mxu0
      %v6749 = vpop.f32.mrb[0].mxu0
      %v6750 = vadd.f32 %v1081, %v6749
      %v6751 = vpop.f32.mrb[0].mxu0
      %6752 = vmatprep.mubr.bf16.mxu0 0
      %6753 = vmatmul.mubr.bf16.gmra.mrb[0].mxu0 %v3990
      %v6754 = vpop.f32.mrb[0].mxu0
      %v6755 = vadd.f32 %v1081, %v6754
      %v6756 = vpop.f32.mrb[0].mxu0
      %v6757 = vpop.f32.mrb[0].mxu0
      %v6758 = vadd.f32 %v1081, %v6757
      %v6759 = vpop.f32.mrb[0].mxu0
      %6760 = vmatprep.mubr.bf16.mxu0 0
      %6761 = vmatmul.mubr.bf16.gmra.mrb[0].mxu0 %v3993
      %v6762 = vpop.f32.mrb[0].mxu0
      %v6763 = vadd.f32 %v1081, %v6762
      %v6764 = vpop.f32.mrb[0].mxu0
      %v6765 = vpop.f32.mrb[0].mxu0
      %v6766 = vadd.f32 %v1081, %v6765
      %v6767 = vpop.f32.mrb[0].mxu0
      %6768 = vmatprep.mubr.bf16.mxu0 0
      %6769 = vmatmul.mubr.bf16.gmra.mrb[0].mxu0 %v3996
      %v6770 = vpop.f32.mrb[0].mxu0
      %v6771 = vadd.f32 %v1081, %v6770
      %v6772 = vpop.f32.mrb[0].mxu0
      %v6773 = vpop.f32.mrb[0].mxu0
      %v6774 = vadd.f32 %v1081, %v6773
      %v6775 = vpop.f32.mrb[0].mxu0
      %6776 = vmatprep.mubr.bf16.mxu0 0
      %6777 = vmatmul.mubr.bf16.gmra.mrb[0].mxu0 %v3999
      %v6778 = vpop.f32.mrb[0].mxu0
      %v6779 = vadd.f32 %v1081, %v6778
      %v6780 = vpop.f32.mrb[0].mxu0
      %v6781 = vpop.f32.mrb[0].mxu0
      %v6782 = vadd.f32 %v1081, %v6781
      %v6783 = vpop.f32.mrb[0].mxu0
      %6784 = vmatprep.mubr.bf16.mxu0 0
      %6785 = vmatmul.mubr.bf16.gmra.mrb[0].mxu0 %v4002
      %v6786 = vpop.f32.mrb[0].mxu0
      %v6787 = vadd.f32 %v1081, %v6786
      %v6788 = vpop.f32.mrb[0].mxu0
      %v6789 = vpop.f32.mrb[0].mxu0
      %v6790 = vadd.f32 %v1081, %v6789
      %v6791 = vpop.f32.mrb[0].mxu0
      %6792 = vmatprep.mubr.bf16.mxu0 0
      %6793 = vmatmul.mubr.bf16.gmra.mrb[0].mxu0 %v4005
      %v6794 = vpop.f32.mrb[0].mxu0
      %v6795 = vadd.f32 %v1081, %v6794
      %v6796 = vpop.f32.mrb[0].mxu0
      %v6797 = vpop.f32.mrb[0].mxu0
      %v6798 = vadd.f32 %v1081, %v6797
      %v6799 = vpop.f32.mrb[0].mxu0
      %6800 = vmatprep.mubr.bf16.mxu0 0
      %6801 = vmatmul.mubr.bf16.gmra.mrb[0].mxu0 %v4008
      %v6802 = vpop.f32.mrb[0].mxu0
      %v6803 = vadd.f32 %v1081, %v6802
      %v6804 = vpop.f32.mrb[0].mxu0
      %v6805 = vpop.f32.mrb[0].mxu0
      %v6806 = vadd.f32 %v1081, %v6805
      %v6807 = vpop.f32.mrb[0].mxu0
      %6808 = vmatprep.mubr.bf16.mxu0 0
      %6809 = vmatmul.mubr.bf16.gmra.mrb[0].mxu0 %v4011
      %v6810 = vpop.f32.mrb[0].mxu0
      %v6811 = vadd.f32 %v1081, %v6810
      %v6812 = vpop.f32.mrb[0].mxu0
      %v6813 = vpop.f32.mrb[0].mxu0
      %v6814 = vadd.f32 %v1081, %v6813
      %v6815 = vpop.f32.mrb[0].mxu0
      %6816 = vmatprep.mubr.bf16.mxu0 0
      %6817 = vmatmul.mubr.bf16.gmra.mrb[0].mxu0 %v4014
      %v6818 = vpop.f32.mrb[0].mxu0
      %v6819 = vadd.f32 %v1081, %v6818
      %v6820 = vpop.f32.mrb[0].mxu0
      %v6821 = vpop.f32.mrb[0].mxu0
      %v6822 = vadd.f32 %v1081, %v6821
      %v6823 = vpop.f32.mrb[0].mxu0
      %6824 = vmatprep.mubr.bf16.mxu0 0
      %6825 = vmatmul.mubr.bf16.gmra.mrb[0].mxu0 %v4017
      %v6826 = vpop.f32.mrb[0].mxu0
      %v6827 = vadd.f32 %v1081, %v6826
      %v6828 = vpop.f32.mrb[0].mxu0
      %v6829 = vpop.f32.mrb[0].mxu0
      %v6830 = vadd.f32 %v1081, %v6829
      %v6831 = vpop.f32.mrb[0].mxu0
      %6832 = vmatprep.mubr.bf16.mxu0 0
      %6833 = vmatmul.mubr.bf16.gmra.mrb[0].mxu0 %v4020
      %v6834 = vpop.f32.mrb[0].mxu0
      %v6835 = vadd.f32 %v1081, %v6834
      %v6836 = vpop.f32.mrb[0].mxu0
      %v6837 = vpop.f32.mrb[0].mxu0
      %v6838 = vadd.f32 %v1081, %v6837
      %v6839 = vpop.f32.mrb[0].mxu0
      %6840 = vmatprep.mubr.bf16.mxu0 0
      %6841 = vmatmul.mubr.bf16.gmra.mrb[0].mxu0 %v4023
      %v6842 = vpop.f32.mrb[0].mxu0
      %v6843 = vadd.f32 %v1081, %v6842
      %v6844 = vpop.f32.mrb[0].mxu0
      %v6845 = vpop.f32.mrb[0].mxu0
      %v6846 = vadd.f32 %v1081, %v6845
      %v6847 = vpop.f32.mrb[0].mxu0
      %6848 = vmatprep.mubr.bf16.mxu0 0
      %6849 = vmatmul.mubr.bf16.gmra.mrb[0].mxu0 %v4026
      %v6850 = vpop.f32.mrb[0].mxu0
      %v6851 = vadd.f32 %v1081, %v6850
      %v6852 = vpop.f32.mrb[0].mxu0
      %v6853 = vpop.f32.mrb[0].mxu0
      %v6854 = vadd.f32 %v1081, %v6853
      %v6855 = vpop.f32.mrb[0].mxu0
      %6856 = vmatprep.mubr.bf16.mxu0 0
      %6857 = vmatmul.mubr.bf16.gmra.mrb[0].mxu0 %v4029
      %v6858 = vpop.f32.mrb[0].mxu0
      %v6859 = vadd.f32 %v1081, %v6858
      %v6860 = vpop.f32.mrb[0].mxu0
      %v6861 = vpop.f32.mrb[0].mxu0
      %v6862 = vadd.f32 %v1081, %v6861
      %v6863 = vpop.f32.mrb[0].mxu0
      %6864 = vmatprep.mubr.bf16.mxu0 0
      %6865 = vmatmul.mubr.bf16.gmra.mrb[0].mxu0 %v4032
      %v6866 = vpop.f32.mrb[0].mxu0
      %v6867 = vadd.f32 %v1081, %v6866
      %v6868 = vpop.f32.mrb[0].mxu0
      %v6869 = vpop.f32.mrb[0].mxu0
      %v6870 = vadd.f32 %v1081, %v6869
      %v6871 = vpop.f32.mrb[0].mxu0
      %6872 = vmatprep.mubr.bf16.mxu0 0
      %6873 = vmatmul.mubr.bf16.gmra.mrb[0].mxu0 %v4035
      %v6874 = vpop.f32.mrb[0].mxu0
      %v6875 = vadd.f32 %v1081, %v6874
      %v6876 = vpop.f32.mrb[0].mxu0
      %v6877 = vpop.f32.mrb[0].mxu0
      %v6878 = vadd.f32 %v1081, %v6877
      %v6879 = vpop.f32.mrb[0].mxu0
      %6880 = vmatprep.mubr.bf16.mxu0 0
      %6881 = vmatmul.mubr.bf16.gmra.mrb[0].mxu0 %v4038
      %v6882 = vpop.f32.mrb[0].mxu0
      %v6883 = vadd.f32 %v1081, %v6882
      %v6884 = vpop.f32.mrb[0].mxu0
      %v6885 = vpop.f32.mrb[0].mxu0
      %v6886 = vadd.f32 %v1081, %v6885
      %v6887 = vpop.f32.mrb[0].mxu0
      %6888 = vmatprep.mubr.bf16.mxu0 0
      %6889 = vmatmul.mubr.bf16.gmra.mrb[0].mxu0 %v4041
      %v6890 = vpop.f32.mrb[0].mxu0
      %v6891 = vadd.f32 %v1081, %v6890
      %v6892 = vpop.f32.mrb[0].mxu0
      %v6893 = vpop.f32.mrb[0].mxu0
      %v6894 = vadd.f32 %v1081, %v6893
      %v6895 = vpop.f32.mrb[0].mxu0
      %6896 = vmatprep.mubr.bf16.mxu0 0
      %6897 = vmatmul.mubr.bf16.gmra.mrb[0].mxu0 %v4044
      %v6898 = vpop.f32.mrb[0].mxu0
      %v6899 = vadd.f32 %v1081, %v6898
      %v6900 = vpop.f32.mrb[0].mxu0
      %v6901 = vpop.f32.mrb[0].mxu0
      %v6902 = vadd.f32 %v1081, %v6901
      %v6903 = vpop.f32.mrb[0].mxu0
      %6904 = vmatprep.mubr.bf16.mxu0 0
      %6905 = vmatmul.mubr.bf16.gmra.mrb[0].mxu0 %v4047
      %v6906 = vpop.f32.mrb[0].mxu0
      %v6907 = vadd.f32 %v1081, %v6906
      %v6908 = vpop.f32.mrb[0].mxu0
      %v6909 = vpop.f32.mrb[0].mxu0
      %v6910 = vadd.f32 %v1081, %v6909
      %v6911 = vpop.f32.mrb[0].mxu0
      %6912 = vmatprep.mubr.bf16.mxu0 0
      %6913 = vmatmul.mubr.bf16.gmra.mrb[0].mxu0 %v4050
      %v6914 = vpop.f32.mrb[0].mxu0
      %v6915 = vadd.f32 %v1081, %v6914
      %v6916 = vpop.f32.mrb[0].mxu0
      %v6917 = vpop.f32.mrb[0].mxu0
      %v6918 = vadd.f32 %v1081, %v6917
      %v6919 = vpop.f32.mrb[0].mxu0
      %6920 = vmatprep.mubr.bf16.mxu0 0
      %6921 = vmatmul.mubr.bf16.gmra.mrb[0].mxu0 %v4053
      %v6922 = vpop.f32.mrb[0].mxu0
      %v6923 = vadd.f32 %v1081, %v6922
      %v6924 = vpop.f32.mrb[0].mxu0
      %v6925 = vpop.f32.mrb[0].mxu0
      %v6926 = vadd.f32 %v1081, %v6925
      %v6927 = vpop.f32.mrb[0].mxu0
      %6928 = vmatprep.mubr.bf16.mxu0 0
      %6929 = vmatmul.mubr.bf16.gmra.mrb[0].mxu0 %v4056
      %v6930 = vpop.f32.mrb[0].mxu0
      %v6931 = vadd.f32 %v1081, %v6930
      %v6932 = vpop.f32.mrb[0].mxu0
      %v6933 = vpop.f32.mrb[0].mxu0
      %v6934 = vadd.f32 %v1081, %v6933
      %v6935 = vpop.f32.mrb[0].mxu0
      %6936 = vmatprep.mubr.bf16.mxu0 0
      %6937 = vmatmul.mubr.bf16.gmra.mrb[0].mxu0 %v4059
      %v6938 = vpop.f32.mrb[0].mxu0
      %v6939 = vadd.f32 %v1081, %v6938
      %v6940 = vpop.f32.mrb[0].mxu0
      %v6941 = vpop.f32.mrb[0].mxu0
      %v6942 = vadd.f32 %v1081, %v6941
      %v6943 = vpop.f32.mrb[0].mxu0
      %6944 = vmatprep.mubr.bf16.mxu0 0
      %6945 = vmatmul.mubr.bf16.gmra.mrb[0].mxu0 %v4062
      %v6946 = vpop.f32.mrb[0].mxu0
      %v6947 = vadd.f32 %v1081, %v6946
      %v6948 = vpop.f32.mrb[0].mxu0
      %v6949 = vpop.f32.mrb[0].mxu0
      %v6950 = vadd.f32 %v1081, %v6949
      %v6951 = vpop.f32.mrb[0].mxu0
      %6952 = vmatprep.mubr.bf16.mxu0 0
      %6953 = vmatmul.mubr.bf16.gmra.mrb[0].mxu0 %v4065
      %v6954 = vpop.f32.mrb[0].mxu0
      %v6955 = vadd.f32 %v1081, %v6954
      %v6956 = vpop.f32.mrb[0].mxu0
      %v6957 = vpop.f32.mrb[0].mxu0
      %v6958 = vadd.f32 %v1081, %v6957
      %v6959 = vpop.f32.mrb[0].mxu0
      %6960 = vmatprep.mubr.bf16.mxu0 0
      %6961 = vmatmul.mubr.bf16.gmra.mrb[0].mxu0 %v4068
      %v6962 = vpop.f32.mrb[0].mxu0
      %v6963 = vadd.f32 %v1081, %v6962
      %v6964 = vpop.f32.mrb[0].mxu0
      %v6965 = vpop.f32.mrb[0].mxu0
      %v6966 = vadd.f32 %v1081, %v6965
      %v6967 = vpop.f32.mrb[0].mxu0
      %6968 = vmatprep.mubr.bf16.mxu0 0
      %6969 = vmatmul.mubr.bf16.gmra.mrb[0].mxu0 %v4071
      %v6970 = vpop.f32.mrb[0].mxu0
      %v6971 = vadd.f32 %v1081, %v6970
      %v6972 = vpop.f32.mrb[0].mxu0
      %v6973 = vpop.f32.mrb[0].mxu0
      %v6974 = vadd.f32 %v1081, %v6973
      %v6975 = vpop.f32.mrb[0].mxu0
      %6976 = vmatprep.mubr.bf16.mxu0 0
      %6977 = vmatmul.mubr.bf16.gmra.mrb[0].mxu0 %v4074
      %v6978 = vpop.f32.mrb[0].mxu0
      %v6979 = vadd.f32 %v1081, %v6978
      %v6980 = vpop.f32.mrb[0].mxu0
      %v6981 = vpop.f32.mrb[0].mxu0
      %v6982 = vadd.f32 %v1081, %v6981
      %v6983 = vpop.f32.mrb[0].mxu0
      %6984 = vmatprep.mubr.bf16.mxu0 0
      %6985 = vmatmul.mubr.bf16.gmra.mrb[0].mxu0 %v4077
      %v6986 = vpop.f32.mrb[0].mxu0
      %v6987 = vadd.f32 %v1081, %v6986
      %v6988 = vpop.f32.mrb[0].mxu0
      %v6989 = vpop.f32.mrb[0].mxu0
      %v6990 = vadd.f32 %v1081, %v6989
      %v6991 = vpop.f32.mrb[0].mxu0
      %6992 = vmatprep.mubr.bf16.mxu0 0
      %6993 = vmatmul.mubr.bf16.gmra.mrb[0].mxu0 %v4080
      %v6994 = vpop.f32.mrb[0].mxu0
      %v6995 = vadd.f32 %v1081, %v6994
      %v6996 = vpop.f32.mrb[0].mxu0
      %v6997 = vpop.f32.mrb[0].mxu0
      %v6998 = vadd.f32 %v1081, %v6997
      %v6999 = vpop.f32.mrb[0].mxu0
      %7000 = vmatprep.mubr.bf16.mxu0 0
      %7001 = vmatmul.mubr.bf16.gmra.mrb[0].mxu0 %v4083
      %v7002 = vpop.f32.mrb[0].mxu0
      %v7003 = vadd.f32 %v1081, %v7002
      %v7004 = vpop.f32.mrb[0].mxu0
      %v7005 = vpop.f32.mrb[0].mxu0
      %v7006 = vadd.f32 %v1081, %v7005
      %v7007 = vpop.f32.mrb[0].mxu0
      %7008 = vmatprep.mubr.bf16.mxu0 0
      %7009 = vmatmul.mubr.bf16.gmra.mrb[0].mxu0 %v4086
      %v7010 = vpop.f32.mrb[0].mxu0
      %v7011 = vadd.f32 %v1081, %v7010
      %v7012 = vpop.f32.mrb[0].mxu0
      %v7013 = vpop.f32.mrb[0].mxu0
      %v7014 = vadd.f32 %v1081, %v7013
      %v7015 = vpop.f32.mrb[0].mxu0
      %7016 = vmatprep.mubr.bf16.mxu0 0
      %7017 = vmatmul.mubr.bf16.gmra.mrb[0].mxu0 %v4089
      %v7018 = vpop.f32.mrb[0].mxu0
      %v7019 = vadd.f32 %v1081, %v7018
      %v7020 = vpop.f32.mrb[0].mxu0
      %v7021 = vpop.f32.mrb[0].mxu0
      %v7022 = vadd.f32 %v1081, %v7021
      %v7023 = vpop.f32.mrb[0].mxu0
      %7024 = vmatprep.mubr.bf16.mxu0 0
      %7025 = vmatmul.mubr.bf16.gmra.mrb[0].mxu0 %v4092
      %v7026 = vpop.f32.mrb[0].mxu0
      %v7027 = vadd.f32 %v1081, %v7026
      %v7028 = vpop.f32.mrb[0].mxu0
      %v7029 = vpop.f32.mrb[0].mxu0
      %v7030 = vadd.f32 %v1081, %v7029
      %v7031 = vpop.f32.mrb[0].mxu0
      %7032 = vmatprep.mubr.bf16.mxu0 0
      %7033 = vmatmul.mubr.bf16.gmra.mrb[0].mxu0 %v4095
      %v7034 = vpop.f32.mrb[0].mxu0
      %v7035 = vadd.f32 %v1081, %v7034
      %v7036 = vpop.f32.mrb[0].mxu0
      %v7037 = vpop.f32.mrb[0].mxu0
      %v7038 = vadd.f32 %v1081, %v7037
      %v7039 = vpop.f32.mrb[0].mxu0
      %7040 = vmatprep.mubr.bf16.mxu0 0
      %7041 = vmatmul.mubr.bf16.gmra.mrb[0].mxu0 %v4098
      %v7042 = vpop.f32.mrb[0].mxu0
      %v7043 = vadd.f32 %v1081, %v7042
      %v7044 = vpop.f32.mrb[0].mxu0
      %v7045 = vpop.f32.mrb[0].mxu0
      %v7046 = vadd.f32 %v1081, %v7045
      %v7047 = vpop.f32.mrb[0].mxu0
      %7048 = vmatprep.mubr.bf16.mxu0 0
      %7049 = vmatmul.mubr.bf16.gmra.mrb[0].mxu0 %v4101
      %v7050 = vpop.f32.mrb[0].mxu0
      %v7051 = vadd.f32 %v1081, %v7050
      %v7052 = vpop.f32.mrb[0].mxu0
      %v7053 = vpop.f32.mrb[0].mxu0
      %v7054 = vadd.f32 %v1081, %v7053
      %v7055 = vpop.f32.mrb[0].mxu0
      %7056 = vmatprep.mubr.bf16.mxu0 0
      %7057 = vmatmul.mubr.bf16.gmra.mrb[0].mxu0 %v4104
      %v7058 = vpop.f32.mrb[0].mxu0
      %v7059 = vadd.f32 %v1081, %v7058
      %v7060 = vpop.f32.mrb[0].mxu0
      %v7061 = vpop.f32.mrb[0].mxu0
      %v7062 = vadd.f32 %v1081, %v7061
      %v7063 = vpop.f32.mrb[0].mxu0
      %7064 = vmatprep.mubr.bf16.mxu0 0
      %7065 = vmatmul.mubr.bf16.gmra.mrb[0].mxu0 %v4107
      %v7066 = vpop.f32.mrb[0].mxu0
      %v7067 = vadd.f32 %v1081, %v7066
      %v7068 = vpop.f32.mrb[0].mxu0
      %v7069 = vpop.f32.mrb[0].mxu0
      %v7070 = vadd.f32 %v1081, %v7069
      %v7071 = vpop.f32.mrb[0].mxu0
      %7072 = vmatprep.mubr.bf16.mxu0 0
      %7073 = vmatmul.mubr.bf16.gmra.mrb[0].mxu0 %v4110
      %v7074 = vpop.f32.mrb[0].mxu0
      %v7075 = vadd.f32 %v1081, %v7074
      %v7076 = vpop.f32.mrb[0].mxu0
      %v7077 = vpop.f32.mrb[0].mxu0
      %v7078 = vadd.f32 %v1081, %v7077
      %v7079 = vpop.f32.mrb[0].mxu0
      %7080 = vmatprep.mubr.bf16.mxu0 0
      %7081 = vmatmul.mubr.bf16.gmra.mrb[0].mxu0 %v4113
      %v7082 = vpop.f32.mrb[0].mxu0
      %v7083 = vadd.f32 %v1081, %v7082
      %v7084 = vpop.f32.mrb[0].mxu0
      %v7085 = vpop.f32.mrb[0].mxu0
      %v7086 = vadd.f32 %v1081, %v7085
      %v7087 = vpop.f32.mrb[0].mxu0
      %7088 = vmatprep.mubr.bf16.mxu0 0
      %7089 = vmatmul.mubr.bf16.gmra.mrb[0].mxu0 %v4116
      %v7090 = vpop.f32.mrb[0].mxu0
      %v7091 = vadd.f32 %v1081, %v7090
      %v7092 = vpop.f32.mrb[0].mxu0
      %v7093 = vpop.f32.mrb[0].mxu0
      %v7094 = vadd.f32 %v1081, %v7093
      %v7095 = vpop.f32.mrb[0].mxu0
      %7096 = vmatprep.mubr.bf16.mxu0 0
      %7097 = vmatmul.mubr.bf16.gmra.mrb[0].mxu0 %v4119
      %v7098 = vpop.f32.mrb[0].mxu0
      %v7099 = vadd.f32 %v1081, %v7098
      %v7100 = vpop.f32.mrb[0].mxu0
      %v7101 = vpop.f32.mrb[0].mxu0
      %v7102 = vadd.f32 %v1081, %v7101
      %v7103 = vpop.f32.mrb[0].mxu0
      %7104 = vmatprep.mubr.bf16.mxu0 0
      %7105 = vmatmul.mubr.bf16.gmra.mrb[0].mxu0 %v4122
      %v7106 = vpop.f32.mrb[0].mxu0
      %v7107 = vadd.f32 %v1081, %v7106
      %v7108 = vpop.f32.mrb[0].mxu0
      %v7109 = vpop.f32.mrb[0].mxu0
      %v7110 = vadd.f32 %v1081, %v7109
      %v7111 = vpop.f32.mrb[0].mxu0
      %7112 = vmatprep.mubr.bf16.mxu0 0
      %7113 = vmatmul.mubr.bf16.gmra.mrb[0].mxu0 %v4125
      %v7114 = vpop.f32.mrb[0].mxu0
      %v7115 = vadd.f32 %v1081, %v7114
      %v7116 = vpop.f32.mrb[0].mxu0
      %v7117 = vpop.f32.mrb[0].mxu0
      %v7118 = vadd.f32 %v1081, %v7117
      %v7119 = vpop.f32.mrb[0].mxu0
      %7120 = vmatprep.mubr.bf16.mxu0 0
      %7121 = vmatmul.mubr.bf16.gmra.mrb[0].mxu0 %v4128
      %v7122 = vpop.f32.mrb[0].mxu0
      %v7123 = vadd.f32 %v1081, %v7122
      %v7124 = vpop.f32.mrb[0].mxu0
      %v7125 = vpop.f32.mrb[0].mxu0
      %v7126 = vadd.f32 %v1081, %v7125
      %v7127 = vpop.f32.mrb[0].mxu0
      %7128 = vmatprep.mubr.bf16.mxu0 0
      %7129 = vmatmul.mubr.bf16.gmra.mrb[0].mxu0 %v4131
      %v7130 = vpop.f32.mrb[0].mxu0
      %v7131 = vadd.f32 %v1081, %v7130
      %v7132 = vpop.f32.mrb[0].mxu0
      %v7133 = vpop.f32.mrb[0].mxu0
      %v7134 = vadd.f32 %v1081, %v7133
      %v7135 = vpop.f32.mrb[0].mxu0
      %7136 = vmatprep.mubr.bf16.mxu0 0
      %7137 = vmatmul.mubr.bf16.gmra.mrb[0].mxu0 %v4134
      %v7138 = vpop.f32.mrb[0].mxu0
      %v7139 = vadd.f32 %v1081, %v7138
      %v7140 = vpop.f32.mrb[0].mxu0
      %v7141 = vpop.f32.mrb[0].mxu0
      %v7142 = vadd.f32 %v1081, %v7141
      %v7143 = vpop.f32.mrb[0].mxu0
      %7144 = vmatprep.mubr.bf16.mxu0 0
      %7145 = vmatmul.mubr.bf16.gmra.mrb[0].mxu0 %v4137
      %v7146 = vpop.f32.mrb[0].mxu0
      %v7147 = vadd.f32 %v1081, %v7146
      %v7148 = vpop.f32.mrb[0].mxu0
      %v7149 = vpop.f32.mrb[0].mxu0
      %v7150 = vadd.f32 %v1081, %v7149
      %v7151 = vpop.f32.mrb[0].mxu0
      %7152 = vmatprep.mubr.bf16.mxu0 0
      %7153 = vmatmul.mubr.bf16.gmra.mrb[0].mxu0 %v4140
      %v7154 = vpop.f32.mrb[0].mxu0
      %v7155 = vadd.f32 %v1081, %v7154
      %v7156 = vpop.f32.mrb[0].mxu0
      %v7157 = vpop.f32.mrb[0].mxu0
      %v7158 = vadd.f32 %v1081, %v7157
      %v7159 = vpop.f32.mrb[0].mxu0
      %7160 = vmatprep.mubr.bf16.mxu0 0
      %7161 = vmatmul.mubr.bf16.gmra.mrb[0].mxu0 %v4143
      %v7162 = vpop.f32.mrb[0].mxu0
      %v7163 = vadd.f32 %v1081, %v7162
      %v7164 = vpop.f32.mrb[0].mxu0
      %v7165 = vpop.f32.mrb[0].mxu0
      %v7166 = vadd.f32 %v1081, %v7165
      %v7167 = vpop.f32.mrb[0].mxu0
      %7168 = vmatprep.mubr.bf16.mxu0 0
      %7169 = vmatmul.mubr.bf16.gmra.mrb[0].mxu0 %v4146
      %v7170 = vpop.f32.mrb[0].mxu0
      %v7171 = vadd.f32 %v1081, %v7170
      %v7172 = vpop.f32.mrb[0].mxu0
      %v7173 = vpop.f32.mrb[0].mxu0
      %v7174 = vadd.f32 %v1081, %v7173
      %v7175 = vpop.f32.mrb[0].mxu0
      %7176 = vmatprep.mubr.bf16.mxu0 0
      %7177 = vmatmul.mubr.bf16.gmra.mrb[0].mxu0 %v4149
      %v7178 = vpop.f32.mrb[0].mxu0
      %v7179 = vadd.f32 %v1081, %v7178
      %v7180 = vpop.f32.mrb[0].mxu0
      %v7181 = vpop.f32.mrb[0].mxu0
      %v7182 = vadd.f32 %v1081, %v7181
      %v7183 = vpop.f32.mrb[0].mxu0
      %7184 = vmatprep.mubr.bf16.mxu0 0
      %7185 = vmatmul.mubr.bf16.gmra.mrb[0].mxu0 %v4152
      %v7186 = vpop.f32.mrb[0].mxu0
      %v7187 = vadd.f32 %v1081, %v7186
      %v7188 = vpop.f32.mrb[0].mxu0
      %v7189 = vpop.f32.mrb[0].mxu0
      %v7190 = vadd.f32 %v1081, %v7189
      %v7191 = vpop.f32.mrb[0].mxu0
      %7192 = vmatprep.mubr.bf16.mxu0 0
      %7193 = vmatmul.mubr.bf16.gmra.mrb[0].mxu0 %v4155
      %v7194 = vpop.f32.mrb[0].mxu0
      %v7195 = vadd.f32 %v1081, %v7194
      %v7196 = vpop.f32.mrb[0].mxu0
      %v7197 = vpop.f32.mrb[0].mxu0
      %v7198 = vadd.f32 %v1081, %v7197
      %v7199 = vpop.f32.mrb[0].mxu0
      %7200 = vmatprep.mubr.bf16.mxu0 0
      %7201 = vmatmul.mubr.bf16.gmra.mrb[0].mxu0 %v4158
      %v7202 = vpop.f32.mrb[0].mxu0
      %v7203 = vadd.f32 %v1081, %v7202
      %v7204 = vpop.f32.mrb[0].mxu0
      %v7205 = vpop.f32.mrb[0].mxu0
      %v7206 = vadd.f32 %v1081, %v7205
      %v7207 = vpop.f32.mrb[0].mxu0
      %7208 = vmatprep.mubr.bf16.mxu0 0
      %7209 = vmatmul.mubr.bf16.gmra.mrb[0].mxu0 %v4161
      %v7210 = vpop.f32.mrb[0].mxu0
      %v7211 = vadd.f32 %v1081, %v7210
      %v7212 = vpop.f32.mrb[0].mxu0
      %v7213 = vpop.f32.mrb[0].mxu0
      %v7214 = vadd.f32 %v1081, %v7213
      %v7215 = vpop.f32.mrb[0].mxu0
      %7216 = vmatprep.mubr.bf16.mxu0 0
      %7217 = vmatmul.mubr.bf16.gmra.mrb[0].mxu0 %v4164
      %v7218 = vpop.f32.mrb[0].mxu0
      %v7219 = vadd.f32 %v1081, %v7218
      %v7220 = vpop.f32.mrb[0].mxu0
      %v7221 = vpop.f32.mrb[0].mxu0
      %v7222 = vadd.f32 %v1081, %v7221
      %v7223 = vpop.f32.mrb[0].mxu0
      %7224 = vmatprep.mubr.bf16.mxu0 0
      %7225 = vmatmul.mubr.bf16.gmra.mrb[0].mxu0 %v4167
      %v7226 = vpop.f32.mrb[0].mxu0
      %v7227 = vadd.f32 %v1081, %v7226
      %v7228 = vpop.f32.mrb[0].mxu0
      %v7229 = vpop.f32.mrb[0].mxu0
      %v7230 = vadd.f32 %v1081, %v7229
      %v7231 = vpop.f32.mrb[0].mxu0
      %7232 = vmatprep.mubr.bf16.mxu0 0
      %7233 = vmatmul.mubr.bf16.gmra.mrb[0].mxu0 %v4170
      %v7234 = vpop.f32.mrb[0].mxu0
      %v7235 = vadd.f32 %v1081, %v7234
      %v7236 = vpop.f32.mrb[0].mxu0
      %v7237 = vpop.f32.mrb[0].mxu0
      %v7238 = vadd.f32 %v1081, %v7237
      %v7239 = vpop.f32.mrb[0].mxu0
      %7240 = vmatprep.mubr.bf16.mxu0 0
      %7241 = vmatmul.mubr.bf16.gmra.mrb[0].mxu0 %v4173
      %v7242 = vpop.f32.mrb[0].mxu0
      %v7243 = vadd.f32 %v1081, %v7242
      %v7244 = vpop.f32.mrb[0].mxu0
      %v7245 = vpop.f32.mrb[0].mxu0
      %v7246 = vadd.f32 %v1081, %v7245
      %v7247 = vpop.f32.mrb[0].mxu0
      %7248 = vmatprep.mubr.bf16.mxu0 0
      %7249 = vmatmul.mubr.bf16.gmra.mrb[0].mxu0 %v4176
      %v7250 = vpop.f32.mrb[0].mxu0
      %v7251 = vadd.f32 %v1081, %v7250
      %v7252 = vpop.f32.mrb[0].mxu0
      %v7253 = vpop.f32.mrb[0].mxu0
      %v7254 = vadd.f32 %v1081, %v7253
      %v7255 = vpop.f32.mrb[0].mxu0
      %7256 = vmatprep.mubr.bf16.mxu0 0
      %7257 = vmatmul.mubr.bf16.gmra.mrb[0].mxu0 %v4179
      %v7258 = vpop.f32.mrb[0].mxu0
      %v7259 = vadd.f32 %v1081, %v7258
      %v7260 = vpop.f32.mrb[0].mxu0
      %v7261 = vpop.f32.mrb[0].mxu0
      %v7262 = vadd.f32 %v1081, %v7261
      %v7263 = vpop.f32.mrb[0].mxu0
      %7264 = vmatprep.mubr.bf16.mxu0 0
      %7265 = vmatmul.mubr.bf16.gmra.mrb[0].mxu0 %v4182
      %v7266 = vpop.f32.mrb[0].mxu0
      %v7267 = vadd.f32 %v1081, %v7266
      %v7268 = vpop.f32.mrb[0].mxu0
      %v7269 = vpop.f32.mrb[0].mxu0
      %v7270 = vadd.f32 %v1081, %v7269
      %v7271 = vpop.f32.mrb[0].mxu0
      %7272 = vmatprep.mubr.bf16.mxu0 0
      %7273 = vmatmul.mubr.bf16.gmra.mrb[0].mxu0 %v4185
      %v7274 = vpop.f32.mrb[0].mxu0
      %v7275 = vadd.f32 %v1081, %v7274
      %v7276 = vpop.f32.mrb[0].mxu0
      %v7277 = vpop.f32.mrb[0].mxu0
      %v7278 = vadd.f32 %v1081, %v7277
      %v7279 = vpop.f32.mrb[0].mxu0
      %7280 = vmatprep.mubr.bf16.mxu0 0
      %7281 = vmatmul.mubr.bf16.gmra.mrb[0].mxu0 %v4188
      %v7282 = vpop.f32.mrb[0].mxu0
      %v7283 = vadd.f32 %v1081, %v7282
      %v7284 = vpop.f32.mrb[0].mxu0
      %v7285 = vpop.f32.mrb[0].mxu0
      %v7286 = vadd.f32 %v1081, %v7285
      %v7287 = vpop.f32.mrb[0].mxu0
      %7288 = vmatprep.mubr.bf16.mxu0 0
      %7289 = vmatmul.mubr.bf16.gmra.mrb[0].mxu0 %v4191
      %v7290 = vpop.f32.mrb[0].mxu0
      %v7291 = vadd.f32 %v1081, %v7290
      %v7292 = vpop.f32.mrb[0].mxu0
      %v7293 = vpop.f32.mrb[0].mxu0
      %v7294 = vadd.f32 %v1081, %v7293
      %v7295 = vpop.f32.mrb[0].mxu0
      %7296 = vmatprep.mubr.bf16.mxu0 0
      %7297 = vmatmul.mubr.bf16.gmra.mrb[0].mxu0 %v4194
      %v7298 = vpop.f32.mrb[0].mxu0
      %v7299 = vadd.f32 %v1081, %v7298
      %v7300 = vpop.f32.mrb[0].mxu0
      %v7301 = vpop.f32.mrb[0].mxu0
      %v7302 = vadd.f32 %v1081, %v7301
      %v7303 = vpop.f32.mrb[0].mxu0
      %7304 = vmatprep.mubr.bf16.mxu0 0
      %7305 = vmatmul.mubr.bf16.gmra.mrb[0].mxu0 %v4197
      %v7306 = vpop.f32.mrb[0].mxu0
      %v7307 = vadd.f32 %v1081, %v7306
      %v7308 = vpop.f32.mrb[0].mxu0
      %v7309 = vpop.f32.mrb[0].mxu0
      %v7310 = vadd.f32 %v1081, %v7309
      %v7311 = vpop.f32.mrb[0].mxu0
      %7312 = vmatprep.mubr.bf16.mxu0 0
      %7313 = vmatmul.mubr.bf16.gmra.mrb[0].mxu0 %v4200
      %v7314 = vpop.f32.mrb[0].mxu0
      %v7315 = vadd.f32 %v1081, %v7314
      %v7316 = vpop.f32.mrb[0].mxu0
      %v7317 = vpop.f32.mrb[0].mxu0
      %v7318 = vadd.f32 %v1081, %v7317
      %v7319 = vpop.f32.mrb[0].mxu0
      %7320 = vmatprep.mubr.bf16.mxu0 0
      %7321 = vmatmul.mubr.bf16.gmra.mrb[0].mxu0 %v4203
      %v7322 = vpop.f32.mrb[0].mxu0
      %v7323 = vadd.f32 %v1081, %v7322
      %v7324 = vpop.f32.mrb[0].mxu0
      %v7325 = vpop.f32.mrb[0].mxu0
      %v7326 = vadd.f32 %v1081, %v7325
      %v7327 = vpop.f32.mrb[0].mxu0
      %7328 = vmatprep.mubr.bf16.mxu0 0
      %7329 = vmatmul.mubr.bf16.gmra.mrb[0].mxu0 %v4206
      %v7330 = vpop.f32.mrb[0].mxu0
      %v7331 = vadd.f32 %v1081, %v7330
      %v7332 = vpop.f32.mrb[0].mxu0
      %v7333 = vpop.f32.mrb[0].mxu0
      %v7334 = vadd.f32 %v1081, %v7333
      %v7335 = vpop.f32.mrb[0].mxu0
      %7336 = vmatprep.mubr.bf16.mxu0 0
      %7337 = vmatmul.mubr.bf16.gmra.mrb[0].mxu0 %v4209
      %v7338 = vpop.f32.mrb[0].mxu0
      %v7339 = vadd.f32 %v1081, %v7338
      %v7340 = vpop.f32.mrb[0].mxu0
      %v7341 = vpop.f32.mrb[0].mxu0
      %v7342 = vadd.f32 %v1081, %v7341
      %v7343 = vpop.f32.mrb[0].mxu0
      %7344 = vmatprep.mubr.bf16.mxu0 0
      %7345 = vmatmul.mubr.bf16.gmra.mrb[0].mxu0 %v4212
      %v7346 = vpop.f32.mrb[0].mxu0
      %v7347 = vadd.f32 %v1081, %v7346
      %v7348 = vpop.f32.mrb[0].mxu0
      %v7349 = vpop.f32.mrb[0].mxu0
      %v7350 = vadd.f32 %v1081, %v7349
      %v7351 = vpop.f32.mrb[0].mxu0
      %7352 = vmatprep.mubr.bf16.mxu0 0
      %7353 = vmatmul.mubr.bf16.gmra.mrb[0].mxu0 %v4215
      %v7354 = vpop.f32.mrb[0].mxu0
      %v7355 = vadd.f32 %v1081, %v7354
      %v7356 = vpop.f32.mrb[0].mxu0
      %v7357 = vpop.f32.mrb[0].mxu0
      %v7358 = vadd.f32 %v1081, %v7357
      %v7359 = vpop.f32.mrb[0].mxu0
      %7360 = vmatprep.mubr.bf16.mxu0 0
      %7361 = vmatmul.mubr.bf16.gmra.mrb[0].mxu0 %v4218
      %v7362 = vpop.f32.mrb[0].mxu0
      %v7363 = vadd.f32 %v1081, %v7362
      %v7364 = vpop.f32.mrb[0].mxu0
      %v7365 = vpop.f32.mrb[0].mxu0
      %v7366 = vadd.f32 %v1081, %v7365
      %v7367 = vpop.f32.mrb[0].mxu0
      %7368 = vmatprep.mubr.bf16.mxu0 0
      %7369 = vmatmul.mubr.bf16.gmra.mrb[0].mxu0 %v4221
      %v7370 = vpop.f32.mrb[0].mxu0
      %v7371 = vadd.f32 %v1081, %v7370
      %v7372 = vpop.f32.mrb[0].mxu0
      %v7373 = vpop.f32.mrb[0].mxu0
      %v7374 = vadd.f32 %v1081, %v7373
      %v7375 = vpop.f32.mrb[0].mxu0
      %7376 = vmatprep.mubr.bf16.mxu0 0
      %7377 = vmatmul.mubr.bf16.gmra.mrb[0].mxu0 %v4224
      %v7378 = vpop.f32.mrb[0].mxu0
      %v7379 = vadd.f32 %v1081, %v7378
      %v7380 = vpop.f32.mrb[0].mxu0
      %v7381 = vpop.f32.mrb[0].mxu0
      %v7382 = vadd.f32 %v1081, %v7381
      %v7383 = vpop.f32.mrb[0].mxu0
      %7384 = vmatprep.mubr.bf16.mxu0 0
      %7385 = vmatmul.mubr.bf16.gmra.mrb[0].mxu0 %v4227
      %v7386 = vpop.f32.mrb[0].mxu0
      %v7387 = vadd.f32 %v1081, %v7386
      %v7388 = vpop.f32.mrb[0].mxu0
      %v7389 = vpop.f32.mrb[0].mxu0
      %v7390 = vadd.f32 %v1081, %v7389
      %v7391 = vpop.f32.mrb[0].mxu0
      %7392 = vmatprep.mubr.bf16.mxu0 0
      %7393 = vmatmul.mubr.bf16.gmra.mrb[0].mxu0 %v4230
      %v7394 = vpop.f32.mrb[0].mxu0
      %v7395 = vadd.f32 %v1081, %v7394
      %v7396 = vpop.f32.mrb[0].mxu0
      %v7397 = vpop.f32.mrb[0].mxu0
      %v7398 = vadd.f32 %v1081, %v7397
      %v7399 = vpop.f32.mrb[0].mxu0
      %7400 = vdwg.mxu0
      %vm7401 = vcmp.gt.f32.partialorder %v4267, 0.0
      %vm7402 = vcmp.gt.f32.partialorder %v4270, 0.0
      %vm7403 = vcmp.gt.f32.partialorder %v4275, 0.0
      %vm7404 = vcmp.gt.f32.partialorder %v4278, 0.0
      %vm7405 = vcmp.gt.f32.partialorder %v4283, 0.0
      %vm7406 = vcmp.gt.f32.partialorder %v4286, 0.0
      %vm7407 = vcmp.gt.f32.partialorder %v4291, 0.0
      %vm7408 = vcmp.gt.f32.partialorder %v4294, 0.0
      %vm7409 = vcmp.gt.f32.partialorder %v4299, 0.0
      %vm7410 = vcmp.gt.f32.partialorder %v4302, 0.0
      %vm7411 = vcmp.gt.f32.partialorder %v4307, 0.0
      %vm7412 = vcmp.gt.f32.partialorder %v4310, 0.0
      %vm7413 = vcmp.gt.f32.partialorder %v4315, 0.0
      %vm7414 = vcmp.gt.f32.partialorder %v4318, 0.0
      %vm7415 = vcmp.gt.f32.partialorder %v4323, 0.0
      %vm7416 = vcmp.gt.f32.partialorder %v4326, 0.0
      %vm7417 = vcmp.gt.f32.partialorder %v4331, 0.0
      %vm7418 = vcmp.gt.f32.partialorder %v4334, 0.0
      %vm7419 = vcmp.gt.f32.partialorder %v4339, 0.0
      %vm7420 = vcmp.gt.f32.partialorder %v4342, 0.0
      %vm7421 = vcmp.gt.f32.partialorder %v4347, 0.0
      %vm7422 = vcmp.gt.f32.partialorder %v4350, 0.0
      %vm7423 = vcmp.gt.f32.partialorder %v4355, 0.0
      %vm7424 = vcmp.gt.f32.partialorder %v4358, 0.0
      %vm7425 = vcmp.gt.f32.partialorder %v4363, 0.0
      %vm7426 = vcmp.gt.f32.partialorder %v4366, 0.0
      %vm7427 = vcmp.gt.f32.partialorder %v4371, 0.0
      %vm7428 = vcmp.gt.f32.partialorder %v4374, 0.0
      %vm7429 = vcmp.gt.f32.partialorder %v4379, 0.0
      %vm7430 = vcmp.gt.f32.partialorder %v4382, 0.0
      %vm7431 = vcmp.gt.f32.partialorder %v4387, 0.0
      %vm7432 = vcmp.gt.f32.partialorder %v4390, 0.0
      %vm7433 = vcmp.gt.f32.partialorder %v4395, 0.0
      %vm7434 = vcmp.gt.f32.partialorder %v4398, 0.0
      %vm7435 = vcmp.gt.f32.partialorder %v4403, 0.0
      %vm7436 = vcmp.gt.f32.partialorder %v4406, 0.0
      %vm7437 = vcmp.gt.f32.partialorder %v4411, 0.0
      %vm7438 = vcmp.gt.f32.partialorder %v4414, 0.0
      %vm7439 = vcmp.gt.f32.partialorder %v4419, 0.0
      %vm7440 = vcmp.gt.f32.partialorder %v4422, 0.0
      %vm7441 = vcmp.gt.f32.partialorder %v4427, 0.0
      %vm7442 = vcmp.gt.f32.partialorder %v4430, 0.0
      %vm7443 = vcmp.gt.f32.partialorder %v4435, 0.0
      %vm7444 = vcmp.gt.f32.partialorder %v4438, 0.0
      %vm7445 = vcmp.gt.f32.partialorder %v4443, 0.0
      %vm7446 = vcmp.gt.f32.partialorder %v4446, 0.0
      %vm7447 = vcmp.gt.f32.partialorder %v4451, 0.0
      %vm7448 = vcmp.gt.f32.partialorder %v4454, 0.0
      %vm7449 = vcmp.gt.f32.partialorder %v4459, 0.0
      %vm7450 = vcmp.gt.f32.partialorder %v4462, 0.0
      %vm7451 = vcmp.gt.f32.partialorder %v4467, 0.0
      %vm7452 = vcmp.gt.f32.partialorder %v4470, 0.0
      %vm7453 = vcmp.gt.f32.partialorder %v4475, 0.0
      %vm7454 = vcmp.gt.f32.partialorder %v4478, 0.0
      %vm7455 = vcmp.gt.f32.partialorder %v4483, 0.0
      %vm7456 = vcmp.gt.f32.partialorder %v4486, 0.0
      %vm7457 = vcmp.gt.f32.partialorder %v4491, 0.0
      %vm7458 = vcmp.gt.f32.partialorder %v4494, 0.0
      %vm7459 = vcmp.gt.f32.partialorder %v4499, 0.0
      %vm7460 = vcmp.gt.f32.partialorder %v4502, 0.0
      %vm7461 = vcmp.gt.f32.partialorder %v4507, 0.0
      %vm7462 = vcmp.gt.f32.partialorder %v4510, 0.0
      %vm7463 = vcmp.gt.f32.partialorder %v4515, 0.0
      %vm7464 = vcmp.gt.f32.partialorder %v4518, 0.0
      %vm7465 = vcmp.gt.f32.partialorder %v4523, 0.0
      %vm7466 = vcmp.gt.f32.partialorder %v4526, 0.0
      %vm7467 = vcmp.gt.f32.partialorder %v4531, 0.0
      %vm7468 = vcmp.gt.f32.partialorder %v4534, 0.0
      %vm7469 = vcmp.gt.f32.partialorder %v4539, 0.0
      %vm7470 = vcmp.gt.f32.partialorder %v4542, 0.0
      %vm7471 = vcmp.gt.f32.partialorder %v4547, 0.0
      %vm7472 = vcmp.gt.f32.partialorder %v4550, 0.0
      %vm7473 = vcmp.gt.f32.partialorder %v4555, 0.0
      %vm7474 = vcmp.gt.f32.partialorder %v4558, 0.0
      %vm7475 = vcmp.gt.f32.partialorder %v4563, 0.0
      %vm7476 = vcmp.gt.f32.partialorder %v4566, 0.0
      %vm7477 = vcmp.gt.f32.partialorder %v4571, 0.0
      %vm7478 = vcmp.gt.f32.partialorder %v4574, 0.0
      %vm7479 = vcmp.gt.f32.partialorder %v4579, 0.0
      %vm7480 = vcmp.gt.f32.partialorder %v4582, 0.0
      %vm7481 = vcmp.gt.f32.partialorder %v4587, 0.0
      %vm7482 = vcmp.gt.f32.partialorder %v4590, 0.0
      %vm7483 = vcmp.gt.f32.partialorder %v4595, 0.0
      %vm7484 = vcmp.gt.f32.partialorder %v4598, 0.0
      %vm7485 = vcmp.gt.f32.partialorder %v4603, 0.0
      %vm7486 = vcmp.gt.f32.partialorder %v4606, 0.0
      %vm7487 = vcmp.gt.f32.partialorder %v4611, 0.0
      %vm7488 = vcmp.gt.f32.partialorder %v4614, 0.0
      %vm7489 = vcmp.gt.f32.partialorder %v4619, 0.0
      %vm7490 = vcmp.gt.f32.partialorder %v4622, 0.0
      %vm7491 = vcmp.gt.f32.partialorder %v4627, 0.0
      %vm7492 = vcmp.gt.f32.partialorder %v4630, 0.0
      %vm7493 = vcmp.gt.f32.partialorder %v4635, 0.0
      %vm7494 = vcmp.gt.f32.partialorder %v4638, 0.0
      %vm7495 = vcmp.gt.f32.partialorder %v4643, 0.0
      %vm7496 = vcmp.gt.f32.partialorder %v4646, 0.0
      %vm7497 = vcmp.gt.f32.partialorder %v4651, 0.0
      %vm7498 = vcmp.gt.f32.partialorder %v4654, 0.0
      %vm7499 = vcmp.gt.f32.partialorder %v4659, 0.0
      %vm7500 = vcmp.gt.f32.partialorder %v4662, 0.0
      %vm7501 = vcmp.gt.f32.partialorder %v4667, 0.0
      %vm7502 = vcmp.gt.f32.partialorder %v4670, 0.0
      %vm7503 = vcmp.gt.f32.partialorder %v4675, 0.0
      %vm7504 = vcmp.gt.f32.partialorder %v4678, 0.0
      %vm7505 = vcmp.gt.f32.partialorder %v4683, 0.0
      %vm7506 = vcmp.gt.f32.partialorder %v4686, 0.0
      %vm7507 = vcmp.gt.f32.partialorder %v4691, 0.0
      %vm7508 = vcmp.gt.f32.partialorder %v4694, 0.0
      %vm7509 = vcmp.gt.f32.partialorder %v4699, 0.0
      %vm7510 = vcmp.gt.f32.partialorder %v4702, 0.0
      %vm7511 = vcmp.gt.f32.partialorder %v4707, 0.0
      %vm7512 = vcmp.gt.f32.partialorder %v4710, 0.0
      %vm7513 = vcmp.gt.f32.partialorder %v4715, 0.0
      %vm7514 = vcmp.gt.f32.partialorder %v4718, 0.0
      %vm7515 = vcmp.gt.f32.partialorder %v4723, 0.0
      %vm7516 = vcmp.gt.f32.partialorder %v4726, 0.0
      %vm7517 = vcmp.gt.f32.partialorder %v4731, 0.0
      %vm7518 = vcmp.gt.f32.partialorder %v4734, 0.0
      %vm7519 = vcmp.gt.f32.partialorder %v4739, 0.0
      %vm7520 = vcmp.gt.f32.partialorder %v4742, 0.0
      %vm7521 = vcmp.gt.f32.partialorder %v4747, 0.0
      %vm7522 = vcmp.gt.f32.partialorder %v4750, 0.0
      %vm7523 = vcmp.gt.f32.partialorder %v4755, 0.0
      %vm7524 = vcmp.gt.f32.partialorder %v4758, 0.0
      %vm7525 = vcmp.gt.f32.partialorder %v4763, 0.0
      %vm7526 = vcmp.gt.f32.partialorder %v4766, 0.0
      %vm7527 = vcmp.gt.f32.partialorder %v4771, 0.0
      %vm7528 = vcmp.gt.f32.partialorder %v4774, 0.0
      %vm7529 = vcmp.gt.f32.partialorder %v4779, 0.0
      %vm7530 = vcmp.gt.f32.partialorder %v4782, 0.0
      %vm7531 = vcmp.gt.f32.partialorder %v4787, 0.0
      %vm7532 = vcmp.gt.f32.partialorder %v4790, 0.0
      %vm7533 = vcmp.gt.f32.partialorder %v4795, 0.0
      %vm7534 = vcmp.gt.f32.partialorder %v4798, 0.0
      %vm7535 = vcmp.gt.f32.partialorder %v4803, 0.0
      %vm7536 = vcmp.gt.f32.partialorder %v4806, 0.0
      %vm7537 = vcmp.gt.f32.partialorder %v4811, 0.0
      %vm7538 = vcmp.gt.f32.partialorder %v4814, 0.0
      %vm7539 = vcmp.gt.f32.partialorder %v4819, 0.0
      %vm7540 = vcmp.gt.f32.partialorder %v4822, 0.0
      %vm7541 = vcmp.gt.f32.partialorder %v4827, 0.0
      %vm7542 = vcmp.gt.f32.partialorder %v4830, 0.0
      %vm7543 = vcmp.gt.f32.partialorder %v4835, 0.0
      %vm7544 = vcmp.gt.f32.partialorder %v4838, 0.0
      %vm7545 = vcmp.gt.f32.partialorder %v4843, 0.0
      %vm7546 = vcmp.gt.f32.partialorder %v4846, 0.0
      %vm7547 = vcmp.gt.f32.partialorder %v4851, 0.0
      %vm7548 = vcmp.gt.f32.partialorder %v4854, 0.0
      %vm7549 = vcmp.gt.f32.partialorder %v4859, 0.0
      %vm7550 = vcmp.gt.f32.partialorder %v4862, 0.0
      %vm7551 = vcmp.gt.f32.partialorder %v4867, 0.0
      %vm7552 = vcmp.gt.f32.partialorder %v4870, 0.0
      %vm7553 = vcmp.gt.f32.partialorder %v4875, 0.0
      %vm7554 = vcmp.gt.f32.partialorder %v4878, 0.0
      %vm7555 = vcmp.gt.f32.partialorder %v4883, 0.0
      %vm7556 = vcmp.gt.f32.partialorder %v4886, 0.0
      %vm7557 = vcmp.gt.f32.partialorder %v4891, 0.0
      %vm7558 = vcmp.gt.f32.partialorder %v4894, 0.0
      %vm7559 = vcmp.gt.f32.partialorder %v4899, 0.0
      %vm7560 = vcmp.gt.f32.partialorder %v4902, 0.0
      %vm7561 = vcmp.gt.f32.partialorder %v4907, 0.0
      %vm7562 = vcmp.gt.f32.partialorder %v4910, 0.0
      %vm7563 = vcmp.gt.f32.partialorder %v4915, 0.0
      %vm7564 = vcmp.gt.f32.partialorder %v4918, 0.0
      %vm7565 = vcmp.gt.f32.partialorder %v4923, 0.0
      %vm7566 = vcmp.gt.f32.partialorder %v4926, 0.0
      %vm7567 = vcmp.gt.f32.partialorder %v4931, 0.0
      %vm7568 = vcmp.gt.f32.partialorder %v4934, 0.0
      %vm7569 = vcmp.gt.f32.partialorder %v4939, 0.0
      %vm7570 = vcmp.gt.f32.partialorder %v4942, 0.0
      %vm7571 = vcmp.gt.f32.partialorder %v4947, 0.0
      %vm7572 = vcmp.gt.f32.partialorder %v4950, 0.0
      %vm7573 = vcmp.gt.f32.partialorder %v4955, 0.0
      %vm7574 = vcmp.gt.f32.partialorder %v4958, 0.0
      %vm7575 = vcmp.gt.f32.partialorder %v4963, 0.0
      %vm7576 = vcmp.gt.f32.partialorder %v4966, 0.0
      %vm7577 = vcmp.gt.f32.partialorder %v4971, 0.0
      %vm7578 = vcmp.gt.f32.partialorder %v4974, 0.0
      %vm7579 = vcmp.gt.f32.partialorder %v4979, 0.0
      %vm7580 = vcmp.gt.f32.partialorder %v4982, 0.0
      %vm7581 = vcmp.gt.f32.partialorder %v4987, 0.0
      %vm7582 = vcmp.gt.f32.partialorder %v4990, 0.0
      %vm7583 = vcmp.gt.f32.partialorder %v4995, 0.0
      %vm7584 = vcmp.gt.f32.partialorder %v4998, 0.0
      %vm7585 = vcmp.gt.f32.partialorder %v5003, 0.0
      %vm7586 = vcmp.gt.f32.partialorder %v5006, 0.0
      %vm7587 = vcmp.gt.f32.partialorder %v5011, 0.0
      %vm7588 = vcmp.gt.f32.partialorder %v5014, 0.0
      %vm7589 = vcmp.gt.f32.partialorder %v5019, 0.0
      %vm7590 = vcmp.gt.f32.partialorder %v5022, 0.0
      %vm7591 = vcmp.gt.f32.partialorder %v5027, 0.0
      %vm7592 = vcmp.gt.f32.partialorder %v5030, 0.0
      %vm7593 = vcmp.gt.f32.partialorder %v5035, 0.0
      %vm7594 = vcmp.gt.f32.partialorder %v5038, 0.0
      %vm7595 = vcmp.gt.f32.partialorder %v5043, 0.0
      %vm7596 = vcmp.gt.f32.partialorder %v5046, 0.0
      %vm7597 = vcmp.gt.f32.partialorder %v5051, 0.0
      %vm7598 = vcmp.gt.f32.partialorder %v5054, 0.0
      %vm7599 = vcmp.gt.f32.partialorder %v5059, 0.0
      %vm7600 = vcmp.gt.f32.partialorder %v5062, 0.0
      %vm7601 = vcmp.gt.f32.partialorder %v5067, 0.0
      %vm7602 = vcmp.gt.f32.partialorder %v5070, 0.0
      %vm7603 = vcmp.gt.f32.partialorder %v5075, 0.0
      %vm7604 = vcmp.gt.f32.partialorder %v5078, 0.0
      %vm7605 = vcmp.gt.f32.partialorder %v5083, 0.0
      %vm7606 = vcmp.gt.f32.partialorder %v5086, 0.0
      %vm7607 = vcmp.gt.f32.partialorder %v5091, 0.0
      %vm7608 = vcmp.gt.f32.partialorder %v5094, 0.0
      %vm7609 = vcmp.gt.f32.partialorder %v5099, 0.0
      %vm7610 = vcmp.gt.f32.partialorder %v5102, 0.0
      %vm7611 = vcmp.gt.f32.partialorder %v5107, 0.0
      %vm7612 = vcmp.gt.f32.partialorder %v5110, 0.0
      %vm7613 = vcmp.gt.f32.partialorder %v5115, 0.0
      %vm7614 = vcmp.gt.f32.partialorder %v5118, 0.0
      %vm7615 = vcmp.gt.f32.partialorder %v5123, 0.0
      %vm7616 = vcmp.gt.f32.partialorder %v5126, 0.0
      %vm7617 = vcmp.gt.f32.partialorder %v5131, 0.0
      %vm7618 = vcmp.gt.f32.partialorder %v5134, 0.0
      %vm7619 = vcmp.gt.f32.partialorder %v5139, 0.0
      %vm7620 = vcmp.gt.f32.partialorder %v5142, 0.0
      %vm7621 = vcmp.gt.f32.partialorder %v5147, 0.0
      %vm7622 = vcmp.gt.f32.partialorder %v5150, 0.0
      %vm7623 = vcmp.gt.f32.partialorder %v5155, 0.0
      %vm7624 = vcmp.gt.f32.partialorder %v5158, 0.0
      %vm7625 = vcmp.gt.f32.partialorder %v5163, 0.0
      %vm7626 = vcmp.gt.f32.partialorder %v5166, 0.0
      %vm7627 = vcmp.gt.f32.partialorder %v5171, 0.0
      %vm7628 = vcmp.gt.f32.partialorder %v5174, 0.0
      %vm7629 = vcmp.gt.f32.partialorder %v5179, 0.0
      %vm7630 = vcmp.gt.f32.partialorder %v5182, 0.0
      %vm7631 = vcmp.gt.f32.partialorder %v5187, 0.0
      %vm7632 = vcmp.gt.f32.partialorder %v5190, 0.0
      %vm7633 = vcmp.gt.f32.partialorder %v5195, 0.0
      %vm7634 = vcmp.gt.f32.partialorder %v5198, 0.0
      %vm7635 = vcmp.gt.f32.partialorder %v5203, 0.0
      %vm7636 = vcmp.gt.f32.partialorder %v5206, 0.0
      %vm7637 = vcmp.gt.f32.partialorder %v5211, 0.0
      %vm7638 = vcmp.gt.f32.partialorder %v5214, 0.0
      %vm7639 = vcmp.gt.f32.partialorder %v5219, 0.0
      %vm7640 = vcmp.gt.f32.partialorder %v5222, 0.0
      %vm7641 = vcmp.gt.f32.partialorder %v5227, 0.0
      %vm7642 = vcmp.gt.f32.partialorder %v5230, 0.0
      %vm7643 = vcmp.gt.f32.partialorder %v5235, 0.0
      %vm7644 = vcmp.gt.f32.partialorder %v5238, 0.0
      %vm7645 = vcmp.gt.f32.partialorder %v5243, 0.0
      %vm7646 = vcmp.gt.f32.partialorder %v5246, 0.0
      %vm7647 = vcmp.gt.f32.partialorder %v5251, 0.0
      %vm7648 = vcmp.gt.f32.partialorder %v5254, 0.0
      %vm7649 = vcmp.gt.f32.partialorder %v5259, 0.0
      %vm7650 = vcmp.gt.f32.partialorder %v5262, 0.0
      %vm7651 = vcmp.gt.f32.partialorder %v5267, 0.0
      %vm7652 = vcmp.gt.f32.partialorder %v5270, 0.0
      %vm7653 = vcmp.gt.f32.partialorder %v5275, 0.0
      %vm7654 = vcmp.gt.f32.partialorder %v5278, 0.0
      %vm7655 = vcmp.gt.f32.partialorder %v5283, 0.0
      %vm7656 = vcmp.gt.f32.partialorder %v5286, 0.0
      %vm7657 = vcmp.gt.f32.partialorder %v5291, 0.0
      %vm7658 = vcmp.gt.f32.partialorder %v5294, 0.0
      %vm7659 = vcmp.gt.f32.partialorder %v5299, 0.0
      %vm7660 = vcmp.gt.f32.partialorder %v5302, 0.0
      %vm7661 = vcmp.gt.f32.partialorder %v5307, 0.0
      %vm7662 = vcmp.gt.f32.partialorder %v5310, 0.0
      %vm7663 = vcmp.gt.f32.partialorder %v5315, 0.0
      %vm7664 = vcmp.gt.f32.partialorder %v5318, 0.0
      %vm7665 = vcmp.gt.f32.partialorder %v5323, 0.0
      %vm7666 = vcmp.gt.f32.partialorder %v5326, 0.0
      %vm7667 = vcmp.gt.f32.partialorder %v5331, 0.0
      %vm7668 = vcmp.gt.f32.partialorder %v5334, 0.0
      %vm7669 = vcmp.gt.f32.partialorder %v5339, 0.0
      %vm7670 = vcmp.gt.f32.partialorder %v5342, 0.0
      %vm7671 = vcmp.gt.f32.partialorder %v5347, 0.0
      %vm7672 = vcmp.gt.f32.partialorder %v5350, 0.0
      %vm7673 = vcmp.gt.f32.partialorder %v5355, 0.0
      %vm7674 = vcmp.gt.f32.partialorder %v5358, 0.0
      %vm7675 = vcmp.gt.f32.partialorder %v5363, 0.0
      %vm7676 = vcmp.gt.f32.partialorder %v5366, 0.0
      %vm7677 = vcmp.gt.f32.partialorder %v5371, 0.0
      %vm7678 = vcmp.gt.f32.partialorder %v5374, 0.0
      %vm7679 = vcmp.gt.f32.partialorder %v5379, 0.0
      %vm7680 = vcmp.gt.f32.partialorder %v5382, 0.0
      %vm7681 = vcmp.gt.f32.partialorder %v5387, 0.0
      %vm7682 = vcmp.gt.f32.partialorder %v5390, 0.0
      %vm7683 = vcmp.gt.f32.partialorder %v5395, 0.0
      %vm7684 = vcmp.gt.f32.partialorder %v5398, 0.0
      %vm7685 = vcmp.gt.f32.partialorder %v5403, 0.0
      %vm7686 = vcmp.gt.f32.partialorder %v5406, 0.0
      %vm7687 = vcmp.gt.f32.partialorder %v5411, 0.0
      %vm7688 = vcmp.gt.f32.partialorder %v5414, 0.0
      %vm7689 = vcmp.gt.f32.partialorder %v5419, 0.0
      %vm7690 = vcmp.gt.f32.partialorder %v5422, 0.0
      %vm7691 = vcmp.gt.f32.partialorder %v5427, 0.0
      %vm7692 = vcmp.gt.f32.partialorder %v5430, 0.0
      %vm7693 = vcmp.gt.f32.partialorder %v5435, 0.0
      %vm7694 = vcmp.gt.f32.partialorder %v5438, 0.0
      %vm7695 = vcmp.gt.f32.partialorder %v5443, 0.0
      %vm7696 = vcmp.gt.f32.partialorder %v5446, 0.0
      %vm7697 = vcmp.gt.f32.partialorder %v5451, 0.0
      %vm7698 = vcmp.gt.f32.partialorder %v5454, 0.0
      %vm7699 = vcmp.gt.f32.partialorder %v5459, 0.0
      %vm7700 = vcmp.gt.f32.partialorder %v5462, 0.0
      %vm7701 = vcmp.gt.f32.partialorder %v5467, 0.0
      %vm7702 = vcmp.gt.f32.partialorder %v5470, 0.0
      %vm7703 = vcmp.gt.f32.partialorder %v5475, 0.0
      %vm7704 = vcmp.gt.f32.partialorder %v5478, 0.0
      %vm7705 = vcmp.gt.f32.partialorder %v5483, 0.0
      %vm7706 = vcmp.gt.f32.partialorder %v5486, 0.0
      %vm7707 = vcmp.gt.f32.partialorder %v5491, 0.0
      %vm7708 = vcmp.gt.f32.partialorder %v5494, 0.0
      %vm7709 = vcmp.gt.f32.partialorder %v5499, 0.0
      %vm7710 = vcmp.gt.f32.partialorder %v5502, 0.0
      %vm7711 = vcmp.gt.f32.partialorder %v5507, 0.0
      %vm7712 = vcmp.gt.f32.partialorder %v5510, 0.0
      %vm7713 = vcmp.gt.f32.partialorder %v5515, 0.0
      %vm7714 = vcmp.gt.f32.partialorder %v5518, 0.0
      %vm7715 = vcmp.gt.f32.partialorder %v5523, 0.0
      %vm7716 = vcmp.gt.f32.partialorder %v5526, 0.0
      %vm7717 = vcmp.gt.f32.partialorder %v5531, 0.0
      %vm7718 = vcmp.gt.f32.partialorder %v5534, 0.0
      %vm7719 = vcmp.gt.f32.partialorder %v5539, 0.0
      %vm7720 = vcmp.gt.f32.partialorder %v5542, 0.0
      %vm7721 = vcmp.gt.f32.partialorder %v5547, 0.0
      %vm7722 = vcmp.gt.f32.partialorder %v5550, 0.0
      %vm7723 = vcmp.gt.f32.partialorder %v5555, 0.0
      %vm7724 = vcmp.gt.f32.partialorder %v5558, 0.0
      %vm7725 = vcmp.gt.f32.partialorder %v5563, 0.0
      %vm7726 = vcmp.gt.f32.partialorder %v5566, 0.0
      %vm7727 = vcmp.gt.f32.partialorder %v5571, 0.0
      %vm7728 = vcmp.gt.f32.partialorder %v5574, 0.0
      %vm7729 = vcmp.gt.f32.partialorder %v5579, 0.0
      %vm7730 = vcmp.gt.f32.partialorder %v5582, 0.0
      %vm7731 = vcmp.gt.f32.partialorder %v5587, 0.0
      %vm7732 = vcmp.gt.f32.partialorder %v5590, 0.0
      %vm7733 = vcmp.gt.f32.partialorder %v5595, 0.0
      %vm7734 = vcmp.gt.f32.partialorder %v5598, 0.0
      %vm7735 = vcmp.gt.f32.partialorder %v5603, 0.0
      %vm7736 = vcmp.gt.f32.partialorder %v5606, 0.0
      %vm7737 = vcmp.gt.f32.partialorder %v5611, 0.0
      %vm7738 = vcmp.gt.f32.partialorder %v5614, 0.0
      %vm7739 = vcmp.gt.f32.partialorder %v5619, 0.0
      %vm7740 = vcmp.gt.f32.partialorder %v5622, 0.0
      %vm7741 = vcmp.gt.f32.partialorder %v5627, 0.0
      %vm7742 = vcmp.gt.f32.partialorder %v5630, 0.0
      %vm7743 = vcmp.gt.f32.partialorder %v5635, 0.0
      %vm7744 = vcmp.gt.f32.partialorder %v5638, 0.0
      %vm7745 = vcmp.gt.f32.partialorder %v5643, 0.0
      %vm7746 = vcmp.gt.f32.partialorder %v5646, 0.0
      %vm7747 = vcmp.gt.f32.partialorder %v5651, 0.0
      %vm7748 = vcmp.gt.f32.partialorder %v5654, 0.0
      %vm7749 = vcmp.gt.f32.partialorder %v5659, 0.0
      %vm7750 = vcmp.gt.f32.partialorder %v5662, 0.0
      %vm7751 = vcmp.gt.f32.partialorder %v5667, 0.0
      %vm7752 = vcmp.gt.f32.partialorder %v5670, 0.0
      %vm7753 = vcmp.gt.f32.partialorder %v5675, 0.0
      %vm7754 = vcmp.gt.f32.partialorder %v5678, 0.0
      %vm7755 = vcmp.gt.f32.partialorder %v5683, 0.0
      %vm7756 = vcmp.gt.f32.partialorder %v5686, 0.0
      %vm7757 = vcmp.gt.f32.partialorder %v5691, 0.0
      %vm7758 = vcmp.gt.f32.partialorder %v5694, 0.0
      %vm7759 = vcmp.gt.f32.partialorder %v5699, 0.0
      %vm7760 = vcmp.gt.f32.partialorder %v5702, 0.0
      %vm7761 = vcmp.gt.f32.partialorder %v5707, 0.0
      %vm7762 = vcmp.gt.f32.partialorder %v5710, 0.0
      %vm7763 = vcmp.gt.f32.partialorder %v5715, 0.0
      %vm7764 = vcmp.gt.f32.partialorder %v5718, 0.0
      %vm7765 = vcmp.gt.f32.partialorder %v5723, 0.0
      %vm7766 = vcmp.gt.f32.partialorder %v5726, 0.0
      %vm7767 = vcmp.gt.f32.partialorder %v5731, 0.0
      %vm7768 = vcmp.gt.f32.partialorder %v5734, 0.0
      %vm7769 = vcmp.gt.f32.partialorder %v5739, 0.0
      %vm7770 = vcmp.gt.f32.partialorder %v5742, 0.0
      %vm7771 = vcmp.gt.f32.partialorder %v5747, 0.0
      %vm7772 = vcmp.gt.f32.partialorder %v5750, 0.0
      %vm7773 = vcmp.gt.f32.partialorder %v5755, 0.0
      %vm7774 = vcmp.gt.f32.partialorder %v5758, 0.0
      %vm7775 = vcmp.gt.f32.partialorder %v5763, 0.0
      %vm7776 = vcmp.gt.f32.partialorder %v5766, 0.0
      %vm7777 = vcmp.gt.f32.partialorder %v5771, 0.0
      %vm7778 = vcmp.gt.f32.partialorder %v5774, 0.0
      %vm7779 = vcmp.gt.f32.partialorder %v5779, 0.0
      %vm7780 = vcmp.gt.f32.partialorder %v5782, 0.0
      %vm7781 = vcmp.gt.f32.partialorder %v5787, 0.0
      %vm7782 = vcmp.gt.f32.partialorder %v5790, 0.0
      %vm7783 = vcmp.gt.f32.partialorder %v5795, 0.0
      %vm7784 = vcmp.gt.f32.partialorder %v5798, 0.0
      %vm7785 = vcmp.gt.f32.partialorder %v5803, 0.0
      %vm7786 = vcmp.gt.f32.partialorder %v5806, 0.0
      %vm7787 = vcmp.gt.f32.partialorder %v5811, 0.0
      %vm7788 = vcmp.gt.f32.partialorder %v5814, 0.0
      %vm7789 = vcmp.gt.f32.partialorder %v5819, 0.0
      %vm7790 = vcmp.gt.f32.partialorder %v5822, 0.0
      %vm7791 = vcmp.gt.f32.partialorder %v5827, 0.0
      %vm7792 = vcmp.gt.f32.partialorder %v5830, 0.0
      %vm7793 = vcmp.gt.f32.partialorder %v5835, 0.0
      %vm7794 = vcmp.gt.f32.partialorder %v5838, 0.0
      %vm7795 = vcmp.gt.f32.partialorder %v5843, 0.0
      %vm7796 = vcmp.gt.f32.partialorder %v5846, 0.0
      %vm7797 = vcmp.gt.f32.partialorder %v5851, 0.0
      %vm7798 = vcmp.gt.f32.partialorder %v5854, 0.0
      %vm7799 = vcmp.gt.f32.partialorder %v5859, 0.0
      %vm7800 = vcmp.gt.f32.partialorder %v5862, 0.0
      %vm7801 = vcmp.gt.f32.partialorder %v5867, 0.0
      %vm7802 = vcmp.gt.f32.partialorder %v5870, 0.0
      %vm7803 = vcmp.gt.f32.partialorder %v5875, 0.0
      %vm7804 = vcmp.gt.f32.partialorder %v5878, 0.0
      %vm7805 = vcmp.gt.f32.partialorder %v5883, 0.0
      %vm7806 = vcmp.gt.f32.partialorder %v5886, 0.0
      %vm7807 = vcmp.gt.f32.partialorder %v5891, 0.0
      %vm7808 = vcmp.gt.f32.partialorder %v5894, 0.0
      %vm7809 = vcmp.gt.f32.partialorder %v5899, 0.0
      %vm7810 = vcmp.gt.f32.partialorder %v5902, 0.0
      %vm7811 = vcmp.gt.f32.partialorder %v5907, 0.0
      %vm7812 = vcmp.gt.f32.partialorder %v5910, 0.0
      %vm7813 = vcmp.gt.f32.partialorder %v5915, 0.0
      %vm7814 = vcmp.gt.f32.partialorder %v5918, 0.0
      %vm7815 = vcmp.gt.f32.partialorder %v5923, 0.0
      %vm7816 = vcmp.gt.f32.partialorder %v5926, 0.0
      %vm7817 = vcmp.gt.f32.partialorder %v5931, 0.0
      %vm7818 = vcmp.gt.f32.partialorder %v5934, 0.0
      %vm7819 = vcmp.gt.f32.partialorder %v5939, 0.0
      %vm7820 = vcmp.gt.f32.partialorder %v5942, 0.0
      %vm7821 = vcmp.gt.f32.partialorder %v5947, 0.0
      %vm7822 = vcmp.gt.f32.partialorder %v5950, 0.0
      %vm7823 = vcmp.gt.f32.partialorder %v5955, 0.0
      %vm7824 = vcmp.gt.f32.partialorder %v5958, 0.0
      %vm7825 = vcmp.gt.f32.partialorder %v5963, 0.0
      %vm7826 = vcmp.gt.f32.partialorder %v5966, 0.0
      %vm7827 = vcmp.gt.f32.partialorder %v5971, 0.0
      %vm7828 = vcmp.gt.f32.partialorder %v5974, 0.0
      %vm7829 = vcmp.gt.f32.partialorder %v5979, 0.0
      %vm7830 = vcmp.gt.f32.partialorder %v5982, 0.0
      %vm7831 = vcmp.gt.f32.partialorder %v5987, 0.0
      %vm7832 = vcmp.gt.f32.partialorder %v5990, 0.0
      %vm7833 = vcmp.gt.f32.partialorder %v5995, 0.0
      %vm7834 = vcmp.gt.f32.partialorder %v5998, 0.0
      %vm7835 = vcmp.gt.f32.partialorder %v6003, 0.0
      %vm7836 = vcmp.gt.f32.partialorder %v6006, 0.0
      %vm7837 = vcmp.gt.f32.partialorder %v6011, 0.0
      %vm7838 = vcmp.gt.f32.partialorder %v6014, 0.0
      %vm7839 = vcmp.gt.f32.partialorder %v6019, 0.0
      %vm7840 = vcmp.gt.f32.partialorder %v6022, 0.0
      %vm7841 = vcmp.gt.f32.partialorder %v6027, 0.0
      %vm7842 = vcmp.gt.f32.partialorder %v6030, 0.0
      %vm7843 = vcmp.gt.f32.partialorder %v6035, 0.0
      %vm7844 = vcmp.gt.f32.partialorder %v6038, 0.0
      %vm7845 = vcmp.gt.f32.partialorder %v6043, 0.0
      %vm7846 = vcmp.gt.f32.partialorder %v6046, 0.0
      %vm7847 = vcmp.gt.f32.partialorder %v6051, 0.0
      %vm7848 = vcmp.gt.f32.partialorder %v6054, 0.0
      %vm7849 = vcmp.gt.f32.partialorder %v6059, 0.0
      %vm7850 = vcmp.gt.f32.partialorder %v6062, 0.0
      %vm7851 = vcmp.gt.f32.partialorder %v6067, 0.0
      %vm7852 = vcmp.gt.f32.partialorder %v6070, 0.0
      %vm7853 = vcmp.gt.f32.partialorder %v6075, 0.0
      %vm7854 = vcmp.gt.f32.partialorder %v6078, 0.0
      %vm7855 = vcmp.gt.f32.partialorder %v6083, 0.0
      %vm7856 = vcmp.gt.f32.partialorder %v6086, 0.0
      %vm7857 = vcmp.gt.f32.partialorder %v6091, 0.0
      %vm7858 = vcmp.gt.f32.partialorder %v6094, 0.0
      %vm7859 = vcmp.gt.f32.partialorder %v6099, 0.0
      %vm7860 = vcmp.gt.f32.partialorder %v6102, 0.0
      %vm7861 = vcmp.gt.f32.partialorder %v6107, 0.0
      %vm7862 = vcmp.gt.f32.partialorder %v6110, 0.0
      %vm7863 = vcmp.gt.f32.partialorder %v6115, 0.0
      %vm7864 = vcmp.gt.f32.partialorder %v6118, 0.0
      %vm7865 = vcmp.gt.f32.partialorder %v6123, 0.0
      %vm7866 = vcmp.gt.f32.partialorder %v6126, 0.0
      %vm7867 = vcmp.gt.f32.partialorder %v6131, 0.0
      %vm7868 = vcmp.gt.f32.partialorder %v6134, 0.0
      %vm7869 = vcmp.gt.f32.partialorder %v6139, 0.0
      %vm7870 = vcmp.gt.f32.partialorder %v6142, 0.0
      %vm7871 = vcmp.gt.f32.partialorder %v6147, 0.0
      %vm7872 = vcmp.gt.f32.partialorder %v6150, 0.0
      %vm7873 = vcmp.gt.f32.partialorder %v6155, 0.0
      %vm7874 = vcmp.gt.f32.partialorder %v6158, 0.0
      %vm7875 = vcmp.gt.f32.partialorder %v6163, 0.0
      %vm7876 = vcmp.gt.f32.partialorder %v6166, 0.0
      %vm7877 = vcmp.gt.f32.partialorder %v6171, 0.0
      %vm7878 = vcmp.gt.f32.partialorder %v6174, 0.0
      %vm7879 = vcmp.gt.f32.partialorder %v6179, 0.0
      %vm7880 = vcmp.gt.f32.partialorder %v6182, 0.0
      %vm7881 = vcmp.gt.f32.partialorder %v6187, 0.0
      %vm7882 = vcmp.gt.f32.partialorder %v6190, 0.0
      %vm7883 = vcmp.gt.f32.partialorder %v6195, 0.0
      %vm7884 = vcmp.gt.f32.partialorder %v6198, 0.0
      %vm7885 = vcmp.gt.f32.partialorder %v6203, 0.0
      %vm7886 = vcmp.gt.f32.partialorder %v6206, 0.0
      %vm7887 = vcmp.gt.f32.partialorder %v6211, 0.0
      %vm7888 = vcmp.gt.f32.partialorder %v6214, 0.0
      %vm7889 = vcmp.gt.f32.partialorder %v6219, 0.0
      %vm7890 = vcmp.gt.f32.partialorder %v6222, 0.0
      %vm7891 = vcmp.gt.f32.partialorder %v6227, 0.0
      %vm7892 = vcmp.gt.f32.partialorder %v6230, 0.0
      %vm7893 = vcmp.gt.f32.partialorder %v6235, 0.0
      %vm7894 = vcmp.gt.f32.partialorder %v6238, 0.0
      %vm7895 = vcmp.gt.f32.partialorder %v6243, 0.0
      %vm7896 = vcmp.gt.f32.partialorder %v6246, 0.0
      %vm7897 = vcmp.gt.f32.partialorder %v6251, 0.0
      %vm7898 = vcmp.gt.f32.partialorder %v6254, 0.0
      %vm7899 = vcmp.gt.f32.partialorder %v6259, 0.0
      %vm7900 = vcmp.gt.f32.partialorder %v6262, 0.0
      %vm7901 = vcmp.gt.f32.partialorder %v6267, 0.0
      %vm7902 = vcmp.gt.f32.partialorder %v6270, 0.0
      %vm7903 = vcmp.gt.f32.partialorder %v6275, 0.0
      %vm7904 = vcmp.gt.f32.partialorder %v6278, 0.0
      %vm7905 = vcmp.gt.f32.partialorder %v6283, 0.0
      %vm7906 = vcmp.gt.f32.partialorder %v6286, 0.0
      %vm7907 = vcmp.gt.f32.partialorder %v6291, 0.0
      %vm7908 = vcmp.gt.f32.partialorder %v6294, 0.0
      %vm7909 = vcmp.gt.f32.partialorder %v6299, 0.0
      %vm7910 = vcmp.gt.f32.partialorder %v6302, 0.0
      %vm7911 = vcmp.gt.f32.partialorder %v6307, 0.0
      %vm7912 = vcmp.gt.f32.partialorder %v6310, 0.0
      %vm7913 = vcmp.gt.f32.partialorder %v6315, 0.0
      %vm7914 = vcmp.gt.f32.partialorder %v6318, 0.0
      %vm7915 = vcmp.gt.f32.partialorder %v6323, 0.0
      %vm7916 = vcmp.gt.f32.partialorder %v6326, 0.0
      %vm7917 = vcmp.gt.f32.partialorder %v6331, 0.0
      %vm7918 = vcmp.gt.f32.partialorder %v6334, 0.0
      %vm7919 = vcmp.gt.f32.partialorder %v6339, 0.0
      %vm7920 = vcmp.gt.f32.partialorder %v6342, 0.0
      %vm7921 = vcmp.gt.f32.partialorder %v6347, 0.0
      %vm7922 = vcmp.gt.f32.partialorder %v6350, 0.0
      %vm7923 = vcmp.gt.f32.partialorder %v6355, 0.0
      %vm7924 = vcmp.gt.f32.partialorder %v6358, 0.0
      %vm7925 = vcmp.gt.f32.partialorder %v6363, 0.0
      %vm7926 = vcmp.gt.f32.partialorder %v6366, 0.0
      %vm7927 = vcmp.gt.f32.partialorder %v6371, 0.0
      %vm7928 = vcmp.gt.f32.partialorder %v6374, 0.0
      %vm7929 = vcmp.gt.f32.partialorder %v6379, 0.0
      %vm7930 = vcmp.gt.f32.partialorder %v6382, 0.0
      %vm7931 = vcmp.gt.f32.partialorder %v6387, 0.0
      %vm7932 = vcmp.gt.f32.partialorder %v6390, 0.0
      %vm7933 = vcmp.gt.f32.partialorder %v6395, 0.0
      %vm7934 = vcmp.gt.f32.partialorder %v6398, 0.0
      %vm7935 = vcmp.gt.f32.partialorder %v6403, 0.0
      %vm7936 = vcmp.gt.f32.partialorder %v6406, 0.0
      %vm7937 = vcmp.gt.f32.partialorder %v6411, 0.0
      %vm7938 = vcmp.gt.f32.partialorder %v6414, 0.0
      %vm7939 = vcmp.gt.f32.partialorder %v6419, 0.0
      %vm7940 = vcmp.gt.f32.partialorder %v6422, 0.0
      %vm7941 = vcmp.gt.f32.partialorder %v6427, 0.0
      %vm7942 = vcmp.gt.f32.partialorder %v6430, 0.0
      %vm7943 = vcmp.gt.f32.partialorder %v6435, 0.0
      %vm7944 = vcmp.gt.f32.partialorder %v6438, 0.0
      %vm7945 = vcmp.gt.f32.partialorder %v6443, 0.0
      %vm7946 = vcmp.gt.f32.partialorder %v6446, 0.0
      %vm7947 = vcmp.gt.f32.partialorder %v6451, 0.0
      %vm7948 = vcmp.gt.f32.partialorder %v6454, 0.0
      %vm7949 = vcmp.gt.f32.partialorder %v6459, 0.0
      %vm7950 = vcmp.gt.f32.partialorder %v6462, 0.0
      %vm7951 = vcmp.gt.f32.partialorder %v6467, 0.0
      %vm7952 = vcmp.gt.f32.partialorder %v6470, 0.0
      %vm7953 = vcmp.gt.f32.partialorder %v6475, 0.0
      %vm7954 = vcmp.gt.f32.partialorder %v6478, 0.0
      %vm7955 = vcmp.gt.f32.partialorder %v6483, 0.0
      %vm7956 = vcmp.gt.f32.partialorder %v6486, 0.0
      %vm7957 = vcmp.gt.f32.partialorder %v6491, 0.0
      %vm7958 = vcmp.gt.f32.partialorder %v6494, 0.0
      %vm7959 = vcmp.gt.f32.partialorder %v6499, 0.0
      %vm7960 = vcmp.gt.f32.partialorder %v6502, 0.0
      %vm7961 = vcmp.gt.f32.partialorder %v6507, 0.0
      %vm7962 = vcmp.gt.f32.partialorder %v6510, 0.0
      %vm7963 = vcmp.gt.f32.partialorder %v6515, 0.0
      %vm7964 = vcmp.gt.f32.partialorder %v6518, 0.0
      %vm7965 = vcmp.gt.f32.partialorder %v6523, 0.0
      %vm7966 = vcmp.gt.f32.partialorder %v6526, 0.0
      %vm7967 = vcmp.gt.f32.partialorder %v6531, 0.0
      %vm7968 = vcmp.gt.f32.partialorder %v6534, 0.0
      %vm7969 = vcmp.gt.f32.partialorder %v6539, 0.0
      %vm7970 = vcmp.gt.f32.partialorder %v6542, 0.0
      %vm7971 = vcmp.gt.f32.partialorder %v6547, 0.0
      %vm7972 = vcmp.gt.f32.partialorder %v6550, 0.0
      %vm7973 = vcmp.gt.f32.partialorder %v6555, 0.0
      %vm7974 = vcmp.gt.f32.partialorder %v6558, 0.0
      %vm7975 = vcmp.gt.f32.partialorder %v6563, 0.0
      %vm7976 = vcmp.gt.f32.partialorder %v6566, 0.0
      %vm7977 = vcmp.gt.f32.partialorder %v6571, 0.0
      %vm7978 = vcmp.gt.f32.partialorder %v6574, 0.0
      %vm7979 = vcmp.gt.f32.partialorder %v6579, 0.0
      %vm7980 = vcmp.gt.f32.partialorder %v6582, 0.0
      %vm7981 = vcmp.gt.f32.partialorder %v6587, 0.0
      %vm7982 = vcmp.gt.f32.partialorder %v6590, 0.0
      %vm7983 = vcmp.gt.f32.partialorder %v6595, 0.0
      %vm7984 = vcmp.gt.f32.partialorder %v6598, 0.0
      %vm7985 = vcmp.gt.f32.partialorder %v6603, 0.0
      %vm7986 = vcmp.gt.f32.partialorder %v6606, 0.0
      %vm7987 = vcmp.gt.f32.partialorder %v6611, 0.0
      %vm7988 = vcmp.gt.f32.partialorder %v6614, 0.0
      %vm7989 = vcmp.gt.f32.partialorder %v6619, 0.0
      %vm7990 = vcmp.gt.f32.partialorder %v6622, 0.0
      %vm7991 = vcmp.gt.f32.partialorder %v6627, 0.0
      %vm7992 = vcmp.gt.f32.partialorder %v6630, 0.0
      %vm7993 = vcmp.gt.f32.partialorder %v6635, 0.0
      %vm7994 = vcmp.gt.f32.partialorder %v6638, 0.0
      %vm7995 = vcmp.gt.f32.partialorder %v6643, 0.0
      %vm7996 = vcmp.gt.f32.partialorder %v6646, 0.0
      %vm7997 = vcmp.gt.f32.partialorder %v6651, 0.0
      %vm7998 = vcmp.gt.f32.partialorder %v6654, 0.0
      %vm7999 = vcmp.gt.f32.partialorder %v6659, 0.0
      %vm8000 = vcmp.gt.f32.partialorder %v6662, 0.0
      %vm8001 = vcmp.gt.f32.partialorder %v6667, 0.0
      %vm8002 = vcmp.gt.f32.partialorder %v6670, 0.0
      %vm8003 = vcmp.gt.f32.partialorder %v6675, 0.0
      %vm8004 = vcmp.gt.f32.partialorder %v6678, 0.0
      %vm8005 = vcmp.gt.f32.partialorder %v6683, 0.0
      %vm8006 = vcmp.gt.f32.partialorder %v6686, 0.0
      %vm8007 = vcmp.gt.f32.partialorder %v6691, 0.0
      %vm8008 = vcmp.gt.f32.partialorder %v6694, 0.0
      %vm8009 = vcmp.gt.f32.partialorder %v6699, 0.0
      %vm8010 = vcmp.gt.f32.partialorder %v6702, 0.0
      %vm8011 = vcmp.gt.f32.partialorder %v6707, 0.0
      %vm8012 = vcmp.gt.f32.partialorder %v6710, 0.0
      %vm8013 = vcmp.gt.f32.partialorder %v6715, 0.0
      %vm8014 = vcmp.gt.f32.partialorder %v6718, 0.0
      %vm8015 = vcmp.gt.f32.partialorder %v6723, 0.0
      %vm8016 = vcmp.gt.f32.partialorder %v6726, 0.0
      %vm8017 = vcmp.gt.f32.partialorder %v6731, 0.0
      %vm8018 = vcmp.gt.f32.partialorder %v6734, 0.0
      %vm8019 = vcmp.gt.f32.partialorder %v6739, 0.0
      %vm8020 = vcmp.gt.f32.partialorder %v6742, 0.0
      %vm8021 = vcmp.gt.f32.partialorder %v6747, 0.0
      %vm8022 = vcmp.gt.f32.partialorder %v6750, 0.0
      %vm8023 = vcmp.gt.f32.partialorder %v6755, 0.0
      %vm8024 = vcmp.gt.f32.partialorder %v6758, 0.0
      %vm8025 = vcmp.gt.f32.partialorder %v6763, 0.0
      %vm8026 = vcmp.gt.f32.partialorder %v6766, 0.0
      %vm8027 = vcmp.gt.f32.partialorder %v6771, 0.0
      %vm8028 = vcmp.gt.f32.partialorder %v6774, 0.0
      %vm8029 = vcmp.gt.f32.partialorder %v6779, 0.0
      %vm8030 = vcmp.gt.f32.partialorder %v6782, 0.0
      %vm8031 = vcmp.gt.f32.partialorder %v6787, 0.0
      %vm8032 = vcmp.gt.f32.partialorder %v6790, 0.0
      %vm8033 = vcmp.gt.f32.partialorder %v6795, 0.0
      %vm8034 = vcmp.gt.f32.partialorder %v6798, 0.0
      %vm8035 = vcmp.gt.f32.partialorder %v6803, 0.0
      %vm8036 = vcmp.gt.f32.partialorder %v6806, 0.0
      %vm8037 = vcmp.gt.f32.partialorder %v6811, 0.0
      %vm8038 = vcmp.gt.f32.partialorder %v6814, 0.0
      %vm8039 = vcmp.gt.f32.partialorder %v6819, 0.0
      %vm8040 = vcmp.gt.f32.partialorder %v6822, 0.0
      %vm8041 = vcmp.gt.f32.partialorder %v6827, 0.0
      %vm8042 = vcmp.gt.f32.partialorder %v6830, 0.0
      %vm8043 = vcmp.gt.f32.partialorder %v6835, 0.0
      %vm8044 = vcmp.gt.f32.partialorder %v6838, 0.0
      %vm8045 = vcmp.gt.f32.partialorder %v6843, 0.0
      %vm8046 = vcmp.gt.f32.partialorder %v6846, 0.0
      %vm8047 = vcmp.gt.f32.partialorder %v6851, 0.0
      %vm8048 = vcmp.gt.f32.partialorder %v6854, 0.0
      %vm8049 = vcmp.gt.f32.partialorder %v6859, 0.0
      %vm8050 = vcmp.gt.f32.partialorder %v6862, 0.0
      %vm8051 = vcmp.gt.f32.partialorder %v6867, 0.0
      %vm8052 = vcmp.gt.f32.partialorder %v6870, 0.0
      %vm8053 = vcmp.gt.f32.partialorder %v6875, 0.0
      %vm8054 = vcmp.gt.f32.partialorder %v6878, 0.0
      %vm8055 = vcmp.gt.f32.partialorder %v6883, 0.0
      %vm8056 = vcmp.gt.f32.partialorder %v6886, 0.0
      %vm8057 = vcmp.gt.f32.partialorder %v6891, 0.0
      %vm8058 = vcmp.gt.f32.partialorder %v6894, 0.0
      %vm8059 = vcmp.gt.f32.partialorder %v6899, 0.0
      %vm8060 = vcmp.gt.f32.partialorder %v6902, 0.0
      %vm8061 = vcmp.gt.f32.partialorder %v6907, 0.0
      %vm8062 = vcmp.gt.f32.partialorder %v6910, 0.0
      %vm8063 = vcmp.gt.f32.partialorder %v6915, 0.0
      %vm8064 = vcmp.gt.f32.partialorder %v6918, 0.0
      %vm8065 = vcmp.gt.f32.partialorder %v6923, 0.0
      %vm8066 = vcmp.gt.f32.partialorder %v6926, 0.0
      %vm8067 = vcmp.gt.f32.partialorder %v6931, 0.0
      %vm8068 = vcmp.gt.f32.partialorder %v6934, 0.0
      %vm8069 = vcmp.gt.f32.partialorder %v6939, 0.0
      %vm8070 = vcmp.gt.f32.partialorder %v6942, 0.0
      %vm8071 = vcmp.gt.f32.partialorder %v6947, 0.0
      %vm8072 = vcmp.gt.f32.partialorder %v6950, 0.0
      %vm8073 = vcmp.gt.f32.partialorder %v6955, 0.0
      %vm8074 = vcmp.gt.f32.partialorder %v6958, 0.0
      %vm8075 = vcmp.gt.f32.partialorder %v6963, 0.0
      %vm8076 = vcmp.gt.f32.partialorder %v6966, 0.0
      %vm8077 = vcmp.gt.f32.partialorder %v6971, 0.0
      %vm8078 = vcmp.gt.f32.partialorder %v6974, 0.0
      %vm8079 = vcmp.gt.f32.partialorder %v6979, 0.0
      %vm8080 = vcmp.gt.f32.partialorder %v6982, 0.0
      %vm8081 = vcmp.gt.f32.partialorder %v6987, 0.0
      %vm8082 = vcmp.gt.f32.partialorder %v6990, 0.0
      %vm8083 = vcmp.gt.f32.partialorder %v6995, 0.0
      %vm8084 = vcmp.gt.f32.partialorder %v6998, 0.0
      %vm8085 = vcmp.gt.f32.partialorder %v7003, 0.0
      %vm8086 = vcmp.gt.f32.partialorder %v7006, 0.0
      %vm8087 = vcmp.gt.f32.partialorder %v7011, 0.0
      %vm8088 = vcmp.gt.f32.partialorder %v7014, 0.0
      %vm8089 = vcmp.gt.f32.partialorder %v7019, 0.0
      %vm8090 = vcmp.gt.f32.partialorder %v7022, 0.0
      %vm8091 = vcmp.gt.f32.partialorder %v7027, 0.0
      %vm8092 = vcmp.gt.f32.partialorder %v7030, 0.0
      %vm8093 = vcmp.gt.f32.partialorder %v7035, 0.0
      %vm8094 = vcmp.gt.f32.partialorder %v7038, 0.0
      %vm8095 = vcmp.gt.f32.partialorder %v7043, 0.0
      %vm8096 = vcmp.gt.f32.partialorder %v7046, 0.0
      %vm8097 = vcmp.gt.f32.partialorder %v7051, 0.0
      %vm8098 = vcmp.gt.f32.partialorder %v7054, 0.0
      %vm8099 = vcmp.gt.f32.partialorder %v7059, 0.0
      %vm8100 = vcmp.gt.f32.partialorder %v7062, 0.0
      %vm8101 = vcmp.gt.f32.partialorder %v7067, 0.0
      %vm8102 = vcmp.gt.f32.partialorder %v7070, 0.0
      %vm8103 = vcmp.gt.f32.partialorder %v7075, 0.0
      %vm8104 = vcmp.gt.f32.partialorder %v7078, 0.0
      %vm8105 = vcmp.gt.f32.partialorder %v7083, 0.0
      %vm8106 = vcmp.gt.f32.partialorder %v7086, 0.0
      %vm8107 = vcmp.gt.f32.partialorder %v7091, 0.0
      %vm8108 = vcmp.gt.f32.partialorder %v7094, 0.0
      %vm8109 = vcmp.gt.f32.partialorder %v7099, 0.0
      %vm8110 = vcmp.gt.f32.partialorder %v7102, 0.0
      %vm8111 = vcmp.gt.f32.partialorder %v7107, 0.0
      %vm8112 = vcmp.gt.f32.partialorder %v7110, 0.0
      %vm8113 = vcmp.gt.f32.partialorder %v7115, 0.0
      %vm8114 = vcmp.gt.f32.partialorder %v7118, 0.0
      %vm8115 = vcmp.gt.f32.partialorder %v7123, 0.0
      %vm8116 = vcmp.gt.f32.partialorder %v7126, 0.0
      %vm8117 = vcmp.gt.f32.partialorder %v7131, 0.0
      %vm8118 = vcmp.gt.f32.partialorder %v7134, 0.0
      %vm8119 = vcmp.gt.f32.partialorder %v7139, 0.0
      %vm8120 = vcmp.gt.f32.partialorder %v7142, 0.0
      %vm8121 = vcmp.gt.f32.partialorder %v7147, 0.0
      %vm8122 = vcmp.gt.f32.partialorder %v7150, 0.0
      %vm8123 = vcmp.gt.f32.partialorder %v7155, 0.0
      %vm8124 = vcmp.gt.f32.partialorder %v7158, 0.0
      %vm8125 = vcmp.gt.f32.partialorder %v7163, 0.0
      %vm8126 = vcmp.gt.f32.partialorder %v7166, 0.0
      %vm8127 = vcmp.gt.f32.partialorder %v7171, 0.0
      %vm8128 = vcmp.gt.f32.partialorder %v7174, 0.0
      %vm8129 = vcmp.gt.f32.partialorder %v7179, 0.0
      %vm8130 = vcmp.gt.f32.partialorder %v7182, 0.0
      %vm8131 = vcmp.gt.f32.partialorder %v7187, 0.0
      %vm8132 = vcmp.gt.f32.partialorder %v7190, 0.0
      %vm8133 = vcmp.gt.f32.partialorder %v7195, 0.0
      %vm8134 = vcmp.gt.f32.partialorder %v7198, 0.0
      %vm8135 = vcmp.gt.f32.partialorder %v7203, 0.0
      %vm8136 = vcmp.gt.f32.partialorder %v7206, 0.0
      %vm8137 = vcmp.gt.f32.partialorder %v7211, 0.0
      %vm8138 = vcmp.gt.f32.partialorder %v7214, 0.0
      %vm8139 = vcmp.gt.f32.partialorder %v7219, 0.0
      %vm8140 = vcmp.gt.f32.partialorder %v7222, 0.0
      %vm8141 = vcmp.gt.f32.partialorder %v7227, 0.0
      %vm8142 = vcmp.gt.f32.partialorder %v7230, 0.0
      %vm8143 = vcmp.gt.f32.partialorder %v7235, 0.0
      %vm8144 = vcmp.gt.f32.partialorder %v7238, 0.0
      %vm8145 = vcmp.gt.f32.partialorder %v7243, 0.0
      %vm8146 = vcmp.gt.f32.partialorder %v7246, 0.0
      %vm8147 = vcmp.gt.f32.partialorder %v7251, 0.0
      %vm8148 = vcmp.gt.f32.partialorder %v7254, 0.0
      %vm8149 = vcmp.gt.f32.partialorder %v7259, 0.0
      %vm8150 = vcmp.gt.f32.partialorder %v7262, 0.0
      %vm8151 = vcmp.gt.f32.partialorder %v7267, 0.0
      %vm8152 = vcmp.gt.f32.partialorder %v7270, 0.0
      %vm8153 = vcmp.gt.f32.partialorder %v7275, 0.0
      %vm8154 = vcmp.gt.f32.partialorder %v7278, 0.0
      %vm8155 = vcmp.gt.f32.partialorder %v7283, 0.0
      %vm8156 = vcmp.gt.f32.partialorder %v7286, 0.0
      %vm8157 = vcmp.gt.f32.partialorder %v7291, 0.0
      %vm8158 = vcmp.gt.f32.partialorder %v7294, 0.0
      %vm8159 = vcmp.gt.f32.partialorder %v7299, 0.0
      %vm8160 = vcmp.gt.f32.partialorder %v7302, 0.0
      %vm8161 = vcmp.gt.f32.partialorder %v7307, 0.0
      %vm8162 = vcmp.gt.f32.partialorder %v7310, 0.0
      %vm8163 = vcmp.gt.f32.partialorder %v7315, 0.0
      %vm8164 = vcmp.gt.f32.partialorder %v7318, 0.0
      %vm8165 = vcmp.gt.f32.partialorder %v7323, 0.0
      %vm8166 = vcmp.gt.f32.partialorder %v7326, 0.0
      %vm8167 = vcmp.gt.f32.partialorder %v7331, 0.0
      %vm8168 = vcmp.gt.f32.partialorder %v7334, 0.0
      %vm8169 = vcmp.gt.f32.partialorder %v7339, 0.0
      %vm8170 = vcmp.gt.f32.partialorder %v7342, 0.0
      %vm8171 = vcmp.gt.f32.partialorder %v7347, 0.0
      %vm8172 = vcmp.gt.f32.partialorder %v7350, 0.0
      %vm8173 = vcmp.gt.f32.partialorder %v7355, 0.0
      %vm8174 = vcmp.gt.f32.partialorder %v7358, 0.0
      %vm8175 = vcmp.gt.f32.partialorder %v7363, 0.0
      %vm8176 = vcmp.gt.f32.partialorder %v7366, 0.0
      %vm8177 = vcmp.gt.f32.partialorder %v7371, 0.0
      %vm8178 = vcmp.gt.f32.partialorder %v7374, 0.0
      %vm8179 = vcmp.gt.f32.partialorder %v7379, 0.0
      %vm8180 = vcmp.gt.f32.partialorder %v7382, 0.0
      %vm8181 = vcmp.gt.f32.partialorder %v7387, 0.0
      %vm8182 = vcmp.gt.f32.partialorder %v7390, 0.0
      %vm8183 = vcmp.gt.f32.partialorder %v7395, 0.0
      %vm8184 = vcmp.gt.f32.partialorder %v7398, 0.0
      %v8185 = vld [vmem:[%s3] sm:$0x1]
      %v8187 = vlaneseq
      %v8188 = vshrl.u32 %v8187, 7
      %v8189 = vsub.s32 0, %v8188
      %v8190 = vrot.slane %v8185, %v8189
      %v8192 = vmul.f32 %v4267, %v8190
      %v8193 = vmul.f32 %v4270, %v8190
      %v8194 = vmul.f32 %v4275, %v8190
      %v8195 = vmul.f32 %v4278, %v8190
      %v8196 = vmul.f32 %v4283, %v8190
      %v8197 = vmul.f32 %v4286, %v8190
      %v8198 = vmul.f32 %v4291, %v8190
      %v8199 = vmul.f32 %v4294, %v8190
      %v8200 = vmul.f32 %v4299, %v8190
      %v8201 = vmul.f32 %v4302, %v8190
      %v8202 = vmul.f32 %v4307, %v8190
      %v8203 = vmul.f32 %v4310, %v8190
      %v8204 = vmul.f32 %v4315, %v8190
      %v8205 = vmul.f32 %v4318, %v8190
      %v8206 = vmul.f32 %v4323, %v8190
      %v8207 = vmul.f32 %v4326, %v8190
      %v8208 = vmul.f32 %v4331, %v8190
      %v8209 = vmul.f32 %v4334, %v8190
      %v8210 = vmul.f32 %v4339, %v8190
      %v8211 = vmul.f32 %v4342, %v8190
      %v8212 = vmul.f32 %v4347, %v8190
      %v8213 = vmul.f32 %v4350, %v8190
      %v8214 = vmul.f32 %v4355, %v8190
      %v8215 = vmul.f32 %v4358, %v8190
      %v8216 = vmul.f32 %v4363, %v8190
      %v8217 = vmul.f32 %v4366, %v8190
      %v8218 = vmul.f32 %v4371, %v8190
      %v8219 = vmul.f32 %v4374, %v8190
      %v8220 = vmul.f32 %v4379, %v8190
      %v8221 = vmul.f32 %v4382, %v8190
      %v8222 = vmul.f32 %v4387, %v8190
      %v8223 = vmul.f32 %v4390, %v8190
      %v8224 = vmul.f32 %v4395, %v8190
      %v8225 = vmul.f32 %v4398, %v8190
      %v8226 = vmul.f32 %v4403, %v8190
      %v8227 = vmul.f32 %v4406, %v8190
      %v8228 = vmul.f32 %v4411, %v8190
      %v8229 = vmul.f32 %v4414, %v8190
      %v8230 = vmul.f32 %v4419, %v8190
      %v8231 = vmul.f32 %v4422, %v8190
      %v8232 = vmul.f32 %v4427, %v8190
      %v8233 = vmul.f32 %v4430, %v8190
      %v8234 = vmul.f32 %v4435, %v8190
      %v8235 = vmul.f32 %v4438, %v8190
      %v8236 = vmul.f32 %v4443, %v8190
      %v8237 = vmul.f32 %v4446, %v8190
      %v8238 = vmul.f32 %v4451, %v8190
      %v8239 = vmul.f32 %v4454, %v8190
      %v8240 = vmul.f32 %v4459, %v8190
      %v8241 = vmul.f32 %v4462, %v8190
      %v8242 = vmul.f32 %v4467, %v8190
      %v8243 = vmul.f32 %v4470, %v8190
      %v8244 = vmul.f32 %v4475, %v8190
      %v8245 = vmul.f32 %v4478, %v8190
      %v8246 = vmul.f32 %v4483, %v8190
      %v8247 = vmul.f32 %v4486, %v8190
      %v8248 = vmul.f32 %v4491, %v8190
      %v8249 = vmul.f32 %v4494, %v8190
      %v8250 = vmul.f32 %v4499, %v8190
      %v8251 = vmul.f32 %v4502, %v8190
      %v8252 = vmul.f32 %v4507, %v8190
      %v8253 = vmul.f32 %v4510, %v8190
      %v8254 = vmul.f32 %v4515, %v8190
      %v8255 = vmul.f32 %v4518, %v8190
      %v8256 = vmul.f32 %v4523, %v8190
      %v8257 = vmul.f32 %v4526, %v8190
      %v8258 = vmul.f32 %v4531, %v8190
      %v8259 = vmul.f32 %v4534, %v8190
      %v8260 = vmul.f32 %v4539, %v8190
      %v8261 = vmul.f32 %v4542, %v8190
      %v8262 = vmul.f32 %v4547, %v8190
      %v8263 = vmul.f32 %v4550, %v8190
      %v8264 = vmul.f32 %v4555, %v8190
      %v8265 = vmul.f32 %v4558, %v8190
      %v8266 = vmul.f32 %v4563, %v8190
      %v8267 = vmul.f32 %v4566, %v8190
      %v8268 = vmul.f32 %v4571, %v8190
      %v8269 = vmul.f32 %v4574, %v8190
      %v8270 = vmul.f32 %v4579, %v8190
      %v8271 = vmul.f32 %v4582, %v8190
      %v8272 = vmul.f32 %v4587, %v8190
      %v8273 = vmul.f32 %v4590, %v8190
      %v8274 = vmul.f32 %v4595, %v8190
      %v8275 = vmul.f32 %v4598, %v8190
      %v8276 = vmul.f32 %v4603, %v8190
      %v8277 = vmul.f32 %v4606, %v8190
      %v8278 = vmul.f32 %v4611, %v8190
      %v8279 = vmul.f32 %v4614, %v8190
      %v8280 = vmul.f32 %v4619, %v8190
      %v8281 = vmul.f32 %v4622, %v8190
      %v8282 = vmul.f32 %v4627, %v8190
      %v8283 = vmul.f32 %v4630, %v8190
      %v8284 = vmul.f32 %v4635, %v8190
      %v8285 = vmul.f32 %v4638, %v8190
      %v8286 = vmul.f32 %v4643, %v8190
      %v8287 = vmul.f32 %v4646, %v8190
      %v8288 = vmul.f32 %v4651, %v8190
      %v8289 = vmul.f32 %v4654, %v8190
      %v8290 = vmul.f32 %v4659, %v8190
      %v8291 = vmul.f32 %v4662, %v8190
      %v8292 = vmul.f32 %v4667, %v8190
      %v8293 = vmul.f32 %v4670, %v8190
      %v8294 = vmul.f32 %v4675, %v8190
      %v8295 = vmul.f32 %v4678, %v8190
      %v8296 = vmul.f32 %v4683, %v8190
      %v8297 = vmul.f32 %v4686, %v8190
      %v8298 = vmul.f32 %v4691, %v8190
      %v8299 = vmul.f32 %v4694, %v8190
      %v8300 = vmul.f32 %v4699, %v8190
      %v8301 = vmul.f32 %v4702, %v8190
      %v8302 = vmul.f32 %v4707, %v8190
      %v8303 = vmul.f32 %v4710, %v8190
      %v8304 = vmul.f32 %v4715, %v8190
      %v8305 = vmul.f32 %v4718, %v8190
      %v8306 = vmul.f32 %v4723, %v8190
      %v8307 = vmul.f32 %v4726, %v8190
      %v8308 = vmul.f32 %v4731, %v8190
      %v8309 = vmul.f32 %v4734, %v8190
      %v8310 = vmul.f32 %v4739, %v8190
      %v8311 = vmul.f32 %v4742, %v8190
      %v8312 = vmul.f32 %v4747, %v8190
      %v8313 = vmul.f32 %v4750, %v8190
      %v8314 = vmul.f32 %v4755, %v8190
      %v8315 = vmul.f32 %v4758, %v8190
      %v8316 = vmul.f32 %v4763, %v8190
      %v8317 = vmul.f32 %v4766, %v8190
      %v8318 = vmul.f32 %v4771, %v8190
      %v8319 = vmul.f32 %v4774, %v8190
      %v8320 = vmul.f32 %v4779, %v8190
      %v8321 = vmul.f32 %v4782, %v8190
      %v8322 = vmul.f32 %v4787, %v8190
      %v8323 = vmul.f32 %v4790, %v8190
      %v8324 = vmul.f32 %v4795, %v8190
      %v8325 = vmul.f32 %v4798, %v8190
      %v8326 = vmul.f32 %v4803, %v8190
      %v8327 = vmul.f32 %v4806, %v8190
      %v8328 = vmul.f32 %v4811, %v8190
      %v8329 = vmul.f32 %v4814, %v8190
      %v8330 = vmul.f32 %v4819, %v8190
      %v8331 = vmul.f32 %v4822, %v8190
      %v8332 = vmul.f32 %v4827, %v8190
      %v8333 = vmul.f32 %v4830, %v8190
      %v8334 = vmul.f32 %v4835, %v8190
      %v8335 = vmul.f32 %v4838, %v8190
      %v8336 = vmul.f32 %v4843, %v8190
      %v8337 = vmul.f32 %v4846, %v8190
      %v8338 = vmul.f32 %v4851, %v8190
      %v8339 = vmul.f32 %v4854, %v8190
      %v8340 = vmul.f32 %v4859, %v8190
      %v8341 = vmul.f32 %v4862, %v8190
      %v8342 = vmul.f32 %v4867, %v8190
      %v8343 = vmul.f32 %v4870, %v8190
      %v8344 = vmul.f32 %v4875, %v8190
      %v8345 = vmul.f32 %v4878, %v8190
      %v8346 = vmul.f32 %v4883, %v8190
      %v8347 = vmul.f32 %v4886, %v8190
      %v8348 = vmul.f32 %v4891, %v8190
      %v8349 = vmul.f32 %v4894, %v8190
      %v8350 = vmul.f32 %v4899, %v8190
      %v8351 = vmul.f32 %v4902, %v8190
      %v8352 = vmul.f32 %v4907, %v8190
      %v8353 = vmul.f32 %v4910, %v8190
      %v8354 = vmul.f32 %v4915, %v8190
      %v8355 = vmul.f32 %v4918, %v8190
      %v8356 = vmul.f32 %v4923, %v8190
      %v8357 = vmul.f32 %v4926, %v8190
      %v8358 = vmul.f32 %v4931, %v8190
      %v8359 = vmul.f32 %v4934, %v8190
      %v8360 = vmul.f32 %v4939, %v8190
      %v8361 = vmul.f32 %v4942, %v8190
      %v8362 = vmul.f32 %v4947, %v8190
      %v8363 = vmul.f32 %v4950, %v8190
      %v8364 = vmul.f32 %v4955, %v8190
      %v8365 = vmul.f32 %v4958, %v8190
      %v8366 = vmul.f32 %v4963, %v8190
      %v8367 = vmul.f32 %v4966, %v8190
      %v8368 = vmul.f32 %v4971, %v8190
      %v8369 = vmul.f32 %v4974, %v8190
      %v8370 = vmul.f32 %v4979, %v8190
      %v8371 = vmul.f32 %v4982, %v8190
      %v8372 = vmul.f32 %v4987, %v8190
      %v8373 = vmul.f32 %v4990, %v8190
      %v8374 = vmul.f32 %v4995, %v8190
      %v8375 = vmul.f32 %v4998, %v8190
      %v8376 = vmul.f32 %v5003, %v8190
      %v8377 = vmul.f32 %v5006, %v8190
      %v8378 = vmul.f32 %v5011, %v8190
      %v8379 = vmul.f32 %v5014, %v8190
      %v8380 = vmul.f32 %v5019, %v8190
      %v8381 = vmul.f32 %v5022, %v8190
      %v8382 = vmul.f32 %v5027, %v8190
      %v8383 = vmul.f32 %v5030, %v8190
      %v8384 = vmul.f32 %v5035, %v8190
      %v8385 = vmul.f32 %v5038, %v8190
      %v8386 = vmul.f32 %v5043, %v8190
      %v8387 = vmul.f32 %v5046, %v8190
      %v8388 = vmul.f32 %v5051, %v8190
      %v8389 = vmul.f32 %v5054, %v8190
      %v8390 = vmul.f32 %v5059, %v8190
      %v8391 = vmul.f32 %v5062, %v8190
      %v8392 = vmul.f32 %v5067, %v8190
      %v8393 = vmul.f32 %v5070, %v8190
      %v8394 = vmul.f32 %v5075, %v8190
      %v8395 = vmul.f32 %v5078, %v8190
      %v8396 = vmul.f32 %v5083, %v8190
      %v8397 = vmul.f32 %v5086, %v8190
      %v8398 = vmul.f32 %v5091, %v8190
      %v8399 = vmul.f32 %v5094, %v8190
      %v8400 = vmul.f32 %v5099, %v8190
      %v8401 = vmul.f32 %v5102, %v8190
      %v8402 = vmul.f32 %v5107, %v8190
      %v8403 = vmul.f32 %v5110, %v8190
      %v8404 = vmul.f32 %v5115, %v8190
      %v8405 = vmul.f32 %v5118, %v8190
      %v8406 = vmul.f32 %v5123, %v8190
      %v8407 = vmul.f32 %v5126, %v8190
      %v8408 = vmul.f32 %v5131, %v8190
      %v8409 = vmul.f32 %v5134, %v8190
      %v8410 = vmul.f32 %v5139, %v8190
      %v8411 = vmul.f32 %v5142, %v8190
      %v8412 = vmul.f32 %v5147, %v8190
      %v8413 = vmul.f32 %v5150, %v8190
      %v8414 = vmul.f32 %v5155, %v8190
      %v8415 = vmul.f32 %v5158, %v8190
      %v8416 = vmul.f32 %v5163, %v8190
      %v8417 = vmul.f32 %v5166, %v8190
      %v8418 = vmul.f32 %v5171, %v8190
      %v8419 = vmul.f32 %v5174, %v8190
      %v8420 = vmul.f32 %v5179, %v8190
      %v8421 = vmul.f32 %v5182, %v8190
      %v8422 = vmul.f32 %v5187, %v8190
      %v8423 = vmul.f32 %v5190, %v8190
      %v8424 = vmul.f32 %v5195, %v8190
      %v8425 = vmul.f32 %v5198, %v8190
      %v8426 = vmul.f32 %v5203, %v8190
      %v8427 = vmul.f32 %v5206, %v8190
      %v8428 = vmul.f32 %v5211, %v8190
      %v8429 = vmul.f32 %v5214, %v8190
      %v8430 = vmul.f32 %v5219, %v8190
      %v8431 = vmul.f32 %v5222, %v8190
      %v8432 = vmul.f32 %v5227, %v8190
      %v8433 = vmul.f32 %v5230, %v8190
      %v8434 = vmul.f32 %v5235, %v8190
      %v8435 = vmul.f32 %v5238, %v8190
      %v8436 = vmul.f32 %v5243, %v8190
      %v8437 = vmul.f32 %v5246, %v8190
      %v8438 = vmul.f32 %v5251, %v8190
      %v8439 = vmul.f32 %v5254, %v8190
      %v8440 = vmul.f32 %v5259, %v8190
      %v8441 = vmul.f32 %v5262, %v8190
      %v8442 = vmul.f32 %v5267, %v8190
      %v8443 = vmul.f32 %v5270, %v8190
      %v8444 = vmul.f32 %v5275, %v8190
      %v8445 = vmul.f32 %v5278, %v8190
      %v8446 = vmul.f32 %v5283, %v8190
      %v8447 = vmul.f32 %v5286, %v8190
      %v8448 = vmul.f32 %v5291, %v8190
      %v8449 = vmul.f32 %v5294, %v8190
      %v8450 = vmul.f32 %v5299, %v8190
      %v8451 = vmul.f32 %v5302, %v8190
      %v8452 = vmul.f32 %v5307, %v8190
      %v8453 = vmul.f32 %v5310, %v8190
      %v8454 = vmul.f32 %v5315, %v8190
      %v8455 = vmul.f32 %v5318, %v8190
      %v8456 = vmul.f32 %v5323, %v8190
      %v8457 = vmul.f32 %v5326, %v8190
      %v8458 = vmul.f32 %v5331, %v8190
      %v8459 = vmul.f32 %v5334, %v8190
      %v8460 = vmul.f32 %v5339, %v8190
      %v8461 = vmul.f32 %v5342, %v8190
      %v8462 = vmul.f32 %v5347, %v8190
      %v8463 = vmul.f32 %v5350, %v8190
      %v8464 = vmul.f32 %v5355, %v8190
      %v8465 = vmul.f32 %v5358, %v8190
      %v8466 = vmul.f32 %v5363, %v8190
      %v8467 = vmul.f32 %v5366, %v8190
      %v8468 = vmul.f32 %v5371, %v8190
      %v8469 = vmul.f32 %v5374, %v8190
      %v8470 = vmul.f32 %v5379, %v8190
      %v8471 = vmul.f32 %v5382, %v8190
      %v8472 = vmul.f32 %v5387, %v8190
      %v8473 = vmul.f32 %v5390, %v8190
      %v8474 = vmul.f32 %v5395, %v8190
      %v8475 = vmul.f32 %v5398, %v8190
      %v8476 = vmul.f32 %v5403, %v8190
      %v8477 = vmul.f32 %v5406, %v8190
      %v8478 = vmul.f32 %v5411, %v8190
      %v8479 = vmul.f32 %v5414, %v8190
      %v8480 = vmul.f32 %v5419, %v8190
      %v8481 = vmul.f32 %v5422, %v8190
      %v8482 = vmul.f32 %v5427, %v8190
      %v8483 = vmul.f32 %v5430, %v8190
      %v8484 = vmul.f32 %v5435, %v8190
      %v8485 = vmul.f32 %v5438, %v8190
      %v8486 = vmul.f32 %v5443, %v8190
      %v8487 = vmul.f32 %v5446, %v8190
      %v8488 = vmul.f32 %v5451, %v8190
      %v8489 = vmul.f32 %v5454, %v8190
      %v8490 = vmul.f32 %v5459, %v8190
      %v8491 = vmul.f32 %v5462, %v8190
      %v8492 = vmul.f32 %v5467, %v8190
      %v8493 = vmul.f32 %v5470, %v8190
      %v8494 = vmul.f32 %v5475, %v8190
      %v8495 = vmul.f32 %v5478, %v8190
      %v8496 = vmul.f32 %v5483, %v8190
      %v8497 = vmul.f32 %v5486, %v8190
      %v8498 = vmul.f32 %v5491, %v8190
      %v8499 = vmul.f32 %v5494, %v8190
      %v8500 = vmul.f32 %v5499, %v8190
      %v8501 = vmul.f32 %v5502, %v8190
      %v8502 = vmul.f32 %v5507, %v8190
      %v8503 = vmul.f32 %v5510, %v8190
      %v8504 = vmul.f32 %v5515, %v8190
      %v8505 = vmul.f32 %v5518, %v8190
      %v8506 = vmul.f32 %v5523, %v8190
      %v8507 = vmul.f32 %v5526, %v8190
      %v8508 = vmul.f32 %v5531, %v8190
      %v8509 = vmul.f32 %v5534, %v8190
      %v8510 = vmul.f32 %v5539, %v8190
      %v8511 = vmul.f32 %v5542, %v8190
      %v8512 = vmul.f32 %v5547, %v8190
      %v8513 = vmul.f32 %v5550, %v8190
      %v8514 = vmul.f32 %v5555, %v8190
      %v8515 = vmul.f32 %v5558, %v8190
      %v8516 = vmul.f32 %v5563, %v8190
      %v8517 = vmul.f32 %v5566, %v8190
      %v8518 = vmul.f32 %v5571, %v8190
      %v8519 = vmul.f32 %v5574, %v8190
      %v8520 = vmul.f32 %v5579, %v8190
      %v8521 = vmul.f32 %v5582, %v8190
      %v8522 = vmul.f32 %v5587, %v8190
      %v8523 = vmul.f32 %v5590, %v8190
      %v8524 = vmul.f32 %v5595, %v8190
      %v8525 = vmul.f32 %v5598, %v8190
      %v8526 = vmul.f32 %v5603, %v8190
      %v8527 = vmul.f32 %v5606, %v8190
      %v8528 = vmul.f32 %v5611, %v8190
      %v8529 = vmul.f32 %v5614, %v8190
      %v8530 = vmul.f32 %v5619, %v8190
      %v8531 = vmul.f32 %v5622, %v8190
      %v8532 = vmul.f32 %v5627, %v8190
      %v8533 = vmul.f32 %v5630, %v8190
      %v8534 = vmul.f32 %v5635, %v8190
      %v8535 = vmul.f32 %v5638, %v8190
      %v8536 = vmul.f32 %v5643, %v8190
      %v8537 = vmul.f32 %v5646, %v8190
      %v8538 = vmul.f32 %v5651, %v8190
      %v8539 = vmul.f32 %v5654, %v8190
      %v8540 = vmul.f32 %v5659, %v8190
      %v8541 = vmul.f32 %v5662, %v8190
      %v8542 = vmul.f32 %v5667, %v8190
      %v8543 = vmul.f32 %v5670, %v8190
      %v8544 = vmul.f32 %v5675, %v8190
      %v8545 = vmul.f32 %v5678, %v8190
      %v8546 = vmul.f32 %v5683, %v8190
      %v8547 = vmul.f32 %v5686, %v8190
      %v8548 = vmul.f32 %v5691, %v8190
      %v8549 = vmul.f32 %v5694, %v8190
      %v8550 = vmul.f32 %v5699, %v8190
      %v8551 = vmul.f32 %v5702, %v8190
      %v8552 = vmul.f32 %v5707, %v8190
      %v8553 = vmul.f32 %v5710, %v8190
      %v8554 = vmul.f32 %v5715, %v8190
      %v8555 = vmul.f32 %v5718, %v8190
      %v8556 = vmul.f32 %v5723, %v8190
      %v8557 = vmul.f32 %v5726, %v8190
      %v8558 = vmul.f32 %v5731, %v8190
      %v8559 = vmul.f32 %v5734, %v8190
      %v8560 = vmul.f32 %v5739, %v8190
      %v8561 = vmul.f32 %v5742, %v8190
      %v8562 = vmul.f32 %v5747, %v8190
      %v8563 = vmul.f32 %v5750, %v8190
      %v8564 = vmul.f32 %v5755, %v8190
      %v8565 = vmul.f32 %v5758, %v8190
      %v8566 = vmul.f32 %v5763, %v8190
      %v8567 = vmul.f32 %v5766, %v8190
      %v8568 = vmul.f32 %v5771, %v8190
      %v8569 = vmul.f32 %v5774, %v8190
      %v8570 = vmul.f32 %v5779, %v8190
      %v8571 = vmul.f32 %v5782, %v8190
      %v8572 = vmul.f32 %v5787, %v8190
      %v8573 = vmul.f32 %v5790, %v8190
      %v8574 = vmul.f32 %v5795, %v8190
      %v8575 = vmul.f32 %v5798, %v8190
      %v8576 = vmul.f32 %v5803, %v8190
      %v8577 = vmul.f32 %v5806, %v8190
      %v8578 = vmul.f32 %v5811, %v8190
      %v8579 = vmul.f32 %v5814, %v8190
      %v8580 = vmul.f32 %v5819, %v8190
      %v8581 = vmul.f32 %v5822, %v8190
      %v8582 = vmul.f32 %v5827, %v8190
      %v8583 = vmul.f32 %v5830, %v8190
      %v8584 = vmul.f32 %v5835, %v8190
      %v8585 = vmul.f32 %v5838, %v8190
      %v8586 = vmul.f32 %v5843, %v8190
      %v8587 = vmul.f32 %v5846, %v8190
      %v8588 = vmul.f32 %v5851, %v8190
      %v8589 = vmul.f32 %v5854, %v8190
      %v8590 = vmul.f32 %v5859, %v8190
      %v8591 = vmul.f32 %v5862, %v8190
      %v8592 = vmul.f32 %v5867, %v8190
      %v8593 = vmul.f32 %v5870, %v8190
      %v8594 = vmul.f32 %v5875, %v8190
      %v8595 = vmul.f32 %v5878, %v8190
      %v8596 = vmul.f32 %v5883, %v8190
      %v8597 = vmul.f32 %v5886, %v8190
      %v8598 = vmul.f32 %v5891, %v8190
      %v8599 = vmul.f32 %v5894, %v8190
      %v8600 = vmul.f32 %v5899, %v8190
      %v8601 = vmul.f32 %v5902, %v8190
      %v8602 = vmul.f32 %v5907, %v8190
      %v8603 = vmul.f32 %v5910, %v8190
      %v8604 = vmul.f32 %v5915, %v8190
      %v8605 = vmul.f32 %v5918, %v8190
      %v8606 = vmul.f32 %v5923, %v8190
      %v8607 = vmul.f32 %v5926, %v8190
      %v8608 = vmul.f32 %v5931, %v8190
      %v8609 = vmul.f32 %v5934, %v8190
      %v8610 = vmul.f32 %v5939, %v8190
      %v8611 = vmul.f32 %v5942, %v8190
      %v8612 = vmul.f32 %v5947, %v8190
      %v8613 = vmul.f32 %v5950, %v8190
      %v8614 = vmul.f32 %v5955, %v8190
      %v8615 = vmul.f32 %v5958, %v8190
      %v8616 = vmul.f32 %v5963, %v8190
      %v8617 = vmul.f32 %v5966, %v8190
      %v8618 = vmul.f32 %v5971, %v8190
      %v8619 = vmul.f32 %v5974, %v8190
      %v8620 = vmul.f32 %v5979, %v8190
      %v8621 = vmul.f32 %v5982, %v8190
      %v8622 = vmul.f32 %v5987, %v8190
      %v8623 = vmul.f32 %v5990, %v8190
      %v8624 = vmul.f32 %v5995, %v8190
      %v8625 = vmul.f32 %v5998, %v8190
      %v8626 = vmul.f32 %v6003, %v8190
      %v8627 = vmul.f32 %v6006, %v8190
      %v8628 = vmul.f32 %v6011, %v8190
      %v8629 = vmul.f32 %v6014, %v8190
      %v8630 = vmul.f32 %v6019, %v8190
      %v8631 = vmul.f32 %v6022, %v8190
      %v8632 = vmul.f32 %v6027, %v8190
      %v8633 = vmul.f32 %v6030, %v8190
      %v8634 = vmul.f32 %v6035, %v8190
      %v8635 = vmul.f32 %v6038, %v8190
      %v8636 = vmul.f32 %v6043, %v8190
      %v8637 = vmul.f32 %v6046, %v8190
      %v8638 = vmul.f32 %v6051, %v8190
      %v8639 = vmul.f32 %v6054, %v8190
      %v8640 = vmul.f32 %v6059, %v8190
      %v8641 = vmul.f32 %v6062, %v8190
      %v8642 = vmul.f32 %v6067, %v8190
      %v8643 = vmul.f32 %v6070, %v8190
      %v8644 = vmul.f32 %v6075, %v8190
      %v8645 = vmul.f32 %v6078, %v8190
      %v8646 = vmul.f32 %v6083, %v8190
      %v8647 = vmul.f32 %v6086, %v8190
      %v8648 = vmul.f32 %v6091, %v8190
      %v8649 = vmul.f32 %v6094, %v8190
      %v8650 = vmul.f32 %v6099, %v8190
      %v8651 = vmul.f32 %v6102, %v8190
      %v8652 = vmul.f32 %v6107, %v8190
      %v8653 = vmul.f32 %v6110, %v8190
      %v8654 = vmul.f32 %v6115, %v8190
      %v8655 = vmul.f32 %v6118, %v8190
      %v8656 = vmul.f32 %v6123, %v8190
      %v8657 = vmul.f32 %v6126, %v8190
      %v8658 = vmul.f32 %v6131, %v8190
      %v8659 = vmul.f32 %v6134, %v8190
      %v8660 = vmul.f32 %v6139, %v8190
      %v8661 = vmul.f32 %v6142, %v8190
      %v8662 = vmul.f32 %v6147, %v8190
      %v8663 = vmul.f32 %v6150, %v8190
      %v8664 = vmul.f32 %v6155, %v8190
      %v8665 = vmul.f32 %v6158, %v8190
      %v8666 = vmul.f32 %v6163, %v8190
      %v8667 = vmul.f32 %v6166, %v8190
      %v8668 = vmul.f32 %v6171, %v8190
      %v8669 = vmul.f32 %v6174, %v8190
      %v8670 = vmul.f32 %v6179, %v8190
      %v8671 = vmul.f32 %v6182, %v8190
      %v8672 = vmul.f32 %v6187, %v8190
      %v8673 = vmul.f32 %v6190, %v8190
      %v8674 = vmul.f32 %v6195, %v8190
      %v8675 = vmul.f32 %v6198, %v8190
      %v8676 = vmul.f32 %v6203, %v8190
      %v8677 = vmul.f32 %v6206, %v8190
      %v8678 = vmul.f32 %v6211, %v8190
      %v8679 = vmul.f32 %v6214, %v8190
      %v8680 = vmul.f32 %v6219, %v8190
      %v8681 = vmul.f32 %v6222, %v8190
      %v8682 = vmul.f32 %v6227, %v8190
      %v8683 = vmul.f32 %v6230, %v8190
      %v8684 = vmul.f32 %v6235, %v8190
      %v8685 = vmul.f32 %v6238, %v8190
      %v8686 = vmul.f32 %v6243, %v8190
      %v8687 = vmul.f32 %v6246, %v8190
      %v8688 = vmul.f32 %v6251, %v8190
      %v8689 = vmul.f32 %v6254, %v8190
      %v8690 = vmul.f32 %v6259, %v8190
      %v8691 = vmul.f32 %v6262, %v8190
      %v8692 = vmul.f32 %v6267, %v8190
      %v8693 = vmul.f32 %v6270, %v8190
      %v8694 = vmul.f32 %v6275, %v8190
      %v8695 = vmul.f32 %v6278, %v8190
      %v8696 = vmul.f32 %v6283, %v8190
      %v8697 = vmul.f32 %v6286, %v8190
      %v8698 = vmul.f32 %v6291, %v8190
      %v8699 = vmul.f32 %v6294, %v8190
      %v8700 = vmul.f32 %v6299, %v8190
      %v8701 = vmul.f32 %v6302, %v8190
      %v8702 = vmul.f32 %v6307, %v8190
      %v8703 = vmul.f32 %v6310, %v8190
      %v8704 = vmul.f32 %v6315, %v8190
      %v8705 = vmul.f32 %v6318, %v8190
      %v8706 = vmul.f32 %v6323, %v8190
      %v8707 = vmul.f32 %v6326, %v8190
      %v8708 = vmul.f32 %v6331, %v8190
      %v8709 = vmul.f32 %v6334, %v8190
      %v8710 = vmul.f32 %v6339, %v8190
      %v8711 = vmul.f32 %v6342, %v8190
      %v8712 = vmul.f32 %v6347, %v8190
      %v8713 = vmul.f32 %v6350, %v8190
      %v8714 = vmul.f32 %v6355, %v8190
      %v8715 = vmul.f32 %v6358, %v8190
      %v8716 = vmul.f32 %v6363, %v8190
      %v8717 = vmul.f32 %v6366, %v8190
      %v8718 = vmul.f32 %v6371, %v8190
      %v8719 = vmul.f32 %v6374, %v8190
      %v8720 = vmul.f32 %v6379, %v8190
      %v8721 = vmul.f32 %v6382, %v8190
      %v8722 = vmul.f32 %v6387, %v8190
      %v8723 = vmul.f32 %v6390, %v8190
      %v8724 = vmul.f32 %v6395, %v8190
      %v8725 = vmul.f32 %v6398, %v8190
      %v8726 = vmul.f32 %v6403, %v8190
      %v8727 = vmul.f32 %v6406, %v8190
      %v8728 = vmul.f32 %v6411, %v8190
      %v8729 = vmul.f32 %v6414, %v8190
      %v8730 = vmul.f32 %v6419, %v8190
      %v8731 = vmul.f32 %v6422, %v8190
      %v8732 = vmul.f32 %v6427, %v8190
      %v8733 = vmul.f32 %v6430, %v8190
      %v8734 = vmul.f32 %v6435, %v8190
      %v8735 = vmul.f32 %v6438, %v8190
      %v8736 = vmul.f32 %v6443, %v8190
      %v8737 = vmul.f32 %v6446, %v8190
      %v8738 = vmul.f32 %v6451, %v8190
      %v8739 = vmul.f32 %v6454, %v8190
      %v8740 = vmul.f32 %v6459, %v8190
      %v8741 = vmul.f32 %v6462, %v8190
      %v8742 = vmul.f32 %v6467, %v8190
      %v8743 = vmul.f32 %v6470, %v8190
      %v8744 = vmul.f32 %v6475, %v8190
      %v8745 = vmul.f32 %v6478, %v8190
      %v8746 = vmul.f32 %v6483, %v8190
      %v8747 = vmul.f32 %v6486, %v8190
      %v8748 = vmul.f32 %v6491, %v8190
      %v8749 = vmul.f32 %v6494, %v8190
      %v8750 = vmul.f32 %v6499, %v8190
      %v8751 = vmul.f32 %v6502, %v8190
      %v8752 = vmul.f32 %v6507, %v8190
      %v8753 = vmul.f32 %v6510, %v8190
      %v8754 = vmul.f32 %v6515, %v8190
      %v8755 = vmul.f32 %v6518, %v8190
      %v8756 = vmul.f32 %v6523, %v8190
      %v8757 = vmul.f32 %v6526, %v8190
      %v8758 = vmul.f32 %v6531, %v8190
      %v8759 = vmul.f32 %v6534, %v8190
      %v8760 = vmul.f32 %v6539, %v8190
      %v8761 = vmul.f32 %v6542, %v8190
      %v8762 = vmul.f32 %v6547, %v8190
      %v8763 = vmul.f32 %v6550, %v8190
      %v8764 = vmul.f32 %v6555, %v8190
      %v8765 = vmul.f32 %v6558, %v8190
      %v8766 = vmul.f32 %v6563, %v8190
      %v8767 = vmul.f32 %v6566, %v8190
      %v8768 = vmul.f32 %v6571, %v8190
      %v8769 = vmul.f32 %v6574, %v8190
      %v8770 = vmul.f32 %v6579, %v8190
      %v8771 = vmul.f32 %v6582, %v8190
      %v8772 = vmul.f32 %v6587, %v8190
      %v8773 = vmul.f32 %v6590, %v8190
      %v8774 = vmul.f32 %v6595, %v8190
      %v8775 = vmul.f32 %v6598, %v8190
      %v8776 = vmul.f32 %v6603, %v8190
      %v8777 = vmul.f32 %v6606, %v8190
      %v8778 = vmul.f32 %v6611, %v8190
      %v8779 = vmul.f32 %v6614, %v8190
      %v8780 = vmul.f32 %v6619, %v8190
      %v8781 = vmul.f32 %v6622, %v8190
      %v8782 = vmul.f32 %v6627, %v8190
      %v8783 = vmul.f32 %v6630, %v8190
      %v8784 = vmul.f32 %v6635, %v8190
      %v8785 = vmul.f32 %v6638, %v8190
      %v8786 = vmul.f32 %v6643, %v8190
      %v8787 = vmul.f32 %v6646, %v8190
      %v8788 = vmul.f32 %v6651, %v8190
      %v8789 = vmul.f32 %v6654, %v8190
      %v8790 = vmul.f32 %v6659, %v8190
      %v8791 = vmul.f32 %v6662, %v8190
      %v8792 = vmul.f32 %v6667, %v8190
      %v8793 = vmul.f32 %v6670, %v8190
      %v8794 = vmul.f32 %v6675, %v8190
      %v8795 = vmul.f32 %v6678, %v8190
      %v8796 = vmul.f32 %v6683, %v8190
      %v8797 = vmul.f32 %v6686, %v8190
      %v8798 = vmul.f32 %v6691, %v8190
      %v8799 = vmul.f32 %v6694, %v8190
      %v8800 = vmul.f32 %v6699, %v8190
      %v8801 = vmul.f32 %v6702, %v8190
      %v8802 = vmul.f32 %v6707, %v8190
      %v8803 = vmul.f32 %v6710, %v8190
      %v8804 = vmul.f32 %v6715, %v8190
      %v8805 = vmul.f32 %v6718, %v8190
      %v8806 = vmul.f32 %v6723, %v8190
      %v8807 = vmul.f32 %v6726, %v8190
      %v8808 = vmul.f32 %v6731, %v8190
      %v8809 = vmul.f32 %v6734, %v8190
      %v8810 = vmul.f32 %v6739, %v8190
      %v8811 = vmul.f32 %v6742, %v8190
      %v8812 = vmul.f32 %v6747, %v8190
      %v8813 = vmul.f32 %v6750, %v8190
      %v8814 = vmul.f32 %v6755, %v8190
      %v8815 = vmul.f32 %v6758, %v8190
      %v8816 = vmul.f32 %v6763, %v8190
      %v8817 = vmul.f32 %v6766, %v8190
      %v8818 = vmul.f32 %v6771, %v8190
      %v8819 = vmul.f32 %v6774, %v8190
      %v8820 = vmul.f32 %v6779, %v8190
      %v8821 = vmul.f32 %v6782, %v8190
      %v8822 = vmul.f32 %v6787, %v8190
      %v8823 = vmul.f32 %v6790, %v8190
      %v8824 = vmul.f32 %v6795, %v8190
      %v8825 = vmul.f32 %v6798, %v8190
      %v8826 = vmul.f32 %v6803, %v8190
      %v8827 = vmul.f32 %v6806, %v8190
      %v8828 = vmul.f32 %v6811, %v8190
      %v8829 = vmul.f32 %v6814, %v8190
      %v8830 = vmul.f32 %v6819, %v8190
      %v8831 = vmul.f32 %v6822, %v8190
      %v8832 = vmul.f32 %v6827, %v8190
      %v8833 = vmul.f32 %v6830, %v8190
      %v8834 = vmul.f32 %v6835, %v8190
      %v8835 = vmul.f32 %v6838, %v8190
      %v8836 = vmul.f32 %v6843, %v8190
      %v8837 = vmul.f32 %v6846, %v8190
      %v8838 = vmul.f32 %v6851, %v8190
      %v8839 = vmul.f32 %v6854, %v8190
      %v8840 = vmul.f32 %v6859, %v8190
      %v8841 = vmul.f32 %v6862, %v8190
      %v8842 = vmul.f32 %v6867, %v8190
      %v8843 = vmul.f32 %v6870, %v8190
      %v8844 = vmul.f32 %v6875, %v8190
      %v8845 = vmul.f32 %v6878, %v8190
      %v8846 = vmul.f32 %v6883, %v8190
      %v8847 = vmul.f32 %v6886, %v8190
      %v8848 = vmul.f32 %v6891, %v8190
      %v8849 = vmul.f32 %v6894, %v8190
      %v8850 = vmul.f32 %v6899, %v8190
      %v8851 = vmul.f32 %v6902, %v8190
      %v8852 = vmul.f32 %v6907, %v8190
      %v8853 = vmul.f32 %v6910, %v8190
      %v8854 = vmul.f32 %v6915, %v8190
      %v8855 = vmul.f32 %v6918, %v8190
      %v8856 = vmul.f32 %v6923, %v8190
      %v8857 = vmul.f32 %v6926, %v8190
      %v8858 = vmul.f32 %v6931, %v8190
      %v8859 = vmul.f32 %v6934, %v8190
      %v8860 = vmul.f32 %v6939, %v8190
      %v8861 = vmul.f32 %v6942, %v8190
      %v8862 = vmul.f32 %v6947, %v8190
      %v8863 = vmul.f32 %v6950, %v8190
      %v8864 = vmul.f32 %v6955, %v8190
      %v8865 = vmul.f32 %v6958, %v8190
      %v8866 = vmul.f32 %v6963, %v8190
      %v8867 = vmul.f32 %v6966, %v8190
      %v8868 = vmul.f32 %v6971, %v8190
      %v8869 = vmul.f32 %v6974, %v8190
      %v8870 = vmul.f32 %v6979, %v8190
      %v8871 = vmul.f32 %v6982, %v8190
      %v8872 = vmul.f32 %v6987, %v8190
      %v8873 = vmul.f32 %v6990, %v8190
      %v8874 = vmul.f32 %v6995, %v8190
      %v8875 = vmul.f32 %v6998, %v8190
      %v8876 = vmul.f32 %v7003, %v8190
      %v8877 = vmul.f32 %v7006, %v8190
      %v8878 = vmul.f32 %v7011, %v8190
      %v8879 = vmul.f32 %v7014, %v8190
      %v8880 = vmul.f32 %v7019, %v8190
      %v8881 = vmul.f32 %v7022, %v8190
      %v8882 = vmul.f32 %v7027, %v8190
      %v8883 = vmul.f32 %v7030, %v8190
      %v8884 = vmul.f32 %v7035, %v8190
      %v8885 = vmul.f32 %v7038, %v8190
      %v8886 = vmul.f32 %v7043, %v8190
      %v8887 = vmul.f32 %v7046, %v8190
      %v8888 = vmul.f32 %v7051, %v8190
      %v8889 = vmul.f32 %v7054, %v8190
      %v8890 = vmul.f32 %v7059, %v8190
      %v8891 = vmul.f32 %v7062, %v8190
      %v8892 = vmul.f32 %v7067, %v8190
      %v8893 = vmul.f32 %v7070, %v8190
      %v8894 = vmul.f32 %v7075, %v8190
      %v8895 = vmul.f32 %v7078, %v8190
      %v8896 = vmul.f32 %v7083, %v8190
      %v8897 = vmul.f32 %v7086, %v8190
      %v8898 = vmul.f32 %v7091, %v8190
      %v8899 = vmul.f32 %v7094, %v8190
      %v8900 = vmul.f32 %v7099, %v8190
      %v8901 = vmul.f32 %v7102, %v8190
      %v8902 = vmul.f32 %v7107, %v8190
      %v8903 = vmul.f32 %v7110, %v8190
      %v8904 = vmul.f32 %v7115, %v8190
      %v8905 = vmul.f32 %v7118, %v8190
      %v8906 = vmul.f32 %v7123, %v8190
      %v8907 = vmul.f32 %v7126, %v8190
      %v8908 = vmul.f32 %v7131, %v8190
      %v8909 = vmul.f32 %v7134, %v8190
      %v8910 = vmul.f32 %v7139, %v8190
      %v8911 = vmul.f32 %v7142, %v8190
      %v8912 = vmul.f32 %v7147, %v8190
      %v8913 = vmul.f32 %v7150, %v8190
      %v8914 = vmul.f32 %v7155, %v8190
      %v8915 = vmul.f32 %v7158, %v8190
      %v8916 = vmul.f32 %v7163, %v8190
      %v8917 = vmul.f32 %v7166, %v8190
      %v8918 = vmul.f32 %v7171, %v8190
      %v8919 = vmul.f32 %v7174, %v8190
      %v8920 = vmul.f32 %v7179, %v8190
      %v8921 = vmul.f32 %v7182, %v8190
      %v8922 = vmul.f32 %v7187, %v8190
      %v8923 = vmul.f32 %v7190, %v8190
      %v8924 = vmul.f32 %v7195, %v8190
      %v8925 = vmul.f32 %v7198, %v8190
      %v8926 = vmul.f32 %v7203, %v8190
      %v8927 = vmul.f32 %v7206, %v8190
      %v8928 = vmul.f32 %v7211, %v8190
      %v8929 = vmul.f32 %v7214, %v8190
      %v8930 = vmul.f32 %v7219, %v8190
      %v8931 = vmul.f32 %v7222, %v8190
      %v8932 = vmul.f32 %v7227, %v8190
      %v8933 = vmul.f32 %v7230, %v8190
      %v8934 = vmul.f32 %v7235, %v8190
      %v8935 = vmul.f32 %v7238, %v8190
      %v8936 = vmul.f32 %v7243, %v8190
      %v8937 = vmul.f32 %v7246, %v8190
      %v8938 = vmul.f32 %v7251, %v8190
      %v8939 = vmul.f32 %v7254, %v8190
      %v8940 = vmul.f32 %v7259, %v8190
      %v8941 = vmul.f32 %v7262, %v8190
      %v8942 = vmul.f32 %v7267, %v8190
      %v8943 = vmul.f32 %v7270, %v8190
      %v8944 = vmul.f32 %v7275, %v8190
      %v8945 = vmul.f32 %v7278, %v8190
      %v8946 = vmul.f32 %v7283, %v8190
      %v8947 = vmul.f32 %v7286, %v8190
      %v8948 = vmul.f32 %v7291, %v8190
      %v8949 = vmul.f32 %v7294, %v8190
      %v8950 = vmul.f32 %v7299, %v8190
      %v8951 = vmul.f32 %v7302, %v8190
      %v8952 = vmul.f32 %v7307, %v8190
      %v8953 = vmul.f32 %v7310, %v8190
      %v8954 = vmul.f32 %v7315, %v8190
      %v8955 = vmul.f32 %v7318, %v8190
      %v8956 = vmul.f32 %v7323, %v8190
      %v8957 = vmul.f32 %v7326, %v8190
      %v8958 = vmul.f32 %v7331, %v8190
      %v8959 = vmul.f32 %v7334, %v8190
      %v8960 = vmul.f32 %v7339, %v8190
      %v8961 = vmul.f32 %v7342, %v8190
      %v8962 = vmul.f32 %v7347, %v8190
      %v8963 = vmul.f32 %v7350, %v8190
      %v8964 = vmul.f32 %v7355, %v8190
      %v8965 = vmul.f32 %v7358, %v8190
      %v8966 = vmul.f32 %v7363, %v8190
      %v8967 = vmul.f32 %v7366, %v8190
      %v8968 = vmul.f32 %v7371, %v8190
      %v8969 = vmul.f32 %v7374, %v8190
      %v8970 = vmul.f32 %v7379, %v8190
      %v8971 = vmul.f32 %v7382, %v8190
      %v8972 = vmul.f32 %v7387, %v8190
      %v8973 = vmul.f32 %v7390, %v8190
      %v8974 = vmul.f32 %v7395, %v8190
      %v8975 = vmul.f32 %v7398, %v8190
      %v8976 = vsel %vm7401, %v4267, %v8192
      %v8977 = vsel %vm7402, %v4270, %v8193
      %v8978 = vsel %vm7403, %v4275, %v8194
      %v8979 = vsel %vm7404, %v4278, %v8195
      %v8980 = vsel %vm7405, %v4283, %v8196
      %v8981 = vsel %vm7406, %v4286, %v8197
      %v8982 = vsel %vm7407, %v4291, %v8198
      %v8983 = vsel %vm7408, %v4294, %v8199
      %v8984 = vsel %vm7409, %v4299, %v8200
      %v8985 = vsel %vm7410, %v4302, %v8201
      %v8986 = vsel %vm7411, %v4307, %v8202
      %v8987 = vsel %vm7412, %v4310, %v8203
      %v8988 = vsel %vm7413, %v4315, %v8204
      %v8989 = vsel %vm7414, %v4318, %v8205
      %v8990 = vsel %vm7415, %v4323, %v8206
      %v8991 = vsel %vm7416, %v4326, %v8207
      %v8992 = vsel %vm7417, %v4331, %v8208
      %v8993 = vsel %vm7418, %v4334, %v8209
      %v8994 = vsel %vm7419, %v4339, %v8210
      %v8995 = vsel %vm7420, %v4342, %v8211
      %v8996 = vsel %vm7421, %v4347, %v8212
      %v8997 = vsel %vm7422, %v4350, %v8213
      %v8998 = vsel %vm7423, %v4355, %v8214
      %v8999 = vsel %vm7424, %v4358, %v8215
      %v9000 = vsel %vm7425, %v4363, %v8216
      %v9001 = vsel %vm7426, %v4366, %v8217
      %v9002 = vsel %vm7427, %v4371, %v8218
      %v9003 = vsel %vm7428, %v4374, %v8219
      %v9004 = vsel %vm7429, %v4379, %v8220
      %v9005 = vsel %vm7430, %v4382, %v8221
      %v9006 = vsel %vm7431, %v4387, %v8222
      %v9007 = vsel %vm7432, %v4390, %v8223
      %v9008 = vsel %vm7433, %v4395, %v8224
      %v9009 = vsel %vm7434, %v4398, %v8225
      %v9010 = vsel %vm7435, %v4403, %v8226
      %v9011 = vsel %vm7436, %v4406, %v8227
      %v9012 = vsel %vm7437, %v4411, %v8228
      %v9013 = vsel %vm7438, %v4414, %v8229
      %v9014 = vsel %vm7439, %v4419, %v8230
      %v9015 = vsel %vm7440, %v4422, %v8231
      %v9016 = vsel %vm7441, %v4427, %v8232
      %v9017 = vsel %vm7442, %v4430, %v8233
      %v9018 = vsel %vm7443, %v4435, %v8234
      %v9019 = vsel %vm7444, %v4438, %v8235
      %v9020 = vsel %vm7445, %v4443, %v8236
      %v9021 = vsel %vm7446, %v4446, %v8237
      %v9022 = vsel %vm7447, %v4451, %v8238
      %v9023 = vsel %vm7448, %v4454, %v8239
      %v9024 = vsel %vm7449, %v4459, %v8240
      %v9025 = vsel %vm7450, %v4462, %v8241
      %v9026 = vsel %vm7451, %v4467, %v8242
      %v9027 = vsel %vm7452, %v4470, %v8243
      %v9028 = vsel %vm7453, %v4475, %v8244
      %v9029 = vsel %vm7454, %v4478, %v8245
      %v9030 = vsel %vm7455, %v4483, %v8246
      %v9031 = vsel %vm7456, %v4486, %v8247
      %v9032 = vsel %vm7457, %v4491, %v8248
      %v9033 = vsel %vm7458, %v4494, %v8249
      %v9034 = vsel %vm7459, %v4499, %v8250
      %v9035 = vsel %vm7460, %v4502, %v8251
      %v9036 = vsel %vm7461, %v4507, %v8252
      %v9037 = vsel %vm7462, %v4510, %v8253
      %v9038 = vsel %vm7463, %v4515, %v8254
      %v9039 = vsel %vm7464, %v4518, %v8255
      %v9040 = vsel %vm7465, %v4523, %v8256
      %v9041 = vsel %vm7466, %v4526, %v8257
      %v9042 = vsel %vm7467, %v4531, %v8258
      %v9043 = vsel %vm7468, %v4534, %v8259
      %v9044 = vsel %vm7469, %v4539, %v8260
      %v9045 = vsel %vm7470, %v4542, %v8261
      %v9046 = vsel %vm7471, %v4547, %v8262
      %v9047 = vsel %vm7472, %v4550, %v8263
      %v9048 = vsel %vm7473, %v4555, %v8264
      %v9049 = vsel %vm7474, %v4558, %v8265
      %v9050 = vsel %vm7475, %v4563, %v8266
      %v9051 = vsel %vm7476, %v4566, %v8267
      %v9052 = vsel %vm7477, %v4571, %v8268
      %v9053 = vsel %vm7478, %v4574, %v8269
      %v9054 = vsel %vm7479, %v4579, %v8270
      %v9055 = vsel %vm7480, %v4582, %v8271
      %v9056 = vsel %vm7481, %v4587, %v8272
      %v9057 = vsel %vm7482, %v4590, %v8273
      %v9058 = vsel %vm7483, %v4595, %v8274
      %v9059 = vsel %vm7484, %v4598, %v8275
      %v9060 = vsel %vm7485, %v4603, %v8276
      %v9061 = vsel %vm7486, %v4606, %v8277
      %v9062 = vsel %vm7487, %v4611, %v8278
      %v9063 = vsel %vm7488, %v4614, %v8279
      %v9064 = vsel %vm7489, %v4619, %v8280
      %v9065 = vsel %vm7490, %v4622, %v8281
      %v9066 = vsel %vm7491, %v4627, %v8282
      %v9067 = vsel %vm7492, %v4630, %v8283
      %v9068 = vsel %vm7493, %v4635, %v8284
      %v9069 = vsel %vm7494, %v4638, %v8285
      %v9070 = vsel %vm7495, %v4643, %v8286
      %v9071 = vsel %vm7496, %v4646, %v8287
      %v9072 = vsel %vm7497, %v4651, %v8288
      %v9073 = vsel %vm7498, %v4654, %v8289
      %v9074 = vsel %vm7499, %v4659, %v8290
      %v9075 = vsel %vm7500, %v4662, %v8291
      %v9076 = vsel %vm7501, %v4667, %v8292
      %v9077 = vsel %vm7502, %v4670, %v8293
      %v9078 = vsel %vm7503, %v4675, %v8294
      %v9079 = vsel %vm7504, %v4678, %v8295
      %v9080 = vsel %vm7505, %v4683, %v8296
      %v9081 = vsel %vm7506, %v4686, %v8297
      %v9082 = vsel %vm7507, %v4691, %v8298
      %v9083 = vsel %vm7508, %v4694, %v8299
      %v9084 = vsel %vm7509, %v4699, %v8300
      %v9085 = vsel %vm7510, %v4702, %v8301
      %v9086 = vsel %vm7511, %v4707, %v8302
      %v9087 = vsel %vm7512, %v4710, %v8303
      %v9088 = vsel %vm7513, %v4715, %v8304
      %v9089 = vsel %vm7514, %v4718, %v8305
      %v9090 = vsel %vm7515, %v4723, %v8306
      %v9091 = vsel %vm7516, %v4726, %v8307
      %v9092 = vsel %vm7517, %v4731, %v8308
      %v9093 = vsel %vm7518, %v4734, %v8309
      %v9094 = vsel %vm7519, %v4739, %v8310
      %v9095 = vsel %vm7520, %v4742, %v8311
      %v9096 = vsel %vm7521, %v4747, %v8312
      %v9097 = vsel %vm7522, %v4750, %v8313
      %v9098 = vsel %vm7523, %v4755, %v8314
      %v9099 = vsel %vm7524, %v4758, %v8315
      %v9100 = vsel %vm7525, %v4763, %v8316
      %v9101 = vsel %vm7526, %v4766, %v8317
      %v9102 = vsel %vm7527, %v4771, %v8318
      %v9103 = vsel %vm7528, %v4774, %v8319
      %v9104 = vsel %vm7529, %v4779, %v8320
      %v9105 = vsel %vm7530, %v4782, %v8321
      %v9106 = vsel %vm7531, %v4787, %v8322
      %v9107 = vsel %vm7532, %v4790, %v8323
      %v9108 = vsel %vm7533, %v4795, %v8324
      %v9109 = vsel %vm7534, %v4798, %v8325
      %v9110 = vsel %vm7535, %v4803, %v8326
      %v9111 = vsel %vm7536, %v4806, %v8327
      %v9112 = vsel %vm7537, %v4811, %v8328
      %v9113 = vsel %vm7538, %v4814, %v8329
      %v9114 = vsel %vm7539, %v4819, %v8330
      %v9115 = vsel %vm7540, %v4822, %v8331
      %v9116 = vsel %vm7541, %v4827, %v8332
      %v9117 = vsel %vm7542, %v4830, %v8333
      %v9118 = vsel %vm7543, %v4835, %v8334
      %v9119 = vsel %vm7544, %v4838, %v8335
      %v9120 = vsel %vm7545, %v4843, %v8336
      %v9121 = vsel %vm7546, %v4846, %v8337
      %v9122 = vsel %vm7547, %v4851, %v8338
      %v9123 = vsel %vm7548, %v4854, %v8339
      %v9124 = vsel %vm7549, %v4859, %v8340
      %v9125 = vsel %vm7550, %v4862, %v8341
      %v9126 = vsel %vm7551, %v4867, %v8342
      %v9127 = vsel %vm7552, %v4870, %v8343
      %v9128 = vsel %vm7553, %v4875, %v8344
      %v9129 = vsel %vm7554, %v4878, %v8345
      %v9130 = vsel %vm7555, %v4883, %v8346
      %v9131 = vsel %vm7556, %v4886, %v8347
      %v9132 = vsel %vm7557, %v4891, %v8348
      %v9133 = vsel %vm7558, %v4894, %v8349
      %v9134 = vsel %vm7559, %v4899, %v8350
      %v9135 = vsel %vm7560, %v4902, %v8351
      %v9136 = vsel %vm7561, %v4907, %v8352
      %v9137 = vsel %vm7562, %v4910, %v8353
      %v9138 = vsel %vm7563, %v4915, %v8354
      %v9139 = vsel %vm7564, %v4918, %v8355
      %v9140 = vsel %vm7565, %v4923, %v8356
      %v9141 = vsel %vm7566, %v4926, %v8357
      %v9142 = vsel %vm7567, %v4931, %v8358
      %v9143 = vsel %vm7568, %v4934, %v8359
      %v9144 = vsel %vm7569, %v4939, %v8360
      %v9145 = vsel %vm7570, %v4942, %v8361
      %v9146 = vsel %vm7571, %v4947, %v8362
      %v9147 = vsel %vm7572, %v4950, %v8363
      %v9148 = vsel %vm7573, %v4955, %v8364
      %v9149 = vsel %vm7574, %v4958, %v8365
      %v9150 = vsel %vm7575, %v4963, %v8366
      %v9151 = vsel %vm7576, %v4966, %v8367
      %v9152 = vsel %vm7577, %v4971, %v8368
      %v9153 = vsel %vm7578, %v4974, %v8369
      %v9154 = vsel %vm7579, %v4979, %v8370
      %v9155 = vsel %vm7580, %v4982, %v8371
      %v9156 = vsel %vm7581, %v4987, %v8372
      %v9157 = vsel %vm7582, %v4990, %v8373
      %v9158 = vsel %vm7583, %v4995, %v8374
      %v9159 = vsel %vm7584, %v4998, %v8375
      %v9160 = vsel %vm7585, %v5003, %v8376
      %v9161 = vsel %vm7586, %v5006, %v8377
      %v9162 = vsel %vm7587, %v5011, %v8378
      %v9163 = vsel %vm7588, %v5014, %v8379
      %v9164 = vsel %vm7589, %v5019, %v8380
      %v9165 = vsel %vm7590, %v5022, %v8381
      %v9166 = vsel %vm7591, %v5027, %v8382
      %v9167 = vsel %vm7592, %v5030, %v8383
      %v9168 = vsel %vm7593, %v5035, %v8384
      %v9169 = vsel %vm7594, %v5038, %v8385
      %v9170 = vsel %vm7595, %v5043, %v8386
      %v9171 = vsel %vm7596, %v5046, %v8387
      %v9172 = vsel %vm7597, %v5051, %v8388
      %v9173 = vsel %vm7598, %v5054, %v8389
      %v9174 = vsel %vm7599, %v5059, %v8390
      %v9175 = vsel %vm7600, %v5062, %v8391
      %v9176 = vsel %vm7601, %v5067, %v8392
      %v9177 = vsel %vm7602, %v5070, %v8393
      %v9178 = vsel %vm7603, %v5075, %v8394
      %v9179 = vsel %vm7604, %v5078, %v8395
      %v9180 = vsel %vm7605, %v5083, %v8396
      %v9181 = vsel %vm7606, %v5086, %v8397
      %v9182 = vsel %vm7607, %v5091, %v8398
      %v9183 = vsel %vm7608, %v5094, %v8399
      %v9184 = vsel %vm7609, %v5099, %v8400
      %v9185 = vsel %vm7610, %v5102, %v8401
      %v9186 = vsel %vm7611, %v5107, %v8402
      %v9187 = vsel %vm7612, %v5110, %v8403
      %v9188 = vsel %vm7613, %v5115, %v8404
      %v9189 = vsel %vm7614, %v5118, %v8405
      %v9190 = vsel %vm7615, %v5123, %v8406
      %v9191 = vsel %vm7616, %v5126, %v8407
      %v9192 = vsel %vm7617, %v5131, %v8408
      %v9193 = vsel %vm7618, %v5134, %v8409
      %v9194 = vsel %vm7619, %v5139, %v8410
      %v9195 = vsel %vm7620, %v5142, %v8411
      %v9196 = vsel %vm7621, %v5147, %v8412
      %v9197 = vsel %vm7622, %v5150, %v8413
      %v9198 = vsel %vm7623, %v5155, %v8414
      %v9199 = vsel %vm7624, %v5158, %v8415
      %v9200 = vsel %vm7625, %v5163, %v8416
      %v9201 = vsel %vm7626, %v5166, %v8417
      %v9202 = vsel %vm7627, %v5171, %v8418
      %v9203 = vsel %vm7628, %v5174, %v8419
      %v9204 = vsel %vm7629, %v5179, %v8420
      %v9205 = vsel %vm7630, %v5182, %v8421
      %v9206 = vsel %vm7631, %v5187, %v8422
      %v9207 = vsel %vm7632, %v5190, %v8423
      %v9208 = vsel %vm7633, %v5195, %v8424
      %v9209 = vsel %vm7634, %v5198, %v8425
      %v9210 = vsel %vm7635, %v5203, %v8426
      %v9211 = vsel %vm7636, %v5206, %v8427
      %v9212 = vsel %vm7637, %v5211, %v8428
      %v9213 = vsel %vm7638, %v5214, %v8429
      %v9214 = vsel %vm7639, %v5219, %v8430
      %v9215 = vsel %vm7640, %v5222, %v8431
      %v9216 = vsel %vm7641, %v5227, %v8432
      %v9217 = vsel %vm7642, %v5230, %v8433
      %v9218 = vsel %vm7643, %v5235, %v8434
      %v9219 = vsel %vm7644, %v5238, %v8435
      %v9220 = vsel %vm7645, %v5243, %v8436
      %v9221 = vsel %vm7646, %v5246, %v8437
      %v9222 = vsel %vm7647, %v5251, %v8438
      %v9223 = vsel %vm7648, %v5254, %v8439
      %v9224 = vsel %vm7649, %v5259, %v8440
      %v9225 = vsel %vm7650, %v5262, %v8441
      %v9226 = vsel %vm7651, %v5267, %v8442
      %v9227 = vsel %vm7652, %v5270, %v8443
      %v9228 = vsel %vm7653, %v5275, %v8444
      %v9229 = vsel %vm7654, %v5278, %v8445
      %v9230 = vsel %vm7655, %v5283, %v8446
      %v9231 = vsel %vm7656, %v5286, %v8447
      %v9232 = vsel %vm7657, %v5291, %v8448
      %v9233 = vsel %vm7658, %v5294, %v8449
      %v9234 = vsel %vm7659, %v5299, %v8450
      %v9235 = vsel %vm7660, %v5302, %v8451
      %v9236 = vsel %vm7661, %v5307, %v8452
      %v9237 = vsel %vm7662, %v5310, %v8453
      %v9238 = vsel %vm7663, %v5315, %v8454
      %v9239 = vsel %vm7664, %v5318, %v8455
      %v9240 = vsel %vm7665, %v5323, %v8456
      %v9241 = vsel %vm7666, %v5326, %v8457
      %v9242 = vsel %vm7667, %v5331, %v8458
      %v9243 = vsel %vm7668, %v5334, %v8459
      %v9244 = vsel %vm7669, %v5339, %v8460
      %v9245 = vsel %vm7670, %v5342, %v8461
      %v9246 = vsel %vm7671, %v5347, %v8462
      %v9247 = vsel %vm7672, %v5350, %v8463
      %v9248 = vsel %vm7673, %v5355, %v8464
      %v9249 = vsel %vm7674, %v5358, %v8465
      %v9250 = vsel %vm7675, %v5363, %v8466
      %v9251 = vsel %vm7676, %v5366, %v8467
      %v9252 = vsel %vm7677, %v5371, %v8468
      %v9253 = vsel %vm7678, %v5374, %v8469
      %v9254 = vsel %vm7679, %v5379, %v8470
      %v9255 = vsel %vm7680, %v5382, %v8471
      %v9256 = vsel %vm7681, %v5387, %v8472
      %v9257 = vsel %vm7682, %v5390, %v8473
      %v9258 = vsel %vm7683, %v5395, %v8474
      %v9259 = vsel %vm7684, %v5398, %v8475
      %v9260 = vsel %vm7685, %v5403, %v8476
      %v9261 = vsel %vm7686, %v5406, %v8477
      %v9262 = vsel %vm7687, %v5411, %v8478
      %v9263 = vsel %vm7688, %v5414, %v8479
      %v9264 = vsel %vm7689, %v5419, %v8480
      %v9265 = vsel %vm7690, %v5422, %v8481
      %v9266 = vsel %vm7691, %v5427, %v8482
      %v9267 = vsel %vm7692, %v5430, %v8483
      %v9268 = vsel %vm7693, %v5435, %v8484
      %v9269 = vsel %vm7694, %v5438, %v8485
      %v9270 = vsel %vm7695, %v5443, %v8486
      %v9271 = vsel %vm7696, %v5446, %v8487
      %v9272 = vsel %vm7697, %v5451, %v8488
      %v9273 = vsel %vm7698, %v5454, %v8489
      %v9274 = vsel %vm7699, %v5459, %v8490
      %v9275 = vsel %vm7700, %v5462, %v8491
      %v9276 = vsel %vm7701, %v5467, %v8492
      %v9277 = vsel %vm7702, %v5470, %v8493
      %v9278 = vsel %vm7703, %v5475, %v8494
      %v9279 = vsel %vm7704, %v5478, %v8495
      %v9280 = vsel %vm7705, %v5483, %v8496
      %v9281 = vsel %vm7706, %v5486, %v8497
      %v9282 = vsel %vm7707, %v5491, %v8498
      %v9283 = vsel %vm7708, %v5494, %v8499
      %v9284 = vsel %vm7709, %v5499, %v8500
      %v9285 = vsel %vm7710, %v5502, %v8501
      %v9286 = vsel %vm7711, %v5507, %v8502
      %v9287 = vsel %vm7712, %v5510, %v8503
      %v9288 = vsel %vm7713, %v5515, %v8504
      %v9289 = vsel %vm7714, %v5518, %v8505
      %v9290 = vsel %vm7715, %v5523, %v8506
      %v9291 = vsel %vm7716, %v5526, %v8507
      %v9292 = vsel %vm7717, %v5531, %v8508
      %v9293 = vsel %vm7718, %v5534, %v8509
      %v9294 = vsel %vm7719, %v5539, %v8510
      %v9295 = vsel %vm7720, %v5542, %v8511
      %v9296 = vsel %vm7721, %v5547, %v8512
      %v9297 = vsel %vm7722, %v5550, %v8513
      %v9298 = vsel %vm7723, %v5555, %v8514
      %v9299 = vsel %vm7724, %v5558, %v8515
      %v9300 = vsel %vm7725, %v5563, %v8516
      %v9301 = vsel %vm7726, %v5566, %v8517
      %v9302 = vsel %vm7727, %v5571, %v8518
      %v9303 = vsel %vm7728, %v5574, %v8519
      %v9304 = vsel %vm7729, %v5579, %v8520
      %v9305 = vsel %vm7730, %v5582, %v8521
      %v9306 = vsel %vm7731, %v5587, %v8522
      %v9307 = vsel %vm7732, %v5590, %v8523
      %v9308 = vsel %vm7733, %v5595, %v8524
      %v9309 = vsel %vm7734, %v5598, %v8525
      %v9310 = vsel %vm7735, %v5603, %v8526
      %v9311 = vsel %vm7736, %v5606, %v8527
      %v9312 = vsel %vm7737, %v5611, %v8528
      %v9313 = vsel %vm7738, %v5614, %v8529
      %v9314 = vsel %vm7739, %v5619, %v8530
      %v9315 = vsel %vm7740, %v5622, %v8531
      %v9316 = vsel %vm7741, %v5627, %v8532
      %v9317 = vsel %vm7742, %v5630, %v8533
      %v9318 = vsel %vm7743, %v5635, %v8534
      %v9319 = vsel %vm7744, %v5638, %v8535
      %v9320 = vsel %vm7745, %v5643, %v8536
      %v9321 = vsel %vm7746, %v5646, %v8537
      %v9322 = vsel %vm7747, %v5651, %v8538
      %v9323 = vsel %vm7748, %v5654, %v8539
      %v9324 = vsel %vm7749, %v5659, %v8540
      %v9325 = vsel %vm7750, %v5662, %v8541
      %v9326 = vsel %vm7751, %v5667, %v8542
      %v9327 = vsel %vm7752, %v5670, %v8543
      %v9328 = vsel %vm7753, %v5675, %v8544
      %v9329 = vsel %vm7754, %v5678, %v8545
      %v9330 = vsel %vm7755, %v5683, %v8546
      %v9331 = vsel %vm7756, %v5686, %v8547
      %v9332 = vsel %vm7757, %v5691, %v8548
      %v9333 = vsel %vm7758, %v5694, %v8549
      %v9334 = vsel %vm7759, %v5699, %v8550
      %v9335 = vsel %vm7760, %v5702, %v8551
      %v9336 = vsel %vm7761, %v5707, %v8552
      %v9337 = vsel %vm7762, %v5710, %v8553
      %v9338 = vsel %vm7763, %v5715, %v8554
      %v9339 = vsel %vm7764, %v5718, %v8555
      %v9340 = vsel %vm7765, %v5723, %v8556
      %v9341 = vsel %vm7766, %v5726, %v8557
      %v9342 = vsel %vm7767, %v5731, %v8558
      %v9343 = vsel %vm7768, %v5734, %v8559
      %v9344 = vsel %vm7769, %v5739, %v8560
      %v9345 = vsel %vm7770, %v5742, %v8561
      %v9346 = vsel %vm7771, %v5747, %v8562
      %v9347 = vsel %vm7772, %v5750, %v8563
      %v9348 = vsel %vm7773, %v5755, %v8564
      %v9349 = vsel %vm7774, %v5758, %v8565
      %v9350 = vsel %vm7775, %v5763, %v8566
      %v9351 = vsel %vm7776, %v5766, %v8567
      %v9352 = vsel %vm7777, %v5771, %v8568
      %v9353 = vsel %vm7778, %v5774, %v8569
      %v9354 = vsel %vm7779, %v5779, %v8570
      %v9355 = vsel %vm7780, %v5782, %v8571
      %v9356 = vsel %vm7781, %v5787, %v8572
      %v9357 = vsel %vm7782, %v5790, %v8573
      %v9358 = vsel %vm7783, %v5795, %v8574
      %v9359 = vsel %vm7784, %v5798, %v8575
      %v9360 = vsel %vm7785, %v5803, %v8576
      %v9361 = vsel %vm7786, %v5806, %v8577
      %v9362 = vsel %vm7787, %v5811, %v8578
      %v9363 = vsel %vm7788, %v5814, %v8579
      %v9364 = vsel %vm7789, %v5819, %v8580
      %v9365 = vsel %vm7790, %v5822, %v8581
      %v9366 = vsel %vm7791, %v5827, %v8582
      %v9367 = vsel %vm7792, %v5830, %v8583
      %v9368 = vsel %vm7793, %v5835, %v8584
      %v9369 = vsel %vm7794, %v5838, %v8585
      %v9370 = vsel %vm7795, %v5843, %v8586
      %v9371 = vsel %vm7796, %v5846, %v8587
      %v9372 = vsel %vm7797, %v5851, %v8588
      %v9373 = vsel %vm7798, %v5854, %v8589
      %v9374 = vsel %vm7799, %v5859, %v8590
      %v9375 = vsel %vm7800, %v5862, %v8591
      %v9376 = vsel %vm7801, %v5867, %v8592
      %v9377 = vsel %vm7802, %v5870, %v8593
      %v9378 = vsel %vm7803, %v5875, %v8594
      %v9379 = vsel %vm7804, %v5878, %v8595
      %v9380 = vsel %vm7805, %v5883, %v8596
      %v9381 = vsel %vm7806, %v5886, %v8597
      %v9382 = vsel %vm7807, %v5891, %v8598
      %v9383 = vsel %vm7808, %v5894, %v8599
      %v9384 = vsel %vm7809, %v5899, %v8600
      %v9385 = vsel %vm7810, %v5902, %v8601
      %v9386 = vsel %vm7811, %v5907, %v8602
      %v9387 = vsel %vm7812, %v5910, %v8603
      %v9388 = vsel %vm7813, %v5915, %v8604
      %v9389 = vsel %vm7814, %v5918, %v8605
      %v9390 = vsel %vm7815, %v5923, %v8606
      %v9391 = vsel %vm7816, %v5926, %v8607
      %v9392 = vsel %vm7817, %v5931, %v8608
      %v9393 = vsel %vm7818, %v5934, %v8609
      %v9394 = vsel %vm7819, %v5939, %v8610
      %v9395 = vsel %vm7820, %v5942, %v8611
      %v9396 = vsel %vm7821, %v5947, %v8612
      %v9397 = vsel %vm7822, %v5950, %v8613
      %v9398 = vsel %vm7823, %v5955, %v8614
      %v9399 = vsel %vm7824, %v5958, %v8615
      %v9400 = vsel %vm7825, %v5963, %v8616
      %v9401 = vsel %vm7826, %v5966, %v8617
      %v9402 = vsel %vm7827, %v5971, %v8618
      %v9403 = vsel %vm7828, %v5974, %v8619
      %v9404 = vsel %vm7829, %v5979, %v8620
      %v9405 = vsel %vm7830, %v5982, %v8621
      %v9406 = vsel %vm7831, %v5987, %v8622
      %v9407 = vsel %vm7832, %v5990, %v8623
      %v9408 = vsel %vm7833, %v5995, %v8624
      %v9409 = vsel %vm7834, %v5998, %v8625
      %v9410 = vsel %vm7835, %v6003, %v8626
      %v9411 = vsel %vm7836, %v6006, %v8627
      %v9412 = vsel %vm7837, %v6011, %v8628
      %v9413 = vsel %vm7838, %v6014, %v8629
      %v9414 = vsel %vm7839, %v6019, %v8630
      %v9415 = vsel %vm7840, %v6022, %v8631
      %v9416 = vsel %vm7841, %v6027, %v8632
      %v9417 = vsel %vm7842, %v6030, %v8633
      %v9418 = vsel %vm7843, %v6035, %v8634
      %v9419 = vsel %vm7844, %v6038, %v8635
      %v9420 = vsel %vm7845, %v6043, %v8636
      %v9421 = vsel %vm7846, %v6046, %v8637
      %v9422 = vsel %vm7847, %v6051, %v8638
      %v9423 = vsel %vm7848, %v6054, %v8639
      %v9424 = vsel %vm7849, %v6059, %v8640
      %v9425 = vsel %vm7850, %v6062, %v8641
      %v9426 = vsel %vm7851, %v6067, %v8642
      %v9427 = vsel %vm7852, %v6070, %v8643
      %v9428 = vsel %vm7853, %v6075, %v8644
      %v9429 = vsel %vm7854, %v6078, %v8645
      %v9430 = vsel %vm7855, %v6083, %v8646
      %v9431 = vsel %vm7856, %v6086, %v8647
      %v9432 = vsel %vm7857, %v6091, %v8648
      %v9433 = vsel %vm7858, %v6094, %v8649
      %v9434 = vsel %vm7859, %v6099, %v8650
      %v9435 = vsel %vm7860, %v6102, %v8651
      %v9436 = vsel %vm7861, %v6107, %v8652
      %v9437 = vsel %vm7862, %v6110, %v8653
      %v9438 = vsel %vm7863, %v6115, %v8654
      %v9439 = vsel %vm7864, %v6118, %v8655
      %v9440 = vsel %vm7865, %v6123, %v8656
      %v9441 = vsel %vm7866, %v6126, %v8657
      %v9442 = vsel %vm7867, %v6131, %v8658
      %v9443 = vsel %vm7868, %v6134, %v8659
      %v9444 = vsel %vm7869, %v6139, %v8660
      %v9445 = vsel %vm7870, %v6142, %v8661
      %v9446 = vsel %vm7871, %v6147, %v8662
      %v9447 = vsel %vm7872, %v6150, %v8663
      %v9448 = vsel %vm7873, %v6155, %v8664
      %v9449 = vsel %vm7874, %v6158, %v8665
      %v9450 = vsel %vm7875, %v6163, %v8666
      %v9451 = vsel %vm7876, %v6166, %v8667
      %v9452 = vsel %vm7877, %v6171, %v8668
      %v9453 = vsel %vm7878, %v6174, %v8669
      %v9454 = vsel %vm7879, %v6179, %v8670
      %v9455 = vsel %vm7880, %v6182, %v8671
      %v9456 = vsel %vm7881, %v6187, %v8672
      %v9457 = vsel %vm7882, %v6190, %v8673
      %v9458 = vsel %vm7883, %v6195, %v8674
      %v9459 = vsel %vm7884, %v6198, %v8675
      %v9460 = vsel %vm7885, %v6203, %v8676
      %v9461 = vsel %vm7886, %v6206, %v8677
      %v9462 = vsel %vm7887, %v6211, %v8678
      %v9463 = vsel %vm7888, %v6214, %v8679
      %v9464 = vsel %vm7889, %v6219, %v8680
      %v9465 = vsel %vm7890, %v6222, %v8681
      %v9466 = vsel %vm7891, %v6227, %v8682
      %v9467 = vsel %vm7892, %v6230, %v8683
      %v9468 = vsel %vm7893, %v6235, %v8684
      %v9469 = vsel %vm7894, %v6238, %v8685
      %v9470 = vsel %vm7895, %v6243, %v8686
      %v9471 = vsel %vm7896, %v6246, %v8687
      %v9472 = vsel %vm7897, %v6251, %v8688
      %v9473 = vsel %vm7898, %v6254, %v8689
      %v9474 = vsel %vm7899, %v6259, %v8690
      %v9475 = vsel %vm7900, %v6262, %v8691
      %v9476 = vsel %vm7901, %v6267, %v8692
      %v9477 = vsel %vm7902, %v6270, %v8693
      %v9478 = vsel %vm7903, %v6275, %v8694
      %v9479 = vsel %vm7904, %v6278, %v8695
      %v9480 = vsel %vm7905, %v6283, %v8696
      %v9481 = vsel %vm7906, %v6286, %v8697
      %v9482 = vsel %vm7907, %v6291, %v8698
      %v9483 = vsel %vm7908, %v6294, %v8699
      %v9484 = vsel %vm7909, %v6299, %v8700
      %v9485 = vsel %vm7910, %v6302, %v8701
      %v9486 = vsel %vm7911, %v6307, %v8702
      %v9487 = vsel %vm7912, %v6310, %v8703
      %v9488 = vsel %vm7913, %v6315, %v8704
      %v9489 = vsel %vm7914, %v6318, %v8705
      %v9490 = vsel %vm7915, %v6323, %v8706
      %v9491 = vsel %vm7916, %v6326, %v8707
      %v9492 = vsel %vm7917, %v6331, %v8708
      %v9493 = vsel %vm7918, %v6334, %v8709
      %v9494 = vsel %vm7919, %v6339, %v8710
      %v9495 = vsel %vm7920, %v6342, %v8711
      %v9496 = vsel %vm7921, %v6347, %v8712
      %v9497 = vsel %vm7922, %v6350, %v8713
      %v9498 = vsel %vm7923, %v6355, %v8714
      %v9499 = vsel %vm7924, %v6358, %v8715
      %v9500 = vsel %vm7925, %v6363, %v8716
      %v9501 = vsel %vm7926, %v6366, %v8717
      %v9502 = vsel %vm7927, %v6371, %v8718
      %v9503 = vsel %vm7928, %v6374, %v8719
      %v9504 = vsel %vm7929, %v6379, %v8720
      %v9505 = vsel %vm7930, %v6382, %v8721
      %v9506 = vsel %vm7931, %v6387, %v8722
      %v9507 = vsel %vm7932, %v6390, %v8723
      %v9508 = vsel %vm7933, %v6395, %v8724
      %v9509 = vsel %vm7934, %v6398, %v8725
      %v9510 = vsel %vm7935, %v6403, %v8726
      %v9511 = vsel %vm7936, %v6406, %v8727
      %v9512 = vsel %vm7937, %v6411, %v8728
      %v9513 = vsel %vm7938, %v6414, %v8729
      %v9514 = vsel %vm7939, %v6419, %v8730
      %v9515 = vsel %vm7940, %v6422, %v8731
      %v9516 = vsel %vm7941, %v6427, %v8732
      %v9517 = vsel %vm7942, %v6430, %v8733
      %v9518 = vsel %vm7943, %v6435, %v8734
      %v9519 = vsel %vm7944, %v6438, %v8735
      %v9520 = vsel %vm7945, %v6443, %v8736
      %v9521 = vsel %vm7946, %v6446, %v8737
      %v9522 = vsel %vm7947, %v6451, %v8738
      %v9523 = vsel %vm7948, %v6454, %v8739
      %v9524 = vsel %vm7949, %v6459, %v8740
      %v9525 = vsel %vm7950, %v6462, %v8741
      %v9526 = vsel %vm7951, %v6467, %v8742
      %v9527 = vsel %vm7952, %v6470, %v8743
      %v9528 = vsel %vm7953, %v6475, %v8744
      %v9529 = vsel %vm7954, %v6478, %v8745
      %v9530 = vsel %vm7955, %v6483, %v8746
      %v9531 = vsel %vm7956, %v6486, %v8747
      %v9532 = vsel %vm7957, %v6491, %v8748
      %v9533 = vsel %vm7958, %v6494, %v8749
      %v9534 = vsel %vm7959, %v6499, %v8750
      %v9535 = vsel %vm7960, %v6502, %v8751
      %v9536 = vsel %vm7961, %v6507, %v8752
      %v9537 = vsel %vm7962, %v6510, %v8753
      %v9538 = vsel %vm7963, %v6515, %v8754
      %v9539 = vsel %vm7964, %v6518, %v8755
      %v9540 = vsel %vm7965, %v6523, %v8756
      %v9541 = vsel %vm7966, %v6526, %v8757
      %v9542 = vsel %vm7967, %v6531, %v8758
      %v9543 = vsel %vm7968, %v6534, %v8759
      %v9544 = vsel %vm7969, %v6539, %v8760
      %v9545 = vsel %vm7970, %v6542, %v8761
      %v9546 = vsel %vm7971, %v6547, %v8762
      %v9547 = vsel %vm7972, %v6550, %v8763
      %v9548 = vsel %vm7973, %v6555, %v8764
      %v9549 = vsel %vm7974, %v6558, %v8765
      %v9550 = vsel %vm7975, %v6563, %v8766
      %v9551 = vsel %vm7976, %v6566, %v8767
      %v9552 = vsel %vm7977, %v6571, %v8768
      %v9553 = vsel %vm7978, %v6574, %v8769
      %v9554 = vsel %vm7979, %v6579, %v8770
      %v9555 = vsel %vm7980, %v6582, %v8771
      %v9556 = vsel %vm7981, %v6587, %v8772
      %v9557 = vsel %vm7982, %v6590, %v8773
      %v9558 = vsel %vm7983, %v6595, %v8774
      %v9559 = vsel %vm7984, %v6598, %v8775
      %v9560 = vsel %vm7985, %v6603, %v8776
      %v9561 = vsel %vm7986, %v6606, %v8777
      %v9562 = vsel %vm7987, %v6611, %v8778
      %v9563 = vsel %vm7988, %v6614, %v8779
      %v9564 = vsel %vm7989, %v6619, %v8780
      %v9565 = vsel %vm7990, %v6622, %v8781
      %v9566 = vsel %vm7991, %v6627, %v8782
      %v9567 = vsel %vm7992, %v6630, %v8783
      %v9568 = vsel %vm7993, %v6635, %v8784
      %v9569 = vsel %vm7994, %v6638, %v8785
      %v9570 = vsel %vm7995, %v6643, %v8786
      %v9571 = vsel %vm7996, %v6646, %v8787
      %v9572 = vsel %vm7997, %v6651, %v8788
      %v9573 = vsel %vm7998, %v6654, %v8789
      %v9574 = vsel %vm7999, %v6659, %v8790
      %v9575 = vsel %vm8000, %v6662, %v8791
      %v9576 = vsel %vm8001, %v6667, %v8792
      %v9577 = vsel %vm8002, %v6670, %v8793
      %v9578 = vsel %vm8003, %v6675, %v8794
      %v9579 = vsel %vm8004, %v6678, %v8795
      %v9580 = vsel %vm8005, %v6683, %v8796
      %v9581 = vsel %vm8006, %v6686, %v8797
      %v9582 = vsel %vm8007, %v6691, %v8798
      %v9583 = vsel %vm8008, %v6694, %v8799
      %v9584 = vsel %vm8009, %v6699, %v8800
      %v9585 = vsel %vm8010, %v6702, %v8801
      %v9586 = vsel %vm8011, %v6707, %v8802
      %v9587 = vsel %vm8012, %v6710, %v8803
      %v9588 = vsel %vm8013, %v6715, %v8804
      %v9589 = vsel %vm8014, %v6718, %v8805
      %v9590 = vsel %vm8015, %v6723, %v8806
      %v9591 = vsel %vm8016, %v6726, %v8807
      %v9592 = vsel %vm8017, %v6731, %v8808
      %v9593 = vsel %vm8018, %v6734, %v8809
      %v9594 = vsel %vm8019, %v6739, %v8810
      %v9595 = vsel %vm8020, %v6742, %v8811
      %v9596 = vsel %vm8021, %v6747, %v8812
      %v9597 = vsel %vm8022, %v6750, %v8813
      %v9598 = vsel %vm8023, %v6755, %v8814
      %v9599 = vsel %vm8024, %v6758, %v8815
      %v9600 = vsel %vm8025, %v6763, %v8816
      %v9601 = vsel %vm8026, %v6766, %v8817
      %v9602 = vsel %vm8027, %v6771, %v8818
      %v9603 = vsel %vm8028, %v6774, %v8819
      %v9604 = vsel %vm8029, %v6779, %v8820
      %v9605 = vsel %vm8030, %v6782, %v8821
      %v9606 = vsel %vm8031, %v6787, %v8822
      %v9607 = vsel %vm8032, %v6790, %v8823
      %v9608 = vsel %vm8033, %v6795, %v8824
      %v9609 = vsel %vm8034, %v6798, %v8825
      %v9610 = vsel %vm8035, %v6803, %v8826
      %v9611 = vsel %vm8036, %v6806, %v8827
      %v9612 = vsel %vm8037, %v6811, %v8828
      %v9613 = vsel %vm8038, %v6814, %v8829
      %v9614 = vsel %vm8039, %v6819, %v8830
      %v9615 = vsel %vm8040, %v6822, %v8831
      %v9616 = vsel %vm8041, %v6827, %v8832
      %v9617 = vsel %vm8042, %v6830, %v8833
      %v9618 = vsel %vm8043, %v6835, %v8834
      %v9619 = vsel %vm8044, %v6838, %v8835
      %v9620 = vsel %vm8045, %v6843, %v8836
      %v9621 = vsel %vm8046, %v6846, %v8837
      %v9622 = vsel %vm8047, %v6851, %v8838
      %v9623 = vsel %vm8048, %v6854, %v8839
      %v9624 = vsel %vm8049, %v6859, %v8840
      %v9625 = vsel %vm8050, %v6862, %v8841
      %v9626 = vsel %vm8051, %v6867, %v8842
      %v9627 = vsel %vm8052, %v6870, %v8843
      %v9628 = vsel %vm8053, %v6875, %v8844
      %v9629 = vsel %vm8054, %v6878, %v8845
      %v9630 = vsel %vm8055, %v6883, %v8846
      %v9631 = vsel %vm8056, %v6886, %v8847
      %v9632 = vsel %vm8057, %v6891, %v8848
      %v9633 = vsel %vm8058, %v6894, %v8849
      %v9634 = vsel %vm8059, %v6899, %v8850
      %v9635 = vsel %vm8060, %v6902, %v8851
      %v9636 = vsel %vm8061, %v6907, %v8852
      %v9637 = vsel %vm8062, %v6910, %v8853
      %v9638 = vsel %vm8063, %v6915, %v8854
      %v9639 = vsel %vm8064, %v6918, %v8855
      %v9640 = vsel %vm8065, %v6923, %v8856
      %v9641 = vsel %vm8066, %v6926, %v8857
      %v9642 = vsel %vm8067, %v6931, %v8858
      %v9643 = vsel %vm8068, %v6934, %v8859
      %v9644 = vsel %vm8069, %v6939, %v8860
      %v9645 = vsel %vm8070, %v6942, %v8861
      %v9646 = vsel %vm8071, %v6947, %v8862
      %v9647 = vsel %vm8072, %v6950, %v8863
      %v9648 = vsel %vm8073, %v6955, %v8864
      %v9649 = vsel %vm8074, %v6958, %v8865
      %v9650 = vsel %vm8075, %v6963, %v8866
      %v9651 = vsel %vm8076, %v6966, %v8867
      %v9652 = vsel %vm8077, %v6971, %v8868
      %v9653 = vsel %vm8078, %v6974, %v8869
      %v9654 = vsel %vm8079, %v6979, %v8870
      %v9655 = vsel %vm8080, %v6982, %v8871
      %v9656 = vsel %vm8081, %v6987, %v8872
      %v9657 = vsel %vm8082, %v6990, %v8873
      %v9658 = vsel %vm8083, %v6995, %v8874
      %v9659 = vsel %vm8084, %v6998, %v8875
      %v9660 = vsel %vm8085, %v7003, %v8876
      %v9661 = vsel %vm8086, %v7006, %v8877
      %v9662 = vsel %vm8087, %v7011, %v8878
      %v9663 = vsel %vm8088, %v7014, %v8879
      %v9664 = vsel %vm8089, %v7019, %v8880
      %v9665 = vsel %vm8090, %v7022, %v8881
      %v9666 = vsel %vm8091, %v7027, %v8882
      %v9667 = vsel %vm8092, %v7030, %v8883
      %v9668 = vsel %vm8093, %v7035, %v8884
      %v9669 = vsel %vm8094, %v7038, %v8885
      %v9670 = vsel %vm8095, %v7043, %v8886
      %v9671 = vsel %vm8096, %v7046, %v8887
      %v9672 = vsel %vm8097, %v7051, %v8888
      %v9673 = vsel %vm8098, %v7054, %v8889
      %v9674 = vsel %vm8099, %v7059, %v8890
      %v9675 = vsel %vm8100, %v7062, %v8891
      %v9676 = vsel %vm8101, %v7067, %v8892
      %v9677 = vsel %vm8102, %v7070, %v8893
      %v9678 = vsel %vm8103, %v7075, %v8894
      %v9679 = vsel %vm8104, %v7078, %v8895
      %v9680 = vsel %vm8105, %v7083, %v8896
      %v9681 = vsel %vm8106, %v7086, %v8897
      %v9682 = vsel %vm8107, %v7091, %v8898
      %v9683 = vsel %vm8108, %v7094, %v8899
      %v9684 = vsel %vm8109, %v7099, %v8900
      %v9685 = vsel %vm8110, %v7102, %v8901
      %v9686 = vsel %vm8111, %v7107, %v8902
      %v9687 = vsel %vm8112, %v7110, %v8903
      %v9688 = vsel %vm8113, %v7115, %v8904
      %v9689 = vsel %vm8114, %v7118, %v8905
      %v9690 = vsel %vm8115, %v7123, %v8906
      %v9691 = vsel %vm8116, %v7126, %v8907
      %v9692 = vsel %vm8117, %v7131, %v8908
      %v9693 = vsel %vm8118, %v7134, %v8909
      %v9694 = vsel %vm8119, %v7139, %v8910
      %v9695 = vsel %vm8120, %v7142, %v8911
      %v9696 = vsel %vm8121, %v7147, %v8912
      %v9697 = vsel %vm8122, %v7150, %v8913
      %v9698 = vsel %vm8123, %v7155, %v8914
      %v9699 = vsel %vm8124, %v7158, %v8915
      %v9700 = vsel %vm8125, %v7163, %v8916
      %v9701 = vsel %vm8126, %v7166, %v8917
      %v9702 = vsel %vm8127, %v7171, %v8918
      %v9703 = vsel %vm8128, %v7174, %v8919
      %v9704 = vsel %vm8129, %v7179, %v8920
      %v9705 = vsel %vm8130, %v7182, %v8921
      %v9706 = vsel %vm8131, %v7187, %v8922
      %v9707 = vsel %vm8132, %v7190, %v8923
      %v9708 = vsel %vm8133, %v7195, %v8924
      %v9709 = vsel %vm8134, %v7198, %v8925
      %v9710 = vsel %vm8135, %v7203, %v8926
      %v9711 = vsel %vm8136, %v7206, %v8927
      %v9712 = vsel %vm8137, %v7211, %v8928
      %v9713 = vsel %vm8138, %v7214, %v8929
      %v9714 = vsel %vm8139, %v7219, %v8930
      %v9715 = vsel %vm8140, %v7222, %v8931
      %v9716 = vsel %vm8141, %v7227, %v8932
      %v9717 = vsel %vm8142, %v7230, %v8933
      %v9718 = vsel %vm8143, %v7235, %v8934
      %v9719 = vsel %vm8144, %v7238, %v8935
      %v9720 = vsel %vm8145, %v7243, %v8936
      %v9721 = vsel %vm8146, %v7246, %v8937
      %v9722 = vsel %vm8147, %v7251, %v8938
      %v9723 = vsel %vm8148, %v7254, %v8939
      %v9724 = vsel %vm8149, %v7259, %v8940
      %v9725 = vsel %vm8150, %v7262, %v8941
      %v9726 = vsel %vm8151, %v7267, %v8942
      %v9727 = vsel %vm8152, %v7270, %v8943
      %v9728 = vsel %vm8153, %v7275, %v8944
      %v9729 = vsel %vm8154, %v7278, %v8945
      %v9730 = vsel %vm8155, %v7283, %v8946
      %v9731 = vsel %vm8156, %v7286, %v8947
      %v9732 = vsel %vm8157, %v7291, %v8948
      %v9733 = vsel %vm8158, %v7294, %v8949
      %v9734 = vsel %vm8159, %v7299, %v8950
      %v9735 = vsel %vm8160, %v7302, %v8951
      %v9736 = vsel %vm8161, %v7307, %v8952
      %v9737 = vsel %vm8162, %v7310, %v8953
      %v9738 = vsel %vm8163, %v7315, %v8954
      %v9739 = vsel %vm8164, %v7318, %v8955
      %v9740 = vsel %vm8165, %v7323, %v8956
      %v9741 = vsel %vm8166, %v7326, %v8957
      %v9742 = vsel %vm8167, %v7331, %v8958
      %v9743 = vsel %vm8168, %v7334, %v8959
      %v9744 = vsel %vm8169, %v7339, %v8960
      %v9745 = vsel %vm8170, %v7342, %v8961
      %v9746 = vsel %vm8171, %v7347, %v8962
      %v9747 = vsel %vm8172, %v7350, %v8963
      %v9748 = vsel %vm8173, %v7355, %v8964
      %v9749 = vsel %vm8174, %v7358, %v8965
      %v9750 = vsel %vm8175, %v7363, %v8966
      %v9751 = vsel %vm8176, %v7366, %v8967
      %v9752 = vsel %vm8177, %v7371, %v8968
      %v9753 = vsel %vm8178, %v7374, %v8969
      %v9754 = vsel %vm8179, %v7379, %v8970
      %v9755 = vsel %vm8180, %v7382, %v8971
      %v9756 = vsel %vm8181, %v7387, %v8972
      %v9757 = vsel %vm8182, %v7390, %v8973
      %v9758 = vsel %vm8183, %v7395, %v8974
      %v9759 = vsel %vm8184, %v7398, %v8975
      %v9760 = vld [vmem:[#allocation2] sm:$0x1]
      %vm9761 = vcmask 523264
      %v9762 = vsel %vm9761, %v8976, 0.0
      %v9763 = vsel %vm9761, %v8977, 0.0
      %v9764 = vadd.f32 %v9762, %v9763
      %v9765 = vsel %vm9761, %v8978, 0.0
      %v9766 = vadd.f32 %v9764, %v9765
      %v9767 = vsel %vm9761, %v8979, 0.0
      %v9768 = vadd.f32 %v9766, %v9767
      %v9769 = vsel %vm9761, %v8980, 0.0
      %v9770 = vadd.f32 %v9768, %v9769
      %v9771 = vsel %vm9761, %v8981, 0.0
      %v9772 = vadd.f32 %v9770, %v9771
      %v9773 = vsel %vm9761, %v8982, 0.0
      %v9774 = vadd.f32 %v9772, %v9773
      %v9775 = vsel %vm9761, %v8983, 0.0
      %v9776 = vadd.f32 %v9774, %v9775
      %v9777 = vsel %vm9761, %v8984, 0.0
      %v9778 = vadd.f32 %v9776, %v9777
      %v9779 = vsel %vm9761, %v8985, 0.0
      %v9780 = vadd.f32 %v9778, %v9779
      %v9781 = vsel %vm9761, %v8986, 0.0
      %v9782 = vadd.f32 %v9780, %v9781
      %v9783 = vsel %vm9761, %v8987, 0.0
      %v9784 = vadd.f32 %v9782, %v9783
      %v9785 = vsel %vm9761, %v8988, 0.0
      %v9786 = vadd.f32 %v9784, %v9785
      %v9787 = vsel %vm9761, %v8989, 0.0
      %v9788 = vadd.f32 %v9786, %v9787
      %v9789 = vsel %vm9761, %v8990, 0.0
      %v9790 = vadd.f32 %v9788, %v9789
      %v9791 = vsel %vm9761, %v8991, 0.0
      %v9792 = vadd.f32 %v9790, %v9791
      %v9793 = vsel %vm9761, %v8992, 0.0
      %v9794 = vadd.f32 %v9792, %v9793
      %v9795 = vsel %vm9761, %v8993, 0.0
      %v9796 = vadd.f32 %v9794, %v9795
      %v9797 = vsel %vm9761, %v8994, 0.0
      %v9798 = vadd.f32 %v9796, %v9797
      %v9799 = vsel %vm9761, %v8995, 0.0
      %v9800 = vadd.f32 %v9798, %v9799
      %v9801 = vsel %vm9761, %v8996, 0.0
      %v9802 = vadd.f32 %v9800, %v9801
      %v9803 = vsel %vm9761, %v8997, 0.0
      %v9804 = vadd.f32 %v9802, %v9803
      %v9805 = vsel %vm9761, %v8998, 0.0
      %v9806 = vadd.f32 %v9804, %v9805
      %v9807 = vsel %vm9761, %v8999, 0.0
      %v9808 = vadd.f32 %v9806, %v9807
      %v9809 = vsel %vm9761, %v9000, 0.0
      %v9810 = vadd.f32 %v9808, %v9809
      %v9811 = vsel %vm9761, %v9001, 0.0
      %v9812 = vadd.f32 %v9810, %v9811
      %v9813 = vsel %vm9761, %v9002, 0.0
      %v9814 = vadd.f32 %v9812, %v9813
      %v9815 = vsel %vm9761, %v9003, 0.0
      %v9816 = vadd.f32 %v9814, %v9815
      %v9817 = vsel %vm9761, %v9004, 0.0
      %v9818 = vadd.f32 %v9816, %v9817
      %v9819 = vsel %vm9761, %v9005, 0.0
      %v9820 = vadd.f32 %v9818, %v9819
      %v9821 = vsel %vm9761, %v9006, 0.0
      %v9822 = vadd.f32 %v9820, %v9821
      %v9823 = vsel %vm9761, %v9007, 0.0
      %v9824 = vadd.f32 %v9822, %v9823
      %v9825 = vsel %vm9761, %v9008, 0.0
      %v9826 = vadd.f32 %v9824, %v9825
      %v9827 = vsel %vm9761, %v9009, 0.0
      %v9828 = vadd.f32 %v9826, %v9827
      %v9829 = vsel %vm9761, %v9010, 0.0
      %v9830 = vadd.f32 %v9828, %v9829
      %v9831 = vsel %vm9761, %v9011, 0.0
      %v9832 = vadd.f32 %v9830, %v9831
      %v9833 = vsel %vm9761, %v9012, 0.0
      %v9834 = vadd.f32 %v9832, %v9833
      %v9835 = vsel %vm9761, %v9013, 0.0
      %v9836 = vadd.f32 %v9834, %v9835
      %v9837 = vsel %vm9761, %v9014, 0.0
      %v9838 = vadd.f32 %v9836, %v9837
      %v9839 = vsel %vm9761, %v9015, 0.0
      %v9840 = vadd.f32 %v9838, %v9839
      %v9841 = vsel %vm9761, %v9016, 0.0
      %v9842 = vadd.f32 %v9840, %v9841
      %v9843 = vsel %vm9761, %v9017, 0.0
      %v9844 = vadd.f32 %v9842, %v9843
      %v9845 = vsel %vm9761, %v9018, 0.0
      %v9846 = vadd.f32 %v9844, %v9845
      %v9847 = vsel %vm9761, %v9019, 0.0
      %v9848 = vadd.f32 %v9846, %v9847
      %v9849 = vsel %vm9761, %v9020, 0.0
      %v9850 = vadd.f32 %v9848, %v9849
      %v9851 = vsel %vm9761, %v9021, 0.0
      %v9852 = vadd.f32 %v9850, %v9851
      %v9853 = vsel %vm9761, %v9022, 0.0
      %v9854 = vadd.f32 %v9852, %v9853
      %v9855 = vsel %vm9761, %v9023, 0.0
      %v9856 = vadd.f32 %v9854, %v9855
      %v9857 = vsel %vm9761, %v9024, 0.0
      %v9858 = vadd.f32 %v9856, %v9857
      %v9859 = vsel %vm9761, %v9025, 0.0
      %v9860 = vadd.f32 %v9858, %v9859
      %v9861 = vsel %vm9761, %v9026, 0.0
      %v9862 = vadd.f32 %v9860, %v9861
      %v9863 = vsel %vm9761, %v9027, 0.0
      %v9864 = vadd.f32 %v9862, %v9863
      %v9865 = vsel %vm9761, %v9028, 0.0
      %v9866 = vadd.f32 %v9864, %v9865
      %v9867 = vsel %vm9761, %v9029, 0.0
      %v9868 = vadd.f32 %v9866, %v9867
      %v9869 = vsel %vm9761, %v9030, 0.0
      %v9870 = vadd.f32 %v9868, %v9869
      %v9871 = vsel %vm9761, %v9031, 0.0
      %v9872 = vadd.f32 %v9870, %v9871
      %v9873 = vsel %vm9761, %v9032, 0.0
      %v9874 = vadd.f32 %v9872, %v9873
      %v9875 = vsel %vm9761, %v9033, 0.0
      %v9876 = vadd.f32 %v9874, %v9875
      %v9877 = vsel %vm9761, %v9034, 0.0
      %v9878 = vadd.f32 %v9876, %v9877
      %v9879 = vsel %vm9761, %v9035, 0.0
      %v9880 = vadd.f32 %v9878, %v9879
      %v9881 = vsel %vm9761, %v9036, 0.0
      %v9882 = vadd.f32 %v9880, %v9881
      %v9883 = vsel %vm9761, %v9037, 0.0
      %v9884 = vadd.f32 %v9882, %v9883
      %v9885 = vsel %vm9761, %v9038, 0.0
      %v9886 = vadd.f32 %v9884, %v9885
      %v9887 = vsel %vm9761, %v9039, 0.0
      %v9888 = vadd.f32 %v9886, %v9887
      %v9889 = vsel %vm9761, %v9040, 0.0
      %v9890 = vadd.f32 %v9888, %v9889
      %v9891 = vsel %vm9761, %v9041, 0.0
      %v9892 = vadd.f32 %v9890, %v9891
      %v9893 = vsel %vm9761, %v9042, 0.0
      %v9894 = vadd.f32 %v9892, %v9893
      %v9895 = vsel %vm9761, %v9043, 0.0
      %v9896 = vadd.f32 %v9894, %v9895
      %v9897 = vsel %vm9761, %v9044, 0.0
      %v9898 = vadd.f32 %v9896, %v9897
      %v9899 = vsel %vm9761, %v9045, 0.0
      %v9900 = vadd.f32 %v9898, %v9899
      %v9901 = vsel %vm9761, %v9046, 0.0
      %v9902 = vadd.f32 %v9900, %v9901
      %v9903 = vsel %vm9761, %v9047, 0.0
      %v9904 = vadd.f32 %v9902, %v9903
      %v9905 = vsel %vm9761, %v9048, 0.0
      %v9906 = vadd.f32 %v9904, %v9905
      %v9907 = vsel %vm9761, %v9049, 0.0
      %v9908 = vadd.f32 %v9906, %v9907
      %v9909 = vsel %vm9761, %v9050, 0.0
      %v9910 = vadd.f32 %v9908, %v9909
      %v9911 = vsel %vm9761, %v9051, 0.0
      %v9912 = vadd.f32 %v9910, %v9911
      %v9913 = vsel %vm9761, %v9052, 0.0
      %v9914 = vadd.f32 %v9912, %v9913
      %v9915 = vsel %vm9761, %v9053, 0.0
      %v9916 = vadd.f32 %v9914, %v9915
      %v9917 = vsel %vm9761, %v9054, 0.0
      %v9918 = vadd.f32 %v9916, %v9917
      %v9919 = vsel %vm9761, %v9055, 0.0
      %v9920 = vadd.f32 %v9918, %v9919
      %v9921 = vsel %vm9761, %v9056, 0.0
      %v9922 = vadd.f32 %v9920, %v9921
      %v9923 = vsel %vm9761, %v9057, 0.0
      %v9924 = vadd.f32 %v9922, %v9923
      %v9925 = vsel %vm9761, %v9058, 0.0
      %v9926 = vadd.f32 %v9924, %v9925
      %v9927 = vsel %vm9761, %v9059, 0.0
      %v9928 = vadd.f32 %v9926, %v9927
      %v9929 = vsel %vm9761, %v9060, 0.0
      %v9930 = vadd.f32 %v9928, %v9929
      %v9931 = vsel %vm9761, %v9061, 0.0
      %v9932 = vadd.f32 %v9930, %v9931
      %v9933 = vsel %vm9761, %v9062, 0.0
      %v9934 = vadd.f32 %v9932, %v9933
      %v9935 = vsel %vm9761, %v9063, 0.0
      %v9936 = vadd.f32 %v9934, %v9935
      %v9937 = vsel %vm9761, %v9064, 0.0
      %v9938 = vadd.f32 %v9936, %v9937
      %v9939 = vsel %vm9761, %v9065, 0.0
      %v9940 = vadd.f32 %v9938, %v9939
      %v9941 = vsel %vm9761, %v9066, 0.0
      %v9942 = vadd.f32 %v9940, %v9941
      %v9943 = vsel %vm9761, %v9067, 0.0
      %v9944 = vadd.f32 %v9942, %v9943
      %v9945 = vsel %vm9761, %v9068, 0.0
      %v9946 = vadd.f32 %v9944, %v9945
      %v9947 = vsel %vm9761, %v9069, 0.0
      %v9948 = vadd.f32 %v9946, %v9947
      %v9949 = vsel %vm9761, %v9070, 0.0
      %v9950 = vadd.f32 %v9948, %v9949
      %v9951 = vsel %vm9761, %v9071, 0.0
      %v9952 = vadd.f32 %v9950, %v9951
      %v9953 = vsel %vm9761, %v9072, 0.0
      %v9954 = vadd.f32 %v9952, %v9953
      %v9955 = vsel %vm9761, %v9073, 0.0
      %v9956 = vadd.f32 %v9954, %v9955
      %v9957 = vsel %vm9761, %v9074, 0.0
      %v9958 = vadd.f32 %v9956, %v9957
      %v9959 = vsel %vm9761, %v9075, 0.0
      %v9960 = vadd.f32 %v9958, %v9959
      %v9961 = vsel %vm9761, %v9076, 0.0
      %v9962 = vadd.f32 %v9960, %v9961
      %v9963 = vsel %vm9761, %v9077, 0.0
      %v9964 = vadd.f32 %v9962, %v9963
      %v9965 = vsel %vm9761, %v9078, 0.0
      %v9966 = vadd.f32 %v9964, %v9965
      %v9967 = vsel %vm9761, %v9079, 0.0
      %v9968 = vadd.f32 %v9966, %v9967
      %v9969 = vsel %vm9761, %v9080, 0.0
      %v9970 = vadd.f32 %v9968, %v9969
      %v9971 = vsel %vm9761, %v9081, 0.0
      %v9972 = vadd.f32 %v9970, %v9971
      %v9973 = vsel %vm9761, %v9082, 0.0
      %v9974 = vadd.f32 %v9972, %v9973
      %v9975 = vsel %vm9761, %v9083, 0.0
      %v9976 = vadd.f32 %v9974, %v9975
      %v9977 = vsel %vm9761, %v9084, 0.0
      %v9978 = vadd.f32 %v9976, %v9977
      %v9979 = vsel %vm9761, %v9085, 0.0
      %v9980 = vadd.f32 %v9978, %v9979
      %v9981 = vsel %vm9761, %v9086, 0.0
      %v9982 = vadd.f32 %v9980, %v9981
      %v9983 = vsel %vm9761, %v9087, 0.0
      %v9984 = vadd.f32 %v9982, %v9983
      %v9985 = vsel %vm9761, %v9088, 0.0
      %v9986 = vadd.f32 %v9984, %v9985
      %v9987 = vsel %vm9761, %v9089, 0.0
      %v9988 = vadd.f32 %v9986, %v9987
      %v9989 = vsel %vm9761, %v9090, 0.0
      %v9990 = vadd.f32 %v9988, %v9989
      %v9991 = vsel %vm9761, %v9091, 0.0
      %v9992 = vadd.f32 %v9990, %v9991
      %v9993 = vsel %vm9761, %v9092, 0.0
      %v9994 = vadd.f32 %v9992, %v9993
      %v9995 = vsel %vm9761, %v9093, 0.0
      %v9996 = vadd.f32 %v9994, %v9995
      %v9997 = vsel %vm9761, %v9094, 0.0
      %v9998 = vadd.f32 %v9996, %v9997
      %v9999 = vsel %vm9761, %v9095, 0.0
      %v10000 = vadd.f32 %v9998, %v9999
      %v10001 = vsel %vm9761, %v9096, 0.0
      %v10002 = vadd.f32 %v10000, %v10001
      %v10003 = vsel %vm9761, %v9097, 0.0
      %v10004 = vadd.f32 %v10002, %v10003
      %v10005 = vsel %vm9761, %v9098, 0.0
      %v10006 = vadd.f32 %v10004, %v10005
      %v10007 = vsel %vm9761, %v9099, 0.0
      %v10008 = vadd.f32 %v10006, %v10007
      %v10009 = vsel %vm9761, %v9100, 0.0
      %v10010 = vadd.f32 %v10008, %v10009
      %v10011 = vsel %vm9761, %v9101, 0.0
      %v10012 = vadd.f32 %v10010, %v10011
      %v10013 = vsel %vm9761, %v9102, 0.0
      %v10014 = vadd.f32 %v10012, %v10013
      %v10015 = vsel %vm9761, %v9103, 0.0
      %v10016 = vadd.f32 %v10014, %v10015
      %v10017 = vsel %vm9761, %v9104, 0.0
      %v10018 = vadd.f32 %v10016, %v10017
      %v10019 = vsel %vm9761, %v9105, 0.0
      %v10020 = vadd.f32 %v10018, %v10019
      %v10021 = vsel %vm9761, %v9106, 0.0
      %v10022 = vadd.f32 %v10020, %v10021
      %v10023 = vsel %vm9761, %v9107, 0.0
      %v10024 = vadd.f32 %v10022, %v10023
      %v10025 = vsel %vm9761, %v9108, 0.0
      %v10026 = vadd.f32 %v10024, %v10025
      %v10027 = vsel %vm9761, %v9109, 0.0
      %v10028 = vadd.f32 %v10026, %v10027
      %v10029 = vsel %vm9761, %v9110, 0.0
      %v10030 = vadd.f32 %v10028, %v10029
      %v10031 = vsel %vm9761, %v9111, 0.0
      %v10032 = vadd.f32 %v10030, %v10031
      %v10033 = vsel %vm9761, %v9112, 0.0
      %v10034 = vadd.f32 %v10032, %v10033
      %v10035 = vsel %vm9761, %v9113, 0.0
      %v10036 = vadd.f32 %v10034, %v10035
      %v10037 = vsel %vm9761, %v9114, 0.0
      %v10038 = vadd.f32 %v10036, %v10037
      %v10039 = vsel %vm9761, %v9115, 0.0
      %v10040 = vadd.f32 %v10038, %v10039
      %v10041 = vsel %vm9761, %v9116, 0.0
      %v10042 = vadd.f32 %v10040, %v10041
      %v10043 = vsel %vm9761, %v9117, 0.0
      %v10044 = vadd.f32 %v10042, %v10043
      %v10045 = vsel %vm9761, %v9118, 0.0
      %v10046 = vadd.f32 %v10044, %v10045
      %v10047 = vsel %vm9761, %v9119, 0.0
      %v10048 = vadd.f32 %v10046, %v10047
      %v10049 = vsel %vm9761, %v9120, 0.0
      %v10050 = vadd.f32 %v10048, %v10049
      %v10051 = vsel %vm9761, %v9121, 0.0
      %v10052 = vadd.f32 %v10050, %v10051
      %v10053 = vsel %vm9761, %v9122, 0.0
      %v10054 = vadd.f32 %v10052, %v10053
      %v10055 = vsel %vm9761, %v9123, 0.0
      %v10056 = vadd.f32 %v10054, %v10055
      %v10057 = vsel %vm9761, %v9124, 0.0
      %v10058 = vadd.f32 %v10056, %v10057
      %v10059 = vsel %vm9761, %v9125, 0.0
      %v10060 = vadd.f32 %v10058, %v10059
      %v10061 = vsel %vm9761, %v9126, 0.0
      %v10062 = vadd.f32 %v10060, %v10061
      %v10063 = vsel %vm9761, %v9127, 0.0
      %v10064 = vadd.f32 %v10062, %v10063
      %v10065 = vsel %vm9761, %v9128, 0.0
      %v10066 = vadd.f32 %v10064, %v10065
      %v10067 = vsel %vm9761, %v9129, 0.0
      %v10068 = vadd.f32 %v10066, %v10067
      %v10069 = vsel %vm9761, %v9130, 0.0
      %v10070 = vadd.f32 %v10068, %v10069
      %v10071 = vsel %vm9761, %v9131, 0.0
      %v10072 = vadd.f32 %v10070, %v10071
      %v10073 = vsel %vm9761, %v9132, 0.0
      %v10074 = vadd.f32 %v10072, %v10073
      %v10075 = vsel %vm9761, %v9133, 0.0
      %v10076 = vadd.f32 %v10074, %v10075
      %v10077 = vsel %vm9761, %v9134, 0.0
      %v10078 = vadd.f32 %v10076, %v10077
      %v10079 = vsel %vm9761, %v9135, 0.0
      %v10080 = vadd.f32 %v10078, %v10079
      %v10081 = vsel %vm9761, %v9136, 0.0
      %v10082 = vadd.f32 %v10080, %v10081
      %v10083 = vsel %vm9761, %v9137, 0.0
      %v10084 = vadd.f32 %v10082, %v10083
      %v10085 = vsel %vm9761, %v9138, 0.0
      %v10086 = vadd.f32 %v10084, %v10085
      %v10087 = vsel %vm9761, %v9139, 0.0
      %v10088 = vadd.f32 %v10086, %v10087
      %v10089 = vsel %vm9761, %v9140, 0.0
      %v10090 = vadd.f32 %v10088, %v10089
      %v10091 = vsel %vm9761, %v9141, 0.0
      %v10092 = vadd.f32 %v10090, %v10091
      %v10093 = vsel %vm9761, %v9142, 0.0
      %v10094 = vadd.f32 %v10092, %v10093
      %v10095 = vsel %vm9761, %v9143, 0.0
      %v10096 = vadd.f32 %v10094, %v10095
      %v10097 = vsel %vm9761, %v9144, 0.0
      %v10098 = vadd.f32 %v10096, %v10097
      %v10099 = vsel %vm9761, %v9145, 0.0
      %v10100 = vadd.f32 %v10098, %v10099
      %v10101 = vsel %vm9761, %v9146, 0.0
      %v10102 = vadd.f32 %v10100, %v10101
      %v10103 = vsel %vm9761, %v9147, 0.0
      %v10104 = vadd.f32 %v10102, %v10103
      %v10105 = vsel %vm9761, %v9148, 0.0
      %v10106 = vadd.f32 %v10104, %v10105
      %v10107 = vsel %vm9761, %v9149, 0.0
      %v10108 = vadd.f32 %v10106, %v10107
      %v10109 = vsel %vm9761, %v9150, 0.0
      %v10110 = vadd.f32 %v10108, %v10109
      %v10111 = vsel %vm9761, %v9151, 0.0
      %v10112 = vadd.f32 %v10110, %v10111
      %v10113 = vsel %vm9761, %v9152, 0.0
      %v10114 = vadd.f32 %v10112, %v10113
      %v10115 = vsel %vm9761, %v9153, 0.0
      %v10116 = vadd.f32 %v10114, %v10115
      %v10117 = vsel %vm9761, %v9154, 0.0
      %v10118 = vadd.f32 %v10116, %v10117
      %v10119 = vsel %vm9761, %v9155, 0.0
      %v10120 = vadd.f32 %v10118, %v10119
      %v10121 = vsel %vm9761, %v9156, 0.0
      %v10122 = vadd.f32 %v10120, %v10121
      %v10123 = vsel %vm9761, %v9157, 0.0
      %v10124 = vadd.f32 %v10122, %v10123
      %v10125 = vsel %vm9761, %v9158, 0.0
      %v10126 = vadd.f32 %v10124, %v10125
      %v10127 = vsel %vm9761, %v9159, 0.0
      %v10128 = vadd.f32 %v10126, %v10127
      %v10129 = vsel %vm9761, %v9160, 0.0
      %v10130 = vadd.f32 %v10128, %v10129
      %v10131 = vsel %vm9761, %v9161, 0.0
      %v10132 = vadd.f32 %v10130, %v10131
      %v10133 = vsel %vm9761, %v9162, 0.0
      %v10134 = vadd.f32 %v10132, %v10133
      %v10135 = vsel %vm9761, %v9163, 0.0
      %v10136 = vadd.f32 %v10134, %v10135
      %v10137 = vsel %vm9761, %v9164, 0.0
      %v10138 = vadd.f32 %v10136, %v10137
      %v10139 = vsel %vm9761, %v9165, 0.0
      %v10140 = vadd.f32 %v10138, %v10139
      %v10141 = vsel %vm9761, %v9166, 0.0
      %v10142 = vadd.f32 %v10140, %v10141
      %v10143 = vsel %vm9761, %v9167, 0.0
      %v10144 = vadd.f32 %v10142, %v10143
      %v10145 = vsel %vm9761, %v9168, 0.0
      %v10146 = vadd.f32 %v10144, %v10145
      %v10147 = vsel %vm9761, %v9169, 0.0
      %v10148 = vadd.f32 %v10146, %v10147
      %v10149 = vsel %vm9761, %v9170, 0.0
      %v10150 = vadd.f32 %v10148, %v10149
      %v10151 = vsel %vm9761, %v9171, 0.0
      %v10152 = vadd.f32 %v10150, %v10151
      %v10153 = vsel %vm9761, %v9172, 0.0
      %v10154 = vadd.f32 %v10152, %v10153
      %v10155 = vsel %vm9761, %v9173, 0.0
      %v10156 = vadd.f32 %v10154, %v10155
      %v10157 = vsel %vm9761, %v9174, 0.0
      %v10158 = vadd.f32 %v10156, %v10157
      %v10159 = vsel %vm9761, %v9175, 0.0
      %v10160 = vadd.f32 %v10158, %v10159
      %v10161 = vsel %vm9761, %v9176, 0.0
      %v10162 = vadd.f32 %v10160, %v10161
      %v10163 = vsel %vm9761, %v9177, 0.0
      %v10164 = vadd.f32 %v10162, %v10163
      %v10165 = vsel %vm9761, %v9178, 0.0
      %v10166 = vadd.f32 %v10164, %v10165
      %v10167 = vsel %vm9761, %v9179, 0.0
      %v10168 = vadd.f32 %v10166, %v10167
      %v10169 = vsel %vm9761, %v9180, 0.0
      %v10170 = vadd.f32 %v10168, %v10169
      %v10171 = vsel %vm9761, %v9181, 0.0
      %v10172 = vadd.f32 %v10170, %v10171
      %v10173 = vsel %vm9761, %v9182, 0.0
      %v10174 = vadd.f32 %v10172, %v10173
      %v10175 = vsel %vm9761, %v9183, 0.0
      %v10176 = vadd.f32 %v10174, %v10175
      %v10177 = vsel %vm9761, %v9184, 0.0
      %v10178 = vadd.f32 %v10176, %v10177
      %v10179 = vsel %vm9761, %v9185, 0.0
      %v10180 = vadd.f32 %v10178, %v10179
      %v10181 = vsel %vm9761, %v9186, 0.0
      %v10182 = vadd.f32 %v10180, %v10181
      %v10183 = vsel %vm9761, %v9187, 0.0
      %v10184 = vadd.f32 %v10182, %v10183
      %v10185 = vsel %vm9761, %v9188, 0.0
      %v10186 = vadd.f32 %v10184, %v10185
      %v10187 = vsel %vm9761, %v9189, 0.0
      %v10188 = vadd.f32 %v10186, %v10187
      %v10189 = vsel %vm9761, %v9190, 0.0
      %v10190 = vadd.f32 %v10188, %v10189
      %v10191 = vsel %vm9761, %v9191, 0.0
      %v10192 = vadd.f32 %v10190, %v10191
      %v10193 = vsel %vm9761, %v9192, 0.0
      %v10194 = vadd.f32 %v10192, %v10193
      %v10195 = vsel %vm9761, %v9193, 0.0
      %v10196 = vadd.f32 %v10194, %v10195
      %v10197 = vsel %vm9761, %v9194, 0.0
      %v10198 = vadd.f32 %v10196, %v10197
      %v10199 = vsel %vm9761, %v9195, 0.0
      %v10200 = vadd.f32 %v10198, %v10199
      %v10201 = vsel %vm9761, %v9196, 0.0
      %v10202 = vadd.f32 %v10200, %v10201
      %v10203 = vsel %vm9761, %v9197, 0.0
      %v10204 = vadd.f32 %v10202, %v10203
      %v10205 = vsel %vm9761, %v9198, 0.0
      %v10206 = vadd.f32 %v10204, %v10205
      %v10207 = vsel %vm9761, %v9199, 0.0
      %v10208 = vadd.f32 %v10206, %v10207
      %v10209 = vsel %vm9761, %v9200, 0.0
      %v10210 = vadd.f32 %v10208, %v10209
      %v10211 = vsel %vm9761, %v9201, 0.0
      %v10212 = vadd.f32 %v10210, %v10211
      %v10213 = vsel %vm9761, %v9202, 0.0
      %v10214 = vadd.f32 %v10212, %v10213
      %v10215 = vsel %vm9761, %v9203, 0.0
      %v10216 = vadd.f32 %v10214, %v10215
      %v10217 = vsel %vm9761, %v9204, 0.0
      %v10218 = vadd.f32 %v10216, %v10217
      %v10219 = vsel %vm9761, %v9205, 0.0
      %v10220 = vadd.f32 %v10218, %v10219
      %v10221 = vsel %vm9761, %v9206, 0.0
      %v10222 = vadd.f32 %v10220, %v10221
      %v10223 = vsel %vm9761, %v9207, 0.0
      %v10224 = vadd.f32 %v10222, %v10223
      %v10225 = vsel %vm9761, %v9208, 0.0
      %v10226 = vadd.f32 %v10224, %v10225
      %v10227 = vsel %vm9761, %v9209, 0.0
      %v10228 = vadd.f32 %v10226, %v10227
      %v10229 = vsel %vm9761, %v9210, 0.0
      %v10230 = vadd.f32 %v10228, %v10229
      %v10231 = vsel %vm9761, %v9211, 0.0
      %v10232 = vadd.f32 %v10230, %v10231
      %v10233 = vsel %vm9761, %v9212, 0.0
      %v10234 = vadd.f32 %v10232, %v10233
      %v10235 = vsel %vm9761, %v9213, 0.0
      %v10236 = vadd.f32 %v10234, %v10235
      %v10237 = vsel %vm9761, %v9214, 0.0
      %v10238 = vadd.f32 %v10236, %v10237
      %v10239 = vsel %vm9761, %v9215, 0.0
      %v10240 = vadd.f32 %v10238, %v10239
      %v10241 = vsel %vm9761, %v9216, 0.0
      %v10242 = vadd.f32 %v10240, %v10241
      %v10243 = vsel %vm9761, %v9217, 0.0
      %v10244 = vadd.f32 %v10242, %v10243
      %v10245 = vsel %vm9761, %v9218, 0.0
      %v10246 = vadd.f32 %v10244, %v10245
      %v10247 = vsel %vm9761, %v9219, 0.0
      %v10248 = vadd.f32 %v10246, %v10247
      %v10249 = vsel %vm9761, %v9220, 0.0
      %v10250 = vadd.f32 %v10248, %v10249
      %v10251 = vsel %vm9761, %v9221, 0.0
      %v10252 = vadd.f32 %v10250, %v10251
      %v10253 = vsel %vm9761, %v9222, 0.0
      %v10254 = vadd.f32 %v10252, %v10253
      %v10255 = vsel %vm9761, %v9223, 0.0
      %v10256 = vadd.f32 %v10254, %v10255
      %v10257 = vsel %vm9761, %v9224, 0.0
      %v10258 = vadd.f32 %v10256, %v10257
      %v10259 = vsel %vm9761, %v9225, 0.0
      %v10260 = vadd.f32 %v10258, %v10259
      %v10261 = vsel %vm9761, %v9226, 0.0
      %v10262 = vadd.f32 %v10260, %v10261
      %v10263 = vsel %vm9761, %v9227, 0.0
      %v10264 = vadd.f32 %v10262, %v10263
      %v10265 = vsel %vm9761, %v9228, 0.0
      %v10266 = vadd.f32 %v10264, %v10265
      %v10267 = vsel %vm9761, %v9229, 0.0
      %v10268 = vadd.f32 %v10266, %v10267
      %v10269 = vsel %vm9761, %v9230, 0.0
      %v10270 = vadd.f32 %v10268, %v10269
      %v10271 = vsel %vm9761, %v9231, 0.0
      %v10272 = vadd.f32 %v10270, %v10271
      %v10273 = vsel %vm9761, %v9232, 0.0
      %v10274 = vadd.f32 %v10272, %v10273
      %v10275 = vsel %vm9761, %v9233, 0.0
      %v10276 = vadd.f32 %v10274, %v10275
      %v10277 = vsel %vm9761, %v9234, 0.0
      %v10278 = vadd.f32 %v10276, %v10277
      %v10279 = vsel %vm9761, %v9235, 0.0
      %v10280 = vadd.f32 %v10278, %v10279
      %v10281 = vsel %vm9761, %v9236, 0.0
      %v10282 = vadd.f32 %v10280, %v10281
      %v10283 = vsel %vm9761, %v9237, 0.0
      %v10284 = vadd.f32 %v10282, %v10283
      %v10285 = vsel %vm9761, %v9238, 0.0
      %v10286 = vadd.f32 %v10284, %v10285
      %v10287 = vsel %vm9761, %v9239, 0.0
      %v10288 = vadd.f32 %v10286, %v10287
      %v10289 = vsel %vm9761, %v9240, 0.0
      %v10290 = vadd.f32 %v10288, %v10289
      %v10291 = vsel %vm9761, %v9241, 0.0
      %v10292 = vadd.f32 %v10290, %v10291
      %v10293 = vsel %vm9761, %v9242, 0.0
      %v10294 = vadd.f32 %v10292, %v10293
      %v10295 = vsel %vm9761, %v9243, 0.0
      %v10296 = vadd.f32 %v10294, %v10295
      %v10297 = vsel %vm9761, %v9244, 0.0
      %v10298 = vadd.f32 %v10296, %v10297
      %v10299 = vsel %vm9761, %v9245, 0.0
      %v10300 = vadd.f32 %v10298, %v10299
      %v10301 = vsel %vm9761, %v9246, 0.0
      %v10302 = vadd.f32 %v10300, %v10301
      %v10303 = vsel %vm9761, %v9247, 0.0
      %v10304 = vadd.f32 %v10302, %v10303
      %v10305 = vsel %vm9761, %v9248, 0.0
      %v10306 = vadd.f32 %v10304, %v10305
      %v10307 = vsel %vm9761, %v9249, 0.0
      %v10308 = vadd.f32 %v10306, %v10307
      %v10309 = vsel %vm9761, %v9250, 0.0
      %v10310 = vadd.f32 %v10308, %v10309
      %v10311 = vsel %vm9761, %v9251, 0.0
      %v10312 = vadd.f32 %v10310, %v10311
      %v10313 = vsel %vm9761, %v9252, 0.0
      %v10314 = vadd.f32 %v10312, %v10313
      %v10315 = vsel %vm9761, %v9253, 0.0
      %v10316 = vadd.f32 %v10314, %v10315
      %v10317 = vsel %vm9761, %v9254, 0.0
      %v10318 = vadd.f32 %v10316, %v10317
      %v10319 = vsel %vm9761, %v9255, 0.0
      %v10320 = vadd.f32 %v10318, %v10319
      %v10321 = vsel %vm9761, %v9256, 0.0
      %v10322 = vadd.f32 %v10320, %v10321
      %v10323 = vsel %vm9761, %v9257, 0.0
      %v10324 = vadd.f32 %v10322, %v10323
      %v10325 = vsel %vm9761, %v9258, 0.0
      %v10326 = vadd.f32 %v10324, %v10325
      %v10327 = vsel %vm9761, %v9259, 0.0
      %v10328 = vadd.f32 %v10326, %v10327
      %v10329 = vsel %vm9761, %v9260, 0.0
      %v10330 = vadd.f32 %v10328, %v10329
      %v10331 = vsel %vm9761, %v9261, 0.0
      %v10332 = vadd.f32 %v10330, %v10331
      %v10333 = vsel %vm9761, %v9262, 0.0
      %v10334 = vadd.f32 %v10332, %v10333
      %v10335 = vsel %vm9761, %v9263, 0.0
      %v10336 = vadd.f32 %v10334, %v10335
      %v10337 = vsel %vm9761, %v9264, 0.0
      %v10338 = vadd.f32 %v10336, %v10337
      %v10339 = vsel %vm9761, %v9265, 0.0
      %v10340 = vadd.f32 %v10338, %v10339
      %v10341 = vsel %vm9761, %v9266, 0.0
      %v10342 = vadd.f32 %v10340, %v10341
      %v10343 = vsel %vm9761, %v9267, 0.0
      %v10344 = vadd.f32 %v10342, %v10343
      %v10345 = vsel %vm9761, %v9268, 0.0
      %v10346 = vadd.f32 %v10344, %v10345
      %v10347 = vsel %vm9761, %v9269, 0.0
      %v10348 = vadd.f32 %v10346, %v10347
      %v10349 = vsel %vm9761, %v9270, 0.0
      %v10350 = vadd.f32 %v10348, %v10349
      %v10351 = vsel %vm9761, %v9271, 0.0
      %v10352 = vadd.f32 %v10350, %v10351
      %v10353 = vsel %vm9761, %v9272, 0.0
      %v10354 = vadd.f32 %v10352, %v10353
      %v10355 = vsel %vm9761, %v9273, 0.0
      %v10356 = vadd.f32 %v10354, %v10355
      %v10357 = vsel %vm9761, %v9274, 0.0
      %v10358 = vadd.f32 %v10356, %v10357
      %v10359 = vsel %vm9761, %v9275, 0.0
      %v10360 = vadd.f32 %v10358, %v10359
      %v10361 = vsel %vm9761, %v9276, 0.0
      %v10362 = vadd.f32 %v10360, %v10361
      %v10363 = vsel %vm9761, %v9277, 0.0
      %v10364 = vadd.f32 %v10362, %v10363
      %v10365 = vsel %vm9761, %v9278, 0.0
      %v10366 = vadd.f32 %v10364, %v10365
      %v10367 = vsel %vm9761, %v9279, 0.0
      %v10368 = vadd.f32 %v10366, %v10367
      %v10369 = vsel %vm9761, %v9280, 0.0
      %v10370 = vadd.f32 %v10368, %v10369
      %v10371 = vsel %vm9761, %v9281, 0.0
      %v10372 = vadd.f32 %v10370, %v10371
      %v10373 = vsel %vm9761, %v9282, 0.0
      %v10374 = vadd.f32 %v10372, %v10373
      %v10375 = vsel %vm9761, %v9283, 0.0
      %v10376 = vadd.f32 %v10374, %v10375
      %v10377 = vsel %vm9761, %v9284, 0.0
      %v10378 = vadd.f32 %v10376, %v10377
      %v10379 = vsel %vm9761, %v9285, 0.0
      %v10380 = vadd.f32 %v10378, %v10379
      %v10381 = vsel %vm9761, %v9286, 0.0
      %v10382 = vadd.f32 %v10380, %v10381
      %v10383 = vsel %vm9761, %v9287, 0.0
      %v10384 = vadd.f32 %v10382, %v10383
      %v10385 = vsel %vm9761, %v9288, 0.0
      %v10386 = vadd.f32 %v10384, %v10385
      %v10387 = vsel %vm9761, %v9289, 0.0
      %v10388 = vadd.f32 %v10386, %v10387
      %v10389 = vsel %vm9761, %v9290, 0.0
      %v10390 = vadd.f32 %v10388, %v10389
      %v10391 = vsel %vm9761, %v9291, 0.0
      %v10392 = vadd.f32 %v10390, %v10391
      %v10393 = vsel %vm9761, %v9292, 0.0
      %v10394 = vadd.f32 %v10392, %v10393
      %v10395 = vsel %vm9761, %v9293, 0.0
      %v10396 = vadd.f32 %v10394, %v10395
      %v10397 = vsel %vm9761, %v9294, 0.0
      %v10398 = vadd.f32 %v10396, %v10397
      %v10399 = vsel %vm9761, %v9295, 0.0
      %v10400 = vadd.f32 %v10398, %v10399
      %v10401 = vsel %vm9761, %v9296, 0.0
      %v10402 = vadd.f32 %v10400, %v10401
      %v10403 = vsel %vm9761, %v9297, 0.0
      %v10404 = vadd.f32 %v10402, %v10403
      %v10405 = vsel %vm9761, %v9298, 0.0
      %v10406 = vadd.f32 %v10404, %v10405
      %v10407 = vsel %vm9761, %v9299, 0.0
      %v10408 = vadd.f32 %v10406, %v10407
      %v10409 = vsel %vm9761, %v9300, 0.0
      %v10410 = vadd.f32 %v10408, %v10409
      %v10411 = vsel %vm9761, %v9301, 0.0
      %v10412 = vadd.f32 %v10410, %v10411
      %v10413 = vsel %vm9761, %v9302, 0.0
      %v10414 = vadd.f32 %v10412, %v10413
      %v10415 = vsel %vm9761, %v9303, 0.0
      %v10416 = vadd.f32 %v10414, %v10415
      %v10417 = vsel %vm9761, %v9304, 0.0
      %v10418 = vadd.f32 %v10416, %v10417
      %v10419 = vsel %vm9761, %v9305, 0.0
      %v10420 = vadd.f32 %v10418, %v10419
      %v10421 = vsel %vm9761, %v9306, 0.0
      %v10422 = vadd.f32 %v10420, %v10421
      %v10423 = vsel %vm9761, %v9307, 0.0
      %v10424 = vadd.f32 %v10422, %v10423
      %v10425 = vsel %vm9761, %v9308, 0.0
      %v10426 = vadd.f32 %v10424, %v10425
      %v10427 = vsel %vm9761, %v9309, 0.0
      %v10428 = vadd.f32 %v10426, %v10427
      %v10429 = vsel %vm9761, %v9310, 0.0
      %v10430 = vadd.f32 %v10428, %v10429
      %v10431 = vsel %vm9761, %v9311, 0.0
      %v10432 = vadd.f32 %v10430, %v10431
      %v10433 = vsel %vm9761, %v9312, 0.0
      %v10434 = vadd.f32 %v10432, %v10433
      %v10435 = vsel %vm9761, %v9313, 0.0
      %v10436 = vadd.f32 %v10434, %v10435
      %v10437 = vsel %vm9761, %v9314, 0.0
      %v10438 = vadd.f32 %v10436, %v10437
      %v10439 = vsel %vm9761, %v9315, 0.0
      %v10440 = vadd.f32 %v10438, %v10439
      %v10441 = vsel %vm9761, %v9316, 0.0
      %v10442 = vadd.f32 %v10440, %v10441
      %v10443 = vsel %vm9761, %v9317, 0.0
      %v10444 = vadd.f32 %v10442, %v10443
      %v10445 = vsel %vm9761, %v9318, 0.0
      %v10446 = vadd.f32 %v10444, %v10445
      %v10447 = vsel %vm9761, %v9319, 0.0
      %v10448 = vadd.f32 %v10446, %v10447
      %v10449 = vsel %vm9761, %v9320, 0.0
      %v10450 = vadd.f32 %v10448, %v10449
      %v10451 = vsel %vm9761, %v9321, 0.0
      %v10452 = vadd.f32 %v10450, %v10451
      %v10453 = vsel %vm9761, %v9322, 0.0
      %v10454 = vadd.f32 %v10452, %v10453
      %v10455 = vsel %vm9761, %v9323, 0.0
      %v10456 = vadd.f32 %v10454, %v10455
      %v10457 = vsel %vm9761, %v9324, 0.0
      %v10458 = vadd.f32 %v10456, %v10457
      %v10459 = vsel %vm9761, %v9325, 0.0
      %v10460 = vadd.f32 %v10458, %v10459
      %v10461 = vsel %vm9761, %v9326, 0.0
      %v10462 = vadd.f32 %v10460, %v10461
      %v10463 = vsel %vm9761, %v9327, 0.0
      %v10464 = vadd.f32 %v10462, %v10463
      %v10465 = vsel %vm9761, %v9328, 0.0
      %v10466 = vadd.f32 %v10464, %v10465
      %v10467 = vsel %vm9761, %v9329, 0.0
      %v10468 = vadd.f32 %v10466, %v10467
      %v10469 = vsel %vm9761, %v9330, 0.0
      %v10470 = vadd.f32 %v10468, %v10469
      %v10471 = vsel %vm9761, %v9331, 0.0
      %v10472 = vadd.f32 %v10470, %v10471
      %v10473 = vsel %vm9761, %v9332, 0.0
      %v10474 = vadd.f32 %v10472, %v10473
      %v10475 = vsel %vm9761, %v9333, 0.0
      %v10476 = vadd.f32 %v10474, %v10475
      %v10477 = vsel %vm9761, %v9334, 0.0
      %v10478 = vadd.f32 %v10476, %v10477
      %v10479 = vsel %vm9761, %v9335, 0.0
      %v10480 = vadd.f32 %v10478, %v10479
      %v10481 = vsel %vm9761, %v9336, 0.0
      %v10482 = vadd.f32 %v10480, %v10481
      %v10483 = vsel %vm9761, %v9337, 0.0
      %v10484 = vadd.f32 %v10482, %v10483
      %v10485 = vsel %vm9761, %v9338, 0.0
      %v10486 = vadd.f32 %v10484, %v10485
      %v10487 = vsel %vm9761, %v9339, 0.0
      %v10488 = vadd.f32 %v10486, %v10487
      %v10489 = vsel %vm9761, %v9340, 0.0
      %v10490 = vadd.f32 %v10488, %v10489
      %v10491 = vsel %vm9761, %v9341, 0.0
      %v10492 = vadd.f32 %v10490, %v10491
      %v10493 = vsel %vm9761, %v9342, 0.0
      %v10494 = vadd.f32 %v10492, %v10493
      %v10495 = vsel %vm9761, %v9343, 0.0
      %v10496 = vadd.f32 %v10494, %v10495
      %v10497 = vsel %vm9761, %v9344, 0.0
      %v10498 = vadd.f32 %v10496, %v10497
      %v10499 = vsel %vm9761, %v9345, 0.0
      %v10500 = vadd.f32 %v10498, %v10499
      %v10501 = vsel %vm9761, %v9346, 0.0
      %v10502 = vadd.f32 %v10500, %v10501
      %v10503 = vsel %vm9761, %v9347, 0.0
      %v10504 = vadd.f32 %v10502, %v10503
      %v10505 = vsel %vm9761, %v9348, 0.0
      %v10506 = vadd.f32 %v10504, %v10505
      %v10507 = vsel %vm9761, %v9349, 0.0
      %v10508 = vadd.f32 %v10506, %v10507
      %v10509 = vsel %vm9761, %v9350, 0.0
      %v10510 = vadd.f32 %v10508, %v10509
      %v10511 = vsel %vm9761, %v9351, 0.0
      %v10512 = vadd.f32 %v10510, %v10511
      %v10513 = vsel %vm9761, %v9352, 0.0
      %v10514 = vadd.f32 %v10512, %v10513
      %v10515 = vsel %vm9761, %v9353, 0.0
      %v10516 = vadd.f32 %v10514, %v10515
      %v10517 = vsel %vm9761, %v9354, 0.0
      %v10518 = vadd.f32 %v10516, %v10517
      %v10519 = vsel %vm9761, %v9355, 0.0
      %v10520 = vadd.f32 %v10518, %v10519
      %v10521 = vsel %vm9761, %v9356, 0.0
      %v10522 = vadd.f32 %v10520, %v10521
      %v10523 = vsel %vm9761, %v9357, 0.0
      %v10524 = vadd.f32 %v10522, %v10523
      %v10525 = vsel %vm9761, %v9358, 0.0
      %v10526 = vadd.f32 %v10524, %v10525
      %v10527 = vsel %vm9761, %v9359, 0.0
      %v10528 = vadd.f32 %v10526, %v10527
      %v10529 = vsel %vm9761, %v9360, 0.0
      %v10530 = vadd.f32 %v10528, %v10529
      %v10531 = vsel %vm9761, %v9361, 0.0
      %v10532 = vadd.f32 %v10530, %v10531
      %v10533 = vsel %vm9761, %v9362, 0.0
      %v10534 = vadd.f32 %v10532, %v10533
      %v10535 = vsel %vm9761, %v9363, 0.0
      %v10536 = vadd.f32 %v10534, %v10535
      %v10537 = vsel %vm9761, %v9364, 0.0
      %v10538 = vadd.f32 %v10536, %v10537
      %v10539 = vsel %vm9761, %v9365, 0.0
      %v10540 = vadd.f32 %v10538, %v10539
      %v10541 = vsel %vm9761, %v9366, 0.0
      %v10542 = vadd.f32 %v10540, %v10541
      %v10543 = vsel %vm9761, %v9367, 0.0
      %v10544 = vadd.f32 %v10542, %v10543
      %v10545 = vsel %vm9761, %v9368, 0.0
      %v10546 = vadd.f32 %v10544, %v10545
      %v10547 = vsel %vm9761, %v9369, 0.0
      %v10548 = vadd.f32 %v10546, %v10547
      %v10549 = vsel %vm9761, %v9370, 0.0
      %v10550 = vadd.f32 %v10548, %v10549
      %v10551 = vsel %vm9761, %v9371, 0.0
      %v10552 = vadd.f32 %v10550, %v10551
      %v10553 = vsel %vm9761, %v9372, 0.0
      %v10554 = vadd.f32 %v10552, %v10553
      %v10555 = vsel %vm9761, %v9373, 0.0
      %v10556 = vadd.f32 %v10554, %v10555
      %v10557 = vsel %vm9761, %v9374, 0.0
      %v10558 = vadd.f32 %v10556, %v10557
      %v10559 = vsel %vm9761, %v9375, 0.0
      %v10560 = vadd.f32 %v10558, %v10559
      %v10561 = vsel %vm9761, %v9376, 0.0
      %v10562 = vadd.f32 %v10560, %v10561
      %v10563 = vsel %vm9761, %v9377, 0.0
      %v10564 = vadd.f32 %v10562, %v10563
      %v10565 = vsel %vm9761, %v9378, 0.0
      %v10566 = vadd.f32 %v10564, %v10565
      %v10567 = vsel %vm9761, %v9379, 0.0
      %v10568 = vadd.f32 %v10566, %v10567
      %v10569 = vsel %vm9761, %v9380, 0.0
      %v10570 = vadd.f32 %v10568, %v10569
      %v10571 = vsel %vm9761, %v9381, 0.0
      %v10572 = vadd.f32 %v10570, %v10571
      %v10573 = vsel %vm9761, %v9382, 0.0
      %v10574 = vadd.f32 %v10572, %v10573
      %v10575 = vsel %vm9761, %v9383, 0.0
      %v10576 = vadd.f32 %v10574, %v10575
      %v10577 = vsel %vm9761, %v9384, 0.0
      %v10578 = vadd.f32 %v10576, %v10577
      %v10579 = vsel %vm9761, %v9385, 0.0
      %v10580 = vadd.f32 %v10578, %v10579
      %v10581 = vsel %vm9761, %v9386, 0.0
      %v10582 = vadd.f32 %v10580, %v10581
      %v10583 = vsel %vm9761, %v9387, 0.0
      %v10584 = vadd.f32 %v10582, %v10583
      %v10585 = vsel %vm9761, %v9388, 0.0
      %v10586 = vadd.f32 %v10584, %v10585
      %v10587 = vsel %vm9761, %v9389, 0.0
      %v10588 = vadd.f32 %v10586, %v10587
      %v10589 = vsel %vm9761, %v9390, 0.0
      %v10590 = vadd.f32 %v10588, %v10589
      %v10591 = vsel %vm9761, %v9391, 0.0
      %v10592 = vadd.f32 %v10590, %v10591
      %v10593 = vsel %vm9761, %v9392, 0.0
      %v10594 = vadd.f32 %v10592, %v10593
      %v10595 = vsel %vm9761, %v9393, 0.0
      %v10596 = vadd.f32 %v10594, %v10595
      %v10597 = vsel %vm9761, %v9394, 0.0
      %v10598 = vadd.f32 %v10596, %v10597
      %v10599 = vsel %vm9761, %v9395, 0.0
      %v10600 = vadd.f32 %v10598, %v10599
      %v10601 = vsel %vm9761, %v9396, 0.0
      %v10602 = vadd.f32 %v10600, %v10601
      %v10603 = vsel %vm9761, %v9397, 0.0
      %v10604 = vadd.f32 %v10602, %v10603
      %v10605 = vsel %vm9761, %v9398, 0.0
      %v10606 = vadd.f32 %v10604, %v10605
      %v10607 = vsel %vm9761, %v9399, 0.0
      %v10608 = vadd.f32 %v10606, %v10607
      %v10609 = vsel %vm9761, %v9400, 0.0
      %v10610 = vadd.f32 %v10608, %v10609
      %v10611 = vsel %vm9761, %v9401, 0.0
      %v10612 = vadd.f32 %v10610, %v10611
      %v10613 = vsel %vm9761, %v9402, 0.0
      %v10614 = vadd.f32 %v10612, %v10613
      %v10615 = vsel %vm9761, %v9403, 0.0
      %v10616 = vadd.f32 %v10614, %v10615
      %v10617 = vsel %vm9761, %v9404, 0.0
      %v10618 = vadd.f32 %v10616, %v10617
      %v10619 = vsel %vm9761, %v9405, 0.0
      %v10620 = vadd.f32 %v10618, %v10619
      %v10621 = vsel %vm9761, %v9406, 0.0
      %v10622 = vadd.f32 %v10620, %v10621
      %v10623 = vsel %vm9761, %v9407, 0.0
      %v10624 = vadd.f32 %v10622, %v10623
      %v10625 = vsel %vm9761, %v9408, 0.0
      %v10626 = vadd.f32 %v10624, %v10625
      %v10627 = vsel %vm9761, %v9409, 0.0
      %v10628 = vadd.f32 %v10626, %v10627
      %v10629 = vsel %vm9761, %v9410, 0.0
      %v10630 = vadd.f32 %v10628, %v10629
      %v10631 = vsel %vm9761, %v9411, 0.0
      %v10632 = vadd.f32 %v10630, %v10631
      %v10633 = vsel %vm9761, %v9412, 0.0
      %v10634 = vadd.f32 %v10632, %v10633
      %v10635 = vsel %vm9761, %v9413, 0.0
      %v10636 = vadd.f32 %v10634, %v10635
      %v10637 = vsel %vm9761, %v9414, 0.0
      %v10638 = vadd.f32 %v10636, %v10637
      %v10639 = vsel %vm9761, %v9415, 0.0
      %v10640 = vadd.f32 %v10638, %v10639
      %v10641 = vsel %vm9761, %v9416, 0.0
      %v10642 = vadd.f32 %v10640, %v10641
      %v10643 = vsel %vm9761, %v9417, 0.0
      %v10644 = vadd.f32 %v10642, %v10643
      %v10645 = vsel %vm9761, %v9418, 0.0
      %v10646 = vadd.f32 %v10644, %v10645
      %v10647 = vsel %vm9761, %v9419, 0.0
      %v10648 = vadd.f32 %v10646, %v10647
      %v10649 = vsel %vm9761, %v9420, 0.0
      %v10650 = vadd.f32 %v10648, %v10649
      %v10651 = vsel %vm9761, %v9421, 0.0
      %v10652 = vadd.f32 %v10650, %v10651
      %v10653 = vsel %vm9761, %v9422, 0.0
      %v10654 = vadd.f32 %v10652, %v10653
      %v10655 = vsel %vm9761, %v9423, 0.0
      %v10656 = vadd.f32 %v10654, %v10655
      %v10657 = vsel %vm9761, %v9424, 0.0
      %v10658 = vadd.f32 %v10656, %v10657
      %v10659 = vsel %vm9761, %v9425, 0.0
      %v10660 = vadd.f32 %v10658, %v10659
      %v10661 = vsel %vm9761, %v9426, 0.0
      %v10662 = vadd.f32 %v10660, %v10661
      %v10663 = vsel %vm9761, %v9427, 0.0
      %v10664 = vadd.f32 %v10662, %v10663
      %v10665 = vsel %vm9761, %v9428, 0.0
      %v10666 = vadd.f32 %v10664, %v10665
      %v10667 = vsel %vm9761, %v9429, 0.0
      %v10668 = vadd.f32 %v10666, %v10667
      %v10669 = vsel %vm9761, %v9430, 0.0
      %v10670 = vadd.f32 %v10668, %v10669
      %v10671 = vsel %vm9761, %v9431, 0.0
      %v10672 = vadd.f32 %v10670, %v10671
      %v10673 = vsel %vm9761, %v9432, 0.0
      %v10674 = vadd.f32 %v10672, %v10673
      %v10675 = vsel %vm9761, %v9433, 0.0
      %v10676 = vadd.f32 %v10674, %v10675
      %v10677 = vsel %vm9761, %v9434, 0.0
      %v10678 = vadd.f32 %v10676, %v10677
      %v10679 = vsel %vm9761, %v9435, 0.0
      %v10680 = vadd.f32 %v10678, %v10679
      %v10681 = vsel %vm9761, %v9436, 0.0
      %v10682 = vadd.f32 %v10680, %v10681
      %v10683 = vsel %vm9761, %v9437, 0.0
      %v10684 = vadd.f32 %v10682, %v10683
      %v10685 = vsel %vm9761, %v9438, 0.0
      %v10686 = vadd.f32 %v10684, %v10685
      %v10687 = vsel %vm9761, %v9439, 0.0
      %v10688 = vadd.f32 %v10686, %v10687
      %v10689 = vsel %vm9761, %v9440, 0.0
      %v10690 = vadd.f32 %v10688, %v10689
      %v10691 = vsel %vm9761, %v9441, 0.0
      %v10692 = vadd.f32 %v10690, %v10691
      %v10693 = vsel %vm9761, %v9442, 0.0
      %v10694 = vadd.f32 %v10692, %v10693
      %v10695 = vsel %vm9761, %v9443, 0.0
      %v10696 = vadd.f32 %v10694, %v10695
      %v10697 = vsel %vm9761, %v9444, 0.0
      %v10698 = vadd.f32 %v10696, %v10697
      %v10699 = vsel %vm9761, %v9445, 0.0
      %v10700 = vadd.f32 %v10698, %v10699
      %v10701 = vsel %vm9761, %v9446, 0.0
      %v10702 = vadd.f32 %v10700, %v10701
      %v10703 = vsel %vm9761, %v9447, 0.0
      %v10704 = vadd.f32 %v10702, %v10703
      %v10705 = vsel %vm9761, %v9448, 0.0
      %v10706 = vadd.f32 %v10704, %v10705
      %v10707 = vsel %vm9761, %v9449, 0.0
      %v10708 = vadd.f32 %v10706, %v10707
      %v10709 = vsel %vm9761, %v9450, 0.0
      %v10710 = vadd.f32 %v10708, %v10709
      %v10711 = vsel %vm9761, %v9451, 0.0
      %v10712 = vadd.f32 %v10710, %v10711
      %v10713 = vsel %vm9761, %v9452, 0.0
      %v10714 = vadd.f32 %v10712, %v10713
      %v10715 = vsel %vm9761, %v9453, 0.0
      %v10716 = vadd.f32 %v10714, %v10715
      %v10717 = vsel %vm9761, %v9454, 0.0
      %v10718 = vadd.f32 %v10716, %v10717
      %v10719 = vsel %vm9761, %v9455, 0.0
      %v10720 = vadd.f32 %v10718, %v10719
      %v10721 = vsel %vm9761, %v9456, 0.0
      %v10722 = vadd.f32 %v10720, %v10721
      %v10723 = vsel %vm9761, %v9457, 0.0
      %v10724 = vadd.f32 %v10722, %v10723
      %v10725 = vsel %vm9761, %v9458, 0.0
      %v10726 = vadd.f32 %v10724, %v10725
      %v10727 = vsel %vm9761, %v9459, 0.0
      %v10728 = vadd.f32 %v10726, %v10727
      %v10729 = vsel %vm9761, %v9460, 0.0
      %v10730 = vadd.f32 %v10728, %v10729
      %v10731 = vsel %vm9761, %v9461, 0.0
      %v10732 = vadd.f32 %v10730, %v10731
      %v10733 = vsel %vm9761, %v9462, 0.0
      %v10734 = vadd.f32 %v10732, %v10733
      %v10735 = vsel %vm9761, %v9463, 0.0
      %v10736 = vadd.f32 %v10734, %v10735
      %v10737 = vsel %vm9761, %v9464, 0.0
      %v10738 = vadd.f32 %v10736, %v10737
      %v10739 = vsel %vm9761, %v9465, 0.0
      %v10740 = vadd.f32 %v10738, %v10739
      %v10741 = vsel %vm9761, %v9466, 0.0
      %v10742 = vadd.f32 %v10740, %v10741
      %v10743 = vsel %vm9761, %v9467, 0.0
      %v10744 = vadd.f32 %v10742, %v10743
      %v10745 = vsel %vm9761, %v9468, 0.0
      %v10746 = vadd.f32 %v10744, %v10745
      %v10747 = vsel %vm9761, %v9469, 0.0
      %v10748 = vadd.f32 %v10746, %v10747
      %v10749 = vsel %vm9761, %v9470, 0.0
      %v10750 = vadd.f32 %v10748, %v10749
      %v10751 = vsel %vm9761, %v9471, 0.0
      %v10752 = vadd.f32 %v10750, %v10751
      %v10753 = vsel %vm9761, %v9472, 0.0
      %v10754 = vadd.f32 %v10752, %v10753
      %v10755 = vsel %vm9761, %v9473, 0.0
      %v10756 = vadd.f32 %v10754, %v10755
      %v10757 = vsel %vm9761, %v9474, 0.0
      %v10758 = vadd.f32 %v10756, %v10757
      %v10759 = vsel %vm9761, %v9475, 0.0
      %v10760 = vadd.f32 %v10758, %v10759
      %v10761 = vsel %vm9761, %v9476, 0.0
      %v10762 = vadd.f32 %v10760, %v10761
      %v10763 = vsel %vm9761, %v9477, 0.0
      %v10764 = vadd.f32 %v10762, %v10763
      %v10765 = vsel %vm9761, %v9478, 0.0
      %v10766 = vadd.f32 %v10764, %v10765
      %v10767 = vsel %vm9761, %v9479, 0.0
      %v10768 = vadd.f32 %v10766, %v10767
      %v10769 = vsel %vm9761, %v9480, 0.0
      %v10770 = vadd.f32 %v10768, %v10769
      %v10771 = vsel %vm9761, %v9481, 0.0
      %v10772 = vadd.f32 %v10770, %v10771
      %v10773 = vsel %vm9761, %v9482, 0.0
      %v10774 = vadd.f32 %v10772, %v10773
      %v10775 = vsel %vm9761, %v9483, 0.0
      %v10776 = vadd.f32 %v10774, %v10775
      %v10777 = vsel %vm9761, %v9484, 0.0
      %v10778 = vadd.f32 %v10776, %v10777
      %v10779 = vsel %vm9761, %v9485, 0.0
      %v10780 = vadd.f32 %v10778, %v10779
      %v10781 = vsel %vm9761, %v9486, 0.0
      %v10782 = vadd.f32 %v10780, %v10781
      %v10783 = vsel %vm9761, %v9487, 0.0
      %v10784 = vadd.f32 %v10782, %v10783
      %v10785 = vsel %vm9761, %v9488, 0.0
      %v10786 = vadd.f32 %v10784, %v10785
      %v10787 = vsel %vm9761, %v9489, 0.0
      %v10788 = vadd.f32 %v10786, %v10787
      %v10789 = vsel %vm9761, %v9490, 0.0
      %v10790 = vadd.f32 %v10788, %v10789
      %v10791 = vsel %vm9761, %v9491, 0.0
      %v10792 = vadd.f32 %v10790, %v10791
      %v10793 = vsel %vm9761, %v9492, 0.0
      %v10794 = vadd.f32 %v10792, %v10793
      %v10795 = vsel %vm9761, %v9493, 0.0
      %v10796 = vadd.f32 %v10794, %v10795
      %v10797 = vsel %vm9761, %v9494, 0.0
      %v10798 = vadd.f32 %v10796, %v10797
      %v10799 = vsel %vm9761, %v9495, 0.0
      %v10800 = vadd.f32 %v10798, %v10799
      %v10801 = vsel %vm9761, %v9496, 0.0
      %v10802 = vadd.f32 %v10800, %v10801
      %v10803 = vsel %vm9761, %v9497, 0.0
      %v10804 = vadd.f32 %v10802, %v10803
      %v10805 = vsel %vm9761, %v9498, 0.0
      %v10806 = vadd.f32 %v10804, %v10805
      %v10807 = vsel %vm9761, %v9499, 0.0
      %v10808 = vadd.f32 %v10806, %v10807
      %v10809 = vsel %vm9761, %v9500, 0.0
      %v10810 = vadd.f32 %v10808, %v10809
      %v10811 = vsel %vm9761, %v9501, 0.0
      %v10812 = vadd.f32 %v10810, %v10811
      %v10813 = vsel %vm9761, %v9502, 0.0
      %v10814 = vadd.f32 %v10812, %v10813
      %v10815 = vsel %vm9761, %v9503, 0.0
      %v10816 = vadd.f32 %v10814, %v10815
      %v10817 = vsel %vm9761, %v9504, 0.0
      %v10818 = vadd.f32 %v10816, %v10817
      %v10819 = vsel %vm9761, %v9505, 0.0
      %v10820 = vadd.f32 %v10818, %v10819
      %v10821 = vsel %vm9761, %v9506, 0.0
      %v10822 = vadd.f32 %v10820, %v10821
      %v10823 = vsel %vm9761, %v9507, 0.0
      %v10824 = vadd.f32 %v10822, %v10823
      %v10825 = vsel %vm9761, %v9508, 0.0
      %v10826 = vadd.f32 %v10824, %v10825
      %v10827 = vsel %vm9761, %v9509, 0.0
      %v10828 = vadd.f32 %v10826, %v10827
      %v10829 = vsel %vm9761, %v9510, 0.0
      %v10830 = vadd.f32 %v10828, %v10829
      %v10831 = vsel %vm9761, %v9511, 0.0
      %v10832 = vadd.f32 %v10830, %v10831
      %v10833 = vsel %vm9761, %v9512, 0.0
      %v10834 = vadd.f32 %v10832, %v10833
      %v10835 = vsel %vm9761, %v9513, 0.0
      %v10836 = vadd.f32 %v10834, %v10835
      %v10837 = vsel %vm9761, %v9514, 0.0
      %v10838 = vadd.f32 %v10836, %v10837
      %v10839 = vsel %vm9761, %v9515, 0.0
      %v10840 = vadd.f32 %v10838, %v10839
      %v10841 = vsel %vm9761, %v9516, 0.0
      %v10842 = vadd.f32 %v10840, %v10841
      %v10843 = vsel %vm9761, %v9517, 0.0
      %v10844 = vadd.f32 %v10842, %v10843
      %v10845 = vsel %vm9761, %v9518, 0.0
      %v10846 = vadd.f32 %v10844, %v10845
      %v10847 = vsel %vm9761, %v9519, 0.0
      %v10848 = vadd.f32 %v10846, %v10847
      %v10849 = vsel %vm9761, %v9520, 0.0
      %v10850 = vadd.f32 %v10848, %v10849
      %v10851 = vsel %vm9761, %v9521, 0.0
      %v10852 = vadd.f32 %v10850, %v10851
      %v10853 = vsel %vm9761, %v9522, 0.0
      %v10854 = vadd.f32 %v10852, %v10853
      %v10855 = vsel %vm9761, %v9523, 0.0
      %v10856 = vadd.f32 %v10854, %v10855
      %v10857 = vsel %vm9761, %v9524, 0.0
      %v10858 = vadd.f32 %v10856, %v10857
      %v10859 = vsel %vm9761, %v9525, 0.0
      %v10860 = vadd.f32 %v10858, %v10859
      %v10861 = vsel %vm9761, %v9526, 0.0
      %v10862 = vadd.f32 %v10860, %v10861
      %v10863 = vsel %vm9761, %v9527, 0.0
      %v10864 = vadd.f32 %v10862, %v10863
      %v10865 = vsel %vm9761, %v9528, 0.0
      %v10866 = vadd.f32 %v10864, %v10865
      %v10867 = vsel %vm9761, %v9529, 0.0
      %v10868 = vadd.f32 %v10866, %v10867
      %v10869 = vsel %vm9761, %v9530, 0.0
      %v10870 = vadd.f32 %v10868, %v10869
      %v10871 = vsel %vm9761, %v9531, 0.0
      %v10872 = vadd.f32 %v10870, %v10871
      %v10873 = vsel %vm9761, %v9532, 0.0
      %v10874 = vadd.f32 %v10872, %v10873
      %v10875 = vsel %vm9761, %v9533, 0.0
      %v10876 = vadd.f32 %v10874, %v10875
      %v10877 = vsel %vm9761, %v9534, 0.0
      %v10878 = vadd.f32 %v10876, %v10877
      %v10879 = vsel %vm9761, %v9535, 0.0
      %v10880 = vadd.f32 %v10878, %v10879
      %v10881 = vsel %vm9761, %v9536, 0.0
      %v10882 = vadd.f32 %v10880, %v10881
      %v10883 = vsel %vm9761, %v9537, 0.0
      %v10884 = vadd.f32 %v10882, %v10883
      %v10885 = vsel %vm9761, %v9538, 0.0
      %v10886 = vadd.f32 %v10884, %v10885
      %v10887 = vsel %vm9761, %v9539, 0.0
      %v10888 = vadd.f32 %v10886, %v10887
      %v10889 = vsel %vm9761, %v9540, 0.0
      %v10890 = vadd.f32 %v10888, %v10889
      %v10891 = vsel %vm9761, %v9541, 0.0
      %v10892 = vadd.f32 %v10890, %v10891
      %v10893 = vsel %vm9761, %v9542, 0.0
      %v10894 = vadd.f32 %v10892, %v10893
      %v10895 = vsel %vm9761, %v9543, 0.0
      %v10896 = vadd.f32 %v10894, %v10895
      %v10897 = vsel %vm9761, %v9544, 0.0
      %v10898 = vadd.f32 %v10896, %v10897
      %v10899 = vsel %vm9761, %v9545, 0.0
      %v10900 = vadd.f32 %v10898, %v10899
      %v10901 = vsel %vm9761, %v9546, 0.0
      %v10902 = vadd.f32 %v10900, %v10901
      %v10903 = vsel %vm9761, %v9547, 0.0
      %v10904 = vadd.f32 %v10902, %v10903
      %v10905 = vsel %vm9761, %v9548, 0.0
      %v10906 = vadd.f32 %v10904, %v10905
      %v10907 = vsel %vm9761, %v9549, 0.0
      %v10908 = vadd.f32 %v10906, %v10907
      %v10909 = vsel %vm9761, %v9550, 0.0
      %v10910 = vadd.f32 %v10908, %v10909
      %v10911 = vsel %vm9761, %v9551, 0.0
      %v10912 = vadd.f32 %v10910, %v10911
      %v10913 = vsel %vm9761, %v9552, 0.0
      %v10914 = vadd.f32 %v10912, %v10913
      %v10915 = vsel %vm9761, %v9553, 0.0
      %v10916 = vadd.f32 %v10914, %v10915
      %v10917 = vsel %vm9761, %v9554, 0.0
      %v10918 = vadd.f32 %v10916, %v10917
      %v10919 = vsel %vm9761, %v9555, 0.0
      %v10920 = vadd.f32 %v10918, %v10919
      %v10921 = vsel %vm9761, %v9556, 0.0
      %v10922 = vadd.f32 %v10920, %v10921
      %v10923 = vsel %vm9761, %v9557, 0.0
      %v10924 = vadd.f32 %v10922, %v10923
      %v10925 = vsel %vm9761, %v9558, 0.0
      %v10926 = vadd.f32 %v10924, %v10925
      %v10927 = vsel %vm9761, %v9559, 0.0
      %v10928 = vadd.f32 %v10926, %v10927
      %v10929 = vsel %vm9761, %v9560, 0.0
      %v10930 = vadd.f32 %v10928, %v10929
      %v10931 = vsel %vm9761, %v9561, 0.0
      %v10932 = vadd.f32 %v10930, %v10931
      %v10933 = vsel %vm9761, %v9562, 0.0
      %v10934 = vadd.f32 %v10932, %v10933
      %v10935 = vsel %vm9761, %v9563, 0.0
      %v10936 = vadd.f32 %v10934, %v10935
      %v10937 = vsel %vm9761, %v9564, 0.0
      %v10938 = vadd.f32 %v10936, %v10937
      %v10939 = vsel %vm9761, %v9565, 0.0
      %v10940 = vadd.f32 %v10938, %v10939
      %v10941 = vsel %vm9761, %v9566, 0.0
      %v10942 = vadd.f32 %v10940, %v10941
      %v10943 = vsel %vm9761, %v9567, 0.0
      %v10944 = vadd.f32 %v10942, %v10943
      %v10945 = vsel %vm9761, %v9568, 0.0
      %v10946 = vadd.f32 %v10944, %v10945
      %v10947 = vsel %vm9761, %v9569, 0.0
      %v10948 = vadd.f32 %v10946, %v10947
      %v10949 = vsel %vm9761, %v9570, 0.0
      %v10950 = vadd.f32 %v10948, %v10949
      %v10951 = vsel %vm9761, %v9571, 0.0
      %v10952 = vadd.f32 %v10950, %v10951
      %v10953 = vsel %vm9761, %v9572, 0.0
      %v10954 = vadd.f32 %v10952, %v10953
      %v10955 = vsel %vm9761, %v9573, 0.0
      %v10956 = vadd.f32 %v10954, %v10955
      %v10957 = vsel %vm9761, %v9574, 0.0
      %v10958 = vadd.f32 %v10956, %v10957
      %v10959 = vsel %vm9761, %v9575, 0.0
      %v10960 = vadd.f32 %v10958, %v10959
      %v10961 = vsel %vm9761, %v9576, 0.0
      %v10962 = vadd.f32 %v10960, %v10961
      %v10963 = vsel %vm9761, %v9577, 0.0
      %v10964 = vadd.f32 %v10962, %v10963
      %v10965 = vsel %vm9761, %v9578, 0.0
      %v10966 = vadd.f32 %v10964, %v10965
      %v10967 = vsel %vm9761, %v9579, 0.0
      %v10968 = vadd.f32 %v10966, %v10967
      %v10969 = vsel %vm9761, %v9580, 0.0
      %v10970 = vadd.f32 %v10968, %v10969
      %v10971 = vsel %vm9761, %v9581, 0.0
      %v10972 = vadd.f32 %v10970, %v10971
      %v10973 = vsel %vm9761, %v9582, 0.0
      %v10974 = vadd.f32 %v10972, %v10973
      %v10975 = vsel %vm9761, %v9583, 0.0
      %v10976 = vadd.f32 %v10974, %v10975
      %v10977 = vsel %vm9761, %v9584, 0.0
      %v10978 = vadd.f32 %v10976, %v10977
      %v10979 = vsel %vm9761, %v9585, 0.0
      %v10980 = vadd.f32 %v10978, %v10979
      %v10981 = vsel %vm9761, %v9586, 0.0
      %v10982 = vadd.f32 %v10980, %v10981
      %v10983 = vsel %vm9761, %v9587, 0.0
      %v10984 = vadd.f32 %v10982, %v10983
      %v10985 = vsel %vm9761, %v9588, 0.0
      %v10986 = vadd.f32 %v10984, %v10985
      %v10987 = vsel %vm9761, %v9589, 0.0
      %v10988 = vadd.f32 %v10986, %v10987
      %v10989 = vsel %vm9761, %v9590, 0.0
      %v10990 = vadd.f32 %v10988, %v10989
      %v10991 = vsel %vm9761, %v9591, 0.0
      %v10992 = vadd.f32 %v10990, %v10991
      %v10993 = vsel %vm9761, %v9592, 0.0
      %v10994 = vadd.f32 %v10992, %v10993
      %v10995 = vsel %vm9761, %v9593, 0.0
      %v10996 = vadd.f32 %v10994, %v10995
      %v10997 = vsel %vm9761, %v9594, 0.0
      %v10998 = vadd.f32 %v10996, %v10997
      %v10999 = vsel %vm9761, %v9595, 0.0
      %v11000 = vadd.f32 %v10998, %v10999
      %v11001 = vsel %vm9761, %v9596, 0.0
      %v11002 = vadd.f32 %v11000, %v11001
      %v11003 = vsel %vm9761, %v9597, 0.0
      %v11004 = vadd.f32 %v11002, %v11003
      %v11005 = vsel %vm9761, %v9598, 0.0
      %v11006 = vadd.f32 %v11004, %v11005
      %v11007 = vsel %vm9761, %v9599, 0.0
      %v11008 = vadd.f32 %v11006, %v11007
      %v11009 = vsel %vm9761, %v9600, 0.0
      %v11010 = vadd.f32 %v11008, %v11009
      %v11011 = vsel %vm9761, %v9601, 0.0
      %v11012 = vadd.f32 %v11010, %v11011
      %v11013 = vsel %vm9761, %v9602, 0.0
      %v11014 = vadd.f32 %v11012, %v11013
      %v11015 = vsel %vm9761, %v9603, 0.0
      %v11016 = vadd.f32 %v11014, %v11015
      %v11017 = vsel %vm9761, %v9604, 0.0
      %v11018 = vadd.f32 %v11016, %v11017
      %v11019 = vsel %vm9761, %v9605, 0.0
      %v11020 = vadd.f32 %v11018, %v11019
      %v11021 = vsel %vm9761, %v9606, 0.0
      %v11022 = vadd.f32 %v11020, %v11021
      %v11023 = vsel %vm9761, %v9607, 0.0
      %v11024 = vadd.f32 %v11022, %v11023
      %v11025 = vsel %vm9761, %v9608, 0.0
      %v11026 = vadd.f32 %v11024, %v11025
      %v11027 = vsel %vm9761, %v9609, 0.0
      %v11028 = vadd.f32 %v11026, %v11027
      %v11029 = vsel %vm9761, %v9610, 0.0
      %v11030 = vadd.f32 %v11028, %v11029
      %v11031 = vsel %vm9761, %v9611, 0.0
      %v11032 = vadd.f32 %v11030, %v11031
      %v11033 = vsel %vm9761, %v9612, 0.0
      %v11034 = vadd.f32 %v11032, %v11033
      %v11035 = vsel %vm9761, %v9613, 0.0
      %v11036 = vadd.f32 %v11034, %v11035
      %v11037 = vsel %vm9761, %v9614, 0.0
      %v11038 = vadd.f32 %v11036, %v11037
      %v11039 = vsel %vm9761, %v9615, 0.0
      %v11040 = vadd.f32 %v11038, %v11039
      %v11041 = vsel %vm9761, %v9616, 0.0
      %v11042 = vadd.f32 %v11040, %v11041
      %v11043 = vsel %vm9761, %v9617, 0.0
      %v11044 = vadd.f32 %v11042, %v11043
      %v11045 = vsel %vm9761, %v9618, 0.0
      %v11046 = vadd.f32 %v11044, %v11045
      %v11047 = vsel %vm9761, %v9619, 0.0
      %v11048 = vadd.f32 %v11046, %v11047
      %v11049 = vsel %vm9761, %v9620, 0.0
      %v11050 = vadd.f32 %v11048, %v11049
      %v11051 = vsel %vm9761, %v9621, 0.0
      %v11052 = vadd.f32 %v11050, %v11051
      %v11053 = vsel %vm9761, %v9622, 0.0
      %v11054 = vadd.f32 %v11052, %v11053
      %v11055 = vsel %vm9761, %v9623, 0.0
      %v11056 = vadd.f32 %v11054, %v11055
      %v11057 = vsel %vm9761, %v9624, 0.0
      %v11058 = vadd.f32 %v11056, %v11057
      %v11059 = vsel %vm9761, %v9625, 0.0
      %v11060 = vadd.f32 %v11058, %v11059
      %v11061 = vsel %vm9761, %v9626, 0.0
      %v11062 = vadd.f32 %v11060, %v11061
      %v11063 = vsel %vm9761, %v9627, 0.0
      %v11064 = vadd.f32 %v11062, %v11063
      %v11065 = vsel %vm9761, %v9628, 0.0
      %v11066 = vadd.f32 %v11064, %v11065
      %v11067 = vsel %vm9761, %v9629, 0.0
      %v11068 = vadd.f32 %v11066, %v11067
      %v11069 = vsel %vm9761, %v9630, 0.0
      %v11070 = vadd.f32 %v11068, %v11069
      %v11071 = vsel %vm9761, %v9631, 0.0
      %v11072 = vadd.f32 %v11070, %v11071
      %v11073 = vsel %vm9761, %v9632, 0.0
      %v11074 = vadd.f32 %v11072, %v11073
      %v11075 = vsel %vm9761, %v9633, 0.0
      %v11076 = vadd.f32 %v11074, %v11075
      %v11077 = vsel %vm9761, %v9634, 0.0
      %v11078 = vadd.f32 %v11076, %v11077
      %v11079 = vsel %vm9761, %v9635, 0.0
      %v11080 = vadd.f32 %v11078, %v11079
      %v11081 = vsel %vm9761, %v9636, 0.0
      %v11082 = vadd.f32 %v11080, %v11081
      %v11083 = vsel %vm9761, %v9637, 0.0
      %v11084 = vadd.f32 %v11082, %v11083
      %v11085 = vsel %vm9761, %v9638, 0.0
      %v11086 = vadd.f32 %v11084, %v11085
      %v11087 = vsel %vm9761, %v9639, 0.0
      %v11088 = vadd.f32 %v11086, %v11087
      %v11089 = vsel %vm9761, %v9640, 0.0
      %v11090 = vadd.f32 %v11088, %v11089
      %v11091 = vsel %vm9761, %v9641, 0.0
      %v11092 = vadd.f32 %v11090, %v11091
      %v11093 = vsel %vm9761, %v9642, 0.0
      %v11094 = vadd.f32 %v11092, %v11093
      %v11095 = vsel %vm9761, %v9643, 0.0
      %v11096 = vadd.f32 %v11094, %v11095
      %v11097 = vsel %vm9761, %v9644, 0.0
      %v11098 = vadd.f32 %v11096, %v11097
      %v11099 = vsel %vm9761, %v9645, 0.0
      %v11100 = vadd.f32 %v11098, %v11099
      %v11101 = vsel %vm9761, %v9646, 0.0
      %v11102 = vadd.f32 %v11100, %v11101
      %v11103 = vsel %vm9761, %v9647, 0.0
      %v11104 = vadd.f32 %v11102, %v11103
      %v11105 = vsel %vm9761, %v9648, 0.0
      %v11106 = vadd.f32 %v11104, %v11105
      %v11107 = vsel %vm9761, %v9649, 0.0
      %v11108 = vadd.f32 %v11106, %v11107
      %v11109 = vsel %vm9761, %v9650, 0.0
      %v11110 = vadd.f32 %v11108, %v11109
      %v11111 = vsel %vm9761, %v9651, 0.0
      %v11112 = vadd.f32 %v11110, %v11111
      %v11113 = vsel %vm9761, %v9652, 0.0
      %v11114 = vadd.f32 %v11112, %v11113
      %v11115 = vsel %vm9761, %v9653, 0.0
      %v11116 = vadd.f32 %v11114, %v11115
      %v11117 = vsel %vm9761, %v9654, 0.0
      %v11118 = vadd.f32 %v11116, %v11117
      %v11119 = vsel %vm9761, %v9655, 0.0
      %v11120 = vadd.f32 %v11118, %v11119
      %v11121 = vsel %vm9761, %v9656, 0.0
      %v11122 = vadd.f32 %v11120, %v11121
      %v11123 = vsel %vm9761, %v9657, 0.0
      %v11124 = vadd.f32 %v11122, %v11123
      %v11125 = vsel %vm9761, %v9658, 0.0
      %v11126 = vadd.f32 %v11124, %v11125
      %v11127 = vsel %vm9761, %v9659, 0.0
      %v11128 = vadd.f32 %v11126, %v11127
      %v11129 = vsel %vm9761, %v9660, 0.0
      %v11130 = vadd.f32 %v11128, %v11129
      %v11131 = vsel %vm9761, %v9661, 0.0
      %v11132 = vadd.f32 %v11130, %v11131
      %v11133 = vsel %vm9761, %v9662, 0.0
      %v11134 = vadd.f32 %v11132, %v11133
      %v11135 = vsel %vm9761, %v9663, 0.0
      %v11136 = vadd.f32 %v11134, %v11135
      %v11137 = vsel %vm9761, %v9664, 0.0
      %v11138 = vadd.f32 %v11136, %v11137
      %v11139 = vsel %vm9761, %v9665, 0.0
      %v11140 = vadd.f32 %v11138, %v11139
      %v11141 = vsel %vm9761, %v9666, 0.0
      %v11142 = vadd.f32 %v11140, %v11141
      %v11143 = vsel %vm9761, %v9667, 0.0
      %v11144 = vadd.f32 %v11142, %v11143
      %v11145 = vsel %vm9761, %v9668, 0.0
      %v11146 = vadd.f32 %v11144, %v11145
      %v11147 = vsel %vm9761, %v9669, 0.0
      %v11148 = vadd.f32 %v11146, %v11147
      %v11149 = vsel %vm9761, %v9670, 0.0
      %v11150 = vadd.f32 %v11148, %v11149
      %v11151 = vsel %vm9761, %v9671, 0.0
      %v11152 = vadd.f32 %v11150, %v11151
      %v11153 = vsel %vm9761, %v9672, 0.0
      %v11154 = vadd.f32 %v11152, %v11153
      %v11155 = vsel %vm9761, %v9673, 0.0
      %v11156 = vadd.f32 %v11154, %v11155
      %v11157 = vsel %vm9761, %v9674, 0.0
      %v11158 = vadd.f32 %v11156, %v11157
      %v11159 = vsel %vm9761, %v9675, 0.0
      %v11160 = vadd.f32 %v11158, %v11159
      %v11161 = vsel %vm9761, %v9676, 0.0
      %v11162 = vadd.f32 %v11160, %v11161
      %v11163 = vsel %vm9761, %v9677, 0.0
      %v11164 = vadd.f32 %v11162, %v11163
      %v11165 = vsel %vm9761, %v9678, 0.0
      %v11166 = vadd.f32 %v11164, %v11165
      %v11167 = vsel %vm9761, %v9679, 0.0
      %v11168 = vadd.f32 %v11166, %v11167
      %v11169 = vsel %vm9761, %v9680, 0.0
      %v11170 = vadd.f32 %v11168, %v11169
      %v11171 = vsel %vm9761, %v9681, 0.0
      %v11172 = vadd.f32 %v11170, %v11171
      %v11173 = vsel %vm9761, %v9682, 0.0
      %v11174 = vadd.f32 %v11172, %v11173
      %v11175 = vsel %vm9761, %v9683, 0.0
      %v11176 = vadd.f32 %v11174, %v11175
      %v11177 = vsel %vm9761, %v9684, 0.0
      %v11178 = vadd.f32 %v11176, %v11177
      %v11179 = vsel %vm9761, %v9685, 0.0
      %v11180 = vadd.f32 %v11178, %v11179
      %v11181 = vsel %vm9761, %v9686, 0.0
      %v11182 = vadd.f32 %v11180, %v11181
      %v11183 = vsel %vm9761, %v9687, 0.0
      %v11184 = vadd.f32 %v11182, %v11183
      %v11185 = vsel %vm9761, %v9688, 0.0
      %v11186 = vadd.f32 %v11184, %v11185
      %v11187 = vsel %vm9761, %v9689, 0.0
      %v11188 = vadd.f32 %v11186, %v11187
      %v11189 = vsel %vm9761, %v9690, 0.0
      %v11190 = vadd.f32 %v11188, %v11189
      %v11191 = vsel %vm9761, %v9691, 0.0
      %v11192 = vadd.f32 %v11190, %v11191
      %v11193 = vsel %vm9761, %v9692, 0.0
      %v11194 = vadd.f32 %v11192, %v11193
      %v11195 = vsel %vm9761, %v9693, 0.0
      %v11196 = vadd.f32 %v11194, %v11195
      %v11197 = vsel %vm9761, %v9694, 0.0
      %v11198 = vadd.f32 %v11196, %v11197
      %v11199 = vsel %vm9761, %v9695, 0.0
      %v11200 = vadd.f32 %v11198, %v11199
      %v11201 = vsel %vm9761, %v9696, 0.0
      %v11202 = vadd.f32 %v11200, %v11201
      %v11203 = vsel %vm9761, %v9697, 0.0
      %v11204 = vadd.f32 %v11202, %v11203
      %v11205 = vsel %vm9761, %v9698, 0.0
      %v11206 = vadd.f32 %v11204, %v11205
      %v11207 = vsel %vm9761, %v9699, 0.0
      %v11208 = vadd.f32 %v11206, %v11207
      %v11209 = vsel %vm9761, %v9700, 0.0
      %v11210 = vadd.f32 %v11208, %v11209
      %v11211 = vsel %vm9761, %v9701, 0.0
      %v11212 = vadd.f32 %v11210, %v11211
      %v11213 = vsel %vm9761, %v9702, 0.0
      %v11214 = vadd.f32 %v11212, %v11213
      %v11215 = vsel %vm9761, %v9703, 0.0
      %v11216 = vadd.f32 %v11214, %v11215
      %v11217 = vsel %vm9761, %v9704, 0.0
      %v11218 = vadd.f32 %v11216, %v11217
      %v11219 = vsel %vm9761, %v9705, 0.0
      %v11220 = vadd.f32 %v11218, %v11219
      %v11221 = vsel %vm9761, %v9706, 0.0
      %v11222 = vadd.f32 %v11220, %v11221
      %v11223 = vsel %vm9761, %v9707, 0.0
      %v11224 = vadd.f32 %v11222, %v11223
      %v11225 = vsel %vm9761, %v9708, 0.0
      %v11226 = vadd.f32 %v11224, %v11225
      %v11227 = vsel %vm9761, %v9709, 0.0
      %v11228 = vadd.f32 %v11226, %v11227
      %v11229 = vsel %vm9761, %v9710, 0.0
      %v11230 = vadd.f32 %v11228, %v11229
      %v11231 = vsel %vm9761, %v9711, 0.0
      %v11232 = vadd.f32 %v11230, %v11231
      %v11233 = vsel %vm9761, %v9712, 0.0
      %v11234 = vadd.f32 %v11232, %v11233
      %v11235 = vsel %vm9761, %v9713, 0.0
      %v11236 = vadd.f32 %v11234, %v11235
      %v11237 = vsel %vm9761, %v9714, 0.0
      %v11238 = vadd.f32 %v11236, %v11237
      %v11239 = vsel %vm9761, %v9715, 0.0
      %v11240 = vadd.f32 %v11238, %v11239
      %v11241 = vsel %vm9761, %v9716, 0.0
      %v11242 = vadd.f32 %v11240, %v11241
      %v11243 = vsel %vm9761, %v9717, 0.0
      %v11244 = vadd.f32 %v11242, %v11243
      %v11245 = vsel %vm9761, %v9718, 0.0
      %v11246 = vadd.f32 %v11244, %v11245
      %v11247 = vsel %vm9761, %v9719, 0.0
      %v11248 = vadd.f32 %v11246, %v11247
      %v11249 = vsel %vm9761, %v9720, 0.0
      %v11250 = vadd.f32 %v11248, %v11249
      %v11251 = vsel %vm9761, %v9721, 0.0
      %v11252 = vadd.f32 %v11250, %v11251
      %v11253 = vsel %vm9761, %v9722, 0.0
      %v11254 = vadd.f32 %v11252, %v11253
      %v11255 = vsel %vm9761, %v9723, 0.0
      %v11256 = vadd.f32 %v11254, %v11255
      %v11257 = vsel %vm9761, %v9724, 0.0
      %v11258 = vadd.f32 %v11256, %v11257
      %v11259 = vsel %vm9761, %v9725, 0.0
      %v11260 = vadd.f32 %v11258, %v11259
      %v11261 = vsel %vm9761, %v9726, 0.0
      %v11262 = vadd.f32 %v11260, %v11261
      %v11263 = vsel %vm9761, %v9727, 0.0
      %v11264 = vadd.f32 %v11262, %v11263
      %v11265 = vsel %vm9761, %v9728, 0.0
      %v11266 = vadd.f32 %v11264, %v11265
      %v11267 = vsel %vm9761, %v9729, 0.0
      %v11268 = vadd.f32 %v11266, %v11267
      %v11269 = vsel %vm9761, %v9730, 0.0
      %v11270 = vadd.f32 %v11268, %v11269
      %v11271 = vsel %vm9761, %v9731, 0.0
      %v11272 = vadd.f32 %v11270, %v11271
      %v11273 = vsel %vm9761, %v9732, 0.0
      %v11274 = vadd.f32 %v11272, %v11273
      %v11275 = vsel %vm9761, %v9733, 0.0
      %v11276 = vadd.f32 %v11274, %v11275
      %v11277 = vsel %vm9761, %v9734, 0.0
      %v11278 = vadd.f32 %v11276, %v11277
      %v11279 = vsel %vm9761, %v9735, 0.0
      %v11280 = vadd.f32 %v11278, %v11279
      %v11281 = vsel %vm9761, %v9736, 0.0
      %v11282 = vadd.f32 %v11280, %v11281
      %v11283 = vsel %vm9761, %v9737, 0.0
      %v11284 = vadd.f32 %v11282, %v11283
      %v11285 = vsel %vm9761, %v9738, 0.0
      %v11286 = vadd.f32 %v11284, %v11285
      %v11287 = vsel %vm9761, %v9739, 0.0
      %v11288 = vadd.f32 %v11286, %v11287
      %v11289 = vsel %vm9761, %v9740, 0.0
      %v11290 = vadd.f32 %v11288, %v11289
      %v11291 = vsel %vm9761, %v9741, 0.0
      %v11292 = vadd.f32 %v11290, %v11291
      %v11293 = vsel %vm9761, %v9742, 0.0
      %v11294 = vadd.f32 %v11292, %v11293
      %v11295 = vsel %vm9761, %v9743, 0.0
      %v11296 = vadd.f32 %v11294, %v11295
      %v11297 = vsel %vm9761, %v9744, 0.0
      %v11298 = vadd.f32 %v11296, %v11297
      %v11299 = vsel %vm9761, %v9745, 0.0
      %v11300 = vadd.f32 %v11298, %v11299
      %v11301 = vsel %vm9761, %v9746, 0.0
      %v11302 = vadd.f32 %v11300, %v11301
      %v11303 = vsel %vm9761, %v9747, 0.0
      %v11304 = vadd.f32 %v11302, %v11303
      %v11305 = vsel %vm9761, %v9748, 0.0
      %v11306 = vadd.f32 %v11304, %v11305
      %v11307 = vsel %vm9761, %v9749, 0.0
      %v11308 = vadd.f32 %v11306, %v11307
      %v11309 = vsel %vm9761, %v9750, 0.0
      %v11310 = vadd.f32 %v11308, %v11309
      %v11311 = vsel %vm9761, %v9751, 0.0
      %v11312 = vadd.f32 %v11310, %v11311
      %v11313 = vsel %vm9761, %v9752, 0.0
      %v11314 = vadd.f32 %v11312, %v11313
      %v11315 = vsel %vm9761, %v9753, 0.0
      %v11316 = vadd.f32 %v11314, %v11315
      %v11317 = vsel %vm9761, %v9754, 0.0
      %v11318 = vadd.f32 %v11316, %v11317
      %v11319 = vsel %vm9761, %v9755, 0.0
      %v11320 = vadd.f32 %v11318, %v11319
      %v11321 = vsel %vm9761, %v9756, 0.0
      %v11322 = vadd.f32 %v11320, %v11321
      %v11323 = vsel %vm9761, %v9757, 0.0
      %v11324 = vadd.f32 %v11322, %v11323
      %v11325 = vsel %vm9761, %v9758, 0.0
      %v11326 = vadd.f32 %v11324, %v11325
      %v11327 = vsel %vm9761, %v9759, 0.0
      %v11328 = vadd.f32 %v11326, %v11327
      %v11329 = vrot.slane %v11328, 4
      %v11330 = vadd.f32 %v11328, %v11329
      %v11331 = vrot.slane %v11330, 2
      %v11332 = vadd.f32 %v11330, %v11331
      %v11333 = vrot.slane %v11332, 1
      %v11334 = vadd.f32 %v11332, %v11333
      %v11335 = vadd.f32 %v9760, %v11334
      %vm11336 = vcmask 516096
      %11337 = vst.msk [vmem:[#allocation2] sm:$0x1] %vm11336, %v11335
      %p11338 = scmp.eq.s32.totalorder %s22, 1
      // Predicated region
      $region49: #{_forward_impl.1} parent=43 // pred_check
        %p11339 = pneg %p11338
      $region50: #{_forward_impl.1} parent=43 // pred_check_branch
        %11341 = sbr.rel (%p11339) target = $region52
      $region51: #{_forward_impl.1} parent=43 // pred_region
        %v11342 = vld [vmem:[#allocation2] sm:$0x1]
        %v11343 = vmul.f32 %v11342, 7.9719386e-05
        %v11344 = vpack.c.bf16 %v11343, %v11343
        %v11345 = vld [vmem:[%s4] sm:$0xff]
        %v11346 = vld [vmem:[%s4 + $0x8] sm:$0xff]
        %v11347 = vld [vmem:[%s4 + $0x10] sm:$0xff]
        %v11348 = vld [vmem:[%s4 + $0x18] sm:$0xff]
        %v11349 = vld [vmem:[%s4 + $0x20] sm:$0xff]
        %v11350 = vld [vmem:[%s4 + $0x28] sm:$0xff]
        %v11351 = vld [vmem:[%s4 + $0x30] sm:$0xff]
        %v11352 = vld [vmem:[%s4 + $0x38] sm:$0xff]
        %v11353 = vld [vmem:[%s4 + $0x40] sm:$0xff]
        %v11354 = vld [vmem:[%s4 + $0x48] sm:$0xff]
        %v11355 = vld [vmem:[%s4 + $0x50] sm:$0xff]
        %v11356 = vld [vmem:[%s4 + $0x58] sm:$0xff]
        %v11357 = vld [vmem:[%s4 + $0x60] sm:$0xff]
        %v11358 = vld [vmem:[%s4 + $0x68] sm:$0xff]
        %v11359 = vld [vmem:[%s4 + $0x70] sm:$0xff]
        %v11360 = vld [vmem:[%s4 + $0x78] sm:$0xff]
        %v11361 = vld [vmem:[%s5] sm:$0xf]
        %v11378 = vunpack.c.l.b16 %v11345
        %v11379 = vunpack.c.h.b16 %v11345
        %v11380 = vunpack.c.l.b16 %v11346
        %v11381 = vunpack.c.h.b16 %v11346
        %v11382 = vunpack.c.l.b16 %v11347
        %v11383 = vunpack.c.h.b16 %v11347
        %v11384 = vunpack.c.l.b16 %v11348
        %v11385 = vunpack.c.h.b16 %v11348
        %v11386 = vunpack.c.l.b16 %v11349
        %v11387 = vunpack.c.h.b16 %v11349
        %v11388 = vunpack.c.l.b16 %v11350
        %v11389 = vunpack.c.h.b16 %v11350
        %v11390 = vunpack.c.l.b16 %v11351
        %v11391 = vunpack.c.h.b16 %v11351
        %v11392 = vunpack.c.l.b16 %v11352
        %v11393 = vunpack.c.h.b16 %v11352
        %v11394 = vunpack.c.l.b16 %v11353
        %v11395 = vunpack.c.h.b16 %v11353
        %v11396 = vunpack.c.l.b16 %v11354
        %v11397 = vunpack.c.h.b16 %v11354
        %v11398 = vunpack.c.l.b16 %v11355
        %v11399 = vunpack.c.h.b16 %v11355
        %v11400 = vunpack.c.l.b16 %v11356
        %v11401 = vunpack.c.h.b16 %v11356
        %v11402 = vunpack.c.l.b16 %v11357
        %v11403 = vunpack.c.h.b16 %v11357
        %v11404 = vunpack.c.l.b16 %v11358
        %v11405 = vunpack.c.h.b16 %v11358
        %v11406 = vunpack.c.l.b16 %v11359
        %v11407 = vunpack.c.h.b16 %v11359
        %v11408 = vunpack.c.l.b16 %v11360
        %v11409 = vunpack.c.h.b16 %v11360
        %v11410 = vpack.c.b16 %v11382, %v11378
        %v11411 = vpack.c.b16 %v11383, %v11379
        %v11412 = vpack.c.b16 %v11384, %v11380
        %v11413 = vpack.c.b16 %v11385, %v11381
        %v11414 = vpack.c.b16 %v11390, %v11386
        %v11415 = vpack.c.b16 %v11391, %v11387
        %v11416 = vpack.c.b16 %v11392, %v11388
        %v11417 = vpack.c.b16 %v11393, %v11389
        %v11418 = vpack.c.b16 %v11398, %v11394
        %v11419 = vpack.c.b16 %v11399, %v11395
        %v11420 = vpack.c.b16 %v11400, %v11396
        %v11421 = vpack.c.b16 %v11401, %v11397
        %v11422 = vpack.c.b16 %v11406, %v11402
        %v11423 = vpack.c.b16 %v11407, %v11403
        %v11424 = vpack.c.b16 %v11408, %v11404
        %v11425 = vpack.c.b16 %v11409, %v11405
        %v11443 = vlaneseq
        %v11444 = vshrl.u32 %v11443, 7
        %v11445 = vsub.s32 0, %v11444
        %v11446 = vrot.slane %v11361, %v11445
        %v11447 = vlaneseq
        %v11448 = vshrl.u32 %v11447, 7
        %v11449 = vsub.s32 1, %v11448
        %v11450 = vrot.slane %v11361, %v11449
        %v11451 = vlaneseq
        %v11452 = vshrl.u32 %v11451, 7
        %v11453 = vsub.s32 2, %v11452
        %v11454 = vrot.slane %v11361, %v11453
        %v11455 = vlaneseq
        %v11456 = vshrl.u32 %v11455, 7
        %v11457 = vsub.s32 3, %v11456
        %v11458 = vrot.slane %v11361, %v11457
        %v11464 = vsel %vm9761, %v11344, 0
        %11466 = vmatprep.subr.bf16.mxu0 %v11411
        %11467 = vmatpush1.bf16.msra.mxu0 %v11410
        %11468 = vmatprep.subr.bf16.mxu0 %v11415
        %11469 = vmatpush1.bf16.msra.mxu0 %v11414
        %11470 = vmatprep.subr.bf16.mxu0 %v11419
        %11471 = vmatpush1.bf16.msra.mxu0 %v11418
        %11472 = vmatprep.subr.bf16.mxu0 %v11423
        %11473 = vmatpush1.bf16.msra.mxu0 %v11422
        %11474 = vmatprep.subr.bf16.mxu0 0
        %11475 = vmatpush1.bf16.msra.mxu0 0
        %11476 = vmatprep.subr.bf16.mxu0 0
        %11477 = vmatpush1.bf16.msra.mxu0 0
        %11478 = vmatprep.subr.bf16.mxu0 0
        %11479 = vmatpush1.bf16.msra.mxu0 0
        %11480 = vmatprep.subr.bf16.mxu0 0
        %11481 = vmatpush1.bf16.msra.mxu0 0
        %11482 = vmatprep.subr.bf16.mxu0 0
        %11483 = vmatpush1.bf16.msra.mxu0 0
        %11484 = vmatprep.subr.bf16.mxu0 0
        %11485 = vmatpush1.bf16.msra.mxu0 0
        %11486 = vmatprep.subr.bf16.mxu0 0
        %11487 = vmatpush1.bf16.msra.mxu0 0
        %11488 = vmatprep.subr.bf16.mxu0 0
        %11489 = vmatpush1.bf16.msra.mxu0 0
        %11490 = vmatprep.subr.bf16.mxu0 0
        %11491 = vmatpush1.bf16.msra.mxu0 0
        %11492 = vmatprep.subr.bf16.mxu0 0
        %11493 = vmatpush1.bf16.msra.mxu0 0
        %11494 = vmatprep.subr.bf16.mxu0 0
        %11495 = vmatpush1.bf16.msra.mxu0 0
        %11496 = vmatprep.subr.bf16.mxu0 0
        %11497 = vmatpush1.bf16.msra.mxu0 0
        %11498 = vmatprep.mubr.bf16.mxu0 0
        %11499 = vmatmul.mubr.bf16.gmra.mrb[0].mxu0 %v11464
        %v11500 = vpop.f32.mrb[0].mxu0
        %v11501 = vadd.f32 %v11446, %v11500
        %v11502 = vpop.f32.mrb[0].mxu0
        %v11503 = vadd.f32 %v11450, %v11502
        %v11504 = vpop.f32.mrb[0].mxu0
        %v11505 = vpop.f32.mrb[0].mxu0
        %11506 = vdwg.mxu0
        %11507 = vmatprep.subr.bf16.mxu0 %v11413
        %11508 = vmatpush1.bf16.msra.mxu0 %v11412
        %11509 = vmatprep.subr.bf16.mxu0 %v11417
        %11510 = vmatpush1.bf16.msra.mxu0 %v11416
        %11511 = vmatprep.subr.bf16.mxu0 %v11421
        %11512 = vmatpush1.bf16.msra.mxu0 %v11420
        %11513 = vmatprep.subr.bf16.mxu0 %v11425
        %11514 = vmatpush1.bf16.msra.mxu0 %v11424
        %11515 = vmatprep.subr.bf16.mxu0 0
        %11516 = vmatpush1.bf16.msra.mxu0 0
        %11517 = vmatprep.subr.bf16.mxu0 0
        %11518 = vmatpush1.bf16.msra.mxu0 0
        %11519 = vmatprep.subr.bf16.mxu0 0
        %11520 = vmatpush1.bf16.msra.mxu0 0
        %11521 = vmatprep.subr.bf16.mxu0 0
        %11522 = vmatpush1.bf16.msra.mxu0 0
        %11523 = vmatprep.subr.bf16.mxu0 0
        %11524 = vmatpush1.bf16.msra.mxu0 0
        %11525 = vmatprep.subr.bf16.mxu0 0
        %11526 = vmatpush1.bf16.msra.mxu0 0
        %11527 = vmatprep.subr.bf16.mxu0 0
        %11528 = vmatpush1.bf16.msra.mxu0 0
        %11529 = vmatprep.subr.bf16.mxu0 0
        %11530 = vmatpush1.bf16.msra.mxu0 0
        %11531 = vmatprep.subr.bf16.mxu0 0
        %11532 = vmatpush1.bf16.msra.mxu0 0
        %11533 = vmatprep.subr.bf16.mxu0 0
        %11534 = vmatpush1.bf16.msra.mxu0 0
        %11535 = vmatprep.subr.bf16.mxu0 0
        %11536 = vmatpush1.bf16.msra.mxu0 0
        %11537 = vmatprep.subr.bf16.mxu0 0
        %11538 = vmatpush1.bf16.msra.mxu0 0
        %11539 = vmatprep.mubr.bf16.mxu0 0
        %11540 = vmatmul.mubr.bf16.gmra.mrb[0].mxu0 %v11464
        %v11541 = vpop.f32.mrb[0].mxu0
        %v11542 = vadd.f32 %v11454, %v11541
        %v11543 = vpop.f32.mrb[0].mxu0
        %v11544 = vadd.f32 %v11458, %v11543
        %v11545 = vpop.f32.mrb[0].mxu0
        %v11546 = vpop.f32.mrb[0].mxu0
        %11547 = vdwg.mxu0
        %v11552 = vcombine.low %v11501, %v11503
        %v11553 = vcombine.low %v11542, %v11544
        %v11555 = vunpack.c.l.s4 1966171168
        %v11556 = vunpack.c.0.s8 %v11555
        %v11557 = vlaneseq
        %v11558 = vshrl.u32 %v11557, 7
        %v11559 = vsub.s32 %v11556, %v11558
        %v11560 = vrot.slane %v11552, %v11559
        %v11562 = vunpack.c.l.s4 1966171168
        %v11563 = vunpack.c.0.s8 %v11562
        %v11564 = vlaneseq
        %v11565 = vshrl.u32 %v11564, 7
        %v11566 = vsub.s32 %v11563, %v11565
        %v11567 = vrot.slane %v11553, %v11566
        %v11568 = vcombine.low %v11560, %v11567
        %v11570 = vunpack.c.l.s4 1966171168
        %v11571 = vunpack.c.0.s8 %v11570
        %v11572 = vlaneseq
        %v11573 = vshrl.u32 %v11572, 7
        %v11574 = vsub.s32 %v11571, %v11573
        %v11575 = vrot.slane %v11568, %v11574
        %v11577 = vlaneseq
        %vm11578 = vcmp.ge.s32.totalorder %v11577, 0
        %vm11579 = vcmp.lt.s32.totalorder %v11577, 512
        %vm11580 = vmand %vm11578, %vm11579
        %11581 = vst.msk [vmem:[%s280] sm:$0xf] %vm11580, %v11575
      $region52: #{_forward_impl.1} parent=43 // pred_fallthru
        _
      %p11582 = scmp.lt.s32.totalorder %s21, 1
      %s11583 = scalar_select %p11582, %s21, 1
      %s11584 = smul.addr %s11583, 4
      %s11585 = scalar_lea.vmem %s6, %s11584
      // Predicated region
      $region53: #{_forward_impl.1} parent=43 // pred_check
        %p11586 = pneg %p180
      $region54: #{_forward_impl.1} parent=43 // pred_check_branch
        %11588 = sbr.rel (%p11586) target = $region56
      $region55: #{_forward_impl.1} parent=43 // pred_region
        _
      $region56: #{_forward_impl.1} parent=43 // pred_fallthru
        _
    $region44: #{_forward_impl.1} parent=5 // pred_fallthru
      _
    %p11589 = scmp.le.s32.totalorder 2, %s12
    // Predicated region
    $region57: #{_forward_impl.1} parent=5 // pred_check
      %p11590 = pneg %p11589
    $region58: #{_forward_impl.1} parent=5 // pred_check_branch
      %11592 = sbr.rel (%p11590) target = $region60
    $region59: #{_forward_impl.1} parent=5 // pred_region
      %s11593 = ssub.s32 %s12, 2
      // Predicated region
      $region61: #{_forward_impl.1} parent=59 // pred_check
        %p11594 = pneg %p186
      $region62: #{_forward_impl.1} parent=59 // pred_check_branch
        %11596 = sbr.rel (%p11594) target = $region64
      $region63: #{_forward_impl.1} parent=59 // pred_region
        %p11597 = scmp.lt.s32.totalorder %s23, 1
        %s11598 = scalar_select %p11597, %s23, 1
        %s11599 = smul.addr %s11598, 4
        %s11600 = scalar_lea.vmem %s6, %s11599
      $region64: #{_forward_impl.1} parent=59 // pred_fallthru
        _
    $region60: #{_forward_impl.1} parent=5 // pred_fallthru
      _
  $region6: #{_forward_impl.1} parent=0 // loop_footer
    %s16 = sadd.s32 1, %s12
  $region7: #{_forward_impl.1} parent=0 // loop_footer_branch
    %11 = sbr.rel target = $region3
  $region8: #{_forward_impl.1} parent=0 // loop_exit
    _

</llo_original>
